<compile_context>
chip_gen: v5e
topology: v5e:2x2
jax: 0.10.0
libtpu: 0.0.40
codegen_flags: <defaults>
</compile_context>

<pallas_src>
import functools

import jax
import jax.numpy as jnp
from jax.experimental import pallas as pl
from jax.experimental.pallas import tpu as pltpu


def _round_up(x, m):
    return (x + m - 1) // m * m


# ----------------------------------------------------------------------------
# Hardware / feature probes (cached, cheap, safe fallbacks).
# ----------------------------------------------------------------------------
@functools.lru_cache(maxsize=None)
def _vmem_limit_bytes():
    """Generation-aware VMEM limit handed to Mosaic."""
    try:
        cap = int(pltpu.get_tpu_info().vmem_capacity_bytes)
    except Exception:
        cap = 64 << 20                         # conservative (v7x-sized) default
    if cap >= (96 << 20):                      # v5e / v6e: 128 MiB physical
        return cap - (16 << 20)                # ~112 MiB
    return max(int(cap * 0.75), 16 << 20)      # v7x: 64 MiB physical -> 48 MiB


@functools.lru_cache(maxsize=None)
def _buffered_ok():
    """Probe whether BlockSpec(pipeline_mode=pl.Buffered(1)) lowers here."""
    try:
        def _probe(x_ref, o_ref):
            o_ref[...] = x_ref[...] + 1.0

        x = jnp.zeros((8, 128), jnp.float32)
        y = pl.pallas_call(
            _probe,
            out_shape=jax.ShapeDtypeStruct((8, 128), jnp.float32),
            grid=(1,),
            in_specs=[pl.BlockSpec((8, 128), lambda i: (0, 0),
                                   pipeline_mode=pl.Buffered(1))],
            out_specs=pl.BlockSpec((8, 128), lambda i: (0, 0)),
        )(x)
        jax.block_until_ready(y)
        return True
    except Exception:
        return False


def _make_spec(shape, index_map, single_buffer):
    if single_buffer and _buffered_ok():
        return pl.BlockSpec(shape, index_map, pipeline_mode=pl.Buffered(1))
    return pl.BlockSpec(shape, index_map)


# ----------------------------------------------------------------------------
# Pallas kernel: one output-row chunk of a stride-1 kh x kw conv with all taps
# folded into the MXU K dimension.  bf16 operands, f32 accumulation, fused bias
# + LeakyReLU epilogue, lane-dense (128-padded) store.
# ----------------------------------------------------------------------------
def _conv_patch_kernel(x_ref, w_ref, b_ref, o_ref, *, kh, kw, ch, ow, alpha,
                       apply_act):
    """x_ref: (Hs, Ws, Ceff)      bf16 resident (padded / s2d) image, one batch elem
       w_ref: (kh*kw*Ceff, Cp)    bf16 flattened tap weights (rows tap-major)
       b_ref: (1, Cp)             f32 bias (zeros in padded channels)
       o_ref: (ch, ow, Cp)        one chunk of output rows (Cp % 128 == 0)
    """
    ceff = x_ref.shape[-1]
    cp = o_ref.shape[-1]
    r0 = pl.multiple_of(pl.program_id(1) * ch, ch)

    # Build the im2col patch for this chunk once in VMEM: K = kh*kw*ceff.
    taps = []
    for i in range(kh):                          # static tap loops
        for j in range(kw):
            taps.append(x_ref[pl.ds(r0 + i, ch), pl.ds(j, ow), :])
    patch = jnp.concatenate(taps, axis=-1).reshape(ch * ow, kh * kw * ceff)

    acc = jnp.dot(patch, w_ref[...], preferred_element_type=jnp.float32)
    acc = acc + b_ref[...]                       # (1, Cp) broadcast, f32
    if apply_act:
        acc = jnp.where(acc >= 0, acc, alpha * acc)      # LeakyReLU in f32
    o_ref[...] = acc.reshape(ch, ow, cp).astype(o_ref.dtype)


# ----------------------------------------------------------------------------
# JAX glue: spatial pad, space-to-depth(2), flattened tap-weight construction.
# ----------------------------------------------------------------------------
def _space_to_depth2(x):
    b, h, w, c = x.shape
    x = x.reshape(b, h // 2, 2, w // 2, 2, c)
    x = x.transpose(0, 1, 3, 2, 4, 5)
    return x.reshape(b, h // 2, w // 2, 4 * c)    # channel index = (dy*2+dx)*C + c


def _flat_taps_stride2(w, cout_pad):
    """4x4/stride-2 OIHW conv -> (16*Cin, Cout_pad) weight of the equivalent
    2x2/stride-1 conv over the space-to-depth(2) input (rows tap-major)."""
    cout, cin = w.shape[0], w.shape[1]
    wp = jnp.zeros((cout_pad, cin, 4, 4), w.dtype).at[:cout].set(w)
    taps = []
    for di in range(2):
        for dj in range(2):
            sub = wp[:, :, 2 * di:2 * di + 2, 2 * dj:2 * dj + 2]   # (Cp, Ci, 2, 2)
            taps.append(sub.transpose(2, 3, 1, 0).reshape(4 * cin, cout_pad))
    return jnp.concatenate(taps, axis=0)          # (4 * 4*cin, cout_pad)


def _flat_taps_stride1(w, cout_pad):
    cout, cin, kh, kw = w.shape
    wp = jnp.zeros((cout_pad, cin, kh, kw), w.dtype).at[:cout].set(w)
    taps = [wp[:, :, i, j].T for i in range(kh) for j in range(kw)]   # (cin, Cp)
    return jnp.concatenate(taps, axis=0)          # (kh*kw*cin, cout_pad)


def _choose_chunk(oh, ow, k, cpad, out_itemsize, fixed_bytes, budget_bytes):
    """Largest divisor of OH whose real per-chunk residency fits the budget."""
    best = 1
    for cand in range(1, oh + 1):
        if oh % cand:
            continue
        patch_b = 2 * cand * ow * k * 2               # bf16 patch (+ relayout copy)
        res_b = 2 * cand * ow * cpad * 4              # f32 matmul result (+ epilogue)
        out_b = 2 * cand * ow * cpad * out_itemsize   # double-buffered output block
        if fixed_bytes + patch_b + res_b + out_b <= budget_bytes:
            best = cand
    return best


def conv_layer(h, layer, *, alpha=0.2):
    """h: (B, H, W, Cin) NHWC, REAL channels only.
       Returns (B, OH, OW, Cout) NHWC, REAL channels only."""
    w_mat = layer["w_mat"]            # (K, cout_pad) bf16, precomputed
    b_pad = layer["b_pad"]            # (1, cout_pad) f32, precomputed
    stride, pad = layer["stride"], layer["pad"]
    kh, kw = layer["kh"], layer["kw"]
    cout, cout_pad = layer["cout"], layer["cout_pad"]
    apply_act = layer["apply_act"]
    out_dtype = jnp.bfloat16 if apply_act else jnp.float32

    B = h.shape[0]

    # TODO(synk): fuse the pad + space-to-depth + bf16 cast (and the trailing
    # channel slice) into the producing kernel's output store to remove one HBM
    # round trip per layer; today they are one fused XLA relayout between kernels.
    if pad:
        h = jnp.pad(h, ((0, 0), (pad, pad), (pad, pad), (0, 0)))
    xe = _space_to_depth2(h) if stride == 2 else h
    xe = xe.astype(jnp.bfloat16)

    Hs, Ws, ceff = xe.shape[1], xe.shape[2], xe.shape[3]
    OH, OW = Hs - kh + 1, Ws - kw + 1
    K = kh * kw * ceff
    assert w_mat.shape == (K, cout_pad), (w_mat.shape, K, cout_pad)

    # Generation-aware residency budget (image + weights + per-chunk working set).
    buffered = _buffered_ok()
    img_bytes = Hs * Ws * ceff * 2
    w_bytes = K * cout_pad * 2
    img_bufs = 1 if (buffered and img_bytes > (1 << 20)) else 2
    w_bufs = 1 if buffered else 2
    fixed = img_bufs * img_bytes + w_bufs * w_bytes + 2 * cout_pad * 4
    budget = int(_vmem_limit_bytes() * 0.85)
    out_itemsize = jnp.dtype(out_dtype).itemsize
    ch = _choose_chunk(OH, OW, K, cout_pad, out_itemsize, fixed, budget)

    flops = 2 * B * OH * OW * K * cout_pad
    bytes_accessed = (xe.size * 2 + w_mat.size * 2 + b_pad.size * 4
                      + B * OH * OW * cout_pad * out_itemsize)

    out = pl.pallas_call(
        functools.partial(_conv_patch_kernel, kh=kh, kw=kw, ch=ch, ow=OW,
                          alpha=alpha, apply_act=apply_act),
        out_shape=jax.ShapeDtypeStruct((B, OH, OW, cout_pad), out_dtype),
        grid=(B, OH // ch),
        in_specs=[
            # Full (padded / s2d) image of batch bb, resident across the chunk axis.
            _make_spec((None, Hs, Ws, ceff), lambda bb, cc: (bb, 0, 0, 0),
                       single_buffer=(img_bufs == 1)),
            # Grid-invariant flattened tap weights.
            _make_spec((K, cout_pad), lambda bb, cc: (0, 0),
                       single_buffer=(w_bufs == 1)),
            pl.BlockSpec((1, cout_pad), lambda bb, cc: (0, 0)),
        ],
        out_specs=pl.BlockSpec((None, ch, OW, cout_pad),
                               lambda bb, cc: (bb, cc, 0, 0)),
        compiler_params=pltpu.CompilerParams(
            dimension_semantics=("parallel", "parallel"),
            vmem_limit_bytes=_vmem_limit_bytes(),
        ),
        cost_estimate=pl.CostEstimate(flops=flops, transcendentals=0,
                                      bytes_accessed=bytes_accessed),
    )(xe, w_mat, b_pad)

    # Drop the 128-lane padding channels; fuses into the next layer's relayout.
    return out[..., :cout]


# ----------------------------------------------------------------------------
# SpectralNorm weight preprocessing (W_bar = W / sigma via power iteration).
# ----------------------------------------------------------------------------
def spectral_norm_weight(w, key, n_iters=1, eps=1e-12):
    # TODO(synk): PyTorch's SpectralNorm persists the power-iteration vector `u`
    # across forward calls; here it is regenerated from a fixed key as pure-JAX
    # parameter preprocessing (not a kernel).
    cout = w.shape[0]
    w2d = w.reshape(cout, -1)
    u = jax.random.normal(key, (cout,), dtype=jnp.float32)
    u = u / (jnp.linalg.norm(u) + eps)
    v = None
    for _ in range(n_iters):
        v = w2d.T @ u
        v = v / (jnp.linalg.norm(v) + eps)
        u = w2d @ v
        u = u / (jnp.linalg.norm(u) + eps)
    sigma = u @ (w2d @ v)
    return w / sigma


def make_params(nf, key):
    keys = jax.random.split(key, 10)
    dims_in = [2, nf, 2 * nf, 4 * nf]
    dims_out = [nf, 2 * nf, 4 * nf, 8 * nf]
    params = []
    for li in range(4):
        w = 0.05 * jax.random.normal(keys[2 * li],
                                     (dims_out[li], dims_in[li], 4, 4),
                                     dtype=jnp.float32)
        b = 0.01 * jax.random.normal(keys[2 * li + 1], (dims_out[li],),
                                     dtype=jnp.float32)
        w = spectral_norm_weight(w, jax.random.fold_in(keys[2 * li], 7))
        params.append((w, b))
    # l5: plain Conv2d(8nf, 1, 4, 1, 0) -- no spectral norm, no activation.
    w5 = 0.05 * jax.random.normal(keys[8], (1, 8 * nf, 4, 4), dtype=jnp.float32)
    b5 = 0.01 * jax.random.normal(keys[9], (1,), dtype=jnp.float32)
    params.append((w5, b5))
    return params


def prepare_layers(params):
    """One-time conversion of (OIHW weight, bias) params into kernel-ready form:
    flattened bf16 tap matrices, 128-padded f32 biases, static layer config."""
    layers = []
    cin = 2
    n = len(params)
    for li, (w, b) in enumerate(params):
        last = li == n - 1
        cout = int(w.shape[0])
        assert int(w.shape[1]) == cin, (w.shape, cin)
        cout_pad = _round_up(cout, 128)
        if last:
            stride, pad, kh, kw = 1, 0, int(w.shape[2]), int(w.shape[3])
            w_mat = _flat_taps_stride1(w, cout_pad)
        else:
            stride, pad, kh, kw = 2, 1, 2, 2       # 4x4/s2 conv as 2x2/s1 over s2d
            w_mat = _flat_taps_stride2(w, cout_pad)
        b_pad = jnp.zeros((1, cout_pad), jnp.float32).at[0, :cout].set(
            b.astype(jnp.float32))
        layers.append(dict(w_mat=w_mat.astype(jnp.bfloat16), b_pad=b_pad,
                           stride=stride, pad=pad, kh=kh, kw=kw,
                           cout=cout, cout_pad=cout_pad, apply_act=not last))
        cin = cout
    return layers


# ----------------------------------------------------------------------------
# Discriminator forward (Pallas path)
# ----------------------------------------------------------------------------
def discriminator_forward(layers, x, gantry_angle):
    # x: (B, 1, H, W) NCHW, gantry_angle: (B,)
    B, _, H, W = x.shape
    g = jnp.broadcast_to(gantry_angle.reshape(B, 1, 1, 1).astype(x.dtype),
                         (B, 1, H, W))
    h = jnp.concatenate([x, g], axis=1)           # (B, 2, H, W)
    h = h.transpose(0, 2, 3, 1)                   # NHWC once, at the model boundary
    for layer in layers:
        h = conv_layer(h, layer)
    return jnp.squeeze(h[..., 0])


# ----------------------------------------------------------------------------
# Pure-JAX references (lax.conv) for correctness checks
# ----------------------------------------------------------------------------
def _conv_nchw_ref(h, w, b, stride, pad):
    y = jax.lax.conv_general_dilated(
        h, w, window_strides=(stride, stride),
        padding=[(pad, pad), (pad, pad)],
        dimension_numbers=("NCHW", "OIHW", "NCHW"))
    return y + b.reshape(1, -1, 1, 1)


def discriminator_reference(params, x, gantry_angle, *,
                            match_kernel_precision=False):
    B, _, H, W = x.shape
    g = jnp.broadcast_to(gantry_angle.reshape(B, 1, 1, 1), (B, 1, H, W))
    h = jnp.concatenate([x, g], axis=1)

    def q(a):  # mimic the kernel's bf16 storage of weights/activations
        if match_kernel_precision:
            return a.astype(jnp.bfloat16).astype(jnp.float32)
        return a

    h = q(h)
    for (w, b) in params[:4]:
        h = _conv_nchw_ref(h, q(w), b, 2, 1)
        h = jnp.where(h >= 0, h, 0.2 * h)
        h = q(h)
    w5, b5 = params[4]
    h = _conv_nchw_ref(h, q(w5), b5, 1, 0)
    return jnp.squeeze(h)


if __name__ == "__main__":
    key = jax.random.PRNGKey(0)
    k_x, k_g, k_p = jax.random.split(key, 3)

    B, H, W, nf = 2, 64, 64, 8            # small-shape version of (B, 1, 256, 256)
    x = jax.random.normal(k_x, (B, 1, H, W), dtype=jnp.float32)
    gantry_angle = jax.random.uniform(k_g, (B,), dtype=jnp.float32)

    params = make_params(nf, k_p)
    layers = prepare_layers(params)       # one-time weight/bias preprocessing

    # Warm the cached hardware probes outside any jit trace.
    _vmem_limit_bytes()
    _buffered_ok()

    fwd = jax.jit(functools.partial(discriminator_forward, layers))
    out = jax.block_until_ready(fwd(x, gantry_angle))

    # Precision-matched reference validates the kernel math (conv / pad / s2d /
    # bias / LeakyReLU); the f32 reference bounds the bf16 quantization drift.
    ref_match = jax.block_until_ready(
        discriminator_reference(params, x, gantry_angle,
                                match_kernel_precision=True))
    ref_f32 = jax.block_until_ready(
        discriminator_reference(params, x, gantry_angle,
                                match_kernel_precision=False))

    assert out.shape == ref_f32.shape, (out.shape, ref_f32.shape)
    scale = max(float(jnp.max(jnp.abs(ref_f32))), 1.0)
    err_match = float(jnp.max(jnp.abs(out - ref_match)))
    err_f32 = float(jnp.max(jnp.abs(out - ref_f32)))
    assert err_match <= 2e-2 * scale, ("mismatch vs matched reference",
                                       err_match, scale)
    assert err_f32 <= 1e-1 * scale, ("mismatch vs f32 reference", err_f32, scale)

    print("KERNEL_OK")
</pallas_src>

<mosaic_0001>
module attributes {stable_mosaic.version = 11 : i64} {
  func.func @_probe(%arg0: i32, %arg1: memref<8x128xf32, #tpu.memory_space<vmem>>, %arg2: memref<8x128xf32, #tpu.memory_space<vmem>>) attributes {dimension_semantics = [#tpu.dimension_semantics<arbitrary>], iteration_bounds = array<i64: 1>, scalar_prefetch = 0 : i64, scratch_operands = 0 : i64, tpu.core_type = #tpu.core_type<tc>, window_params = [{pipeline_mode = #tpu.pipeline_mode<synchronous>, transform_indices = @transform_0, window_bounds = array<i64: 8, 128>}, {pipeline_mode = #tpu.pipeline_mode<synchronous>, transform_indices = @transform_1, window_bounds = array<i64: 8, 128>}]} {
    %c0 = arith.constant 0 : index
    %c0_0 = arith.constant 0 : index
    %0 = vector.load %arg1[%c0, %c0_0] : memref<8x128xf32, #tpu.memory_space<vmem>>, vector<8x128xf32>
    %cst = arith.constant 1.000000e+00 : f32
    %1 = vector.broadcast %cst : f32 to vector<8x128xf32>
    %2 = arith.addf %0, %1 : vector<8x128xf32>
    %c0_1 = arith.constant 0 : index
    %c0_2 = arith.constant 0 : index
    %3 = vector.load %arg2[%c0_1, %c0_2] : memref<8x128xf32, #tpu.memory_space<vmem>>, vector<8x128xf32>
    tpu.vector_store %arg2[%c0_1, %c0_2], %2 {strides = array<i32>} : memref<8x128xf32, #tpu.memory_space<vmem>>, vector<8x128xf32>,
    return
  }
  func.func @transform_0(%arg0: i32) -> (i32, i32) {
    %c0_i32 = arith.constant 0 : i32
    %c0_i32_0 = arith.constant 0 : i32
    %c0_i32_1 = arith.constant 0 : i32
    return %c0_i32, %c0_i32_0 : i32, i32
  }
  func.func @transform_1(%arg0: i32) -> (i32, i32) {
    %c0_i32 = arith.constant 0 : i32
    %c0_i32_0 = arith.constant 0 : i32
    %c0_i32_1 = arith.constant 0 : i32
    return %c0_i32, %c0_i32_0 : i32, i32
  }
}

module attributes {stable_mosaic.version = 11 : i64} {
  func.func @_conv_patch_kernel(%arg0: i32, %arg1: i32, %arg2: memref<1x33x33x8xbf16, #tpu.memory_space<vmem>>, %arg3: memref<32x128xbf16, #tpu.memory_space<vmem>>, %arg4: memref<1x128xf32, #tpu.memory_space<vmem>>, %arg5: memref<1x32x32x128xbf16, #tpu.memory_space<vmem>>) attributes {dimension_semantics = [#tpu.dimension_semantics<parallel>, #tpu.dimension_semantics<parallel>], iteration_bounds = array<i64: 2, 1>, scalar_prefetch = 0 : i64, scratch_operands = 0 : i64, tpu.core_type = #tpu.core_type<tc>, window_params = [{transform_indices = @transform_0, window_bounds = array<i64: 1, 33, 33, 8>}, {pipeline_mode = #tpu.pipeline_mode<synchronous>, transform_indices = @transform_1, window_bounds = array<i64: 32, 128>}, {pipeline_mode = #tpu.pipeline_mode<synchronous>, transform_indices = @transform_2, window_bounds = array<i64: 1, 128>}, {transform_indices = @transform_3, window_bounds = array<i64: 1, 32, 32, 128>}]} {
    %c32_i32 = arith.constant 32 : i32
    %0 = arith.muli %arg1, %c32_i32 : i32
    %1 = tpu.assume_multiple %0, 32 : i32
    %c0_i32 = arith.constant 0 : i32
    %2 = arith.addi %1, %c0_i32 : i32
    %c0 = arith.constant 0 : index
    %3 = arith.index_cast %2 : i32 to index
    %c0_0 = arith.constant 0 : index
    %c0_1 = arith.constant 0 : index
    %4 = vector.load %arg2[%c0, %3, %c0_0, %c0_1] : memref<1x33x33x8xbf16, #tpu.memory_space<vmem>>, vector<1x32x32x8xbf16>
    %5 = vector.shape_cast %4 : vector<1x32x32x8xbf16> to vector<32x32x8xbf16>
    %c0_i32_2 = arith.constant 0 : i32
    %6 = arith.addi %1, %c0_i32_2 : i32
    %c0_3 = arith.constant 0 : index
    %7 = arith.index_cast %6 : i32 to index
    %c1 = arith.constant 1 : index
    %c0_4 = arith.constant 0 : index
    %8 = vector.load %arg2[%c0_3, %7, %c1, %c0_4] : memref<1x33x33x8xbf16, #tpu.memory_space<vmem>>, vector<1x32x32x8xbf16>
    %9 = vector.shape_cast %8 : vector<1x32x32x8xbf16> to vector<32x32x8xbf16>
    %c1_i32 = arith.constant 1 : i32
    %10 = arith.addi %1, %c1_i32 : i32
    %c0_5 = arith.constant 0 : index
    %11 = arith.index_cast %10 : i32 to index
    %c0_6 = arith.constant 0 : index
    %c0_7 = arith.constant 0 : index
    %12 = vector.load %arg2[%c0_5, %11, %c0_6, %c0_7] : memref<1x33x33x8xbf16, #tpu.memory_space<vmem>>, vector<1x32x32x8xbf16>
    %13 = vector.shape_cast %12 : vector<1x32x32x8xbf16> to vector<32x32x8xbf16>
    %c1_i32_8 = arith.constant 1 : i32
    %14 = arith.addi %1, %c1_i32_8 : i32
    %c0_9 = arith.constant 0 : index
    %15 = arith.index_cast %14 : i32 to index
    %c1_10 = arith.constant 1 : index
    %c0_11 = arith.constant 0 : index
    %16 = vector.load %arg2[%c0_9, %15, %c1_10, %c0_11] : memref<1x33x33x8xbf16, #tpu.memory_space<vmem>>, vector<1x32x32x8xbf16>
    %17 = vector.shape_cast %16 : vector<1x32x32x8xbf16> to vector<32x32x8xbf16>
    %18 = tpu.concatenate %5, %9, %13, %17 in 2 : vector<32x32x8xbf16>, vector<32x32x8xbf16>, vector<32x32x8xbf16>, vector<32x32x8xbf16> -> vector<32x32x32xbf16>
    %19 = vector.shape_cast %18 : vector<32x32x32xbf16> to vector<1024x32xbf16>
    %c0_12 = arith.constant 0 : index
    %c0_13 = arith.constant 0 : index
    %20 = vector.load %arg3[%c0_12, %c0_13] : memref<32x128xbf16, #tpu.memory_space<vmem>>, vector<32x128xbf16>
    %cst = arith.constant dense<0.000000e+00> : vector<1024x128xf32>
    %21 = tpu.matmul %19, %20, %cst {dimension_numbers = #tpu.dot_dimension_numbers<[1], [0], [0], [1], [0, 0, 1, 1], [], []>} : vector<1024x32xbf16>, vector<32x128xbf16>, vector<1024x128xf32> -> vector<1024x128xf32>
    %c0_14 = arith.constant 0 : index
    %c0_15 = arith.constant 0 : index
    %22 = vector.load %arg4[%c0_14, %c0_15] : memref<1x128xf32, #tpu.memory_space<vmem>>, vector<1x128xf32>
    %23 = vector.broadcast %22 : vector<1x128xf32> to vector<1024x128xf32>
    %24 = arith.addf %21, %23 : vector<1024x128xf32>
    %cst_16 = arith.constant 0.000000e+00 : f32
    %25 = vector.broadcast %cst_16 : f32 to vector<1024x128xf32>
    %26 = arith.cmpf oge, %24, %25 : vector<1024x128xf32>
    %cst_17 = arith.constant 2.000000e-01 : f32
    %27 = vector.broadcast %cst_17 : f32 to vector<1024x128xf32>
    %28 = arith.mulf %27, %24 : vector<1024x128xf32>
    %29 = arith.select %26, %24, %28 : vector<1024x128xi1>, vector<1024x128xf32>
    %30 = vector.shape_cast %29 : vector<1024x128xf32> to vector<32x32x128xf32>
    %31 = arith.truncf %30 : vector<32x32x128xf32> to vector<32x32x128xbf16>
    %c0_18 = arith.constant 0 : index
    %c0_19 = arith.constant 0 : index
    %c0_20 = arith.constant 0 : index
    %c0_21 = arith.constant 0 : index
    %32 = vector.load %arg5[%c0_18, %c0_19, %c0_20, %c0_21] : memref<1x32x32x128xbf16, #tpu.memory_space<vmem>>, vector<1x32x32x128xbf16>
    %33 = vector.shape_cast %32 : vector<1x32x32x128xbf16> to vector<32x32x128xbf16>
    %34 = vector.shape_cast %31 : vector<32x32x128xbf16> to vector<1x32x32x128xbf16>
    tpu.vector_store %arg5[%c0_18, %c0_19, %c0_20, %c0_21], %34 {strides = array<i32>} : memref<1x32x32x128xbf16, #tpu.memory_space<vmem>>, vector<1x32x32x128xbf16>,
    return
  }
  func.func @transform_0(%arg0: i32, %arg1: i32) -> (i32, i32, i32, i32) {
    %c0_i32 = arith.constant 0 : i32
    %c0_i32_0 = arith.constant 0 : i32
    %c0_i32_1 = arith.constant 0 : i32
    %c0_i32_2 = arith.constant 0 : i32
    return %arg0, %c0_i32, %c0_i32_0, %c0_i32_1 : i32, i32, i32, i32
  }
  func.func @transform_1(%arg0: i32, %arg1: i32) -> (i32, i32) {
    %c0_i32 = arith.constant 0 : i32
    %c0_i32_0 = arith.constant 0 : i32
    %c0_i32_1 = arith.constant 0 : i32
    return %c0_i32, %c0_i32_0 : i32, i32
  }
  func.func @transform_2(%arg0: i32, %arg1: i32) -> (i32, i32) {
    %c0_i32 = arith.constant 0 : i32
    %c0_i32_0 = arith.constant 0 : i32
    %c0_i32_1 = arith.constant 0 : i32
    return %c0_i32, %c0_i32_0 : i32, i32
  }
  func.func @transform_3(%arg0: i32, %arg1: i32) -> (i32, i32, i32, i32) {
    %c0_i32 = arith.constant 0 : i32
    %c0_i32_0 = arith.constant 0 : i32
    %c0_i32_1 = arith.constant 0 : i32
    return %arg0, %arg1, %c0_i32, %c0_i32_0 : i32, i32, i32, i32
  }
}

module attributes {stable_mosaic.version = 11 : i64} {
  func.func @_conv_patch_kernel(%arg0: i32, %arg1: i32, %arg2: memref<1x17x17x32xbf16, #tpu.memory_space<vmem>>, %arg3: memref<128x128xbf16, #tpu.memory_space<vmem>>, %arg4: memref<1x128xf32, #tpu.memory_space<vmem>>, %arg5: memref<1x16x16x128xbf16, #tpu.memory_space<vmem>>) attributes {dimension_semantics = [#tpu.dimension_semantics<parallel>, #tpu.dimension_semantics<parallel>], iteration_bounds = array<i64: 2, 1>, scalar_prefetch = 0 : i64, scratch_operands = 0 : i64, tpu.core_type = #tpu.core_type<tc>, window_params = [{transform_indices = @transform_0, window_bounds = array<i64: 1, 17, 17, 32>}, {pipeline_mode = #tpu.pipeline_mode<synchronous>, transform_indices = @transform_1, window_bounds = array<i64: 128, 128>}, {pipeline_mode = #tpu.pipeline_mode<synchronous>, transform_indices = @transform_2, window_bounds = array<i64: 1, 128>}, {transform_indices = @transform_3, window_bounds = array<i64: 1, 16, 16, 128>}]} {
    %c16_i32 = arith.constant 16 : i32
    %0 = arith.muli %arg1, %c16_i32 : i32
    %1 = tpu.assume_multiple %0, 16 : i32
    %c0_i32 = arith.constant 0 : i32
    %2 = arith.addi %1, %c0_i32 : i32
    %c0 = arith.constant 0 : index
    %3 = arith.index_cast %2 : i32 to index
    %c0_0 = arith.constant 0 : index
    %c0_1 = arith.constant 0 : index
    %4 = vector.load %arg2[%c0, %3, %c0_0, %c0_1] : memref<1x17x17x32xbf16, #tpu.memory_space<vmem>>, vector<1x16x16x32xbf16>
    %5 = vector.shape_cast %4 : vector<1x16x16x32xbf16> to vector<16x16x32xbf16>
    %c0_i32_2 = arith.constant 0 : i32
    %6 = arith.addi %1, %c0_i32_2 : i32
    %c0_3 = arith.constant 0 : index
    %7 = arith.index_cast %6 : i32 to index
    %c1 = arith.constant 1 : index
    %c0_4 = arith.constant 0 : index
    %8 = vector.load %arg2[%c0_3, %7, %c1, %c0_4] : memref<1x17x17x32xbf16, #tpu.memory_space<vmem>>, vector<1x16x16x32xbf16>
    %9 = vector.shape_cast %8 : vector<1x16x16x32xbf16> to vector<16x16x32xbf16>
    %c1_i32 = arith.constant 1 : i32
    %10 = arith.addi %1, %c1_i32 : i32
    %c0_5 = arith.constant 0 : index
    %11 = arith.index_cast %10 : i32 to index
    %c0_6 = arith.constant 0 : index
    %c0_7 = arith.constant 0 : index
    %12 = vector.load %arg2[%c0_5, %11, %c0_6, %c0_7] : memref<1x17x17x32xbf16, #tpu.memory_space<vmem>>, vector<1x16x16x32xbf16>
    %13 = vector.shape_cast %12 : vector<1x16x16x32xbf16> to vector<16x16x32xbf16>
    %c1_i32_8 = arith.constant 1 : i32
    %14 = arith.addi %1, %c1_i32_8 : i32
    %c0_9 = arith.constant 0 : index
    %15 = arith.index_cast %14 : i32 to index
    %c1_10 = arith.constant 1 : index
    %c0_11 = arith.constant 0 : index
    %16 = vector.load %arg2[%c0_9, %15, %c1_10, %c0_11] : memref<1x17x17x32xbf16, #tpu.memory_space<vmem>>, vector<1x16x16x32xbf16>
    %17 = vector.shape_cast %16 : vector<1x16x16x32xbf16> to vector<16x16x32xbf16>
    %18 = tpu.concatenate %5, %9, %13, %17 in 2 : vector<16x16x32xbf16>, vector<16x16x32xbf16>, vector<16x16x32xbf16>, vector<16x16x32xbf16> -> vector<16x16x128xbf16>
    %19 = vector.shape_cast %18 : vector<16x16x128xbf16> to vector<256x128xbf16>
    %c0_12 = arith.constant 0 : index
    %c0_13 = arith.constant 0 : index
    %20 = vector.load %arg3[%c0_12, %c0_13] : memref<128x128xbf16, #tpu.memory_space<vmem>>, vector<128x128xbf16>
    %cst = arith.constant dense<0.000000e+00> : vector<256x128xf32>
    %21 = tpu.matmul %19, %20, %cst {dimension_numbers = #tpu.dot_dimension_numbers<[1], [0], [0], [1], [0, 0, 1, 1], [], []>} : vector<256x128xbf16>, vector<128x128xbf16>, vector<256x128xf32> -> vector<256x128xf32>
    %c0_14 = arith.constant 0 : index
    %c0_15 = arith.constant 0 : index
    %22 = vector.load %arg4[%c0_14, %c0_15] : memref<1x128xf32, #tpu.memory_space<vmem>>, vector<1x128xf32>
    %23 = vector.broadcast %22 : vector<1x128xf32> to vector<256x128xf32>
    %24 = arith.addf %21, %23 : vector<256x128xf32>
    %cst_16 = arith.constant 0.000000e+00 : f32
    %25 = vector.broadcast %cst_16 : f32 to vector<256x128xf32>
    %26 = arith.cmpf oge, %24, %25 : vector<256x128xf32>
    %cst_17 = arith.constant 2.000000e-01 : f32
    %27 = vector.broadcast %cst_17 : f32 to vector<256x128xf32>
    %28 = arith.mulf %27, %24 : vector<256x128xf32>
    %29 = arith.select %26, %24, %28 : vector<256x128xi1>, vector<256x128xf32>
    %30 = vector.shape_cast %29 : vector<256x128xf32> to vector<16x16x128xf32>
    %31 = arith.truncf %30 : vector<16x16x128xf32> to vector<16x16x128xbf16>
    %c0_18 = arith.constant 0 : index
    %c0_19 = arith.constant 0 : index
    %c0_20 = arith.constant 0 : index
    %c0_21 = arith.constant 0 : index
    %32 = vector.load %arg5[%c0_18, %c0_19, %c0_20, %c0_21] : memref<1x16x16x128xbf16, #tpu.memory_space<vmem>>, vector<1x16x16x128xbf16>
    %33 = vector.shape_cast %32 : vector<1x16x16x128xbf16> to vector<16x16x128xbf16>
    %34 = vector.shape_cast %31 : vector<16x16x128xbf16> to vector<1x16x16x128xbf16>
    tpu.vector_store %arg5[%c0_18, %c0_19, %c0_20, %c0_21], %34 {strides = array<i32>} : memref<1x16x16x128xbf16, #tpu.memory_space<vmem>>, vector<1x16x16x128xbf16>,
    return
  }
  func.func @transform_0(%arg0: i32, %arg1: i32) -> (i32, i32, i32, i32) {
    %c0_i32 = arith.constant 0 : i32
    %c0_i32_0 = arith.constant 0 : i32
    %c0_i32_1 = arith.constant 0 : i32
    %c0_i32_2 = arith.constant 0 : i32
    return %arg0, %c0_i32, %c0_i32_0, %c0_i32_1 : i32, i32, i32, i32
  }
  func.func @transform_1(%arg0: i32, %arg1: i32) -> (i32, i32) {
    %c0_i32 = arith.constant 0 : i32
    %c0_i32_0 = arith.constant 0 : i32
    %c0_i32_1 = arith.constant 0 : i32
    return %c0_i32, %c0_i32_0 : i32, i32
  }
  func.func @transform_2(%arg0: i32, %arg1: i32) -> (i32, i32) {
    %c0_i32 = arith.constant 0 : i32
    %c0_i32_0 = arith.constant 0 : i32
    %c0_i32_1 = arith.constant 0 : i32
    return %c0_i32, %c0_i32_0 : i32, i32
  }
  func.func @transform_3(%arg0: i32, %arg1: i32) -> (i32, i32, i32, i32) {
    %c0_i32 = arith.constant 0 : i32
    %c0_i32_0 = arith.constant 0 : i32
    %c0_i32_1 = arith.constant 0 : i32
    return %arg0, %arg1, %c0_i32, %c0_i32_0 : i32, i32, i32, i32
  }
}

module attributes {stable_mosaic.version = 11 : i64} {
  func.func @_conv_patch_kernel(%arg0: i32, %arg1: i32, %arg2: memref<1x9x9x64xbf16, #tpu.memory_space<vmem>>, %arg3: memref<256x128xbf16, #tpu.memory_space<vmem>>, %arg4: memref<1x128xf32, #tpu.memory_space<vmem>>, %arg5: memref<1x8x8x128xbf16, #tpu.memory_space<vmem>>) attributes {dimension_semantics = [#tpu.dimension_semantics<parallel>, #tpu.dimension_semantics<parallel>], iteration_bounds = array<i64: 2, 1>, scalar_prefetch = 0 : i64, scratch_operands = 0 : i64, tpu.core_type = #tpu.core_type<tc>, window_params = [{transform_indices = @transform_0, window_bounds = array<i64: 1, 9, 9, 64>}, {pipeline_mode = #tpu.pipeline_mode<synchronous>, transform_indices = @transform_1, window_bounds = array<i64: 256, 128>}, {pipeline_mode = #tpu.pipeline_mode<synchronous>, transform_indices = @transform_2, window_bounds = array<i64: 1, 128>}, {transform_indices = @transform_3, window_bounds = array<i64: 1, 8, 8, 128>}]} {
    %c8_i32 = arith.constant 8 : i32
    %0 = arith.muli %arg1, %c8_i32 : i32
    %1 = tpu.assume_multiple %0, 8 : i32
    %c0_i32 = arith.constant 0 : i32
    %2 = arith.addi %1, %c0_i32 : i32
    %c0 = arith.constant 0 : index
    %3 = arith.index_cast %2 : i32 to index
    %c0_0 = arith.constant 0 : index
    %c0_1 = arith.constant 0 : index
    %4 = vector.load %arg2[%c0, %3, %c0_0, %c0_1] : memref<1x9x9x64xbf16, #tpu.memory_space<vmem>>, vector<1x8x8x64xbf16>
    %5 = vector.shape_cast %4 : vector<1x8x8x64xbf16> to vector<8x8x64xbf16>
    %c0_i32_2 = arith.constant 0 : i32
    %6 = arith.addi %1, %c0_i32_2 : i32
    %c0_3 = arith.constant 0 : index
    %7 = arith.index_cast %6 : i32 to index
    %c1 = arith.constant 1 : index
    %c0_4 = arith.constant 0 : index
    %8 = vector.load %arg2[%c0_3, %7, %c1, %c0_4] : memref<1x9x9x64xbf16, #tpu.memory_space<vmem>>, vector<1x8x8x64xbf16>
    %9 = vector.shape_cast %8 : vector<1x8x8x64xbf16> to vector<8x8x64xbf16>
    %c1_i32 = arith.constant 1 : i32
    %10 = arith.addi %1, %c1_i32 : i32
    %c0_5 = arith.constant 0 : index
    %11 = arith.index_cast %10 : i32 to index
    %c0_6 = arith.constant 0 : index
    %c0_7 = arith.constant 0 : index
    %12 = vector.load %arg2[%c0_5, %11, %c0_6, %c0_7] : memref<1x9x9x64xbf16, #tpu.memory_space<vmem>>, vector<1x8x8x64xbf16>
    %13 = vector.shape_cast %12 : vector<1x8x8x64xbf16> to vector<8x8x64xbf16>
    %c1_i32_8 = arith.constant 1 : i32
    %14 = arith.addi %1, %c1_i32_8 : i32
    %c0_9 = arith.constant 0 : index
    %15 = arith.index_cast %14 : i32 to index
    %c1_10 = arith.constant 1 : index
    %c0_11 = arith.constant 0 : index
    %16 = vector.load %arg2[%c0_9, %15, %c1_10, %c0_11] : memref<1x9x9x64xbf16, #tpu.memory_space<vmem>>, vector<1x8x8x64xbf16>
    %17 = vector.shape_cast %16 : vector<1x8x8x64xbf16> to vector<8x8x64xbf16>
    %18 = tpu.concatenate %5, %9, %13, %17 in 2 : vector<8x8x64xbf16>, vector<8x8x64xbf16>, vector<8x8x64xbf16>, vector<8x8x64xbf16> -> vector<8x8x256xbf16>
    %19 = vector.shape_cast %18 : vector<8x8x256xbf16> to vector<64x256xbf16>
    %c0_12 = arith.constant 0 : index
    %c0_13 = arith.constant 0 : index
    %20 = vector.load %arg3[%c0_12, %c0_13] : memref<256x128xbf16, #tpu.memory_space<vmem>>, vector<256x128xbf16>
    %cst = arith.constant dense<0.000000e+00> : vector<64x128xf32>
    %21 = tpu.matmul %19, %20, %cst {dimension_numbers = #tpu.dot_dimension_numbers<[1], [0], [0], [1], [0, 0, 1, 1], [], []>} : vector<64x256xbf16>, vector<256x128xbf16>, vector<64x128xf32> -> vector<64x128xf32>
    %c0_14 = arith.constant 0 : index
    %c0_15 = arith.constant 0 : index
    %22 = vector.load %arg4[%c0_14, %c0_15] : memref<1x128xf32, #tpu.memory_space<vmem>>, vector<1x128xf32>
    %23 = vector.broadcast %22 : vector<1x128xf32> to vector<64x128xf32>
    %24 = arith.addf %21, %23 : vector<64x128xf32>
    %cst_16 = arith.constant 0.000000e+00 : f32
    %25 = vector.broadcast %cst_16 : f32 to vector<64x128xf32>
    %26 = arith.cmpf oge, %24, %25 : vector<64x128xf32>
    %cst_17 = arith.constant 2.000000e-01 : f32
    %27 = vector.broadcast %cst_17 : f32 to vector<64x128xf32>
    %28 = arith.mulf %27, %24 : vector<64x128xf32>
    %29 = arith.select %26, %24, %28 : vector<64x128xi1>, vector<64x128xf32>
    %30 = vector.shape_cast %29 : vector<64x128xf32> to vector<8x8x128xf32>
    %31 = arith.truncf %30 : vector<8x8x128xf32> to vector<8x8x128xbf16>
    %c0_18 = arith.constant 0 : index
    %c0_19 = arith.constant 0 : index
    %c0_20 = arith.constant 0 : index
    %c0_21 = arith.constant 0 : index
    %32 = vector.load %arg5[%c0_18, %c0_19, %c0_20, %c0_21] : memref<1x8x8x128xbf16, #tpu.memory_space<vmem>>, vector<1x8x8x128xbf16>
    %33 = vector.shape_cast %32 : vector<1x8x8x128xbf16> to vector<8x8x128xbf16>
    %34 = vector.shape_cast %31 : vector<8x8x128xbf16> to vector<1x8x8x128xbf16>
    tpu.vector_store %arg5[%c0_18, %c0_19, %c0_20, %c0_21], %34 {strides = array<i32>} : memref<1x8x8x128xbf16, #tpu.memory_space<vmem>>, vector<1x8x8x128xbf16>,
    return
  }
  func.func @transform_0(%arg0: i32, %arg1: i32) -> (i32, i32, i32, i32) {
    %c0_i32 = arith.constant 0 : i32
    %c0_i32_0 = arith.constant 0 : i32
    %c0_i32_1 = arith.constant 0 : i32
    %c0_i32_2 = arith.constant 0 : i32
    return %arg0, %c0_i32, %c0_i32_0, %c0_i32_1 : i32, i32, i32, i32
  }
  func.func @transform_1(%arg0: i32, %arg1: i32) -> (i32, i32) {
    %c0_i32 = arith.constant 0 : i32
    %c0_i32_0 = arith.constant 0 : i32
    %c0_i32_1 = arith.constant 0 : i32
    return %c0_i32, %c0_i32_0 : i32, i32
  }
  func.func @transform_2(%arg0: i32, %arg1: i32) -> (i32, i32) {
    %c0_i32 = arith.constant 0 : i32
    %c0_i32_0 = arith.constant 0 : i32
    %c0_i32_1 = arith.constant 0 : i32
    return %c0_i32, %c0_i32_0 : i32, i32
  }
  func.func @transform_3(%arg0: i32, %arg1: i32) -> (i32, i32, i32, i32) {
    %c0_i32 = arith.constant 0 : i32
    %c0_i32_0 = arith.constant 0 : i32
    %c0_i32_1 = arith.constant 0 : i32
    return %arg0, %arg1, %c0_i32, %c0_i32_0 : i32, i32, i32, i32
  }
}

module attributes {stable_mosaic.version = 11 : i64} {
  func.func @_conv_patch_kernel(%arg0: i32, %arg1: i32, %arg2: memref<1x5x5x128xbf16, #tpu.memory_space<vmem>>, %arg3: memref<512x128xbf16, #tpu.memory_space<vmem>>, %arg4: memref<1x128xf32, #tpu.memory_space<vmem>>, %arg5: memref<1x4x4x128xbf16, #tpu.memory_space<vmem>>) attributes {dimension_semantics = [#tpu.dimension_semantics<parallel>, #tpu.dimension_semantics<parallel>], iteration_bounds = array<i64: 2, 1>, scalar_prefetch = 0 : i64, scratch_operands = 0 : i64, tpu.core_type = #tpu.core_type<tc>, window_params = [{transform_indices = @transform_0, window_bounds = array<i64: 1, 5, 5, 128>}, {pipeline_mode = #tpu.pipeline_mode<synchronous>, transform_indices = @transform_1, window_bounds = array<i64: 512, 128>}, {pipeline_mode = #tpu.pipeline_mode<synchronous>, transform_indices = @transform_2, window_bounds = array<i64: 1, 128>}, {transform_indices = @transform_3, window_bounds = array<i64: 1, 4, 4, 128>}]} {
    %c4_i32 = arith.constant 4 : i32
    %0 = arith.muli %arg1, %c4_i32 : i32
    %1 = tpu.assume_multiple %0, 4 : i32
    %c0_i32 = arith.constant 0 : i32
    %2 = arith.addi %1, %c0_i32 : i32
    %c0 = arith.constant 0 : index
    %3 = arith.index_cast %2 : i32 to index
    %c0_0 = arith.constant 0 : index
    %c0_1 = arith.constant 0 : index
    %4 = vector.load %arg2[%c0, %3, %c0_0, %c0_1] : memref<1x5x5x128xbf16, #tpu.memory_space<vmem>>, vector<1x4x4x128xbf16>
    %5 = vector.shape_cast %4 : vector<1x4x4x128xbf16> to vector<4x4x128xbf16>
    %c0_i32_2 = arith.constant 0 : i32
    %6 = arith.addi %1, %c0_i32_2 : i32
    %c0_3 = arith.constant 0 : index
    %7 = arith.index_cast %6 : i32 to index
    %c1 = arith.constant 1 : index
    %c0_4 = arith.constant 0 : index
    %8 = vector.load %arg2[%c0_3, %7, %c1, %c0_4] : memref<1x5x5x128xbf16, #tpu.memory_space<vmem>>, vector<1x4x4x128xbf16>
    %9 = vector.shape_cast %8 : vector<1x4x4x128xbf16> to vector<4x4x128xbf16>
    %c1_i32 = arith.constant 1 : i32
    %10 = arith.addi %1, %c1_i32 : i32
    %c0_5 = arith.constant 0 : index
    %11 = arith.index_cast %10 : i32 to index
    %c0_6 = arith.constant 0 : index
    %c0_7 = arith.constant 0 : index
    %12 = vector.load %arg2[%c0_5, %11, %c0_6, %c0_7] : memref<1x5x5x128xbf16, #tpu.memory_space<vmem>>, vector<1x4x4x128xbf16>
    %13 = vector.shape_cast %12 : vector<1x4x4x128xbf16> to vector<4x4x128xbf16>
    %c1_i32_8 = arith.constant 1 : i32
    %14 = arith.addi %1, %c1_i32_8 : i32
    %c0_9 = arith.constant 0 : index
    %15 = arith.index_cast %14 : i32 to index
    %c1_10 = arith.constant 1 : index
    %c0_11 = arith.constant 0 : index
    %16 = vector.load %arg2[%c0_9, %15, %c1_10, %c0_11] : memref<1x5x5x128xbf16, #tpu.memory_space<vmem>>, vector<1x4x4x128xbf16>
    %17 = vector.shape_cast %16 : vector<1x4x4x128xbf16> to vector<4x4x128xbf16>
    %18 = tpu.concatenate %5, %9, %13, %17 in 2 : vector<4x4x128xbf16>, vector<4x4x128xbf16>, vector<4x4x128xbf16>, vector<4x4x128xbf16> -> vector<4x4x512xbf16>
    %19 = vector.shape_cast %18 : vector<4x4x512xbf16> to vector<16x512xbf16>
    %c0_12 = arith.constant 0 : index
    %c0_13 = arith.constant 0 : index
    %20 = vector.load %arg3[%c0_12, %c0_13] : memref<512x128xbf16, #tpu.memory_space<vmem>>, vector<512x128xbf16>
    %cst = arith.constant dense<0.000000e+00> : vector<16x128xf32>
    %21 = tpu.matmul %19, %20, %cst {dimension_numbers = #tpu.dot_dimension_numbers<[1], [0], [0], [1], [0, 0, 1, 1], [], []>} : vector<16x512xbf16>, vector<512x128xbf16>, vector<16x128xf32> -> vector<16x128xf32>
    %c0_14 = arith.constant 0 : index
    %c0_15 = arith.constant 0 : index
    %22 = vector.load %arg4[%c0_14, %c0_15] : memref<1x128xf32, #tpu.memory_space<vmem>>, vector<1x128xf32>
    %23 = vector.broadcast %22 : vector<1x128xf32> to vector<16x128xf32>
    %24 = arith.addf %21, %23 : vector<16x128xf32>
    %cst_16 = arith.constant 0.000000e+00 : f32
    %25 = vector.broadcast %cst_16 : f32 to vector<16x128xf32>
    %26 = arith.cmpf oge, %24, %25 : vector<16x128xf32>
    %cst_17 = arith.constant 2.000000e-01 : f32
    %27 = vector.broadcast %cst_17 : f32 to vector<16x128xf32>
    %28 = arith.mulf %27, %24 : vector<16x128xf32>
    %29 = arith.select %26, %24, %28 : vector<16x128xi1>, vector<16x128xf32>
    %30 = vector.shape_cast %29 : vector<16x128xf32> to vector<4x4x128xf32>
    %31 = arith.truncf %30 : vector<4x4x128xf32> to vector<4x4x128xbf16>
    %c0_18 = arith.constant 0 : index
    %c0_19 = arith.constant 0 : index
    %c0_20 = arith.constant 0 : index
    %c0_21 = arith.constant 0 : index
    %32 = vector.load %arg5[%c0_18, %c0_19, %c0_20, %c0_21] : memref<1x4x4x128xbf16, #tpu.memory_space<vmem>>, vector<1x4x4x128xbf16>
    %33 = vector.shape_cast %32 : vector<1x4x4x128xbf16> to vector<4x4x128xbf16>
    %34 = vector.shape_cast %31 : vector<4x4x128xbf16> to vector<1x4x4x128xbf16>
    tpu.vector_store %arg5[%c0_18, %c0_19, %c0_20, %c0_21], %34 {strides = array<i32>} : memref<1x4x4x128xbf16, #tpu.memory_space<vmem>>, vector<1x4x4x128xbf16>,
    return
  }
  func.func @transform_0(%arg0: i32, %arg1: i32) -> (i32, i32, i32, i32) {
    %c0_i32 = arith.constant 0 : i32
    %c0_i32_0 = arith.constant 0 : i32
    %c0_i32_1 = arith.constant 0 : i32
    %c0_i32_2 = arith.constant 0 : i32
    return %arg0, %c0_i32, %c0_i32_0, %c0_i32_1 : i32, i32, i32, i32
  }
  func.func @transform_1(%arg0: i32, %arg1: i32) -> (i32, i32) {
    %c0_i32 = arith.constant 0 : i32
    %c0_i32_0 = arith.constant 0 : i32
    %c0_i32_1 = arith.constant 0 : i32
    return %c0_i32, %c0_i32_0 : i32, i32
  }
  func.func @transform_2(%arg0: i32, %arg1: i32) -> (i32, i32) {
    %c0_i32 = arith.constant 0 : i32
    %c0_i32_0 = arith.constant 0 : i32
    %c0_i32_1 = arith.constant 0 : i32
    return %c0_i32, %c0_i32_0 : i32, i32
  }
  func.func @transform_3(%arg0: i32, %arg1: i32) -> (i32, i32, i32, i32) {
    %c0_i32 = arith.constant 0 : i32
    %c0_i32_0 = arith.constant 0 : i32
    %c0_i32_1 = arith.constant 0 : i32
    return %arg0, %arg1, %c0_i32, %c0_i32_0 : i32, i32, i32, i32
  }
}

module attributes {stable_mosaic.version = 11 : i64} {
  func.func @_conv_patch_kernel(%arg0: i32, %arg1: i32, %arg2: memref<1x4x4x64xbf16, #tpu.memory_space<vmem>>, %arg3: memref<1024x128xbf16, #tpu.memory_space<vmem>>, %arg4: memref<1x128xf32, #tpu.memory_space<vmem>>, %arg5: memref<1x1x1x128xf32, #tpu.memory_space<vmem>>) attributes {dimension_semantics = [#tpu.dimension_semantics<parallel>, #tpu.dimension_semantics<parallel>], iteration_bounds = array<i64: 2, 1>, scalar_prefetch = 0 : i64, scratch_operands = 0 : i64, tpu.core_type = #tpu.core_type<tc>, window_params = [{transform_indices = @transform_0, window_bounds = array<i64: 1, 4, 4, 64>}, {pipeline_mode = #tpu.pipeline_mode<synchronous>, transform_indices = @transform_1, window_bounds = array<i64: 1024, 128>}, {pipeline_mode = #tpu.pipeline_mode<synchronous>, transform_indices = @transform_2, window_bounds = array<i64: 1, 128>}, {transform_indices = @transform_3, window_bounds = array<i64: 1, 1, 1, 128>}]} {
    %c1_i32 = arith.constant 1 : i32
    %0 = arith.muli %arg1, %c1_i32 : i32
    %1 = tpu.assume_multiple %0, 1 : i32
    %c0_i32 = arith.constant 0 : i32
    %2 = arith.addi %1, %c0_i32 : i32
    %c0 = arith.constant 0 : index
    %3 = arith.index_cast %2 : i32 to index
    %c0_0 = arith.constant 0 : index
    %c0_1 = arith.constant 0 : index
    %4 = vector.load %arg2[%c0, %3, %c0_0, %c0_1] : memref<1x4x4x64xbf16, #tpu.memory_space<vmem>>, vector<1x1x1x64xbf16>
    %5 = vector.shape_cast %4 : vector<1x1x1x64xbf16> to vector<1x1x64xbf16>
    %c0_i32_2 = arith.constant 0 : i32
    %6 = arith.addi %1, %c0_i32_2 : i32
    %c0_3 = arith.constant 0 : index
    %7 = arith.index_cast %6 : i32 to index
    %c1 = arith.constant 1 : index
    %c0_4 = arith.constant 0 : index
    %8 = vector.load %arg2[%c0_3, %7, %c1, %c0_4] : memref<1x4x4x64xbf16, #tpu.memory_space<vmem>>, vector<1x1x1x64xbf16>
    %9 = vector.shape_cast %8 : vector<1x1x1x64xbf16> to vector<1x1x64xbf16>
    %c0_i32_5 = arith.constant 0 : i32
    %10 = arith.addi %1, %c0_i32_5 : i32
    %c0_6 = arith.constant 0 : index
    %11 = arith.index_cast %10 : i32 to index
    %c2 = arith.constant 2 : index
    %c0_7 = arith.constant 0 : index
    %12 = vector.load %arg2[%c0_6, %11, %c2, %c0_7] : memref<1x4x4x64xbf16, #tpu.memory_space<vmem>>, vector<1x1x1x64xbf16>
    %13 = vector.shape_cast %12 : vector<1x1x1x64xbf16> to vector<1x1x64xbf16>
    %c0_i32_8 = arith.constant 0 : i32
    %14 = arith.addi %1, %c0_i32_8 : i32
    %c0_9 = arith.constant 0 : index
    %15 = arith.index_cast %14 : i32 to index
    %c3 = arith.constant 3 : index
    %c0_10 = arith.constant 0 : index
    %16 = vector.load %arg2[%c0_9, %15, %c3, %c0_10] : memref<1x4x4x64xbf16, #tpu.memory_space<vmem>>, vector<1x1x1x64xbf16>
    %17 = vector.shape_cast %16 : vector<1x1x1x64xbf16> to vector<1x1x64xbf16>
    %c1_i32_11 = arith.constant 1 : i32
    %18 = arith.addi %1, %c1_i32_11 : i32
    %c0_12 = arith.constant 0 : index
    %19 = arith.index_cast %18 : i32 to index
    %c0_13 = arith.constant 0 : index
    %c0_14 = arith.constant 0 : index
    %20 = vector.load %arg2[%c0_12, %19, %c0_13, %c0_14] : memref<1x4x4x64xbf16, #tpu.memory_space<vmem>>, vector<1x1x1x64xbf16>
    %21 = vector.shape_cast %20 : vector<1x1x1x64xbf16> to vector<1x1x64xbf16>
    %c1_i32_15 = arith.constant 1 : i32
    %22 = arith.addi %1, %c1_i32_15 : i32
    %c0_16 = arith.constant 0 : index
    %23 = arith.index_cast %22 : i32 to index
    %c1_17 = arith.constant 1 : index
    %c0_18 = arith.constant 0 : index
    %24 = vector.load %arg2[%c0_16, %23, %c1_17, %c0_18] : memref<1x4x4x64xbf16, #tpu.memory_space<vmem>>, vector<1x1x1x64xbf16>
    %25 = vector.shape_cast %24 : vector<1x1x1x64xbf16> to vector<1x1x64xbf16>
    %c1_i32_19 = arith.constant 1 : i32
    %26 = arith.addi %1, %c1_i32_19 : i32
    %c0_20 = arith.constant 0 : index
    %27 = arith.index_cast %26 : i32 to index
    %c2_21 = arith.constant 2 : index
    %c0_22 = arith.constant 0 : index
    %28 = vector.load %arg2[%c0_20, %27, %c2_21, %c0_22] : memref<1x4x4x64xbf16, #tpu.memory_space<vmem>>, vector<1x1x1x64xbf16>
    %29 = vector.shape_cast %28 : vector<1x1x1x64xbf16> to vector<1x1x64xbf16>
    %c1_i32_23 = arith.constant 1 : i32
    %30 = arith.addi %1, %c1_i32_23 : i32
    %c0_24 = arith.constant 0 : index
    %31 = arith.index_cast %30 : i32 to index
    %c3_25 = arith.constant 3 : index
    %c0_26 = arith.constant 0 : index
    %32 = vector.load %arg2[%c0_24, %31, %c3_25, %c0_26] : memref<1x4x4x64xbf16, #tpu.memory_space<vmem>>, vector<1x1x1x64xbf16>
    %33 = vector.shape_cast %32 : vector<1x1x1x64xbf16> to vector<1x1x64xbf16>
    %c2_i32 = arith.constant 2 : i32
    %34 = arith.addi %1, %c2_i32 : i32
    %c0_27 = arith.constant 0 : index
    %35 = arith.index_cast %34 : i32 to index
    %c0_28 = arith.constant 0 : index
    %c0_29 = arith.constant 0 : index
    %36 = vector.load %arg2[%c0_27, %35, %c0_28, %c0_29] : memref<1x4x4x64xbf16, #tpu.memory_space<vmem>>, vector<1x1x1x64xbf16>
    %37 = vector.shape_cast %36 : vector<1x1x1x64xbf16> to vector<1x1x64xbf16>
    %c2_i32_30 = arith.constant 2 : i32
    %38 = arith.addi %1, %c2_i32_30 : i32
    %c0_31 = arith.constant 0 : index
    %39 = arith.index_cast %38 : i32 to index
    %c1_32 = arith.constant 1 : index
    %c0_33 = arith.constant 0 : index
    %40 = vector.load %arg2[%c0_31, %39, %c1_32, %c0_33] : memref<1x4x4x64xbf16, #tpu.memory_space<vmem>>, vector<1x1x1x64xbf16>
    %41 = vector.shape_cast %40 : vector<1x1x1x64xbf16> to vector<1x1x64xbf16>
    %c2_i32_34 = arith.constant 2 : i32
    %42 = arith.addi %1, %c2_i32_34 : i32
    %c0_35 = arith.constant 0 : index
    %43 = arith.index_cast %42 : i32 to index
    %c2_36 = arith.constant 2 : index
    %c0_37 = arith.constant 0 : index
    %44 = vector.load %arg2[%c0_35, %43, %c2_36, %c0_37] : memref<1x4x4x64xbf16, #tpu.memory_space<vmem>>, vector<1x1x1x64xbf16>
    %45 = vector.shape_cast %44 : vector<1x1x1x64xbf16> to vector<1x1x64xbf16>
    %c2_i32_38 = arith.constant 2 : i32
    %46 = arith.addi %1, %c2_i32_38 : i32
    %c0_39 = arith.constant 0 : index
    %47 = arith.index_cast %46 : i32 to index
    %c3_40 = arith.constant 3 : index
    %c0_41 = arith.constant 0 : index
    %48 = vector.load %arg2[%c0_39, %47, %c3_40, %c0_41] : memref<1x4x4x64xbf16, #tpu.memory_space<vmem>>, vector<1x1x1x64xbf16>
    %49 = vector.shape_cast %48 : vector<1x1x1x64xbf16> to vector<1x1x64xbf16>
    %c3_i32 = arith.constant 3 : i32
    %50 = arith.addi %1, %c3_i32 : i32
    %c0_42 = arith.constant 0 : index
    %51 = arith.index_cast %50 : i32 to index
    %c0_43 = arith.constant 0 : index
    %c0_44 = arith.constant 0 : index
    %52 = vector.load %arg2[%c0_42, %51, %c0_43, %c0_44] : memref<1x4x4x64xbf16, #tpu.memory_space<vmem>>, vector<1x1x1x64xbf16>
    %53 = vector.shape_cast %52 : vector<1x1x1x64xbf16> to vector<1x1x64xbf16>
    %c3_i32_45 = arith.constant 3 : i32
    %54 = arith.addi %1, %c3_i32_45 : i32
    %c0_46 = arith.constant 0 : index
    %55 = arith.index_cast %54 : i32 to index
    %c1_47 = arith.constant 1 : index
    %c0_48 = arith.constant 0 : index
    %56 = vector.load %arg2[%c0_46, %55, %c1_47, %c0_48] : memref<1x4x4x64xbf16, #tpu.memory_space<vmem>>, vector<1x1x1x64xbf16>
    %57 = vector.shape_cast %56 : vector<1x1x1x64xbf16> to vector<1x1x64xbf16>
    %c3_i32_49 = arith.constant 3 : i32
    %58 = arith.addi %1, %c3_i32_49 : i32
    %c0_50 = arith.constant 0 : index
    %59 = arith.index_cast %58 : i32 to index
    %c2_51 = arith.constant 2 : index
    %c0_52 = arith.constant 0 : index
    %60 = vector.load %arg2[%c0_50, %59, %c2_51, %c0_52] : memref<1x4x4x64xbf16, #tpu.memory_space<vmem>>, vector<1x1x1x64xbf16>
    %61 = vector.shape_cast %60 : vector<1x1x1x64xbf16> to vector<1x1x64xbf16>
    %c3_i32_53 = arith.constant 3 : i32
    %62 = arith.addi %1, %c3_i32_53 : i32
    %c0_54 = arith.constant 0 : index
    %63 = arith.index_cast %62 : i32 to index
    %c3_55 = arith.constant 3 : index
    %c0_56 = arith.constant 0 : index
    %64 = vector.load %arg2[%c0_54, %63, %c3_55, %c0_56] : memref<1x4x4x64xbf16, #tpu.memory_space<vmem>>, vector<1x1x1x64xbf16>
    %65 = vector.shape_cast %64 : vector<1x1x1x64xbf16> to vector<1x1x64xbf16>
    %66 = tpu.concatenate %5, %9, %13, %17, %21, %25, %29, %33, %37, %41, %45, %49, %53, %57, %61, %65 in 2 : vector<1x1x64xbf16>, vector<1x1x64xbf16>, vector<1x1x64xbf16>, vector<1x1x64xbf16>, vector<1x1x64xbf16>, vector<1x1x64xbf16>, vector<1x1x64xbf16>, vector<1x1x64xbf16>, vector<1x1x64xbf16>, vector<1x1x64xbf16>, vector<1x1x64xbf16>, vector<1x1x64xbf16>, vector<1x1x64xbf16>, vector<1x1x64xbf16>, vector<1x1x64xbf16>, vector<1x1x64xbf16> -> vector<1x1x1024xbf16>
    %67 = vector.shape_cast %66 : vector<1x1x1024xbf16> to vector<1x1024xbf16>
    %c0_57 = arith.constant 0 : index
    %c0_58 = arith.constant 0 : index
    %68 = vector.load %arg3[%c0_57, %c0_58] : memref<1024x128xbf16, #tpu.memory_space<vmem>>, vector<1024x128xbf16>
    %cst = arith.constant dense<0.000000e+00> : vector<1x128xf32>
    %69 = tpu.matmul %67, %68, %cst {dimension_numbers = #tpu.dot_dimension_numbers<[1], [0], [0], [1], [0, 0, 1, 1], [], []>} : vector<1x1024xbf16>, vector<1024x128xbf16>, vector<1x128xf32> -> vector<1x128xf32>
    %c0_59 = arith.constant 0 : index
    %c0_60 = arith.constant 0 : index
    %70 = vector.load %arg4[%c0_59, %c0_60] : memref<1x128xf32, #tpu.memory_space<vmem>>, vector<1x128xf32>
    %71 = arith.addf %69, %70 : vector<1x128xf32>
    %72 = vector.shape_cast %71 : vector<1x128xf32> to vector<1x1x128xf32>
    %c0_61 = arith.constant 0 : index
    %c0_62 = arith.constant 0 : index
    %c0_63 = arith.constant 0 : index
    %c0_64 = arith.constant 0 : index
    %73 = vector.load %arg5[%c0_61, %c0_62, %c0_63, %c0_64] : memref<1x1x1x128xf32, #tpu.memory_space<vmem>>, vector<1x1x1x128xf32>
    %74 = vector.shape_cast %73 : vector<1x1x1x128xf32> to vector<1x1x128xf32>
    %75 = vector.shape_cast %72 : vector<1x1x128xf32> to vector<1x1x1x128xf32>
    tpu.vector_store %arg5[%c0_61, %c0_62, %c0_63, %c0_64], %75 {strides = array<i32>} : memref<1x1x1x128xf32, #tpu.memory_space<vmem>>, vector<1x1x1x128xf32>,
    return
  }
  func.func @transform_0(%arg0: i32, %arg1: i32) -> (i32, i32, i32, i32) {
    %c0_i32 = arith.constant 0 : i32
    %c0_i32_0 = arith.constant 0 : i32
    %c0_i32_1 = arith.constant 0 : i32
    %c0_i32_2 = arith.constant 0 : i32
    return %arg0, %c0_i32, %c0_i32_0, %c0_i32_1 : i32, i32, i32, i32
  }
  func.func @transform_1(%arg0: i32, %arg1: i32) -> (i32, i32) {
    %c0_i32 = arith.constant 0 : i32
    %c0_i32_0 = arith.constant 0 : i32
    %c0_i32_1 = arith.constant 0 : i32
    return %c0_i32, %c0_i32_0 : i32, i32
  }
  func.func @transform_2(%arg0: i32, %arg1: i32) -> (i32, i32) {
    %c0_i32 = arith.constant 0 : i32
    %c0_i32_0 = arith.constant 0 : i32
    %c0_i32_1 = arith.constant 0 : i32
    return %c0_i32, %c0_i32_0 : i32, i32
  }
  func.func @transform_3(%arg0: i32, %arg1: i32) -> (i32, i32, i32, i32) {
    %c0_i32 = arith.constant 0 : i32
    %c0_i32_0 = arith.constant 0 : i32
    %c0_i32_1 = arith.constant 0 : i32
    return %arg0, %arg1, %c0_i32, %c0_i32_0 : i32, i32, i32, i32
  }
}

</mosaic_0001>

<llo_original>
// kernel: tpu_custom_call.1
$region0: #{tpu_custom_call.1}
  #allocation0 [shape = 'u32[]', space=smem, size = 0x4, offset = 0x4, fixed_abs, tag = 'smem constant byte address 0x4 - core index']
  #allocation1 [shape = 'u32[72,128]{1,0:T(1,128)}', space=vmem, size = 0x9000, scoped, tag = 'internal scratch']
  %s0 = inlined_call_operand.hbm [shape: f32[8,128], index: 0, kind: input, shape index: {}]
  %s1 = inlined_call_operand.hbm [shape: f32[8,128], index: 1, kind: output, shape index: {}]
  %s2 = sld [smem:[#allocation0]]
  $region18: #{tpu_custom_call.1} parent=0
    _
  %s4 = ssub.s32 1, %s2
  %s5 = scalar_select 0, %s4, %s2
  $region1: #{tpu_custom_call.1} parent=0
    #allocation2 [shape = 'u8[4096]{0}', space=vmem, size = 0x1000, scoped, tag = 'input window, operand 0, single buffered']
    #allocation3 [shape = 's32[1]{0}', space=sflag, size = 0x4, scoped, tag = 'scoped memory for tpu_custom_call.1']
    #allocation4 [shape = 's32[1]{0}', space=sflag, size = 0x4, scoped, tag = 'scoped memory for tpu_custom_call.1']
    #allocation5 [shape = 'u8[4096]{0}', space=vmem, size = 0x1000, scoped, tag = 'output window, operand 0, single buffered']
    %6 = vsyncpa [#allocation3], 0
    %7 = vsyncpa [#allocation4], 0
    // Predicated region
    $region2: #{tpu_custom_call.1} parent=1 // pred_check
      _
    $region3: #{tpu_custom_call.1} parent=1 // pred_check_branch
      %9 = sbr.rel (0) target = $region5
    $region4: #{tpu_custom_call.1} parent=1 // pred_region
      %11 = vsyncadd [#allocation3], 0
      %s13 = sshll.u32 %s0, 4
      %s14 = int_to_ptr.hbm [resolvable:$true] %s13
      %s15 = sshll.u32 [#allocation2], 4
      %s16 = int_to_ptr.vmem [resolvable:$true] %s15
      %18 = dma.hbm_to_vmem [thread:$0]  %s14, 128, %s16, [#allocation3]
    $region5: #{tpu_custom_call.1} parent=1 // pred_fallthru
      _
    // Predicated region
    $region6: #{tpu_custom_call.1} parent=1 // pred_check
      _
    $region7: #{tpu_custom_call.1} parent=1 // pred_check_branch
      %20 = sbr.rel (0) target = $region9
    $region8: #{tpu_custom_call.1} parent=1 // pred_region
      %22 = dma.done [#allocation3], 128
    $region9: #{tpu_custom_call.1} parent=1 // pred_fallthru
      _
    %v23 = vld [vmem:[#allocation2] sm:$0xff]
    %v24 = vadd.f32 %v23, 1.0
    %25 = vst [vmem:[#allocation5] sm:$0xff] %v24
    // Predicated region
    $region10: #{tpu_custom_call.1} parent=1 // pred_check
      _
    $region11: #{tpu_custom_call.1} parent=1 // pred_check_branch
      %27 = sbr.rel (0) target = $region13
    $region12: #{tpu_custom_call.1} parent=1 // pred_region
      %29 = vsyncadd [#allocation4], 0
      %s31 = sshll.u32 [#allocation5], 4
      %s32 = int_to_ptr.vmem [resolvable:$true] %s31
      %s33 = sshll.u32 %s1, 4
      %s34 = int_to_ptr.hbm [resolvable:$true] %s33
      %36 = dma.vmem_to_hbm [thread:$0]  %s32, 128, %s34, [#allocation4]
    $region13: #{tpu_custom_call.1} parent=1 // pred_fallthru
      _
    // Predicated region
    $region14: #{tpu_custom_call.1} parent=1 // pred_check
      _
    $region15: #{tpu_custom_call.1} parent=1 // pred_check_branch
      %38 = sbr.rel (0) target = $region17
    $region16: #{tpu_custom_call.1} parent=1 // pred_region
      %40 = dma.done [#allocation4], 128
    $region17: #{tpu_custom_call.1} parent=1 // pred_fallthru
      _
    %41 = vsyncpa [#allocation3], 1
    %42 = vsyncpa [#allocation4], 1

// kernel: discriminator_forward.5
$region0: #{discriminator_forward.5}
  #allocation0 [shape = 'u32[]', space=smem, size = 0x4, offset = 0x4, fixed_abs, tag = 'smem constant byte address 0x4 - core index']
  #allocation1 [shape = 'u32[72,128]{1,0:T(1,128)}', space=vmem, size = 0x9000, scoped, tag = 'internal scratch']
  %s0 = inlined_call_operand.vmem [shape: bf16[2,33,33,8], index: 0, kind: input, shape index: {}]
  %s1 = inlined_call_operand.vmem [shape: bf16[32,128], index: 1, kind: input, shape index: {}]
  %s2 = inlined_call_operand.vmem [shape: f32[1,128], index: 2, kind: input, shape index: {}]
  %s3 = inlined_call_operand.vmem [shape: bf16[2,32,32,128], index: 3, kind: output, shape index: {}]
  %s4 = sld [smem:[#allocation0]]
  $region45: #{discriminator_forward.5} parent=0
    _
  %s6 = ssub.s32 1, %s4
  %s7 = scalar_select 0, %s6, %s4
  loop: start=0, step=1, limit=4
  $region2: #{discriminator_forward.5} parent=0 // loop_pre_header
    _
  $region3: #{discriminator_forward.5} parent=0 // loop_header
    %s9 = sphi 0, %s13
    %p10 = scmp.ge.s32.totalorder %s9, 4
    %s16 = sphi 0, %s28
    %s17 = sphi 0, %s24
    %s18 = sphi 0, %s16
    %s19 = sphi 0, %s17
    %s20 = sphi 0, %s18
    %s21 = sphi 0, %s19
    %s31 = sphi 0, %s33
    %s34 = sphi 0, %s31
    %s35 = sphi 0, %s34
    %s51 = sphi 0, %s35
    %s55 = sphi 0, %s55
    %s57 = sphi 0, %s55
    %s58 = sphi 0, %s57
    %s72 = sphi 0, %s58
    %s76 = sphi 0, %s76
    %s78 = sphi 0, %s76
    %s79 = sphi 0, %s78
    %s93 = sphi 0, %s79
    %s101 = sphi 0, %s103
    %s104 = sphi 0, %s101
    %s105 = sphi 0, %s104
    %s121 = sphi 0, %s105
  $region4: #{discriminator_forward.5} parent=0 // loop_header_branch
    %12 = sbr.rel (%p10) target = $region8
  $region5: #{discriminator_forward.5} parent=0 // loop_body
    %s14 = ssub.s32 %s9, 1
    %s15 = ssub.s32 %s9, 2
    %s22 = sadd.s32 1, %s17
    %p23 = scmp.ge.s32.totalorder %s22, 1
    %s24 = scalar_select %p23, 0, %s22
    %s25 = sadd.s32 1, %s16
    %s26 = scalar_select %p23, %s25, %s16
    %p27 = scmp.ge.s32.totalorder %s26, 2
    %s28 = scalar_select %p27, 0, %s26
    %s29 = ssub.s32 %s16, %s28
    %p30 = scmp.eq.s32.totalorder %s29, 0
    %s32 = sadd.s32 %s31, 1
    %s33 = scalar_select %p30, %s31, %s32
    %p36 = pneg %p30
    %p37 = scmp.eq.s32.totalorder %s9, 1
    %p38 = por %p36, %p37
    %p39 = scmp.ne.s32.totalorder %s31, %s34
    %p40 = scmp.eq.s32.totalorder %s9, 0
    %p41 = por %p39, %p40
    %p42 = scmp.ne.s32.totalorder %s31, %s34
    %p43 = scmp.eq.s32.totalorder %s14, 1
    %p44 = por %p42, %p43
    %p45 = scmp.ne.s32.totalorder %s34, %s35
    %p46 = scmp.eq.s32.totalorder %s14, 0
    %p47 = por %p45, %p46
    %p48 = scmp.ne.s32.totalorder %s34, %s35
    %p49 = scmp.eq.s32.totalorder %s15, 1
    %p50 = por %p48, %p49
    %p52 = scmp.ne.s32.totalorder %s35, %s51
    %p53 = scmp.eq.s32.totalorder %s15, 0
    %p54 = por %p52, %p53
    %s56 = sadd.s32 %s55, 1
    %p59 = scmp.eq.s32.totalorder %s9, 1
    %p60 = scmp.ne.s32.totalorder %s55, %s57
    %p61 = scmp.eq.s32.totalorder %s9, 0
    %p62 = por %p60, %p61
    %p63 = scmp.ne.s32.totalorder %s55, %s57
    %p64 = scmp.eq.s32.totalorder %s14, 1
    %p65 = por %p63, %p64
    %p66 = scmp.ne.s32.totalorder %s57, %s58
    %p67 = scmp.eq.s32.totalorder %s14, 0
    %p68 = por %p66, %p67
    %p69 = scmp.ne.s32.totalorder %s57, %s58
    %p70 = scmp.eq.s32.totalorder %s15, 1
    %p71 = por %p69, %p70
    %p73 = scmp.ne.s32.totalorder %s58, %s72
    %p74 = scmp.eq.s32.totalorder %s15, 0
    %p75 = por %p73, %p74
    %s77 = sadd.s32 %s76, 1
    %p80 = scmp.eq.s32.totalorder %s9, 1
    %p81 = scmp.ne.s32.totalorder %s76, %s78
    %p82 = scmp.eq.s32.totalorder %s9, 0
    %p83 = por %p81, %p82
    %p84 = scmp.ne.s32.totalorder %s76, %s78
    %p85 = scmp.eq.s32.totalorder %s14, 1
    %p86 = por %p84, %p85
    %p87 = scmp.ne.s32.totalorder %s78, %s79
    %p88 = scmp.eq.s32.totalorder %s14, 0
    %p89 = por %p87, %p88
    %p90 = scmp.ne.s32.totalorder %s78, %s79
    %p91 = scmp.eq.s32.totalorder %s15, 1
    %p92 = por %p90, %p91
    %p94 = scmp.ne.s32.totalorder %s79, %s93
    %p95 = scmp.eq.s32.totalorder %s15, 0
    %p96 = por %p94, %p95
    %s97 = ssub.s32 %s16, %s28
    %s98 = ssub.s32 %s17, %s24
    %s99 = sor.u32 %s97, %s98
    %p100 = scmp.eq.s32.totalorder %s99, 0
    %s102 = sadd.s32 %s101, 1
    %s103 = scalar_select %p100, %s101, %s102
    %p106 = pneg %p100
    %p107 = scmp.eq.s32.totalorder %s9, 1
    %p108 = por %p106, %p107
    %p109 = scmp.ne.s32.totalorder %s101, %s104
    %p110 = scmp.eq.s32.totalorder %s9, 0
    %p111 = por %p109, %p110
    %p112 = scmp.ne.s32.totalorder %s101, %s104
    %p113 = scmp.eq.s32.totalorder %s14, 1
    %p114 = por %p112, %p113
    %p115 = scmp.ne.s32.totalorder %s104, %s105
    %p116 = scmp.eq.s32.totalorder %s14, 0
    %p117 = por %p115, %p116
    %p118 = scmp.ne.s32.totalorder %s104, %s105
    %p119 = scmp.eq.s32.totalorder %s15, 1
    %p120 = por %p118, %p119
    %p122 = scmp.ne.s32.totalorder %s105, %s121
    %p123 = scmp.eq.s32.totalorder %s15, 0
    %p124 = por %p122, %p123
    %p125 = scmp.le.s32.totalorder 1, %s9
    %p126 = scmp.lt.s32.totalorder %s9, 3
    %p127 = pnand %p125, %p126
    %p128 = pneg %p127
    // Predicated region
    $region9: #{discriminator_forward.5} parent=5 // pred_check
      _
    $region10: #{discriminator_forward.5} parent=5 // pred_check_branch
      %130 = sbr.rel (%p127) target = $region12
    $region11: #{discriminator_forward.5} parent=5 // pred_region
      %s131 = ssub.s32 %s9, 1
      // Predicated region
      $region13: #{discriminator_forward.5} parent=11 // pred_check
        %p132 = pneg %p68
      $region14: #{discriminator_forward.5} parent=11 // pred_check_branch
        %134 = sbr.rel (%p132) target = $region16
      $region15: #{discriminator_forward.5} parent=11 // pred_region
        _
      $region16: #{discriminator_forward.5} parent=11 // pred_fallthru
        _
      // Predicated region
      $region17: #{discriminator_forward.5} parent=11 // pred_check
        %p135 = pneg %p89
      $region18: #{discriminator_forward.5} parent=11 // pred_check_branch
        %137 = sbr.rel (%p135) target = $region20
      $region19: #{discriminator_forward.5} parent=11 // pred_region
        _
      $region20: #{discriminator_forward.5} parent=11 // pred_fallthru
        _
    $region12: #{discriminator_forward.5} parent=5 // pred_fallthru
      _
    %p138 = scmp.lt.s32.totalorder %s9, 2
    // Predicated region
    $region21: #{discriminator_forward.5} parent=5 // pred_check
      %p139 = pneg %p138
    $region22: #{discriminator_forward.5} parent=5 // pred_check_branch
      %141 = sbr.rel (%p139) target = $region24
    $region23: #{discriminator_forward.5} parent=5 // pred_region
      // Predicated region
      $region25: #{discriminator_forward.5} parent=23 // pred_check
        %p142 = pneg %p41
      $region26: #{discriminator_forward.5} parent=23 // pred_check_branch
        %144 = sbr.rel (%p142) target = $region28
      $region27: #{discriminator_forward.5} parent=23 // pred_region
        %p145 = scmp.lt.s32.totalorder %s16, 1
        %s146 = scalar_select %p145, %s16, 1
        %s147 = smul.addr %s146, 165
        %s148 = smul.addr %s147, 4
        %s149 = scalar_lea.vmem %s0, %s148
      $region28: #{discriminator_forward.5} parent=23 // pred_fallthru
        _
    $region24: #{discriminator_forward.5} parent=5 // pred_fallthru
      _
    %p150 = scmp.le.s32.totalorder 1, %s9
    %p151 = scmp.lt.s32.totalorder %s9, 3
    %p152 = pnand %p150, %p151
    %p153 = pneg %p152
    // Predicated region
    $region29: #{discriminator_forward.5} parent=5 // pred_check
      _
    $region30: #{discriminator_forward.5} parent=5 // pred_check_branch
      %155 = sbr.rel (%p152) target = $region32
    $region31: #{discriminator_forward.5} parent=5 // pred_region
      %s156 = ssub.s32 %s9, 1
      %p157 = scmp.lt.s32.totalorder %s18, 1
      %s158 = scalar_select %p157, %s18, 1
      %s159 = smul.addr %s158, 165
      %s160 = smul.addr %s159, 4
      %s161 = scalar_lea.vmem %s0, %s160
      %p162 = pneg %p47
      %p163 = pneg %p44
      %p164 = pneg %p68
      %p165 = pneg %p65
      %p166 = pneg %p89
      %p167 = pneg %p86
      %p168 = pneg %p117
      %p169 = pneg %p114
      %s170 = smul.u32 32, %s19
      %p171 = scmp.lt.s32.totalorder %s18, 1
      %s172 = scalar_select %p171, %s18, 1
      %p173 = scmp.lt.s32.totalorder %s170, 31
      %s174 = scalar_select %p173, %s170, 31
      %s175 = smul.addr %s174, 4
      %s176 = smul.addr %s172, 128
      %s177 = sadd.s32 %s175, %s176
      %s178 = smul.addr %s177, 4
      %s179 = scalar_lea.vmem %s3, %s178
      %p180 = scmp.lt.s32.totalorder %s18, 1
      %s181 = scalar_select %p180, %s18, 1
      %s182 = smul.addr %s181, 165
      %s183 = smul.addr %s182, 4
      %s184 = scalar_lea.vmem %s0, %s183
      %s185 = smul.u32 32, %s19
      %p186 = scmp.lt.s32.totalorder %s18, 1
      %s187 = scalar_select %p186, %s18, 1
      %p188 = scmp.lt.s32.totalorder %s185, 31
      %s189 = scalar_select %p188, %s185, 31
      %s190 = smul.addr %s189, 4
      %s191 = smul.addr %s187, 128
      %s192 = sadd.s32 %s190, %s191
      %s193 = smul.addr %s192, 4
      %s194 = scalar_lea.vmem %s3, %s193
      %s195 = smul.u32 32, %s19
      %s197 = smul.u32 %s19, 32
      %s198 = smul.u32 %s197, 5
      %s199 = smul.addr %s198, 4
      %s200 = scalar_lea.vmem %s184, %s199
      %v201 = vld [vmem:[%s200] sm:$0xf]
      %v202 = vld [vmem:[%s200 + $0x4] sm:$0xf]
      %v203 = vld [vmem:[%s200 + $0x8] sm:$0xf]
      %v204 = vld [vmem:[%s200 + $0xc] sm:$0xf]
      %v205 = vld [vmem:[%s200 + $0x14] sm:$0xf]
      %v206 = vld [vmem:[%s200 + $0x18] sm:$0xf]
      %v207 = vld [vmem:[%s200 + $0x1c] sm:$0xf]
      %v208 = vld [vmem:[%s200 + $0x20] sm:$0xf]
      %v209 = vld [vmem:[%s200 + $0x28] sm:$0xf]
      %v210 = vld [vmem:[%s200 + $0x2c] sm:$0xf]
      %v211 = vld [vmem:[%s200 + $0x30] sm:$0xf]
      %v212 = vld [vmem:[%s200 + $0x34] sm:$0xf]
      %v213 = vld [vmem:[%s200 + $0x3c] sm:$0xf]
      %v214 = vld [vmem:[%s200 + $0x40] sm:$0xf]
      %v215 = vld [vmem:[%s200 + $0x44] sm:$0xf]
      %v216 = vld [vmem:[%s200 + $0x48] sm:$0xf]
      %v217 = vld [vmem:[%s200 + $0x50] sm:$0xf]
      %v218 = vld [vmem:[%s200 + $0x54] sm:$0xf]
      %v219 = vld [vmem:[%s200 + $0x58] sm:$0xf]
      %v220 = vld [vmem:[%s200 + $0x5c] sm:$0xf]
      %v221 = vld [vmem:[%s200 + $0x64] sm:$0xf]
      %v222 = vld [vmem:[%s200 + $0x68] sm:$0xf]
      %v223 = vld [vmem:[%s200 + $0x6c] sm:$0xf]
      %v224 = vld [vmem:[%s200 + $0x70] sm:$0xf]
      %v225 = vld [vmem:[%s200 + $0x78] sm:$0xf]
      %v226 = vld [vmem:[%s200 + $0x7c] sm:$0xf]
      %v227 = vld [vmem:[%s200 + $0x80] sm:$0xf]
      %v228 = vld [vmem:[%s200 + $0x84] sm:$0xf]
      %v229 = vld [vmem:[%s200 + $0x8c] sm:$0xf]
      %v230 = vld [vmem:[%s200 + $0x90] sm:$0xf]
      %v231 = vld [vmem:[%s200 + $0x94] sm:$0xf]
      %v232 = vld [vmem:[%s200 + $0x98] sm:$0xf]
      %v233 = vld [vmem:[%s200 + $0xa0] sm:$0xf]
      %v234 = vld [vmem:[%s200 + $0xa4] sm:$0xf]
      %v235 = vld [vmem:[%s200 + $0xa8] sm:$0xf]
      %v236 = vld [vmem:[%s200 + $0xac] sm:$0xf]
      %v237 = vld [vmem:[%s200 + $0xb4] sm:$0xf]
      %v238 = vld [vmem:[%s200 + $0xb8] sm:$0xf]
      %v239 = vld [vmem:[%s200 + $0xbc] sm:$0xf]
      %v240 = vld [vmem:[%s200 + $0xc0] sm:$0xf]
      %v241 = vld [vmem:[%s200 + $0xc8] sm:$0xf]
      %v242 = vld [vmem:[%s200 + $0xcc] sm:$0xf]
      %v243 = vld [vmem:[%s200 + $0xd0] sm:$0xf]
      %v244 = vld [vmem:[%s200 + $0xd4] sm:$0xf]
      %v245 = vld [vmem:[%s200 + $0xdc] sm:$0xf]
      %v246 = vld [vmem:[%s200 + $0xe0] sm:$0xf]
      %v247 = vld [vmem:[%s200 + $0xe4] sm:$0xf]
      %v248 = vld [vmem:[%s200 + $0xe8] sm:$0xf]
      %v249 = vld [vmem:[%s200 + $0xf0] sm:$0xf]
      %v250 = vld [vmem:[%s200 + $0xf4] sm:$0xf]
      %v251 = vld [vmem:[%s200 + $0xf8] sm:$0xf]
      %v252 = vld [vmem:[%s200 + $0xfc] sm:$0xf]
      %v253 = vld [vmem:[%s200 + $0x104] sm:$0xf]
      %v254 = vld [vmem:[%s200 + $0x108] sm:$0xf]
      %v255 = vld [vmem:[%s200 + $0x10c] sm:$0xf]
      %v256 = vld [vmem:[%s200 + $0x110] sm:$0xf]
      %v257 = vld [vmem:[%s200 + $0x118] sm:$0xf]
      %v258 = vld [vmem:[%s200 + $0x11c] sm:$0xf]
      %v259 = vld [vmem:[%s200 + $0x120] sm:$0xf]
      %v260 = vld [vmem:[%s200 + $0x124] sm:$0xf]
      %v261 = vld [vmem:[%s200 + $0x12c] sm:$0xf]
      %v262 = vld [vmem:[%s200 + $0x130] sm:$0xf]
      %v263 = vld [vmem:[%s200 + $0x134] sm:$0xf]
      %v264 = vld [vmem:[%s200 + $0x138] sm:$0xf]
      %v265 = vld [vmem:[%s200 + $0x140] sm:$0xf]
      %v266 = vld [vmem:[%s200 + $0x144] sm:$0xf]
      %v267 = vld [vmem:[%s200 + $0x148] sm:$0xf]
      %v268 = vld [vmem:[%s200 + $0x14c] sm:$0xf]
      %v269 = vld [vmem:[%s200 + $0x154] sm:$0xf]
      %v270 = vld [vmem:[%s200 + $0x158] sm:$0xf]
      %v271 = vld [vmem:[%s200 + $0x15c] sm:$0xf]
      %v272 = vld [vmem:[%s200 + $0x160] sm:$0xf]
      %v273 = vld [vmem:[%s200 + $0x168] sm:$0xf]
      %v274 = vld [vmem:[%s200 + $0x16c] sm:$0xf]
      %v275 = vld [vmem:[%s200 + $0x170] sm:$0xf]
      %v276 = vld [vmem:[%s200 + $0x174] sm:$0xf]
      %v277 = vld [vmem:[%s200 + $0x17c] sm:$0xf]
      %v278 = vld [vmem:[%s200 + $0x180] sm:$0xf]
      %v279 = vld [vmem:[%s200 + $0x184] sm:$0xf]
      %v280 = vld [vmem:[%s200 + $0x188] sm:$0xf]
      %v281 = vld [vmem:[%s200 + $0x190] sm:$0xf]
      %v282 = vld [vmem:[%s200 + $0x194] sm:$0xf]
      %v283 = vld [vmem:[%s200 + $0x198] sm:$0xf]
      %v284 = vld [vmem:[%s200 + $0x19c] sm:$0xf]
      %v285 = vld [vmem:[%s200 + $0x1a4] sm:$0xf]
      %v286 = vld [vmem:[%s200 + $0x1a8] sm:$0xf]
      %v287 = vld [vmem:[%s200 + $0x1ac] sm:$0xf]
      %v288 = vld [vmem:[%s200 + $0x1b0] sm:$0xf]
      %v289 = vld [vmem:[%s200 + $0x1b8] sm:$0xf]
      %v290 = vld [vmem:[%s200 + $0x1bc] sm:$0xf]
      %v291 = vld [vmem:[%s200 + $0x1c0] sm:$0xf]
      %v292 = vld [vmem:[%s200 + $0x1c4] sm:$0xf]
      %v293 = vld [vmem:[%s200 + $0x1cc] sm:$0xf]
      %v294 = vld [vmem:[%s200 + $0x1d0] sm:$0xf]
      %v295 = vld [vmem:[%s200 + $0x1d4] sm:$0xf]
      %v296 = vld [vmem:[%s200 + $0x1d8] sm:$0xf]
      %v297 = vld [vmem:[%s200 + $0x1e0] sm:$0xf]
      %v298 = vld [vmem:[%s200 + $0x1e4] sm:$0xf]
      %v299 = vld [vmem:[%s200 + $0x1e8] sm:$0xf]
      %v300 = vld [vmem:[%s200 + $0x1ec] sm:$0xf]
      %v301 = vld [vmem:[%s200 + $0x1f4] sm:$0xf]
      %v302 = vld [vmem:[%s200 + $0x1f8] sm:$0xf]
      %v303 = vld [vmem:[%s200 + $0x1fc] sm:$0xf]
      %v304 = vld [vmem:[%s200 + $0x200] sm:$0xf]
      %v305 = vld [vmem:[%s200 + $0x208] sm:$0xf]
      %v306 = vld [vmem:[%s200 + $0x20c] sm:$0xf]
      %v307 = vld [vmem:[%s200 + $0x210] sm:$0xf]
      %v308 = vld [vmem:[%s200 + $0x214] sm:$0xf]
      %v309 = vld [vmem:[%s200 + $0x21c] sm:$0xf]
      %v310 = vld [vmem:[%s200 + $0x220] sm:$0xf]
      %v311 = vld [vmem:[%s200 + $0x224] sm:$0xf]
      %v312 = vld [vmem:[%s200 + $0x228] sm:$0xf]
      %v313 = vld [vmem:[%s200 + $0x230] sm:$0xf]
      %v314 = vld [vmem:[%s200 + $0x234] sm:$0xf]
      %v315 = vld [vmem:[%s200 + $0x238] sm:$0xf]
      %v316 = vld [vmem:[%s200 + $0x23c] sm:$0xf]
      %v317 = vld [vmem:[%s200 + $0x244] sm:$0xf]
      %v318 = vld [vmem:[%s200 + $0x248] sm:$0xf]
      %v319 = vld [vmem:[%s200 + $0x24c] sm:$0xf]
      %v320 = vld [vmem:[%s200 + $0x250] sm:$0xf]
      %v321 = vld [vmem:[%s200 + $0x258] sm:$0xf]
      %v322 = vld [vmem:[%s200 + $0x25c] sm:$0xf]
      %v323 = vld [vmem:[%s200 + $0x260] sm:$0xf]
      %v324 = vld [vmem:[%s200 + $0x264] sm:$0xf]
      %v325 = vld [vmem:[%s200 + $0x26c] sm:$0xf]
      %v326 = vld [vmem:[%s200 + $0x270] sm:$0xf]
      %v327 = vld [vmem:[%s200 + $0x274] sm:$0xf]
      %v328 = vld [vmem:[%s200 + $0x278] sm:$0xf]
      %v329 = vld [vmem:[%s200 + $0x10] sm:$0x1]
      %v330 = vld [vmem:[%s200 + $0x24] sm:$0x1]
      %v331 = vld [vmem:[%s200 + $0x38] sm:$0x1]
      %v332 = vld [vmem:[%s200 + $0x4c] sm:$0x1]
      %v333 = vld [vmem:[%s200 + $0x60] sm:$0x1]
      %v334 = vld [vmem:[%s200 + $0x74] sm:$0x1]
      %v335 = vld [vmem:[%s200 + $0x88] sm:$0x1]
      %v336 = vld [vmem:[%s200 + $0x9c] sm:$0x1]
      %v337 = vld [vmem:[%s200 + $0xb0] sm:$0x1]
      %v338 = vld [vmem:[%s200 + $0xc4] sm:$0x1]
      %v339 = vld [vmem:[%s200 + $0xd8] sm:$0x1]
      %v340 = vld [vmem:[%s200 + $0xec] sm:$0x1]
      %v341 = vld [vmem:[%s200 + $0x100] sm:$0x1]
      %v342 = vld [vmem:[%s200 + $0x114] sm:$0x1]
      %v343 = vld [vmem:[%s200 + $0x128] sm:$0x1]
      %v344 = vld [vmem:[%s200 + $0x13c] sm:$0x1]
      %v345 = vld [vmem:[%s200 + $0x150] sm:$0x1]
      %v346 = vld [vmem:[%s200 + $0x164] sm:$0x1]
      %v347 = vld [vmem:[%s200 + $0x178] sm:$0x1]
      %v348 = vld [vmem:[%s200 + $0x18c] sm:$0x1]
      %v349 = vld [vmem:[%s200 + $0x1a0] sm:$0x1]
      %v350 = vld [vmem:[%s200 + $0x1b4] sm:$0x1]
      %v351 = vld [vmem:[%s200 + $0x1c8] sm:$0x1]
      %v352 = vld [vmem:[%s200 + $0x1dc] sm:$0x1]
      %v353 = vld [vmem:[%s200 + $0x1f0] sm:$0x1]
      %v354 = vld [vmem:[%s200 + $0x204] sm:$0x1]
      %v355 = vld [vmem:[%s200 + $0x218] sm:$0x1]
      %v356 = vld [vmem:[%s200 + $0x22c] sm:$0x1]
      %v357 = vld [vmem:[%s200 + $0x240] sm:$0x1]
      %v358 = vld [vmem:[%s200 + $0x254] sm:$0x1]
      %v359 = vld [vmem:[%s200 + $0x268] sm:$0x1]
      %v360 = vld [vmem:[%s200 + $0x27c] sm:$0x1]
      %s361 = sadd.s32 %s197, 1
      %s362 = smul.u32 %s361, 5
      %s363 = smul.addr %s362, 4
      %s364 = scalar_lea.vmem %s184, %s363
      %v365 = vld [vmem:[%s364] sm:$0xf]
      %v366 = vld [vmem:[%s364 + $0x4] sm:$0xf]
      %v367 = vld [vmem:[%s364 + $0x8] sm:$0xf]
      %v368 = vld [vmem:[%s364 + $0xc] sm:$0xf]
      %v369 = vld [vmem:[%s364 + $0x14] sm:$0xf]
      %v370 = vld [vmem:[%s364 + $0x18] sm:$0xf]
      %v371 = vld [vmem:[%s364 + $0x1c] sm:$0xf]
      %v372 = vld [vmem:[%s364 + $0x20] sm:$0xf]
      %v373 = vld [vmem:[%s364 + $0x28] sm:$0xf]
      %v374 = vld [vmem:[%s364 + $0x2c] sm:$0xf]
      %v375 = vld [vmem:[%s364 + $0x30] sm:$0xf]
      %v376 = vld [vmem:[%s364 + $0x34] sm:$0xf]
      %v377 = vld [vmem:[%s364 + $0x3c] sm:$0xf]
      %v378 = vld [vmem:[%s364 + $0x40] sm:$0xf]
      %v379 = vld [vmem:[%s364 + $0x44] sm:$0xf]
      %v380 = vld [vmem:[%s364 + $0x48] sm:$0xf]
      %v381 = vld [vmem:[%s364 + $0x50] sm:$0xf]
      %v382 = vld [vmem:[%s364 + $0x54] sm:$0xf]
      %v383 = vld [vmem:[%s364 + $0x58] sm:$0xf]
      %v384 = vld [vmem:[%s364 + $0x5c] sm:$0xf]
      %v385 = vld [vmem:[%s364 + $0x64] sm:$0xf]
      %v386 = vld [vmem:[%s364 + $0x68] sm:$0xf]
      %v387 = vld [vmem:[%s364 + $0x6c] sm:$0xf]
      %v388 = vld [vmem:[%s364 + $0x70] sm:$0xf]
      %v389 = vld [vmem:[%s364 + $0x78] sm:$0xf]
      %v390 = vld [vmem:[%s364 + $0x7c] sm:$0xf]
      %v391 = vld [vmem:[%s364 + $0x80] sm:$0xf]
      %v392 = vld [vmem:[%s364 + $0x84] sm:$0xf]
      %v393 = vld [vmem:[%s364 + $0x8c] sm:$0xf]
      %v394 = vld [vmem:[%s364 + $0x90] sm:$0xf]
      %v395 = vld [vmem:[%s364 + $0x94] sm:$0xf]
      %v396 = vld [vmem:[%s364 + $0x98] sm:$0xf]
      %v397 = vld [vmem:[%s364 + $0xa0] sm:$0xf]
      %v398 = vld [vmem:[%s364 + $0xa4] sm:$0xf]
      %v399 = vld [vmem:[%s364 + $0xa8] sm:$0xf]
      %v400 = vld [vmem:[%s364 + $0xac] sm:$0xf]
      %v401 = vld [vmem:[%s364 + $0xb4] sm:$0xf]
      %v402 = vld [vmem:[%s364 + $0xb8] sm:$0xf]
      %v403 = vld [vmem:[%s364 + $0xbc] sm:$0xf]
      %v404 = vld [vmem:[%s364 + $0xc0] sm:$0xf]
      %v405 = vld [vmem:[%s364 + $0xc8] sm:$0xf]
      %v406 = vld [vmem:[%s364 + $0xcc] sm:$0xf]
      %v407 = vld [vmem:[%s364 + $0xd0] sm:$0xf]
      %v408 = vld [vmem:[%s364 + $0xd4] sm:$0xf]
      %v409 = vld [vmem:[%s364 + $0xdc] sm:$0xf]
      %v410 = vld [vmem:[%s364 + $0xe0] sm:$0xf]
      %v411 = vld [vmem:[%s364 + $0xe4] sm:$0xf]
      %v412 = vld [vmem:[%s364 + $0xe8] sm:$0xf]
      %v413 = vld [vmem:[%s364 + $0xf0] sm:$0xf]
      %v414 = vld [vmem:[%s364 + $0xf4] sm:$0xf]
      %v415 = vld [vmem:[%s364 + $0xf8] sm:$0xf]
      %v416 = vld [vmem:[%s364 + $0xfc] sm:$0xf]
      %v417 = vld [vmem:[%s364 + $0x104] sm:$0xf]
      %v418 = vld [vmem:[%s364 + $0x108] sm:$0xf]
      %v419 = vld [vmem:[%s364 + $0x10c] sm:$0xf]
      %v420 = vld [vmem:[%s364 + $0x110] sm:$0xf]
      %v421 = vld [vmem:[%s364 + $0x118] sm:$0xf]
      %v422 = vld [vmem:[%s364 + $0x11c] sm:$0xf]
      %v423 = vld [vmem:[%s364 + $0x120] sm:$0xf]
      %v424 = vld [vmem:[%s364 + $0x124] sm:$0xf]
      %v425 = vld [vmem:[%s364 + $0x12c] sm:$0xf]
      %v426 = vld [vmem:[%s364 + $0x130] sm:$0xf]
      %v427 = vld [vmem:[%s364 + $0x134] sm:$0xf]
      %v428 = vld [vmem:[%s364 + $0x138] sm:$0xf]
      %v429 = vld [vmem:[%s364 + $0x140] sm:$0xf]
      %v430 = vld [vmem:[%s364 + $0x144] sm:$0xf]
      %v431 = vld [vmem:[%s364 + $0x148] sm:$0xf]
      %v432 = vld [vmem:[%s364 + $0x14c] sm:$0xf]
      %v433 = vld [vmem:[%s364 + $0x154] sm:$0xf]
      %v434 = vld [vmem:[%s364 + $0x158] sm:$0xf]
      %v435 = vld [vmem:[%s364 + $0x15c] sm:$0xf]
      %v436 = vld [vmem:[%s364 + $0x160] sm:$0xf]
      %v437 = vld [vmem:[%s364 + $0x168] sm:$0xf]
      %v438 = vld [vmem:[%s364 + $0x16c] sm:$0xf]
      %v439 = vld [vmem:[%s364 + $0x170] sm:$0xf]
      %v440 = vld [vmem:[%s364 + $0x174] sm:$0xf]
      %v441 = vld [vmem:[%s364 + $0x17c] sm:$0xf]
      %v442 = vld [vmem:[%s364 + $0x180] sm:$0xf]
      %v443 = vld [vmem:[%s364 + $0x184] sm:$0xf]
      %v444 = vld [vmem:[%s364 + $0x188] sm:$0xf]
      %v445 = vld [vmem:[%s364 + $0x190] sm:$0xf]
      %v446 = vld [vmem:[%s364 + $0x194] sm:$0xf]
      %v447 = vld [vmem:[%s364 + $0x198] sm:$0xf]
      %v448 = vld [vmem:[%s364 + $0x19c] sm:$0xf]
      %v449 = vld [vmem:[%s364 + $0x1a4] sm:$0xf]
      %v450 = vld [vmem:[%s364 + $0x1a8] sm:$0xf]
      %v451 = vld [vmem:[%s364 + $0x1ac] sm:$0xf]
      %v452 = vld [vmem:[%s364 + $0x1b0] sm:$0xf]
      %v453 = vld [vmem:[%s364 + $0x1b8] sm:$0xf]
      %v454 = vld [vmem:[%s364 + $0x1bc] sm:$0xf]
      %v455 = vld [vmem:[%s364 + $0x1c0] sm:$0xf]
      %v456 = vld [vmem:[%s364 + $0x1c4] sm:$0xf]
      %v457 = vld [vmem:[%s364 + $0x1cc] sm:$0xf]
      %v458 = vld [vmem:[%s364 + $0x1d0] sm:$0xf]
      %v459 = vld [vmem:[%s364 + $0x1d4] sm:$0xf]
      %v460 = vld [vmem:[%s364 + $0x1d8] sm:$0xf]
      %v461 = vld [vmem:[%s364 + $0x1e0] sm:$0xf]
      %v462 = vld [vmem:[%s364 + $0x1e4] sm:$0xf]
      %v463 = vld [vmem:[%s364 + $0x1e8] sm:$0xf]
      %v464 = vld [vmem:[%s364 + $0x1ec] sm:$0xf]
      %v465 = vld [vmem:[%s364 + $0x1f4] sm:$0xf]
      %v466 = vld [vmem:[%s364 + $0x1f8] sm:$0xf]
      %v467 = vld [vmem:[%s364 + $0x1fc] sm:$0xf]
      %v468 = vld [vmem:[%s364 + $0x200] sm:$0xf]
      %v469 = vld [vmem:[%s364 + $0x208] sm:$0xf]
      %v470 = vld [vmem:[%s364 + $0x20c] sm:$0xf]
      %v471 = vld [vmem:[%s364 + $0x210] sm:$0xf]
      %v472 = vld [vmem:[%s364 + $0x214] sm:$0xf]
      %v473 = vld [vmem:[%s364 + $0x21c] sm:$0xf]
      %v474 = vld [vmem:[%s364 + $0x220] sm:$0xf]
      %v475 = vld [vmem:[%s364 + $0x224] sm:$0xf]
      %v476 = vld [vmem:[%s364 + $0x228] sm:$0xf]
      %v477 = vld [vmem:[%s364 + $0x230] sm:$0xf]
      %v478 = vld [vmem:[%s364 + $0x234] sm:$0xf]
      %v479 = vld [vmem:[%s364 + $0x238] sm:$0xf]
      %v480 = vld [vmem:[%s364 + $0x23c] sm:$0xf]
      %v481 = vld [vmem:[%s364 + $0x244] sm:$0xf]
      %v482 = vld [vmem:[%s364 + $0x248] sm:$0xf]
      %v483 = vld [vmem:[%s364 + $0x24c] sm:$0xf]
      %v484 = vld [vmem:[%s364 + $0x250] sm:$0xf]
      %v485 = vld [vmem:[%s364 + $0x258] sm:$0xf]
      %v486 = vld [vmem:[%s364 + $0x25c] sm:$0xf]
      %v487 = vld [vmem:[%s364 + $0x260] sm:$0xf]
      %v488 = vld [vmem:[%s364 + $0x264] sm:$0xf]
      %v489 = vld [vmem:[%s364 + $0x26c] sm:$0xf]
      %v490 = vld [vmem:[%s364 + $0x270] sm:$0xf]
      %v491 = vld [vmem:[%s364 + $0x274] sm:$0xf]
      %v492 = vld [vmem:[%s364 + $0x278] sm:$0xf]
      %v493 = vld [vmem:[%s364 + $0x10] sm:$0x1]
      %v494 = vld [vmem:[%s364 + $0x24] sm:$0x1]
      %v495 = vld [vmem:[%s364 + $0x38] sm:$0x1]
      %v496 = vld [vmem:[%s364 + $0x4c] sm:$0x1]
      %v497 = vld [vmem:[%s364 + $0x60] sm:$0x1]
      %v498 = vld [vmem:[%s364 + $0x74] sm:$0x1]
      %v499 = vld [vmem:[%s364 + $0x88] sm:$0x1]
      %v500 = vld [vmem:[%s364 + $0x9c] sm:$0x1]
      %v501 = vld [vmem:[%s364 + $0xb0] sm:$0x1]
      %v502 = vld [vmem:[%s364 + $0xc4] sm:$0x1]
      %v503 = vld [vmem:[%s364 + $0xd8] sm:$0x1]
      %v504 = vld [vmem:[%s364 + $0xec] sm:$0x1]
      %v505 = vld [vmem:[%s364 + $0x100] sm:$0x1]
      %v506 = vld [vmem:[%s364 + $0x114] sm:$0x1]
      %v507 = vld [vmem:[%s364 + $0x128] sm:$0x1]
      %v508 = vld [vmem:[%s364 + $0x13c] sm:$0x1]
      %v509 = vld [vmem:[%s364 + $0x150] sm:$0x1]
      %v510 = vld [vmem:[%s364 + $0x164] sm:$0x1]
      %v511 = vld [vmem:[%s364 + $0x178] sm:$0x1]
      %v512 = vld [vmem:[%s364 + $0x18c] sm:$0x1]
      %v513 = vld [vmem:[%s364 + $0x1a0] sm:$0x1]
      %v514 = vld [vmem:[%s364 + $0x1b4] sm:$0x1]
      %v515 = vld [vmem:[%s364 + $0x1c8] sm:$0x1]
      %v516 = vld [vmem:[%s364 + $0x1dc] sm:$0x1]
      %v517 = vld [vmem:[%s364 + $0x1f0] sm:$0x1]
      %v518 = vld [vmem:[%s364 + $0x204] sm:$0x1]
      %v519 = vld [vmem:[%s364 + $0x218] sm:$0x1]
      %v520 = vld [vmem:[%s364 + $0x22c] sm:$0x1]
      %v521 = vld [vmem:[%s364 + $0x240] sm:$0x1]
      %v522 = vld [vmem:[%s364 + $0x254] sm:$0x1]
      %v523 = vld [vmem:[%s364 + $0x268] sm:$0x1]
      %v524 = vld [vmem:[%s364 + $0x27c] sm:$0x1]
      %v653 = vunpack.c.l.b16 %v201
      %v654 = vunpack.c.l.b16 %v202
      %v655 = vunpack.c.l.b16 %v203
      %v656 = vunpack.c.l.b16 %v204
      %v657 = vunpack.c.l.b16 %v205
      %v658 = vunpack.c.l.b16 %v206
      %v659 = vunpack.c.l.b16 %v207
      %v660 = vunpack.c.l.b16 %v208
      %v661 = vunpack.c.l.b16 %v209
      %v662 = vunpack.c.l.b16 %v210
      %v663 = vunpack.c.l.b16 %v211
      %v664 = vunpack.c.l.b16 %v212
      %v665 = vunpack.c.l.b16 %v213
      %v666 = vunpack.c.l.b16 %v214
      %v667 = vunpack.c.l.b16 %v215
      %v668 = vunpack.c.l.b16 %v216
      %v669 = vunpack.c.l.b16 %v217
      %v670 = vunpack.c.l.b16 %v218
      %v671 = vunpack.c.l.b16 %v219
      %v672 = vunpack.c.l.b16 %v220
      %v673 = vunpack.c.l.b16 %v221
      %v674 = vunpack.c.l.b16 %v222
      %v675 = vunpack.c.l.b16 %v223
      %v676 = vunpack.c.l.b16 %v224
      %v677 = vunpack.c.l.b16 %v225
      %v678 = vunpack.c.l.b16 %v226
      %v679 = vunpack.c.l.b16 %v227
      %v680 = vunpack.c.l.b16 %v228
      %v681 = vunpack.c.l.b16 %v229
      %v682 = vunpack.c.l.b16 %v230
      %v683 = vunpack.c.l.b16 %v231
      %v684 = vunpack.c.l.b16 %v232
      %v685 = vunpack.c.l.b16 %v233
      %v686 = vunpack.c.l.b16 %v234
      %v687 = vunpack.c.l.b16 %v235
      %v688 = vunpack.c.l.b16 %v236
      %v689 = vunpack.c.l.b16 %v237
      %v690 = vunpack.c.l.b16 %v238
      %v691 = vunpack.c.l.b16 %v239
      %v692 = vunpack.c.l.b16 %v240
      %v693 = vunpack.c.l.b16 %v241
      %v694 = vunpack.c.l.b16 %v242
      %v695 = vunpack.c.l.b16 %v243
      %v696 = vunpack.c.l.b16 %v244
      %v697 = vunpack.c.l.b16 %v245
      %v698 = vunpack.c.l.b16 %v246
      %v699 = vunpack.c.l.b16 %v247
      %v700 = vunpack.c.l.b16 %v248
      %v701 = vunpack.c.l.b16 %v249
      %v702 = vunpack.c.l.b16 %v250
      %v703 = vunpack.c.l.b16 %v251
      %v704 = vunpack.c.l.b16 %v252
      %v705 = vunpack.c.l.b16 %v253
      %v706 = vunpack.c.l.b16 %v254
      %v707 = vunpack.c.l.b16 %v255
      %v708 = vunpack.c.l.b16 %v256
      %v709 = vunpack.c.l.b16 %v257
      %v710 = vunpack.c.l.b16 %v258
      %v711 = vunpack.c.l.b16 %v259
      %v712 = vunpack.c.l.b16 %v260
      %v713 = vunpack.c.l.b16 %v261
      %v714 = vunpack.c.l.b16 %v262
      %v715 = vunpack.c.l.b16 %v263
      %v716 = vunpack.c.l.b16 %v264
      %v717 = vunpack.c.l.b16 %v265
      %v718 = vunpack.c.l.b16 %v266
      %v719 = vunpack.c.l.b16 %v267
      %v720 = vunpack.c.l.b16 %v268
      %v721 = vunpack.c.l.b16 %v269
      %v722 = vunpack.c.l.b16 %v270
      %v723 = vunpack.c.l.b16 %v271
      %v724 = vunpack.c.l.b16 %v272
      %v725 = vunpack.c.l.b16 %v273
      %v726 = vunpack.c.l.b16 %v274
      %v727 = vunpack.c.l.b16 %v275
      %v728 = vunpack.c.l.b16 %v276
      %v729 = vunpack.c.l.b16 %v277
      %v730 = vunpack.c.l.b16 %v278
      %v731 = vunpack.c.l.b16 %v279
      %v732 = vunpack.c.l.b16 %v280
      %v733 = vunpack.c.l.b16 %v281
      %v734 = vunpack.c.l.b16 %v282
      %v735 = vunpack.c.l.b16 %v283
      %v736 = vunpack.c.l.b16 %v284
      %v737 = vunpack.c.l.b16 %v285
      %v738 = vunpack.c.l.b16 %v286
      %v739 = vunpack.c.l.b16 %v287
      %v740 = vunpack.c.l.b16 %v288
      %v741 = vunpack.c.l.b16 %v289
      %v742 = vunpack.c.l.b16 %v290
      %v743 = vunpack.c.l.b16 %v291
      %v744 = vunpack.c.l.b16 %v292
      %v745 = vunpack.c.l.b16 %v293
      %v746 = vunpack.c.l.b16 %v294
      %v747 = vunpack.c.l.b16 %v295
      %v748 = vunpack.c.l.b16 %v296
      %v749 = vunpack.c.l.b16 %v297
      %v750 = vunpack.c.l.b16 %v298
      %v751 = vunpack.c.l.b16 %v299
      %v752 = vunpack.c.l.b16 %v300
      %v753 = vunpack.c.l.b16 %v301
      %v754 = vunpack.c.l.b16 %v302
      %v755 = vunpack.c.l.b16 %v303
      %v756 = vunpack.c.l.b16 %v304
      %v757 = vunpack.c.l.b16 %v305
      %v758 = vunpack.c.l.b16 %v306
      %v759 = vunpack.c.l.b16 %v307
      %v760 = vunpack.c.l.b16 %v308
      %v761 = vunpack.c.l.b16 %v309
      %v762 = vunpack.c.l.b16 %v310
      %v763 = vunpack.c.l.b16 %v311
      %v764 = vunpack.c.l.b16 %v312
      %v765 = vunpack.c.l.b16 %v313
      %v766 = vunpack.c.l.b16 %v314
      %v767 = vunpack.c.l.b16 %v315
      %v768 = vunpack.c.l.b16 %v316
      %v769 = vunpack.c.l.b16 %v317
      %v770 = vunpack.c.l.b16 %v318
      %v771 = vunpack.c.l.b16 %v319
      %v772 = vunpack.c.l.b16 %v320
      %v773 = vunpack.c.l.b16 %v321
      %v774 = vunpack.c.l.b16 %v322
      %v775 = vunpack.c.l.b16 %v323
      %v776 = vunpack.c.l.b16 %v324
      %v777 = vunpack.c.l.b16 %v325
      %v778 = vunpack.c.l.b16 %v326
      %v779 = vunpack.c.l.b16 %v327
      %v780 = vunpack.c.l.b16 %v328
      %v781 = vpack.c.b16 %v654, %v653
      %v782 = vpack.c.b16 %v656, %v655
      %v783 = vpack.c.b16 %v658, %v657
      %v784 = vpack.c.b16 %v660, %v659
      %v785 = vpack.c.b16 %v662, %v661
      %v786 = vpack.c.b16 %v664, %v663
      %v787 = vpack.c.b16 %v666, %v665
      %v788 = vpack.c.b16 %v668, %v667
      %v789 = vpack.c.b16 %v670, %v669
      %v790 = vpack.c.b16 %v672, %v671
      %v791 = vpack.c.b16 %v674, %v673
      %v792 = vpack.c.b16 %v676, %v675
      %v793 = vpack.c.b16 %v678, %v677
      %v794 = vpack.c.b16 %v680, %v679
      %v795 = vpack.c.b16 %v682, %v681
      %v796 = vpack.c.b16 %v684, %v683
      %v797 = vpack.c.b16 %v686, %v685
      %v798 = vpack.c.b16 %v688, %v687
      %v799 = vpack.c.b16 %v690, %v689
      %v800 = vpack.c.b16 %v692, %v691
      %v801 = vpack.c.b16 %v694, %v693
      %v802 = vpack.c.b16 %v696, %v695
      %v803 = vpack.c.b16 %v698, %v697
      %v804 = vpack.c.b16 %v700, %v699
      %v805 = vpack.c.b16 %v702, %v701
      %v806 = vpack.c.b16 %v704, %v703
      %v807 = vpack.c.b16 %v706, %v705
      %v808 = vpack.c.b16 %v708, %v707
      %v809 = vpack.c.b16 %v710, %v709
      %v810 = vpack.c.b16 %v712, %v711
      %v811 = vpack.c.b16 %v714, %v713
      %v812 = vpack.c.b16 %v716, %v715
      %v813 = vpack.c.b16 %v718, %v717
      %v814 = vpack.c.b16 %v720, %v719
      %v815 = vpack.c.b16 %v722, %v721
      %v816 = vpack.c.b16 %v724, %v723
      %v817 = vpack.c.b16 %v726, %v725
      %v818 = vpack.c.b16 %v728, %v727
      %v819 = vpack.c.b16 %v730, %v729
      %v820 = vpack.c.b16 %v732, %v731
      %v821 = vpack.c.b16 %v734, %v733
      %v822 = vpack.c.b16 %v736, %v735
      %v823 = vpack.c.b16 %v738, %v737
      %v824 = vpack.c.b16 %v740, %v739
      %v825 = vpack.c.b16 %v742, %v741
      %v826 = vpack.c.b16 %v744, %v743
      %v827 = vpack.c.b16 %v746, %v745
      %v828 = vpack.c.b16 %v748, %v747
      %v829 = vpack.c.b16 %v750, %v749
      %v830 = vpack.c.b16 %v752, %v751
      %v831 = vpack.c.b16 %v754, %v753
      %v832 = vpack.c.b16 %v756, %v755
      %v833 = vpack.c.b16 %v758, %v757
      %v834 = vpack.c.b16 %v760, %v759
      %v835 = vpack.c.b16 %v762, %v761
      %v836 = vpack.c.b16 %v764, %v763
      %v837 = vpack.c.b16 %v766, %v765
      %v838 = vpack.c.b16 %v768, %v767
      %v839 = vpack.c.b16 %v770, %v769
      %v840 = vpack.c.b16 %v772, %v771
      %v841 = vpack.c.b16 %v774, %v773
      %v842 = vpack.c.b16 %v776, %v775
      %v843 = vpack.c.b16 %v778, %v777
      %v844 = vpack.c.b16 %v780, %v779
      %v877 = vunpack.c.l.b16 %v329
      %v878 = vunpack.c.l.b16 %v330
      %v879 = vunpack.c.l.b16 %v331
      %v880 = vunpack.c.l.b16 %v332
      %v881 = vunpack.c.l.b16 %v333
      %v882 = vunpack.c.l.b16 %v334
      %v883 = vunpack.c.l.b16 %v335
      %v884 = vunpack.c.l.b16 %v336
      %v885 = vunpack.c.l.b16 %v337
      %v886 = vunpack.c.l.b16 %v338
      %v887 = vunpack.c.l.b16 %v339
      %v888 = vunpack.c.l.b16 %v340
      %v889 = vunpack.c.l.b16 %v341
      %v890 = vunpack.c.l.b16 %v342
      %v891 = vunpack.c.l.b16 %v343
      %v892 = vunpack.c.l.b16 %v344
      %v893 = vunpack.c.l.b16 %v345
      %v894 = vunpack.c.l.b16 %v346
      %v895 = vunpack.c.l.b16 %v347
      %v896 = vunpack.c.l.b16 %v348
      %v897 = vunpack.c.l.b16 %v349
      %v898 = vunpack.c.l.b16 %v350
      %v899 = vunpack.c.l.b16 %v351
      %v900 = vunpack.c.l.b16 %v352
      %v901 = vunpack.c.l.b16 %v353
      %v902 = vunpack.c.l.b16 %v354
      %v903 = vunpack.c.l.b16 %v355
      %v904 = vunpack.c.l.b16 %v356
      %v905 = vunpack.c.l.b16 %v357
      %v906 = vunpack.c.l.b16 %v358
      %v907 = vunpack.c.l.b16 %v359
      %v908 = vunpack.c.l.b16 %v360
      %v909 = vpack.c.b16 %v877, %v877
      %v910 = vpack.c.b16 %v878, %v878
      %v911 = vpack.c.b16 %v879, %v879
      %v912 = vpack.c.b16 %v880, %v880
      %v913 = vpack.c.b16 %v881, %v881
      %v914 = vpack.c.b16 %v882, %v882
      %v915 = vpack.c.b16 %v883, %v883
      %v916 = vpack.c.b16 %v884, %v884
      %v917 = vpack.c.b16 %v885, %v885
      %v918 = vpack.c.b16 %v886, %v886
      %v919 = vpack.c.b16 %v887, %v887
      %v920 = vpack.c.b16 %v888, %v888
      %v921 = vpack.c.b16 %v889, %v889
      %v922 = vpack.c.b16 %v890, %v890
      %v923 = vpack.c.b16 %v891, %v891
      %v924 = vpack.c.b16 %v892, %v892
      %v925 = vpack.c.b16 %v893, %v893
      %v926 = vpack.c.b16 %v894, %v894
      %v927 = vpack.c.b16 %v895, %v895
      %v928 = vpack.c.b16 %v896, %v896
      %v929 = vpack.c.b16 %v897, %v897
      %v930 = vpack.c.b16 %v898, %v898
      %v931 = vpack.c.b16 %v899, %v899
      %v932 = vpack.c.b16 %v900, %v900
      %v933 = vpack.c.b16 %v901, %v901
      %v934 = vpack.c.b16 %v902, %v902
      %v935 = vpack.c.b16 %v903, %v903
      %v936 = vpack.c.b16 %v904, %v904
      %v937 = vpack.c.b16 %v905, %v905
      %v938 = vpack.c.b16 %v906, %v906
      %v939 = vpack.c.b16 %v907, %v907
      %v940 = vpack.c.b16 %v908, %v908
      %vm941 = vsmask.f32 7424
      %v943 = vshrl.u32 %v781, 16
      %v945 = vshll.u32 %v781, 16
      %v947 = vrot.slane %v945, 1
      %v948 = vor.u32 %v943, %v947
      %v950 = vshll.u32 %v782, 16
      %v952 = vrot.slane %v950, 1
      %v953 = vsel %vm941, %v948, %v952
      %v954 = vshrl.u32 %v782, 16
      %v956 = vor.u32 %v954, %v952
      %v958 = vshll.u32 %v909, 16
      %v960 = vrot.slane %v958, 1
      %v961 = vsel %vm941, %v956, %v960
      %v963 = vshrl.u32 %v783, 16
      %v965 = vshll.u32 %v783, 16
      %v967 = vrot.slane %v965, 1
      %v968 = vor.u32 %v963, %v967
      %v970 = vshll.u32 %v784, 16
      %v972 = vrot.slane %v970, 1
      %v973 = vsel %vm941, %v968, %v972
      %v974 = vshrl.u32 %v784, 16
      %v976 = vor.u32 %v974, %v972
      %v978 = vshll.u32 %v910, 16
      %v980 = vrot.slane %v978, 1
      %v981 = vsel %vm941, %v976, %v980
      %v983 = vshrl.u32 %v785, 16
      %v985 = vshll.u32 %v785, 16
      %v987 = vrot.slane %v985, 1
      %v988 = vor.u32 %v983, %v987
      %v990 = vshll.u32 %v786, 16
      %v992 = vrot.slane %v990, 1
      %v993 = vsel %vm941, %v988, %v992
      %v994 = vshrl.u32 %v786, 16
      %v996 = vor.u32 %v994, %v992
      %v998 = vshll.u32 %v911, 16
      %v1000 = vrot.slane %v998, 1
      %v1001 = vsel %vm941, %v996, %v1000
      %v1003 = vshrl.u32 %v787, 16
      %v1005 = vshll.u32 %v787, 16
      %v1007 = vrot.slane %v1005, 1
      %v1008 = vor.u32 %v1003, %v1007
      %v1010 = vshll.u32 %v788, 16
      %v1012 = vrot.slane %v1010, 1
      %v1013 = vsel %vm941, %v1008, %v1012
      %v1014 = vshrl.u32 %v788, 16
      %v1016 = vor.u32 %v1014, %v1012
      %v1018 = vshll.u32 %v912, 16
      %v1020 = vrot.slane %v1018, 1
      %v1021 = vsel %vm941, %v1016, %v1020
      %v1023 = vshrl.u32 %v789, 16
      %v1025 = vshll.u32 %v789, 16
      %v1027 = vrot.slane %v1025, 1
      %v1028 = vor.u32 %v1023, %v1027
      %v1030 = vshll.u32 %v790, 16
      %v1032 = vrot.slane %v1030, 1
      %v1033 = vsel %vm941, %v1028, %v1032
      %v1034 = vshrl.u32 %v790, 16
      %v1036 = vor.u32 %v1034, %v1032
      %v1038 = vshll.u32 %v913, 16
      %v1040 = vrot.slane %v1038, 1
      %v1041 = vsel %vm941, %v1036, %v1040
      %v1043 = vshrl.u32 %v791, 16
      %v1045 = vshll.u32 %v791, 16
      %v1047 = vrot.slane %v1045, 1
      %v1048 = vor.u32 %v1043, %v1047
      %v1050 = vshll.u32 %v792, 16
      %v1052 = vrot.slane %v1050, 1
      %v1053 = vsel %vm941, %v1048, %v1052
      %v1054 = vshrl.u32 %v792, 16
      %v1056 = vor.u32 %v1054, %v1052
      %v1058 = vshll.u32 %v914, 16
      %v1060 = vrot.slane %v1058, 1
      %v1061 = vsel %vm941, %v1056, %v1060
      %v1063 = vshrl.u32 %v793, 16
      %v1065 = vshll.u32 %v793, 16
      %v1067 = vrot.slane %v1065, 1
      %v1068 = vor.u32 %v1063, %v1067
      %v1070 = vshll.u32 %v794, 16
      %v1072 = vrot.slane %v1070, 1
      %v1073 = vsel %vm941, %v1068, %v1072
      %v1074 = vshrl.u32 %v794, 16
      %v1076 = vor.u32 %v1074, %v1072
      %v1078 = vshll.u32 %v915, 16
      %v1080 = vrot.slane %v1078, 1
      %v1081 = vsel %vm941, %v1076, %v1080
      %v1083 = vshrl.u32 %v795, 16
      %v1085 = vshll.u32 %v795, 16
      %v1087 = vrot.slane %v1085, 1
      %v1088 = vor.u32 %v1083, %v1087
      %v1090 = vshll.u32 %v796, 16
      %v1092 = vrot.slane %v1090, 1
      %v1093 = vsel %vm941, %v1088, %v1092
      %v1094 = vshrl.u32 %v796, 16
      %v1096 = vor.u32 %v1094, %v1092
      %v1098 = vshll.u32 %v916, 16
      %v1100 = vrot.slane %v1098, 1
      %v1101 = vsel %vm941, %v1096, %v1100
      %v1103 = vshrl.u32 %v797, 16
      %v1105 = vshll.u32 %v797, 16
      %v1107 = vrot.slane %v1105, 1
      %v1108 = vor.u32 %v1103, %v1107
      %v1110 = vshll.u32 %v798, 16
      %v1112 = vrot.slane %v1110, 1
      %v1113 = vsel %vm941, %v1108, %v1112
      %v1114 = vshrl.u32 %v798, 16
      %v1116 = vor.u32 %v1114, %v1112
      %v1118 = vshll.u32 %v917, 16
      %v1120 = vrot.slane %v1118, 1
      %v1121 = vsel %vm941, %v1116, %v1120
      %v1123 = vshrl.u32 %v799, 16
      %v1125 = vshll.u32 %v799, 16
      %v1127 = vrot.slane %v1125, 1
      %v1128 = vor.u32 %v1123, %v1127
      %v1130 = vshll.u32 %v800, 16
      %v1132 = vrot.slane %v1130, 1
      %v1133 = vsel %vm941, %v1128, %v1132
      %v1134 = vshrl.u32 %v800, 16
      %v1136 = vor.u32 %v1134, %v1132
      %v1138 = vshll.u32 %v918, 16
      %v1140 = vrot.slane %v1138, 1
      %v1141 = vsel %vm941, %v1136, %v1140
      %v1143 = vshrl.u32 %v801, 16
      %v1145 = vshll.u32 %v801, 16
      %v1147 = vrot.slane %v1145, 1
      %v1148 = vor.u32 %v1143, %v1147
      %v1150 = vshll.u32 %v802, 16
      %v1152 = vrot.slane %v1150, 1
      %v1153 = vsel %vm941, %v1148, %v1152
      %v1154 = vshrl.u32 %v802, 16
      %v1156 = vor.u32 %v1154, %v1152
      %v1158 = vshll.u32 %v919, 16
      %v1160 = vrot.slane %v1158, 1
      %v1161 = vsel %vm941, %v1156, %v1160
      %v1163 = vshrl.u32 %v803, 16
      %v1165 = vshll.u32 %v803, 16
      %v1167 = vrot.slane %v1165, 1
      %v1168 = vor.u32 %v1163, %v1167
      %v1170 = vshll.u32 %v804, 16
      %v1172 = vrot.slane %v1170, 1
      %v1173 = vsel %vm941, %v1168, %v1172
      %v1174 = vshrl.u32 %v804, 16
      %v1176 = vor.u32 %v1174, %v1172
      %v1178 = vshll.u32 %v920, 16
      %v1180 = vrot.slane %v1178, 1
      %v1181 = vsel %vm941, %v1176, %v1180
      %v1183 = vshrl.u32 %v805, 16
      %v1185 = vshll.u32 %v805, 16
      %v1187 = vrot.slane %v1185, 1
      %v1188 = vor.u32 %v1183, %v1187
      %v1190 = vshll.u32 %v806, 16
      %v1192 = vrot.slane %v1190, 1
      %v1193 = vsel %vm941, %v1188, %v1192
      %v1194 = vshrl.u32 %v806, 16
      %v1196 = vor.u32 %v1194, %v1192
      %v1198 = vshll.u32 %v921, 16
      %v1200 = vrot.slane %v1198, 1
      %v1201 = vsel %vm941, %v1196, %v1200
      %v1203 = vshrl.u32 %v807, 16
      %v1205 = vshll.u32 %v807, 16
      %v1207 = vrot.slane %v1205, 1
      %v1208 = vor.u32 %v1203, %v1207
      %v1210 = vshll.u32 %v808, 16
      %v1212 = vrot.slane %v1210, 1
      %v1213 = vsel %vm941, %v1208, %v1212
      %v1214 = vshrl.u32 %v808, 16
      %v1216 = vor.u32 %v1214, %v1212
      %v1218 = vshll.u32 %v922, 16
      %v1220 = vrot.slane %v1218, 1
      %v1221 = vsel %vm941, %v1216, %v1220
      %v1223 = vshrl.u32 %v809, 16
      %v1225 = vshll.u32 %v809, 16
      %v1227 = vrot.slane %v1225, 1
      %v1228 = vor.u32 %v1223, %v1227
      %v1230 = vshll.u32 %v810, 16
      %v1232 = vrot.slane %v1230, 1
      %v1233 = vsel %vm941, %v1228, %v1232
      %v1234 = vshrl.u32 %v810, 16
      %v1236 = vor.u32 %v1234, %v1232
      %v1238 = vshll.u32 %v923, 16
      %v1240 = vrot.slane %v1238, 1
      %v1241 = vsel %vm941, %v1236, %v1240
      %v1243 = vshrl.u32 %v811, 16
      %v1245 = vshll.u32 %v811, 16
      %v1247 = vrot.slane %v1245, 1
      %v1248 = vor.u32 %v1243, %v1247
      %v1250 = vshll.u32 %v812, 16
      %v1252 = vrot.slane %v1250, 1
      %v1253 = vsel %vm941, %v1248, %v1252
      %v1254 = vshrl.u32 %v812, 16
      %v1256 = vor.u32 %v1254, %v1252
      %v1258 = vshll.u32 %v924, 16
      %v1260 = vrot.slane %v1258, 1
      %v1261 = vsel %vm941, %v1256, %v1260
      %v1263 = vshrl.u32 %v813, 16
      %v1265 = vshll.u32 %v813, 16
      %v1267 = vrot.slane %v1265, 1
      %v1268 = vor.u32 %v1263, %v1267
      %v1270 = vshll.u32 %v814, 16
      %v1272 = vrot.slane %v1270, 1
      %v1273 = vsel %vm941, %v1268, %v1272
      %v1274 = vshrl.u32 %v814, 16
      %v1276 = vor.u32 %v1274, %v1272
      %v1278 = vshll.u32 %v925, 16
      %v1280 = vrot.slane %v1278, 1
      %v1281 = vsel %vm941, %v1276, %v1280
      %v1283 = vshrl.u32 %v815, 16
      %v1285 = vshll.u32 %v815, 16
      %v1287 = vrot.slane %v1285, 1
      %v1288 = vor.u32 %v1283, %v1287
      %v1290 = vshll.u32 %v816, 16
      %v1292 = vrot.slane %v1290, 1
      %v1293 = vsel %vm941, %v1288, %v1292
      %v1294 = vshrl.u32 %v816, 16
      %v1296 = vor.u32 %v1294, %v1292
      %v1298 = vshll.u32 %v926, 16
      %v1300 = vrot.slane %v1298, 1
      %v1301 = vsel %vm941, %v1296, %v1300
      %v1303 = vshrl.u32 %v817, 16
      %v1305 = vshll.u32 %v817, 16
      %v1307 = vrot.slane %v1305, 1
      %v1308 = vor.u32 %v1303, %v1307
      %v1310 = vshll.u32 %v818, 16
      %v1312 = vrot.slane %v1310, 1
      %v1313 = vsel %vm941, %v1308, %v1312
      %v1314 = vshrl.u32 %v818, 16
      %v1316 = vor.u32 %v1314, %v1312
      %v1318 = vshll.u32 %v927, 16
      %v1320 = vrot.slane %v1318, 1
      %v1321 = vsel %vm941, %v1316, %v1320
      %v1323 = vshrl.u32 %v819, 16
      %v1325 = vshll.u32 %v819, 16
      %v1327 = vrot.slane %v1325, 1
      %v1328 = vor.u32 %v1323, %v1327
      %v1330 = vshll.u32 %v820, 16
      %v1332 = vrot.slane %v1330, 1
      %v1333 = vsel %vm941, %v1328, %v1332
      %v1334 = vshrl.u32 %v820, 16
      %v1336 = vor.u32 %v1334, %v1332
      %v1338 = vshll.u32 %v928, 16
      %v1340 = vrot.slane %v1338, 1
      %v1341 = vsel %vm941, %v1336, %v1340
      %v1343 = vshrl.u32 %v821, 16
      %v1345 = vshll.u32 %v821, 16
      %v1347 = vrot.slane %v1345, 1
      %v1348 = vor.u32 %v1343, %v1347
      %v1350 = vshll.u32 %v822, 16
      %v1352 = vrot.slane %v1350, 1
      %v1353 = vsel %vm941, %v1348, %v1352
      %v1354 = vshrl.u32 %v822, 16
      %v1356 = vor.u32 %v1354, %v1352
      %v1358 = vshll.u32 %v929, 16
      %v1360 = vrot.slane %v1358, 1
      %v1361 = vsel %vm941, %v1356, %v1360
      %v1363 = vshrl.u32 %v823, 16
      %v1365 = vshll.u32 %v823, 16
      %v1367 = vrot.slane %v1365, 1
      %v1368 = vor.u32 %v1363, %v1367
      %v1370 = vshll.u32 %v824, 16
      %v1372 = vrot.slane %v1370, 1
      %v1373 = vsel %vm941, %v1368, %v1372
      %v1374 = vshrl.u32 %v824, 16
      %v1376 = vor.u32 %v1374, %v1372
      %v1378 = vshll.u32 %v930, 16
      %v1380 = vrot.slane %v1378, 1
      %v1381 = vsel %vm941, %v1376, %v1380
      %v1383 = vshrl.u32 %v825, 16
      %v1385 = vshll.u32 %v825, 16
      %v1387 = vrot.slane %v1385, 1
      %v1388 = vor.u32 %v1383, %v1387
      %v1390 = vshll.u32 %v826, 16
      %v1392 = vrot.slane %v1390, 1
      %v1393 = vsel %vm941, %v1388, %v1392
      %v1394 = vshrl.u32 %v826, 16
      %v1396 = vor.u32 %v1394, %v1392
      %v1398 = vshll.u32 %v931, 16
      %v1400 = vrot.slane %v1398, 1
      %v1401 = vsel %vm941, %v1396, %v1400
      %v1403 = vshrl.u32 %v827, 16
      %v1405 = vshll.u32 %v827, 16
      %v1407 = vrot.slane %v1405, 1
      %v1408 = vor.u32 %v1403, %v1407
      %v1410 = vshll.u32 %v828, 16
      %v1412 = vrot.slane %v1410, 1
      %v1413 = vsel %vm941, %v1408, %v1412
      %v1414 = vshrl.u32 %v828, 16
      %v1416 = vor.u32 %v1414, %v1412
      %v1418 = vshll.u32 %v932, 16
      %v1420 = vrot.slane %v1418, 1
      %v1421 = vsel %vm941, %v1416, %v1420
      %v1423 = vshrl.u32 %v829, 16
      %v1425 = vshll.u32 %v829, 16
      %v1427 = vrot.slane %v1425, 1
      %v1428 = vor.u32 %v1423, %v1427
      %v1430 = vshll.u32 %v830, 16
      %v1432 = vrot.slane %v1430, 1
      %v1433 = vsel %vm941, %v1428, %v1432
      %v1434 = vshrl.u32 %v830, 16
      %v1436 = vor.u32 %v1434, %v1432
      %v1438 = vshll.u32 %v933, 16
      %v1440 = vrot.slane %v1438, 1
      %v1441 = vsel %vm941, %v1436, %v1440
      %v1443 = vshrl.u32 %v831, 16
      %v1445 = vshll.u32 %v831, 16
      %v1447 = vrot.slane %v1445, 1
      %v1448 = vor.u32 %v1443, %v1447
      %v1450 = vshll.u32 %v832, 16
      %v1452 = vrot.slane %v1450, 1
      %v1453 = vsel %vm941, %v1448, %v1452
      %v1454 = vshrl.u32 %v832, 16
      %v1456 = vor.u32 %v1454, %v1452
      %v1458 = vshll.u32 %v934, 16
      %v1460 = vrot.slane %v1458, 1
      %v1461 = vsel %vm941, %v1456, %v1460
      %v1463 = vshrl.u32 %v833, 16
      %v1465 = vshll.u32 %v833, 16
      %v1467 = vrot.slane %v1465, 1
      %v1468 = vor.u32 %v1463, %v1467
      %v1470 = vshll.u32 %v834, 16
      %v1472 = vrot.slane %v1470, 1
      %v1473 = vsel %vm941, %v1468, %v1472
      %v1474 = vshrl.u32 %v834, 16
      %v1476 = vor.u32 %v1474, %v1472
      %v1478 = vshll.u32 %v935, 16
      %v1480 = vrot.slane %v1478, 1
      %v1481 = vsel %vm941, %v1476, %v1480
      %v1483 = vshrl.u32 %v835, 16
      %v1485 = vshll.u32 %v835, 16
      %v1487 = vrot.slane %v1485, 1
      %v1488 = vor.u32 %v1483, %v1487
      %v1490 = vshll.u32 %v836, 16
      %v1492 = vrot.slane %v1490, 1
      %v1493 = vsel %vm941, %v1488, %v1492
      %v1494 = vshrl.u32 %v836, 16
      %v1496 = vor.u32 %v1494, %v1492
      %v1498 = vshll.u32 %v936, 16
      %v1500 = vrot.slane %v1498, 1
      %v1501 = vsel %vm941, %v1496, %v1500
      %v1503 = vshrl.u32 %v837, 16
      %v1505 = vshll.u32 %v837, 16
      %v1507 = vrot.slane %v1505, 1
      %v1508 = vor.u32 %v1503, %v1507
      %v1510 = vshll.u32 %v838, 16
      %v1512 = vrot.slane %v1510, 1
      %v1513 = vsel %vm941, %v1508, %v1512
      %v1514 = vshrl.u32 %v838, 16
      %v1516 = vor.u32 %v1514, %v1512
      %v1518 = vshll.u32 %v937, 16
      %v1520 = vrot.slane %v1518, 1
      %v1521 = vsel %vm941, %v1516, %v1520
      %v1523 = vshrl.u32 %v839, 16
      %v1525 = vshll.u32 %v839, 16
      %v1527 = vrot.slane %v1525, 1
      %v1528 = vor.u32 %v1523, %v1527
      %v1530 = vshll.u32 %v840, 16
      %v1532 = vrot.slane %v1530, 1
      %v1533 = vsel %vm941, %v1528, %v1532
      %v1534 = vshrl.u32 %v840, 16
      %v1536 = vor.u32 %v1534, %v1532
      %v1538 = vshll.u32 %v938, 16
      %v1540 = vrot.slane %v1538, 1
      %v1541 = vsel %vm941, %v1536, %v1540
      %v1543 = vshrl.u32 %v841, 16
      %v1545 = vshll.u32 %v841, 16
      %v1547 = vrot.slane %v1545, 1
      %v1548 = vor.u32 %v1543, %v1547
      %v1550 = vshll.u32 %v842, 16
      %v1552 = vrot.slane %v1550, 1
      %v1553 = vsel %vm941, %v1548, %v1552
      %v1554 = vshrl.u32 %v842, 16
      %v1556 = vor.u32 %v1554, %v1552
      %v1558 = vshll.u32 %v939, 16
      %v1560 = vrot.slane %v1558, 1
      %v1561 = vsel %vm941, %v1556, %v1560
      %v1563 = vshrl.u32 %v843, 16
      %v1565 = vshll.u32 %v843, 16
      %v1567 = vrot.slane %v1565, 1
      %v1568 = vor.u32 %v1563, %v1567
      %v1570 = vshll.u32 %v844, 16
      %v1572 = vrot.slane %v1570, 1
      %v1573 = vsel %vm941, %v1568, %v1572
      %v1574 = vshrl.u32 %v844, 16
      %v1576 = vor.u32 %v1574, %v1572
      %v1578 = vshll.u32 %v940, 16
      %v1580 = vrot.slane %v1578, 1
      %v1581 = vsel %vm941, %v1576, %v1580
      %1582 = vrot.lane.b32.xlu0 %v953, 8
      %v1583 = vpop.permute.xlu0 %1582
      %1584 = vrot.lane.b32.xlu0 %v961, 8
      %v1585 = vpop.permute.xlu0 %1584
      %1586 = vrot.lane.b32.xlu0 %v973, 8
      %v1587 = vpop.permute.xlu0 %1586
      %1588 = vrot.lane.b32.xlu0 %v981, 8
      %v1589 = vpop.permute.xlu0 %1588
      %1590 = vrot.lane.b32.xlu0 %v993, 8
      %v1591 = vpop.permute.xlu0 %1590
      %1592 = vrot.lane.b32.xlu0 %v1001, 8
      %v1593 = vpop.permute.xlu0 %1592
      %1594 = vrot.lane.b32.xlu0 %v1013, 8
      %v1595 = vpop.permute.xlu0 %1594
      %1596 = vrot.lane.b32.xlu0 %v1021, 8
      %v1597 = vpop.permute.xlu0 %1596
      %1598 = vrot.lane.b32.xlu0 %v1033, 8
      %v1599 = vpop.permute.xlu0 %1598
      %1600 = vrot.lane.b32.xlu0 %v1041, 8
      %v1601 = vpop.permute.xlu0 %1600
      %1602 = vrot.lane.b32.xlu0 %v1053, 8
      %v1603 = vpop.permute.xlu0 %1602
      %1604 = vrot.lane.b32.xlu0 %v1061, 8
      %v1605 = vpop.permute.xlu0 %1604
      %1606 = vrot.lane.b32.xlu0 %v1073, 8
      %v1607 = vpop.permute.xlu0 %1606
      %1608 = vrot.lane.b32.xlu0 %v1081, 8
      %v1609 = vpop.permute.xlu0 %1608
      %1610 = vrot.lane.b32.xlu0 %v1093, 8
      %v1611 = vpop.permute.xlu0 %1610
      %1612 = vrot.lane.b32.xlu0 %v1101, 8
      %v1613 = vpop.permute.xlu0 %1612
      %1614 = vrot.lane.b32.xlu0 %v1113, 8
      %v1615 = vpop.permute.xlu0 %1614
      %1616 = vrot.lane.b32.xlu0 %v1121, 8
      %v1617 = vpop.permute.xlu0 %1616
      %1618 = vrot.lane.b32.xlu0 %v1133, 8
      %v1619 = vpop.permute.xlu0 %1618
      %1620 = vrot.lane.b32.xlu0 %v1141, 8
      %v1621 = vpop.permute.xlu0 %1620
      %1622 = vrot.lane.b32.xlu0 %v1153, 8
      %v1623 = vpop.permute.xlu0 %1622
      %1624 = vrot.lane.b32.xlu0 %v1161, 8
      %v1625 = vpop.permute.xlu0 %1624
      %1626 = vrot.lane.b32.xlu0 %v1173, 8
      %v1627 = vpop.permute.xlu0 %1626
      %1628 = vrot.lane.b32.xlu0 %v1181, 8
      %v1629 = vpop.permute.xlu0 %1628
      %1630 = vrot.lane.b32.xlu0 %v1193, 8
      %v1631 = vpop.permute.xlu0 %1630
      %1632 = vrot.lane.b32.xlu0 %v1201, 8
      %v1633 = vpop.permute.xlu0 %1632
      %1634 = vrot.lane.b32.xlu0 %v1213, 8
      %v1635 = vpop.permute.xlu0 %1634
      %1636 = vrot.lane.b32.xlu0 %v1221, 8
      %v1637 = vpop.permute.xlu0 %1636
      %1638 = vrot.lane.b32.xlu0 %v1233, 8
      %v1639 = vpop.permute.xlu0 %1638
      %1640 = vrot.lane.b32.xlu0 %v1241, 8
      %v1641 = vpop.permute.xlu0 %1640
      %1642 = vrot.lane.b32.xlu0 %v1253, 8
      %v1643 = vpop.permute.xlu0 %1642
      %1644 = vrot.lane.b32.xlu0 %v1261, 8
      %v1645 = vpop.permute.xlu0 %1644
      %1646 = vrot.lane.b32.xlu0 %v1273, 8
      %v1647 = vpop.permute.xlu0 %1646
      %1648 = vrot.lane.b32.xlu0 %v1281, 8
      %v1649 = vpop.permute.xlu0 %1648
      %1650 = vrot.lane.b32.xlu0 %v1293, 8
      %v1651 = vpop.permute.xlu0 %1650
      %1652 = vrot.lane.b32.xlu0 %v1301, 8
      %v1653 = vpop.permute.xlu0 %1652
      %1654 = vrot.lane.b32.xlu0 %v1313, 8
      %v1655 = vpop.permute.xlu0 %1654
      %1656 = vrot.lane.b32.xlu0 %v1321, 8
      %v1657 = vpop.permute.xlu0 %1656
      %1658 = vrot.lane.b32.xlu0 %v1333, 8
      %v1659 = vpop.permute.xlu0 %1658
      %1660 = vrot.lane.b32.xlu0 %v1341, 8
      %v1661 = vpop.permute.xlu0 %1660
      %1662 = vrot.lane.b32.xlu0 %v1353, 8
      %v1663 = vpop.permute.xlu0 %1662
      %1664 = vrot.lane.b32.xlu0 %v1361, 8
      %v1665 = vpop.permute.xlu0 %1664
      %1666 = vrot.lane.b32.xlu0 %v1373, 8
      %v1667 = vpop.permute.xlu0 %1666
      %1668 = vrot.lane.b32.xlu0 %v1381, 8
      %v1669 = vpop.permute.xlu0 %1668
      %1670 = vrot.lane.b32.xlu0 %v1393, 8
      %v1671 = vpop.permute.xlu0 %1670
      %1672 = vrot.lane.b32.xlu0 %v1401, 8
      %v1673 = vpop.permute.xlu0 %1672
      %1674 = vrot.lane.b32.xlu0 %v1413, 8
      %v1675 = vpop.permute.xlu0 %1674
      %1676 = vrot.lane.b32.xlu0 %v1421, 8
      %v1677 = vpop.permute.xlu0 %1676
      %1678 = vrot.lane.b32.xlu0 %v1433, 8
      %v1679 = vpop.permute.xlu0 %1678
      %1680 = vrot.lane.b32.xlu0 %v1441, 8
      %v1681 = vpop.permute.xlu0 %1680
      %1682 = vrot.lane.b32.xlu0 %v1453, 8
      %v1683 = vpop.permute.xlu0 %1682
      %1684 = vrot.lane.b32.xlu0 %v1461, 8
      %v1685 = vpop.permute.xlu0 %1684
      %1686 = vrot.lane.b32.xlu0 %v1473, 8
      %v1687 = vpop.permute.xlu0 %1686
      %1688 = vrot.lane.b32.xlu0 %v1481, 8
      %v1689 = vpop.permute.xlu0 %1688
      %1690 = vrot.lane.b32.xlu0 %v1493, 8
      %v1691 = vpop.permute.xlu0 %1690
      %1692 = vrot.lane.b32.xlu0 %v1501, 8
      %v1693 = vpop.permute.xlu0 %1692
      %1694 = vrot.lane.b32.xlu0 %v1513, 8
      %v1695 = vpop.permute.xlu0 %1694
      %1696 = vrot.lane.b32.xlu0 %v1521, 8
      %v1697 = vpop.permute.xlu0 %1696
      %1698 = vrot.lane.b32.xlu0 %v1533, 8
      %v1699 = vpop.permute.xlu0 %1698
      %1700 = vrot.lane.b32.xlu0 %v1541, 8
      %v1701 = vpop.permute.xlu0 %1700
      %1702 = vrot.lane.b32.xlu0 %v1553, 8
      %v1703 = vpop.permute.xlu0 %1702
      %1704 = vrot.lane.b32.xlu0 %v1561, 8
      %v1705 = vpop.permute.xlu0 %1704
      %1706 = vrot.lane.b32.xlu0 %v1573, 8
      %v1707 = vpop.permute.xlu0 %1706
      %1708 = vrot.lane.b32.xlu0 %v1581, 8
      %v1709 = vpop.permute.xlu0 %1708
      %v1838 = vunpack.c.l.b16 %v365
      %v1839 = vunpack.c.l.b16 %v366
      %v1840 = vunpack.c.l.b16 %v367
      %v1841 = vunpack.c.l.b16 %v368
      %v1842 = vunpack.c.l.b16 %v369
      %v1843 = vunpack.c.l.b16 %v370
      %v1844 = vunpack.c.l.b16 %v371
      %v1845 = vunpack.c.l.b16 %v372
      %v1846 = vunpack.c.l.b16 %v373
      %v1847 = vunpack.c.l.b16 %v374
      %v1848 = vunpack.c.l.b16 %v375
      %v1849 = vunpack.c.l.b16 %v376
      %v1850 = vunpack.c.l.b16 %v377
      %v1851 = vunpack.c.l.b16 %v378
      %v1852 = vunpack.c.l.b16 %v379
      %v1853 = vunpack.c.l.b16 %v380
      %v1854 = vunpack.c.l.b16 %v381
      %v1855 = vunpack.c.l.b16 %v382
      %v1856 = vunpack.c.l.b16 %v383
      %v1857 = vunpack.c.l.b16 %v384
      %v1858 = vunpack.c.l.b16 %v385
      %v1859 = vunpack.c.l.b16 %v386
      %v1860 = vunpack.c.l.b16 %v387
      %v1861 = vunpack.c.l.b16 %v388
      %v1862 = vunpack.c.l.b16 %v389
      %v1863 = vunpack.c.l.b16 %v390
      %v1864 = vunpack.c.l.b16 %v391
      %v1865 = vunpack.c.l.b16 %v392
      %v1866 = vunpack.c.l.b16 %v393
      %v1867 = vunpack.c.l.b16 %v394
      %v1868 = vunpack.c.l.b16 %v395
      %v1869 = vunpack.c.l.b16 %v396
      %v1870 = vunpack.c.l.b16 %v397
      %v1871 = vunpack.c.l.b16 %v398
      %v1872 = vunpack.c.l.b16 %v399
      %v1873 = vunpack.c.l.b16 %v400
      %v1874 = vunpack.c.l.b16 %v401
      %v1875 = vunpack.c.l.b16 %v402
      %v1876 = vunpack.c.l.b16 %v403
      %v1877 = vunpack.c.l.b16 %v404
      %v1878 = vunpack.c.l.b16 %v405
      %v1879 = vunpack.c.l.b16 %v406
      %v1880 = vunpack.c.l.b16 %v407
      %v1881 = vunpack.c.l.b16 %v408
      %v1882 = vunpack.c.l.b16 %v409
      %v1883 = vunpack.c.l.b16 %v410
      %v1884 = vunpack.c.l.b16 %v411
      %v1885 = vunpack.c.l.b16 %v412
      %v1886 = vunpack.c.l.b16 %v413
      %v1887 = vunpack.c.l.b16 %v414
      %v1888 = vunpack.c.l.b16 %v415
      %v1889 = vunpack.c.l.b16 %v416
      %v1890 = vunpack.c.l.b16 %v417
      %v1891 = vunpack.c.l.b16 %v418
      %v1892 = vunpack.c.l.b16 %v419
      %v1893 = vunpack.c.l.b16 %v420
      %v1894 = vunpack.c.l.b16 %v421
      %v1895 = vunpack.c.l.b16 %v422
      %v1896 = vunpack.c.l.b16 %v423
      %v1897 = vunpack.c.l.b16 %v424
      %v1898 = vunpack.c.l.b16 %v425
      %v1899 = vunpack.c.l.b16 %v426
      %v1900 = vunpack.c.l.b16 %v427
      %v1901 = vunpack.c.l.b16 %v428
      %v1902 = vunpack.c.l.b16 %v429
      %v1903 = vunpack.c.l.b16 %v430
      %v1904 = vunpack.c.l.b16 %v431
      %v1905 = vunpack.c.l.b16 %v432
      %v1906 = vunpack.c.l.b16 %v433
      %v1907 = vunpack.c.l.b16 %v434
      %v1908 = vunpack.c.l.b16 %v435
      %v1909 = vunpack.c.l.b16 %v436
      %v1910 = vunpack.c.l.b16 %v437
      %v1911 = vunpack.c.l.b16 %v438
      %v1912 = vunpack.c.l.b16 %v439
      %v1913 = vunpack.c.l.b16 %v440
      %v1914 = vunpack.c.l.b16 %v441
      %v1915 = vunpack.c.l.b16 %v442
      %v1916 = vunpack.c.l.b16 %v443
      %v1917 = vunpack.c.l.b16 %v444
      %v1918 = vunpack.c.l.b16 %v445
      %v1919 = vunpack.c.l.b16 %v446
      %v1920 = vunpack.c.l.b16 %v447
      %v1921 = vunpack.c.l.b16 %v448
      %v1922 = vunpack.c.l.b16 %v449
      %v1923 = vunpack.c.l.b16 %v450
      %v1924 = vunpack.c.l.b16 %v451
      %v1925 = vunpack.c.l.b16 %v452
      %v1926 = vunpack.c.l.b16 %v453
      %v1927 = vunpack.c.l.b16 %v454
      %v1928 = vunpack.c.l.b16 %v455
      %v1929 = vunpack.c.l.b16 %v456
      %v1930 = vunpack.c.l.b16 %v457
      %v1931 = vunpack.c.l.b16 %v458
      %v1932 = vunpack.c.l.b16 %v459
      %v1933 = vunpack.c.l.b16 %v460
      %v1934 = vunpack.c.l.b16 %v461
      %v1935 = vunpack.c.l.b16 %v462
      %v1936 = vunpack.c.l.b16 %v463
      %v1937 = vunpack.c.l.b16 %v464
      %v1938 = vunpack.c.l.b16 %v465
      %v1939 = vunpack.c.l.b16 %v466
      %v1940 = vunpack.c.l.b16 %v467
      %v1941 = vunpack.c.l.b16 %v468
      %v1942 = vunpack.c.l.b16 %v469
      %v1943 = vunpack.c.l.b16 %v470
      %v1944 = vunpack.c.l.b16 %v471
      %v1945 = vunpack.c.l.b16 %v472
      %v1946 = vunpack.c.l.b16 %v473
      %v1947 = vunpack.c.l.b16 %v474
      %v1948 = vunpack.c.l.b16 %v475
      %v1949 = vunpack.c.l.b16 %v476
      %v1950 = vunpack.c.l.b16 %v477
      %v1951 = vunpack.c.l.b16 %v478
      %v1952 = vunpack.c.l.b16 %v479
      %v1953 = vunpack.c.l.b16 %v480
      %v1954 = vunpack.c.l.b16 %v481
      %v1955 = vunpack.c.l.b16 %v482
      %v1956 = vunpack.c.l.b16 %v483
      %v1957 = vunpack.c.l.b16 %v484
      %v1958 = vunpack.c.l.b16 %v485
      %v1959 = vunpack.c.l.b16 %v486
      %v1960 = vunpack.c.l.b16 %v487
      %v1961 = vunpack.c.l.b16 %v488
      %v1962 = vunpack.c.l.b16 %v489
      %v1963 = vunpack.c.l.b16 %v490
      %v1964 = vunpack.c.l.b16 %v491
      %v1965 = vunpack.c.l.b16 %v492
      %v1966 = vpack.c.b16 %v1839, %v1838
      %v1967 = vpack.c.b16 %v1841, %v1840
      %v1968 = vpack.c.b16 %v1843, %v1842
      %v1969 = vpack.c.b16 %v1845, %v1844
      %v1970 = vpack.c.b16 %v1847, %v1846
      %v1971 = vpack.c.b16 %v1849, %v1848
      %v1972 = vpack.c.b16 %v1851, %v1850
      %v1973 = vpack.c.b16 %v1853, %v1852
      %v1974 = vpack.c.b16 %v1855, %v1854
      %v1975 = vpack.c.b16 %v1857, %v1856
      %v1976 = vpack.c.b16 %v1859, %v1858
      %v1977 = vpack.c.b16 %v1861, %v1860
      %v1978 = vpack.c.b16 %v1863, %v1862
      %v1979 = vpack.c.b16 %v1865, %v1864
      %v1980 = vpack.c.b16 %v1867, %v1866
      %v1981 = vpack.c.b16 %v1869, %v1868
      %v1982 = vpack.c.b16 %v1871, %v1870
      %v1983 = vpack.c.b16 %v1873, %v1872
      %v1984 = vpack.c.b16 %v1875, %v1874
      %v1985 = vpack.c.b16 %v1877, %v1876
      %v1986 = vpack.c.b16 %v1879, %v1878
      %v1987 = vpack.c.b16 %v1881, %v1880
      %v1988 = vpack.c.b16 %v1883, %v1882
      %v1989 = vpack.c.b16 %v1885, %v1884
      %v1990 = vpack.c.b16 %v1887, %v1886
      %v1991 = vpack.c.b16 %v1889, %v1888
      %v1992 = vpack.c.b16 %v1891, %v1890
      %v1993 = vpack.c.b16 %v1893, %v1892
      %v1994 = vpack.c.b16 %v1895, %v1894
      %v1995 = vpack.c.b16 %v1897, %v1896
      %v1996 = vpack.c.b16 %v1899, %v1898
      %v1997 = vpack.c.b16 %v1901, %v1900
      %v1998 = vpack.c.b16 %v1903, %v1902
      %v1999 = vpack.c.b16 %v1905, %v1904
      %v2000 = vpack.c.b16 %v1907, %v1906
      %v2001 = vpack.c.b16 %v1909, %v1908
      %v2002 = vpack.c.b16 %v1911, %v1910
      %v2003 = vpack.c.b16 %v1913, %v1912
      %v2004 = vpack.c.b16 %v1915, %v1914
      %v2005 = vpack.c.b16 %v1917, %v1916
      %v2006 = vpack.c.b16 %v1919, %v1918
      %v2007 = vpack.c.b16 %v1921, %v1920
      %v2008 = vpack.c.b16 %v1923, %v1922
      %v2009 = vpack.c.b16 %v1925, %v1924
      %v2010 = vpack.c.b16 %v1927, %v1926
      %v2011 = vpack.c.b16 %v1929, %v1928
      %v2012 = vpack.c.b16 %v1931, %v1930
      %v2013 = vpack.c.b16 %v1933, %v1932
      %v2014 = vpack.c.b16 %v1935, %v1934
      %v2015 = vpack.c.b16 %v1937, %v1936
      %v2016 = vpack.c.b16 %v1939, %v1938
      %v2017 = vpack.c.b16 %v1941, %v1940
      %v2018 = vpack.c.b16 %v1943, %v1942
      %v2019 = vpack.c.b16 %v1945, %v1944
      %v2020 = vpack.c.b16 %v1947, %v1946
      %v2021 = vpack.c.b16 %v1949, %v1948
      %v2022 = vpack.c.b16 %v1951, %v1950
      %v2023 = vpack.c.b16 %v1953, %v1952
      %v2024 = vpack.c.b16 %v1955, %v1954
      %v2025 = vpack.c.b16 %v1957, %v1956
      %v2026 = vpack.c.b16 %v1959, %v1958
      %v2027 = vpack.c.b16 %v1961, %v1960
      %v2028 = vpack.c.b16 %v1963, %v1962
      %v2029 = vpack.c.b16 %v1965, %v1964
      %2030 = vrot.lane.b32.xlu0 %v1966, 16
      %v2031 = vpop.permute.xlu0 %2030
      %2032 = vrot.lane.b32.xlu0 %v1967, 16
      %v2033 = vpop.permute.xlu0 %2032
      %2034 = vrot.lane.b32.xlu0 %v1968, 16
      %v2035 = vpop.permute.xlu0 %2034
      %2036 = vrot.lane.b32.xlu0 %v1969, 16
      %v2037 = vpop.permute.xlu0 %2036
      %2038 = vrot.lane.b32.xlu0 %v1970, 16
      %v2039 = vpop.permute.xlu0 %2038
      %2040 = vrot.lane.b32.xlu0 %v1971, 16
      %v2041 = vpop.permute.xlu0 %2040
      %2042 = vrot.lane.b32.xlu0 %v1972, 16
      %v2043 = vpop.permute.xlu0 %2042
      %2044 = vrot.lane.b32.xlu0 %v1973, 16
      %v2045 = vpop.permute.xlu0 %2044
      %2046 = vrot.lane.b32.xlu0 %v1974, 16
      %v2047 = vpop.permute.xlu0 %2046
      %2048 = vrot.lane.b32.xlu0 %v1975, 16
      %v2049 = vpop.permute.xlu0 %2048
      %2050 = vrot.lane.b32.xlu0 %v1976, 16
      %v2051 = vpop.permute.xlu0 %2050
      %2052 = vrot.lane.b32.xlu0 %v1977, 16
      %v2053 = vpop.permute.xlu0 %2052
      %2054 = vrot.lane.b32.xlu0 %v1978, 16
      %v2055 = vpop.permute.xlu0 %2054
      %2056 = vrot.lane.b32.xlu0 %v1979, 16
      %v2057 = vpop.permute.xlu0 %2056
      %2058 = vrot.lane.b32.xlu0 %v1980, 16
      %v2059 = vpop.permute.xlu0 %2058
      %2060 = vrot.lane.b32.xlu0 %v1981, 16
      %v2061 = vpop.permute.xlu0 %2060
      %2062 = vrot.lane.b32.xlu0 %v1982, 16
      %v2063 = vpop.permute.xlu0 %2062
      %2064 = vrot.lane.b32.xlu0 %v1983, 16
      %v2065 = vpop.permute.xlu0 %2064
      %2066 = vrot.lane.b32.xlu0 %v1984, 16
      %v2067 = vpop.permute.xlu0 %2066
      %2068 = vrot.lane.b32.xlu0 %v1985, 16
      %v2069 = vpop.permute.xlu0 %2068
      %2070 = vrot.lane.b32.xlu0 %v1986, 16
      %v2071 = vpop.permute.xlu0 %2070
      %2072 = vrot.lane.b32.xlu0 %v1987, 16
      %v2073 = vpop.permute.xlu0 %2072
      %2074 = vrot.lane.b32.xlu0 %v1988, 16
      %v2075 = vpop.permute.xlu0 %2074
      %2076 = vrot.lane.b32.xlu0 %v1989, 16
      %v2077 = vpop.permute.xlu0 %2076
      %2078 = vrot.lane.b32.xlu0 %v1990, 16
      %v2079 = vpop.permute.xlu0 %2078
      %2080 = vrot.lane.b32.xlu0 %v1991, 16
      %v2081 = vpop.permute.xlu0 %2080
      %2082 = vrot.lane.b32.xlu0 %v1992, 16
      %v2083 = vpop.permute.xlu0 %2082
      %2084 = vrot.lane.b32.xlu0 %v1993, 16
      %v2085 = vpop.permute.xlu0 %2084
      %2086 = vrot.lane.b32.xlu0 %v1994, 16
      %v2087 = vpop.permute.xlu0 %2086
      %2088 = vrot.lane.b32.xlu0 %v1995, 16
      %v2089 = vpop.permute.xlu0 %2088
      %2090 = vrot.lane.b32.xlu0 %v1996, 16
      %v2091 = vpop.permute.xlu0 %2090
      %2092 = vrot.lane.b32.xlu0 %v1997, 16
      %v2093 = vpop.permute.xlu0 %2092
      %2094 = vrot.lane.b32.xlu0 %v1998, 16
      %v2095 = vpop.permute.xlu0 %2094
      %2096 = vrot.lane.b32.xlu0 %v1999, 16
      %v2097 = vpop.permute.xlu0 %2096
      %2098 = vrot.lane.b32.xlu0 %v2000, 16
      %v2099 = vpop.permute.xlu0 %2098
      %2100 = vrot.lane.b32.xlu0 %v2001, 16
      %v2101 = vpop.permute.xlu0 %2100
      %2102 = vrot.lane.b32.xlu0 %v2002, 16
      %v2103 = vpop.permute.xlu0 %2102
      %2104 = vrot.lane.b32.xlu0 %v2003, 16
      %v2105 = vpop.permute.xlu0 %2104
      %2106 = vrot.lane.b32.xlu0 %v2004, 16
      %v2107 = vpop.permute.xlu0 %2106
      %2108 = vrot.lane.b32.xlu0 %v2005, 16
      %v2109 = vpop.permute.xlu0 %2108
      %2110 = vrot.lane.b32.xlu0 %v2006, 16
      %v2111 = vpop.permute.xlu0 %2110
      %2112 = vrot.lane.b32.xlu0 %v2007, 16
      %v2113 = vpop.permute.xlu0 %2112
      %2114 = vrot.lane.b32.xlu0 %v2008, 16
      %v2115 = vpop.permute.xlu0 %2114
      %2116 = vrot.lane.b32.xlu0 %v2009, 16
      %v2117 = vpop.permute.xlu0 %2116
      %2118 = vrot.lane.b32.xlu0 %v2010, 16
      %v2119 = vpop.permute.xlu0 %2118
      %2120 = vrot.lane.b32.xlu0 %v2011, 16
      %v2121 = vpop.permute.xlu0 %2120
      %2122 = vrot.lane.b32.xlu0 %v2012, 16
      %v2123 = vpop.permute.xlu0 %2122
      %2124 = vrot.lane.b32.xlu0 %v2013, 16
      %v2125 = vpop.permute.xlu0 %2124
      %2126 = vrot.lane.b32.xlu0 %v2014, 16
      %v2127 = vpop.permute.xlu0 %2126
      %2128 = vrot.lane.b32.xlu0 %v2015, 16
      %v2129 = vpop.permute.xlu0 %2128
      %2130 = vrot.lane.b32.xlu0 %v2016, 16
      %v2131 = vpop.permute.xlu0 %2130
      %2132 = vrot.lane.b32.xlu0 %v2017, 16
      %v2133 = vpop.permute.xlu0 %2132
      %2134 = vrot.lane.b32.xlu0 %v2018, 16
      %v2135 = vpop.permute.xlu0 %2134
      %2136 = vrot.lane.b32.xlu0 %v2019, 16
      %v2137 = vpop.permute.xlu0 %2136
      %2138 = vrot.lane.b32.xlu0 %v2020, 16
      %v2139 = vpop.permute.xlu0 %2138
      %2140 = vrot.lane.b32.xlu0 %v2021, 16
      %v2141 = vpop.permute.xlu0 %2140
      %2142 = vrot.lane.b32.xlu0 %v2022, 16
      %v2143 = vpop.permute.xlu0 %2142
      %2144 = vrot.lane.b32.xlu0 %v2023, 16
      %v2145 = vpop.permute.xlu0 %2144
      %2146 = vrot.lane.b32.xlu0 %v2024, 16
      %v2147 = vpop.permute.xlu0 %2146
      %2148 = vrot.lane.b32.xlu0 %v2025, 16
      %v2149 = vpop.permute.xlu0 %2148
      %2150 = vrot.lane.b32.xlu0 %v2026, 16
      %v2151 = vpop.permute.xlu0 %2150
      %2152 = vrot.lane.b32.xlu0 %v2027, 16
      %v2153 = vpop.permute.xlu0 %2152
      %2154 = vrot.lane.b32.xlu0 %v2028, 16
      %v2155 = vpop.permute.xlu0 %2154
      %2156 = vrot.lane.b32.xlu0 %v2029, 16
      %v2157 = vpop.permute.xlu0 %2156
      %v2190 = vunpack.c.l.b16 %v493
      %v2191 = vunpack.c.l.b16 %v494
      %v2192 = vunpack.c.l.b16 %v495
      %v2193 = vunpack.c.l.b16 %v496
      %v2194 = vunpack.c.l.b16 %v497
      %v2195 = vunpack.c.l.b16 %v498
      %v2196 = vunpack.c.l.b16 %v499
      %v2197 = vunpack.c.l.b16 %v500
      %v2198 = vunpack.c.l.b16 %v501
      %v2199 = vunpack.c.l.b16 %v502
      %v2200 = vunpack.c.l.b16 %v503
      %v2201 = vunpack.c.l.b16 %v504
      %v2202 = vunpack.c.l.b16 %v505
      %v2203 = vunpack.c.l.b16 %v506
      %v2204 = vunpack.c.l.b16 %v507
      %v2205 = vunpack.c.l.b16 %v508
      %v2206 = vunpack.c.l.b16 %v509
      %v2207 = vunpack.c.l.b16 %v510
      %v2208 = vunpack.c.l.b16 %v511
      %v2209 = vunpack.c.l.b16 %v512
      %v2210 = vunpack.c.l.b16 %v513
      %v2211 = vunpack.c.l.b16 %v514
      %v2212 = vunpack.c.l.b16 %v515
      %v2213 = vunpack.c.l.b16 %v516
      %v2214 = vunpack.c.l.b16 %v517
      %v2215 = vunpack.c.l.b16 %v518
      %v2216 = vunpack.c.l.b16 %v519
      %v2217 = vunpack.c.l.b16 %v520
      %v2218 = vunpack.c.l.b16 %v521
      %v2219 = vunpack.c.l.b16 %v522
      %v2220 = vunpack.c.l.b16 %v523
      %v2221 = vunpack.c.l.b16 %v524
      %v2222 = vpack.c.b16 %v2190, %v2190
      %v2223 = vpack.c.b16 %v2191, %v2191
      %v2224 = vpack.c.b16 %v2192, %v2192
      %v2225 = vpack.c.b16 %v2193, %v2193
      %v2226 = vpack.c.b16 %v2194, %v2194
      %v2227 = vpack.c.b16 %v2195, %v2195
      %v2228 = vpack.c.b16 %v2196, %v2196
      %v2229 = vpack.c.b16 %v2197, %v2197
      %v2230 = vpack.c.b16 %v2198, %v2198
      %v2231 = vpack.c.b16 %v2199, %v2199
      %v2232 = vpack.c.b16 %v2200, %v2200
      %v2233 = vpack.c.b16 %v2201, %v2201
      %v2234 = vpack.c.b16 %v2202, %v2202
      %v2235 = vpack.c.b16 %v2203, %v2203
      %v2236 = vpack.c.b16 %v2204, %v2204
      %v2237 = vpack.c.b16 %v2205, %v2205
      %v2238 = vpack.c.b16 %v2206, %v2206
      %v2239 = vpack.c.b16 %v2207, %v2207
      %v2240 = vpack.c.b16 %v2208, %v2208
      %v2241 = vpack.c.b16 %v2209, %v2209
      %v2242 = vpack.c.b16 %v2210, %v2210
      %v2243 = vpack.c.b16 %v2211, %v2211
      %v2244 = vpack.c.b16 %v2212, %v2212
      %v2245 = vpack.c.b16 %v2213, %v2213
      %v2246 = vpack.c.b16 %v2214, %v2214
      %v2247 = vpack.c.b16 %v2215, %v2215
      %v2248 = vpack.c.b16 %v2216, %v2216
      %v2249 = vpack.c.b16 %v2217, %v2217
      %v2250 = vpack.c.b16 %v2218, %v2218
      %v2251 = vpack.c.b16 %v2219, %v2219
      %v2252 = vpack.c.b16 %v2220, %v2220
      %v2253 = vpack.c.b16 %v2221, %v2221
      %v2255 = vshrl.u32 %v1966, 16
      %v2257 = vshll.u32 %v1966, 16
      %v2259 = vrot.slane %v2257, 1
      %v2260 = vor.u32 %v2255, %v2259
      %v2262 = vshll.u32 %v1967, 16
      %v2264 = vrot.slane %v2262, 1
      %v2265 = vsel %vm941, %v2260, %v2264
      %v2266 = vshrl.u32 %v1967, 16
      %v2268 = vor.u32 %v2266, %v2264
      %v2270 = vshll.u32 %v2222, 16
      %v2272 = vrot.slane %v2270, 1
      %v2273 = vsel %vm941, %v2268, %v2272
      %v2275 = vshrl.u32 %v1968, 16
      %v2277 = vshll.u32 %v1968, 16
      %v2279 = vrot.slane %v2277, 1
      %v2280 = vor.u32 %v2275, %v2279
      %v2282 = vshll.u32 %v1969, 16
      %v2284 = vrot.slane %v2282, 1
      %v2285 = vsel %vm941, %v2280, %v2284
      %v2286 = vshrl.u32 %v1969, 16
      %v2288 = vor.u32 %v2286, %v2284
      %v2290 = vshll.u32 %v2223, 16
      %v2292 = vrot.slane %v2290, 1
      %v2293 = vsel %vm941, %v2288, %v2292
      %v2295 = vshrl.u32 %v1970, 16
      %v2297 = vshll.u32 %v1970, 16
      %v2299 = vrot.slane %v2297, 1
      %v2300 = vor.u32 %v2295, %v2299
      %v2302 = vshll.u32 %v1971, 16
      %v2304 = vrot.slane %v2302, 1
      %v2305 = vsel %vm941, %v2300, %v2304
      %v2306 = vshrl.u32 %v1971, 16
      %v2308 = vor.u32 %v2306, %v2304
      %v2310 = vshll.u32 %v2224, 16
      %v2312 = vrot.slane %v2310, 1
      %v2313 = vsel %vm941, %v2308, %v2312
      %v2315 = vshrl.u32 %v1972, 16
      %v2317 = vshll.u32 %v1972, 16
      %v2319 = vrot.slane %v2317, 1
      %v2320 = vor.u32 %v2315, %v2319
      %v2322 = vshll.u32 %v1973, 16
      %v2324 = vrot.slane %v2322, 1
      %v2325 = vsel %vm941, %v2320, %v2324
      %v2326 = vshrl.u32 %v1973, 16
      %v2328 = vor.u32 %v2326, %v2324
      %v2330 = vshll.u32 %v2225, 16
      %v2332 = vrot.slane %v2330, 1
      %v2333 = vsel %vm941, %v2328, %v2332
      %v2335 = vshrl.u32 %v1974, 16
      %v2337 = vshll.u32 %v1974, 16
      %v2339 = vrot.slane %v2337, 1
      %v2340 = vor.u32 %v2335, %v2339
      %v2342 = vshll.u32 %v1975, 16
      %v2344 = vrot.slane %v2342, 1
      %v2345 = vsel %vm941, %v2340, %v2344
      %v2346 = vshrl.u32 %v1975, 16
      %v2348 = vor.u32 %v2346, %v2344
      %v2350 = vshll.u32 %v2226, 16
      %v2352 = vrot.slane %v2350, 1
      %v2353 = vsel %vm941, %v2348, %v2352
      %v2355 = vshrl.u32 %v1976, 16
      %v2357 = vshll.u32 %v1976, 16
      %v2359 = vrot.slane %v2357, 1
      %v2360 = vor.u32 %v2355, %v2359
      %v2362 = vshll.u32 %v1977, 16
      %v2364 = vrot.slane %v2362, 1
      %v2365 = vsel %vm941, %v2360, %v2364
      %v2366 = vshrl.u32 %v1977, 16
      %v2368 = vor.u32 %v2366, %v2364
      %v2370 = vshll.u32 %v2227, 16
      %v2372 = vrot.slane %v2370, 1
      %v2373 = vsel %vm941, %v2368, %v2372
      %v2375 = vshrl.u32 %v1978, 16
      %v2377 = vshll.u32 %v1978, 16
      %v2379 = vrot.slane %v2377, 1
      %v2380 = vor.u32 %v2375, %v2379
      %v2382 = vshll.u32 %v1979, 16
      %v2384 = vrot.slane %v2382, 1
      %v2385 = vsel %vm941, %v2380, %v2384
      %v2386 = vshrl.u32 %v1979, 16
      %v2388 = vor.u32 %v2386, %v2384
      %v2390 = vshll.u32 %v2228, 16
      %v2392 = vrot.slane %v2390, 1
      %v2393 = vsel %vm941, %v2388, %v2392
      %v2395 = vshrl.u32 %v1980, 16
      %v2397 = vshll.u32 %v1980, 16
      %v2399 = vrot.slane %v2397, 1
      %v2400 = vor.u32 %v2395, %v2399
      %v2402 = vshll.u32 %v1981, 16
      %v2404 = vrot.slane %v2402, 1
      %v2405 = vsel %vm941, %v2400, %v2404
      %v2406 = vshrl.u32 %v1981, 16
      %v2408 = vor.u32 %v2406, %v2404
      %v2410 = vshll.u32 %v2229, 16
      %v2412 = vrot.slane %v2410, 1
      %v2413 = vsel %vm941, %v2408, %v2412
      %v2415 = vshrl.u32 %v1982, 16
      %v2417 = vshll.u32 %v1982, 16
      %v2419 = vrot.slane %v2417, 1
      %v2420 = vor.u32 %v2415, %v2419
      %v2422 = vshll.u32 %v1983, 16
      %v2424 = vrot.slane %v2422, 1
      %v2425 = vsel %vm941, %v2420, %v2424
      %v2426 = vshrl.u32 %v1983, 16
      %v2428 = vor.u32 %v2426, %v2424
      %v2430 = vshll.u32 %v2230, 16
      %v2432 = vrot.slane %v2430, 1
      %v2433 = vsel %vm941, %v2428, %v2432
      %v2435 = vshrl.u32 %v1984, 16
      %v2437 = vshll.u32 %v1984, 16
      %v2439 = vrot.slane %v2437, 1
      %v2440 = vor.u32 %v2435, %v2439
      %v2442 = vshll.u32 %v1985, 16
      %v2444 = vrot.slane %v2442, 1
      %v2445 = vsel %vm941, %v2440, %v2444
      %v2446 = vshrl.u32 %v1985, 16
      %v2448 = vor.u32 %v2446, %v2444
      %v2450 = vshll.u32 %v2231, 16
      %v2452 = vrot.slane %v2450, 1
      %v2453 = vsel %vm941, %v2448, %v2452
      %v2455 = vshrl.u32 %v1986, 16
      %v2457 = vshll.u32 %v1986, 16
      %v2459 = vrot.slane %v2457, 1
      %v2460 = vor.u32 %v2455, %v2459
      %v2462 = vshll.u32 %v1987, 16
      %v2464 = vrot.slane %v2462, 1
      %v2465 = vsel %vm941, %v2460, %v2464
      %v2466 = vshrl.u32 %v1987, 16
      %v2468 = vor.u32 %v2466, %v2464
      %v2470 = vshll.u32 %v2232, 16
      %v2472 = vrot.slane %v2470, 1
      %v2473 = vsel %vm941, %v2468, %v2472
      %v2475 = vshrl.u32 %v1988, 16
      %v2477 = vshll.u32 %v1988, 16
      %v2479 = vrot.slane %v2477, 1
      %v2480 = vor.u32 %v2475, %v2479
      %v2482 = vshll.u32 %v1989, 16
      %v2484 = vrot.slane %v2482, 1
      %v2485 = vsel %vm941, %v2480, %v2484
      %v2486 = vshrl.u32 %v1989, 16
      %v2488 = vor.u32 %v2486, %v2484
      %v2490 = vshll.u32 %v2233, 16
      %v2492 = vrot.slane %v2490, 1
      %v2493 = vsel %vm941, %v2488, %v2492
      %v2495 = vshrl.u32 %v1990, 16
      %v2497 = vshll.u32 %v1990, 16
      %v2499 = vrot.slane %v2497, 1
      %v2500 = vor.u32 %v2495, %v2499
      %v2502 = vshll.u32 %v1991, 16
      %v2504 = vrot.slane %v2502, 1
      %v2505 = vsel %vm941, %v2500, %v2504
      %v2506 = vshrl.u32 %v1991, 16
      %v2508 = vor.u32 %v2506, %v2504
      %v2510 = vshll.u32 %v2234, 16
      %v2512 = vrot.slane %v2510, 1
      %v2513 = vsel %vm941, %v2508, %v2512
      %v2515 = vshrl.u32 %v1992, 16
      %v2517 = vshll.u32 %v1992, 16
      %v2519 = vrot.slane %v2517, 1
      %v2520 = vor.u32 %v2515, %v2519
      %v2522 = vshll.u32 %v1993, 16
      %v2524 = vrot.slane %v2522, 1
      %v2525 = vsel %vm941, %v2520, %v2524
      %v2526 = vshrl.u32 %v1993, 16
      %v2528 = vor.u32 %v2526, %v2524
      %v2530 = vshll.u32 %v2235, 16
      %v2532 = vrot.slane %v2530, 1
      %v2533 = vsel %vm941, %v2528, %v2532
      %v2535 = vshrl.u32 %v1994, 16
      %v2537 = vshll.u32 %v1994, 16
      %v2539 = vrot.slane %v2537, 1
      %v2540 = vor.u32 %v2535, %v2539
      %v2542 = vshll.u32 %v1995, 16
      %v2544 = vrot.slane %v2542, 1
      %v2545 = vsel %vm941, %v2540, %v2544
      %v2546 = vshrl.u32 %v1995, 16
      %v2548 = vor.u32 %v2546, %v2544
      %v2550 = vshll.u32 %v2236, 16
      %v2552 = vrot.slane %v2550, 1
      %v2553 = vsel %vm941, %v2548, %v2552
      %v2555 = vshrl.u32 %v1996, 16
      %v2557 = vshll.u32 %v1996, 16
      %v2559 = vrot.slane %v2557, 1
      %v2560 = vor.u32 %v2555, %v2559
      %v2562 = vshll.u32 %v1997, 16
      %v2564 = vrot.slane %v2562, 1
      %v2565 = vsel %vm941, %v2560, %v2564
      %v2566 = vshrl.u32 %v1997, 16
      %v2568 = vor.u32 %v2566, %v2564
      %v2570 = vshll.u32 %v2237, 16
      %v2572 = vrot.slane %v2570, 1
      %v2573 = vsel %vm941, %v2568, %v2572
      %v2575 = vshrl.u32 %v1998, 16
      %v2577 = vshll.u32 %v1998, 16
      %v2579 = vrot.slane %v2577, 1
      %v2580 = vor.u32 %v2575, %v2579
      %v2582 = vshll.u32 %v1999, 16
      %v2584 = vrot.slane %v2582, 1
      %v2585 = vsel %vm941, %v2580, %v2584
      %v2586 = vshrl.u32 %v1999, 16
      %v2588 = vor.u32 %v2586, %v2584
      %v2590 = vshll.u32 %v2238, 16
      %v2592 = vrot.slane %v2590, 1
      %v2593 = vsel %vm941, %v2588, %v2592
      %v2595 = vshrl.u32 %v2000, 16
      %v2597 = vshll.u32 %v2000, 16
      %v2599 = vrot.slane %v2597, 1
      %v2600 = vor.u32 %v2595, %v2599
      %v2602 = vshll.u32 %v2001, 16
      %v2604 = vrot.slane %v2602, 1
      %v2605 = vsel %vm941, %v2600, %v2604
      %v2606 = vshrl.u32 %v2001, 16
      %v2608 = vor.u32 %v2606, %v2604
      %v2610 = vshll.u32 %v2239, 16
      %v2612 = vrot.slane %v2610, 1
      %v2613 = vsel %vm941, %v2608, %v2612
      %v2615 = vshrl.u32 %v2002, 16
      %v2617 = vshll.u32 %v2002, 16
      %v2619 = vrot.slane %v2617, 1
      %v2620 = vor.u32 %v2615, %v2619
      %v2622 = vshll.u32 %v2003, 16
      %v2624 = vrot.slane %v2622, 1
      %v2625 = vsel %vm941, %v2620, %v2624
      %v2626 = vshrl.u32 %v2003, 16
      %v2628 = vor.u32 %v2626, %v2624
      %v2630 = vshll.u32 %v2240, 16
      %v2632 = vrot.slane %v2630, 1
      %v2633 = vsel %vm941, %v2628, %v2632
      %v2635 = vshrl.u32 %v2004, 16
      %v2637 = vshll.u32 %v2004, 16
      %v2639 = vrot.slane %v2637, 1
      %v2640 = vor.u32 %v2635, %v2639
      %v2642 = vshll.u32 %v2005, 16
      %v2644 = vrot.slane %v2642, 1
      %v2645 = vsel %vm941, %v2640, %v2644
      %v2646 = vshrl.u32 %v2005, 16
      %v2648 = vor.u32 %v2646, %v2644
      %v2650 = vshll.u32 %v2241, 16
      %v2652 = vrot.slane %v2650, 1
      %v2653 = vsel %vm941, %v2648, %v2652
      %v2655 = vshrl.u32 %v2006, 16
      %v2657 = vshll.u32 %v2006, 16
      %v2659 = vrot.slane %v2657, 1
      %v2660 = vor.u32 %v2655, %v2659
      %v2662 = vshll.u32 %v2007, 16
      %v2664 = vrot.slane %v2662, 1
      %v2665 = vsel %vm941, %v2660, %v2664
      %v2666 = vshrl.u32 %v2007, 16
      %v2668 = vor.u32 %v2666, %v2664
      %v2670 = vshll.u32 %v2242, 16
      %v2672 = vrot.slane %v2670, 1
      %v2673 = vsel %vm941, %v2668, %v2672
      %v2675 = vshrl.u32 %v2008, 16
      %v2677 = vshll.u32 %v2008, 16
      %v2679 = vrot.slane %v2677, 1
      %v2680 = vor.u32 %v2675, %v2679
      %v2682 = vshll.u32 %v2009, 16
      %v2684 = vrot.slane %v2682, 1
      %v2685 = vsel %vm941, %v2680, %v2684
      %v2686 = vshrl.u32 %v2009, 16
      %v2688 = vor.u32 %v2686, %v2684
      %v2690 = vshll.u32 %v2243, 16
      %v2692 = vrot.slane %v2690, 1
      %v2693 = vsel %vm941, %v2688, %v2692
      %v2695 = vshrl.u32 %v2010, 16
      %v2697 = vshll.u32 %v2010, 16
      %v2699 = vrot.slane %v2697, 1
      %v2700 = vor.u32 %v2695, %v2699
      %v2702 = vshll.u32 %v2011, 16
      %v2704 = vrot.slane %v2702, 1
      %v2705 = vsel %vm941, %v2700, %v2704
      %v2706 = vshrl.u32 %v2011, 16
      %v2708 = vor.u32 %v2706, %v2704
      %v2710 = vshll.u32 %v2244, 16
      %v2712 = vrot.slane %v2710, 1
      %v2713 = vsel %vm941, %v2708, %v2712
      %v2715 = vshrl.u32 %v2012, 16
      %v2717 = vshll.u32 %v2012, 16
      %v2719 = vrot.slane %v2717, 1
      %v2720 = vor.u32 %v2715, %v2719
      %v2722 = vshll.u32 %v2013, 16
      %v2724 = vrot.slane %v2722, 1
      %v2725 = vsel %vm941, %v2720, %v2724
      %v2726 = vshrl.u32 %v2013, 16
      %v2728 = vor.u32 %v2726, %v2724
      %v2730 = vshll.u32 %v2245, 16
      %v2732 = vrot.slane %v2730, 1
      %v2733 = vsel %vm941, %v2728, %v2732
      %v2735 = vshrl.u32 %v2014, 16
      %v2737 = vshll.u32 %v2014, 16
      %v2739 = vrot.slane %v2737, 1
      %v2740 = vor.u32 %v2735, %v2739
      %v2742 = vshll.u32 %v2015, 16
      %v2744 = vrot.slane %v2742, 1
      %v2745 = vsel %vm941, %v2740, %v2744
      %v2746 = vshrl.u32 %v2015, 16
      %v2748 = vor.u32 %v2746, %v2744
      %v2750 = vshll.u32 %v2246, 16
      %v2752 = vrot.slane %v2750, 1
      %v2753 = vsel %vm941, %v2748, %v2752
      %v2755 = vshrl.u32 %v2016, 16
      %v2757 = vshll.u32 %v2016, 16
      %v2759 = vrot.slane %v2757, 1
      %v2760 = vor.u32 %v2755, %v2759
      %v2762 = vshll.u32 %v2017, 16
      %v2764 = vrot.slane %v2762, 1
      %v2765 = vsel %vm941, %v2760, %v2764
      %v2766 = vshrl.u32 %v2017, 16
      %v2768 = vor.u32 %v2766, %v2764
      %v2770 = vshll.u32 %v2247, 16
      %v2772 = vrot.slane %v2770, 1
      %v2773 = vsel %vm941, %v2768, %v2772
      %v2775 = vshrl.u32 %v2018, 16
      %v2777 = vshll.u32 %v2018, 16
      %v2779 = vrot.slane %v2777, 1
      %v2780 = vor.u32 %v2775, %v2779
      %v2782 = vshll.u32 %v2019, 16
      %v2784 = vrot.slane %v2782, 1
      %v2785 = vsel %vm941, %v2780, %v2784
      %v2786 = vshrl.u32 %v2019, 16
      %v2788 = vor.u32 %v2786, %v2784
      %v2790 = vshll.u32 %v2248, 16
      %v2792 = vrot.slane %v2790, 1
      %v2793 = vsel %vm941, %v2788, %v2792
      %v2795 = vshrl.u32 %v2020, 16
      %v2797 = vshll.u32 %v2020, 16
      %v2799 = vrot.slane %v2797, 1
      %v2800 = vor.u32 %v2795, %v2799
      %v2802 = vshll.u32 %v2021, 16
      %v2804 = vrot.slane %v2802, 1
      %v2805 = vsel %vm941, %v2800, %v2804
      %v2806 = vshrl.u32 %v2021, 16
      %v2808 = vor.u32 %v2806, %v2804
      %v2810 = vshll.u32 %v2249, 16
      %v2812 = vrot.slane %v2810, 1
      %v2813 = vsel %vm941, %v2808, %v2812
      %v2815 = vshrl.u32 %v2022, 16
      %v2817 = vshll.u32 %v2022, 16
      %v2819 = vrot.slane %v2817, 1
      %v2820 = vor.u32 %v2815, %v2819
      %v2822 = vshll.u32 %v2023, 16
      %v2824 = vrot.slane %v2822, 1
      %v2825 = vsel %vm941, %v2820, %v2824
      %v2826 = vshrl.u32 %v2023, 16
      %v2828 = vor.u32 %v2826, %v2824
      %v2830 = vshll.u32 %v2250, 16
      %v2832 = vrot.slane %v2830, 1
      %v2833 = vsel %vm941, %v2828, %v2832
      %v2835 = vshrl.u32 %v2024, 16
      %v2837 = vshll.u32 %v2024, 16
      %v2839 = vrot.slane %v2837, 1
      %v2840 = vor.u32 %v2835, %v2839
      %v2842 = vshll.u32 %v2025, 16
      %v2844 = vrot.slane %v2842, 1
      %v2845 = vsel %vm941, %v2840, %v2844
      %v2846 = vshrl.u32 %v2025, 16
      %v2848 = vor.u32 %v2846, %v2844
      %v2850 = vshll.u32 %v2251, 16
      %v2852 = vrot.slane %v2850, 1
      %v2853 = vsel %vm941, %v2848, %v2852
      %v2855 = vshrl.u32 %v2026, 16
      %v2857 = vshll.u32 %v2026, 16
      %v2859 = vrot.slane %v2857, 1
      %v2860 = vor.u32 %v2855, %v2859
      %v2862 = vshll.u32 %v2027, 16
      %v2864 = vrot.slane %v2862, 1
      %v2865 = vsel %vm941, %v2860, %v2864
      %v2866 = vshrl.u32 %v2027, 16
      %v2868 = vor.u32 %v2866, %v2864
      %v2870 = vshll.u32 %v2252, 16
      %v2872 = vrot.slane %v2870, 1
      %v2873 = vsel %vm941, %v2868, %v2872
      %v2875 = vshrl.u32 %v2028, 16
      %v2877 = vshll.u32 %v2028, 16
      %v2879 = vrot.slane %v2877, 1
      %v2880 = vor.u32 %v2875, %v2879
      %v2882 = vshll.u32 %v2029, 16
      %v2884 = vrot.slane %v2882, 1
      %v2885 = vsel %vm941, %v2880, %v2884
      %v2886 = vshrl.u32 %v2029, 16
      %v2888 = vor.u32 %v2886, %v2884
      %v2890 = vshll.u32 %v2253, 16
      %v2892 = vrot.slane %v2890, 1
      %v2893 = vsel %vm941, %v2888, %v2892
      %2894 = vrot.lane.b32.xlu0 %v2265, 24
      %v2895 = vpop.permute.xlu0 %2894
      %2896 = vrot.lane.b32.xlu0 %v2273, 24
      %v2897 = vpop.permute.xlu0 %2896
      %2898 = vrot.lane.b32.xlu0 %v2285, 24
      %v2899 = vpop.permute.xlu0 %2898
      %2900 = vrot.lane.b32.xlu0 %v2293, 24
      %v2901 = vpop.permute.xlu0 %2900
      %2902 = vrot.lane.b32.xlu0 %v2305, 24
      %v2903 = vpop.permute.xlu0 %2902
      %2904 = vrot.lane.b32.xlu0 %v2313, 24
      %v2905 = vpop.permute.xlu0 %2904
      %2906 = vrot.lane.b32.xlu0 %v2325, 24
      %v2907 = vpop.permute.xlu0 %2906
      %2908 = vrot.lane.b32.xlu0 %v2333, 24
      %v2909 = vpop.permute.xlu0 %2908
      %2910 = vrot.lane.b32.xlu0 %v2345, 24
      %v2911 = vpop.permute.xlu0 %2910
      %2912 = vrot.lane.b32.xlu0 %v2353, 24
      %v2913 = vpop.permute.xlu0 %2912
      %2914 = vrot.lane.b32.xlu0 %v2365, 24
      %v2915 = vpop.permute.xlu0 %2914
      %2916 = vrot.lane.b32.xlu0 %v2373, 24
      %v2917 = vpop.permute.xlu0 %2916
      %2918 = vrot.lane.b32.xlu0 %v2385, 24
      %v2919 = vpop.permute.xlu0 %2918
      %2920 = vrot.lane.b32.xlu0 %v2393, 24
      %v2921 = vpop.permute.xlu0 %2920
      %2922 = vrot.lane.b32.xlu0 %v2405, 24
      %v2923 = vpop.permute.xlu0 %2922
      %2924 = vrot.lane.b32.xlu0 %v2413, 24
      %v2925 = vpop.permute.xlu0 %2924
      %2926 = vrot.lane.b32.xlu0 %v2425, 24
      %v2927 = vpop.permute.xlu0 %2926
      %2928 = vrot.lane.b32.xlu0 %v2433, 24
      %v2929 = vpop.permute.xlu0 %2928
      %2930 = vrot.lane.b32.xlu0 %v2445, 24
      %v2931 = vpop.permute.xlu0 %2930
      %2932 = vrot.lane.b32.xlu0 %v2453, 24
      %v2933 = vpop.permute.xlu0 %2932
      %2934 = vrot.lane.b32.xlu0 %v2465, 24
      %v2935 = vpop.permute.xlu0 %2934
      %2936 = vrot.lane.b32.xlu0 %v2473, 24
      %v2937 = vpop.permute.xlu0 %2936
      %2938 = vrot.lane.b32.xlu0 %v2485, 24
      %v2939 = vpop.permute.xlu0 %2938
      %2940 = vrot.lane.b32.xlu0 %v2493, 24
      %v2941 = vpop.permute.xlu0 %2940
      %2942 = vrot.lane.b32.xlu0 %v2505, 24
      %v2943 = vpop.permute.xlu0 %2942
      %2944 = vrot.lane.b32.xlu0 %v2513, 24
      %v2945 = vpop.permute.xlu0 %2944
      %2946 = vrot.lane.b32.xlu0 %v2525, 24
      %v2947 = vpop.permute.xlu0 %2946
      %2948 = vrot.lane.b32.xlu0 %v2533, 24
      %v2949 = vpop.permute.xlu0 %2948
      %2950 = vrot.lane.b32.xlu0 %v2545, 24
      %v2951 = vpop.permute.xlu0 %2950
      %2952 = vrot.lane.b32.xlu0 %v2553, 24
      %v2953 = vpop.permute.xlu0 %2952
      %2954 = vrot.lane.b32.xlu0 %v2565, 24
      %v2955 = vpop.permute.xlu0 %2954
      %2956 = vrot.lane.b32.xlu0 %v2573, 24
      %v2957 = vpop.permute.xlu0 %2956
      %2958 = vrot.lane.b32.xlu0 %v2585, 24
      %v2959 = vpop.permute.xlu0 %2958
      %2960 = vrot.lane.b32.xlu0 %v2593, 24
      %v2961 = vpop.permute.xlu0 %2960
      %2962 = vrot.lane.b32.xlu0 %v2605, 24
      %v2963 = vpop.permute.xlu0 %2962
      %2964 = vrot.lane.b32.xlu0 %v2613, 24
      %v2965 = vpop.permute.xlu0 %2964
      %2966 = vrot.lane.b32.xlu0 %v2625, 24
      %v2967 = vpop.permute.xlu0 %2966
      %2968 = vrot.lane.b32.xlu0 %v2633, 24
      %v2969 = vpop.permute.xlu0 %2968
      %2970 = vrot.lane.b32.xlu0 %v2645, 24
      %v2971 = vpop.permute.xlu0 %2970
      %2972 = vrot.lane.b32.xlu0 %v2653, 24
      %v2973 = vpop.permute.xlu0 %2972
      %2974 = vrot.lane.b32.xlu0 %v2665, 24
      %v2975 = vpop.permute.xlu0 %2974
      %2976 = vrot.lane.b32.xlu0 %v2673, 24
      %v2977 = vpop.permute.xlu0 %2976
      %2978 = vrot.lane.b32.xlu0 %v2685, 24
      %v2979 = vpop.permute.xlu0 %2978
      %2980 = vrot.lane.b32.xlu0 %v2693, 24
      %v2981 = vpop.permute.xlu0 %2980
      %2982 = vrot.lane.b32.xlu0 %v2705, 24
      %v2983 = vpop.permute.xlu0 %2982
      %2984 = vrot.lane.b32.xlu0 %v2713, 24
      %v2985 = vpop.permute.xlu0 %2984
      %2986 = vrot.lane.b32.xlu0 %v2725, 24
      %v2987 = vpop.permute.xlu0 %2986
      %2988 = vrot.lane.b32.xlu0 %v2733, 24
      %v2989 = vpop.permute.xlu0 %2988
      %2990 = vrot.lane.b32.xlu0 %v2745, 24
      %v2991 = vpop.permute.xlu0 %2990
      %2992 = vrot.lane.b32.xlu0 %v2753, 24
      %v2993 = vpop.permute.xlu0 %2992
      %2994 = vrot.lane.b32.xlu0 %v2765, 24
      %v2995 = vpop.permute.xlu0 %2994
      %2996 = vrot.lane.b32.xlu0 %v2773, 24
      %v2997 = vpop.permute.xlu0 %2996
      %2998 = vrot.lane.b32.xlu0 %v2785, 24
      %v2999 = vpop.permute.xlu0 %2998
      %3000 = vrot.lane.b32.xlu0 %v2793, 24
      %v3001 = vpop.permute.xlu0 %3000
      %3002 = vrot.lane.b32.xlu0 %v2805, 24
      %v3003 = vpop.permute.xlu0 %3002
      %3004 = vrot.lane.b32.xlu0 %v2813, 24
      %v3005 = vpop.permute.xlu0 %3004
      %3006 = vrot.lane.b32.xlu0 %v2825, 24
      %v3007 = vpop.permute.xlu0 %3006
      %3008 = vrot.lane.b32.xlu0 %v2833, 24
      %v3009 = vpop.permute.xlu0 %3008
      %3010 = vrot.lane.b32.xlu0 %v2845, 24
      %v3011 = vpop.permute.xlu0 %3010
      %3012 = vrot.lane.b32.xlu0 %v2853, 24
      %v3013 = vpop.permute.xlu0 %3012
      %3014 = vrot.lane.b32.xlu0 %v2865, 24
      %v3015 = vpop.permute.xlu0 %3014
      %3016 = vrot.lane.b32.xlu0 %v2873, 24
      %v3017 = vpop.permute.xlu0 %3016
      %3018 = vrot.lane.b32.xlu0 %v2885, 24
      %v3019 = vpop.permute.xlu0 %3018
      %3020 = vrot.lane.b32.xlu0 %v2893, 24
      %v3021 = vpop.permute.xlu0 %3020
      %vm3022 = vcmask 64512
      %v3024 = vsel %vm3022, %v781, %v1583
      %v3026 = vsel %vm3022, %v782, %v1585
      %v3028 = vsel %vm3022, %v783, %v1587
      %v3030 = vsel %vm3022, %v784, %v1589
      %v3032 = vsel %vm3022, %v785, %v1591
      %v3034 = vsel %vm3022, %v786, %v1593
      %v3036 = vsel %vm3022, %v787, %v1595
      %v3038 = vsel %vm3022, %v788, %v1597
      %v3040 = vsel %vm3022, %v789, %v1599
      %v3042 = vsel %vm3022, %v790, %v1601
      %v3044 = vsel %vm3022, %v791, %v1603
      %v3046 = vsel %vm3022, %v792, %v1605
      %v3048 = vsel %vm3022, %v793, %v1607
      %v3050 = vsel %vm3022, %v794, %v1609
      %v3052 = vsel %vm3022, %v795, %v1611
      %v3054 = vsel %vm3022, %v796, %v1613
      %v3056 = vsel %vm3022, %v797, %v1615
      %v3058 = vsel %vm3022, %v798, %v1617
      %v3060 = vsel %vm3022, %v799, %v1619
      %v3062 = vsel %vm3022, %v800, %v1621
      %v3064 = vsel %vm3022, %v801, %v1623
      %v3066 = vsel %vm3022, %v802, %v1625
      %v3068 = vsel %vm3022, %v803, %v1627
      %v3070 = vsel %vm3022, %v804, %v1629
      %v3072 = vsel %vm3022, %v805, %v1631
      %v3074 = vsel %vm3022, %v806, %v1633
      %v3076 = vsel %vm3022, %v807, %v1635
      %v3078 = vsel %vm3022, %v808, %v1637
      %v3080 = vsel %vm3022, %v809, %v1639
      %v3082 = vsel %vm3022, %v810, %v1641
      %v3084 = vsel %vm3022, %v811, %v1643
      %v3086 = vsel %vm3022, %v812, %v1645
      %v3088 = vsel %vm3022, %v813, %v1647
      %v3090 = vsel %vm3022, %v814, %v1649
      %v3092 = vsel %vm3022, %v815, %v1651
      %v3094 = vsel %vm3022, %v816, %v1653
      %v3096 = vsel %vm3022, %v817, %v1655
      %v3098 = vsel %vm3022, %v818, %v1657
      %v3100 = vsel %vm3022, %v819, %v1659
      %v3102 = vsel %vm3022, %v820, %v1661
      %v3104 = vsel %vm3022, %v821, %v1663
      %v3106 = vsel %vm3022, %v822, %v1665
      %v3108 = vsel %vm3022, %v823, %v1667
      %v3110 = vsel %vm3022, %v824, %v1669
      %v3112 = vsel %vm3022, %v825, %v1671
      %v3114 = vsel %vm3022, %v826, %v1673
      %v3116 = vsel %vm3022, %v827, %v1675
      %v3118 = vsel %vm3022, %v828, %v1677
      %v3120 = vsel %vm3022, %v829, %v1679
      %v3122 = vsel %vm3022, %v830, %v1681
      %v3124 = vsel %vm3022, %v831, %v1683
      %v3126 = vsel %vm3022, %v832, %v1685
      %v3128 = vsel %vm3022, %v833, %v1687
      %v3130 = vsel %vm3022, %v834, %v1689
      %v3132 = vsel %vm3022, %v835, %v1691
      %v3134 = vsel %vm3022, %v836, %v1693
      %v3136 = vsel %vm3022, %v837, %v1695
      %v3138 = vsel %vm3022, %v838, %v1697
      %v3140 = vsel %vm3022, %v839, %v1699
      %v3142 = vsel %vm3022, %v840, %v1701
      %v3144 = vsel %vm3022, %v841, %v1703
      %v3146 = vsel %vm3022, %v842, %v1705
      %v3148 = vsel %vm3022, %v843, %v1707
      %v3150 = vsel %vm3022, %v844, %v1709
      %vm3151 = vcmask 130048
      %v3153 = vsel %vm3151, %v3024, %v2031
      %v3155 = vsel %vm3151, %v3026, %v2033
      %v3157 = vsel %vm3151, %v3028, %v2035
      %v3159 = vsel %vm3151, %v3030, %v2037
      %v3161 = vsel %vm3151, %v3032, %v2039
      %v3163 = vsel %vm3151, %v3034, %v2041
      %v3165 = vsel %vm3151, %v3036, %v2043
      %v3167 = vsel %vm3151, %v3038, %v2045
      %v3169 = vsel %vm3151, %v3040, %v2047
      %v3171 = vsel %vm3151, %v3042, %v2049
      %v3173 = vsel %vm3151, %v3044, %v2051
      %v3175 = vsel %vm3151, %v3046, %v2053
      %v3177 = vsel %vm3151, %v3048, %v2055
      %v3179 = vsel %vm3151, %v3050, %v2057
      %v3181 = vsel %vm3151, %v3052, %v2059
      %v3183 = vsel %vm3151, %v3054, %v2061
      %v3185 = vsel %vm3151, %v3056, %v2063
      %v3187 = vsel %vm3151, %v3058, %v2065
      %v3189 = vsel %vm3151, %v3060, %v2067
      %v3191 = vsel %vm3151, %v3062, %v2069
      %v3193 = vsel %vm3151, %v3064, %v2071
      %v3195 = vsel %vm3151, %v3066, %v2073
      %v3197 = vsel %vm3151, %v3068, %v2075
      %v3199 = vsel %vm3151, %v3070, %v2077
      %v3201 = vsel %vm3151, %v3072, %v2079
      %v3203 = vsel %vm3151, %v3074, %v2081
      %v3205 = vsel %vm3151, %v3076, %v2083
      %v3207 = vsel %vm3151, %v3078, %v2085
      %v3209 = vsel %vm3151, %v3080, %v2087
      %v3211 = vsel %vm3151, %v3082, %v2089
      %v3213 = vsel %vm3151, %v3084, %v2091
      %v3215 = vsel %vm3151, %v3086, %v2093
      %v3217 = vsel %vm3151, %v3088, %v2095
      %v3219 = vsel %vm3151, %v3090, %v2097
      %v3221 = vsel %vm3151, %v3092, %v2099
      %v3223 = vsel %vm3151, %v3094, %v2101
      %v3225 = vsel %vm3151, %v3096, %v2103
      %v3227 = vsel %vm3151, %v3098, %v2105
      %v3229 = vsel %vm3151, %v3100, %v2107
      %v3231 = vsel %vm3151, %v3102, %v2109
      %v3233 = vsel %vm3151, %v3104, %v2111
      %v3235 = vsel %vm3151, %v3106, %v2113
      %v3237 = vsel %vm3151, %v3108, %v2115
      %v3239 = vsel %vm3151, %v3110, %v2117
      %v3241 = vsel %vm3151, %v3112, %v2119
      %v3243 = vsel %vm3151, %v3114, %v2121
      %v3245 = vsel %vm3151, %v3116, %v2123
      %v3247 = vsel %vm3151, %v3118, %v2125
      %v3249 = vsel %vm3151, %v3120, %v2127
      %v3251 = vsel %vm3151, %v3122, %v2129
      %v3253 = vsel %vm3151, %v3124, %v2131
      %v3255 = vsel %vm3151, %v3126, %v2133
      %v3257 = vsel %vm3151, %v3128, %v2135
      %v3259 = vsel %vm3151, %v3130, %v2137
      %v3261 = vsel %vm3151, %v3132, %v2139
      %v3263 = vsel %vm3151, %v3134, %v2141
      %v3265 = vsel %vm3151, %v3136, %v2143
      %v3267 = vsel %vm3151, %v3138, %v2145
      %v3269 = vsel %vm3151, %v3140, %v2147
      %v3271 = vsel %vm3151, %v3142, %v2149
      %v3273 = vsel %vm3151, %v3144, %v2151
      %v3275 = vsel %vm3151, %v3146, %v2153
      %v3277 = vsel %vm3151, %v3148, %v2155
      %v3279 = vsel %vm3151, %v3150, %v2157
      %vm3280 = vcmask 195584
      %v3282 = vsel %vm3280, %v3153, %v2895
      %v3284 = vsel %vm3280, %v3155, %v2897
      %v3286 = vsel %vm3280, %v3157, %v2899
      %v3288 = vsel %vm3280, %v3159, %v2901
      %v3290 = vsel %vm3280, %v3161, %v2903
      %v3292 = vsel %vm3280, %v3163, %v2905
      %v3294 = vsel %vm3280, %v3165, %v2907
      %v3296 = vsel %vm3280, %v3167, %v2909
      %v3298 = vsel %vm3280, %v3169, %v2911
      %v3300 = vsel %vm3280, %v3171, %v2913
      %v3302 = vsel %vm3280, %v3173, %v2915
      %v3304 = vsel %vm3280, %v3175, %v2917
      %v3306 = vsel %vm3280, %v3177, %v2919
      %v3308 = vsel %vm3280, %v3179, %v2921
      %v3310 = vsel %vm3280, %v3181, %v2923
      %v3312 = vsel %vm3280, %v3183, %v2925
      %v3314 = vsel %vm3280, %v3185, %v2927
      %v3316 = vsel %vm3280, %v3187, %v2929
      %v3318 = vsel %vm3280, %v3189, %v2931
      %v3320 = vsel %vm3280, %v3191, %v2933
      %v3322 = vsel %vm3280, %v3193, %v2935
      %v3324 = vsel %vm3280, %v3195, %v2937
      %v3326 = vsel %vm3280, %v3197, %v2939
      %v3328 = vsel %vm3280, %v3199, %v2941
      %v3330 = vsel %vm3280, %v3201, %v2943
      %v3332 = vsel %vm3280, %v3203, %v2945
      %v3334 = vsel %vm3280, %v3205, %v2947
      %v3336 = vsel %vm3280, %v3207, %v2949
      %v3338 = vsel %vm3280, %v3209, %v2951
      %v3340 = vsel %vm3280, %v3211, %v2953
      %v3342 = vsel %vm3280, %v3213, %v2955
      %v3344 = vsel %vm3280, %v3215, %v2957
      %v3346 = vsel %vm3280, %v3217, %v2959
      %v3348 = vsel %vm3280, %v3219, %v2961
      %v3350 = vsel %vm3280, %v3221, %v2963
      %v3352 = vsel %vm3280, %v3223, %v2965
      %v3354 = vsel %vm3280, %v3225, %v2967
      %v3356 = vsel %vm3280, %v3227, %v2969
      %v3358 = vsel %vm3280, %v3229, %v2971
      %v3360 = vsel %vm3280, %v3231, %v2973
      %v3362 = vsel %vm3280, %v3233, %v2975
      %v3364 = vsel %vm3280, %v3235, %v2977
      %v3366 = vsel %vm3280, %v3237, %v2979
      %v3368 = vsel %vm3280, %v3239, %v2981
      %v3370 = vsel %vm3280, %v3241, %v2983
      %v3372 = vsel %vm3280, %v3243, %v2985
      %v3374 = vsel %vm3280, %v3245, %v2987
      %v3376 = vsel %vm3280, %v3247, %v2989
      %v3378 = vsel %vm3280, %v3249, %v2991
      %v3380 = vsel %vm3280, %v3251, %v2993
      %v3382 = vsel %vm3280, %v3253, %v2995
      %v3384 = vsel %vm3280, %v3255, %v2997
      %v3386 = vsel %vm3280, %v3257, %v2999
      %v3388 = vsel %vm3280, %v3259, %v3001
      %v3390 = vsel %vm3280, %v3261, %v3003
      %v3392 = vsel %vm3280, %v3263, %v3005
      %v3394 = vsel %vm3280, %v3265, %v3007
      %v3396 = vsel %vm3280, %v3267, %v3009
      %v3398 = vsel %vm3280, %v3269, %v3011
      %v3400 = vsel %vm3280, %v3271, %v3013
      %v3402 = vsel %vm3280, %v3273, %v3015
      %v3404 = vsel %vm3280, %v3275, %v3017
      %v3406 = vsel %vm3280, %v3277, %v3019
      %v3408 = vsel %vm3280, %v3279, %v3021
      %v3409 = vld [vmem:[%s1] sm:$0xf]
      %v3410 = vld [vmem:[%s1 + $0x4] sm:$0xf]
      %v3411 = vld [vmem:[%s1 + $0x8] sm:$0xf]
      %v3412 = vld [vmem:[%s1 + $0xc] sm:$0xf]
      %v3413 = vld [vmem:[%s2] sm:$0x1]
      %v3415 = vperm.slane %v3413, 0
      %v3421 = vunpack.c.l.b16 %v3409
      %v3422 = vunpack.c.l.b16 %v3410
      %v3423 = vunpack.c.l.b16 %v3411
      %v3424 = vunpack.c.l.b16 %v3412
      %v3425 = vpack.c.b16 %v3422, %v3421
      %v3426 = vpack.c.b16 %v3424, %v3423
      %vm3429 = vcmask 261120
      %v3430 = vsel %vm3429, %v3282, 0
      %v3432 = vsel %vm3429, %v3284, 0
      %v3434 = vsel %vm3429, %v3286, 0
      %v3436 = vsel %vm3429, %v3288, 0
      %v3438 = vsel %vm3429, %v3290, 0
      %v3440 = vsel %vm3429, %v3292, 0
      %v3442 = vsel %vm3429, %v3294, 0
      %v3444 = vsel %vm3429, %v3296, 0
      %v3446 = vsel %vm3429, %v3298, 0
      %v3448 = vsel %vm3429, %v3300, 0
      %v3450 = vsel %vm3429, %v3302, 0
      %v3452 = vsel %vm3429, %v3304, 0
      %v3454 = vsel %vm3429, %v3306, 0
      %v3456 = vsel %vm3429, %v3308, 0
      %v3458 = vsel %vm3429, %v3310, 0
      %v3460 = vsel %vm3429, %v3312, 0
      %v3462 = vsel %vm3429, %v3314, 0
      %v3464 = vsel %vm3429, %v3316, 0
      %v3466 = vsel %vm3429, %v3318, 0
      %v3468 = vsel %vm3429, %v3320, 0
      %v3470 = vsel %vm3429, %v3322, 0
      %v3472 = vsel %vm3429, %v3324, 0
      %v3474 = vsel %vm3429, %v3326, 0
      %v3476 = vsel %vm3429, %v3328, 0
      %v3478 = vsel %vm3429, %v3330, 0
      %v3480 = vsel %vm3429, %v3332, 0
      %v3482 = vsel %vm3429, %v3334, 0
      %v3484 = vsel %vm3429, %v3336, 0
      %v3486 = vsel %vm3429, %v3338, 0
      %v3488 = vsel %vm3429, %v3340, 0
      %v3490 = vsel %vm3429, %v3342, 0
      %v3492 = vsel %vm3429, %v3344, 0
      %v3494 = vsel %vm3429, %v3346, 0
      %v3496 = vsel %vm3429, %v3348, 0
      %v3498 = vsel %vm3429, %v3350, 0
      %v3500 = vsel %vm3429, %v3352, 0
      %v3502 = vsel %vm3429, %v3354, 0
      %v3504 = vsel %vm3429, %v3356, 0
      %v3506 = vsel %vm3429, %v3358, 0
      %v3508 = vsel %vm3429, %v3360, 0
      %v3510 = vsel %vm3429, %v3362, 0
      %v3512 = vsel %vm3429, %v3364, 0
      %v3514 = vsel %vm3429, %v3366, 0
      %v3516 = vsel %vm3429, %v3368, 0
      %v3518 = vsel %vm3429, %v3370, 0
      %v3520 = vsel %vm3429, %v3372, 0
      %v3522 = vsel %vm3429, %v3374, 0
      %v3524 = vsel %vm3429, %v3376, 0
      %v3526 = vsel %vm3429, %v3378, 0
      %v3528 = vsel %vm3429, %v3380, 0
      %v3530 = vsel %vm3429, %v3382, 0
      %v3532 = vsel %vm3429, %v3384, 0
      %v3534 = vsel %vm3429, %v3386, 0
      %v3536 = vsel %vm3429, %v3388, 0
      %v3538 = vsel %vm3429, %v3390, 0
      %v3540 = vsel %vm3429, %v3392, 0
      %v3542 = vsel %vm3429, %v3394, 0
      %v3544 = vsel %vm3429, %v3396, 0
      %v3546 = vsel %vm3429, %v3398, 0
      %v3548 = vsel %vm3429, %v3400, 0
      %v3550 = vsel %vm3429, %v3402, 0
      %v3552 = vsel %vm3429, %v3404, 0
      %v3554 = vsel %vm3429, %v3406, 0
      %v3556 = vsel %vm3429, %v3408, 0
      %3558 = vmatpush.bf16.msra.mxu0 0
      %3559 = vmatpush.bf16.msra.mxu0 0
      %3560 = vmatpush.bf16.msra.mxu0 0
      %3561 = vmatpush.bf16.msra.mxu0 0
      %3562 = vmatpush.bf16.msra.mxu0 0
      %3563 = vmatpush.bf16.msra.mxu0 0
      %3564 = vmatpush.bf16.msra.mxu0 %v3426
      %3565 = vmatpush.bf16.msra.mxu0 %v3425
      %3566 = vmatmul.bf16.gmra.mxu0 %v3430
      %v3567 = vpop.f32.mrf.mxu0
      %v3568 = vadd.f32 %v3415, %v3567
      %v3569 = vpop.f32.mrf.mxu0
      %v3570 = vadd.f32 %v3415, %v3569
      %3571 = vmatmul.bf16.gmra.mxu0 %v3432
      %v3572 = vpop.f32.mrf.mxu0
      %v3573 = vadd.f32 %v3415, %v3572
      %v3574 = vpop.f32.mrf.mxu0
      %v3575 = vadd.f32 %v3415, %v3574
      %3576 = vmatmul.bf16.gmra.mxu0 %v3434
      %v3577 = vpop.f32.mrf.mxu0
      %v3578 = vadd.f32 %v3415, %v3577
      %v3579 = vpop.f32.mrf.mxu0
      %v3580 = vadd.f32 %v3415, %v3579
      %3581 = vmatmul.bf16.gmra.mxu0 %v3436
      %v3582 = vpop.f32.mrf.mxu0
      %v3583 = vadd.f32 %v3415, %v3582
      %v3584 = vpop.f32.mrf.mxu0
      %v3585 = vadd.f32 %v3415, %v3584
      %3586 = vmatmul.bf16.gmra.mxu0 %v3438
      %v3587 = vpop.f32.mrf.mxu0
      %v3588 = vadd.f32 %v3415, %v3587
      %v3589 = vpop.f32.mrf.mxu0
      %v3590 = vadd.f32 %v3415, %v3589
      %3591 = vmatmul.bf16.gmra.mxu0 %v3440
      %v3592 = vpop.f32.mrf.mxu0
      %v3593 = vadd.f32 %v3415, %v3592
      %v3594 = vpop.f32.mrf.mxu0
      %v3595 = vadd.f32 %v3415, %v3594
      %3596 = vmatmul.bf16.gmra.mxu0 %v3442
      %v3597 = vpop.f32.mrf.mxu0
      %v3598 = vadd.f32 %v3415, %v3597
      %v3599 = vpop.f32.mrf.mxu0
      %v3600 = vadd.f32 %v3415, %v3599
      %3601 = vmatmul.bf16.gmra.mxu0 %v3444
      %v3602 = vpop.f32.mrf.mxu0
      %v3603 = vadd.f32 %v3415, %v3602
      %v3604 = vpop.f32.mrf.mxu0
      %v3605 = vadd.f32 %v3415, %v3604
      %3606 = vmatmul.bf16.gmra.mxu0 %v3446
      %v3607 = vpop.f32.mrf.mxu0
      %v3608 = vadd.f32 %v3415, %v3607
      %v3609 = vpop.f32.mrf.mxu0
      %v3610 = vadd.f32 %v3415, %v3609
      %3611 = vmatmul.bf16.gmra.mxu0 %v3448
      %v3612 = vpop.f32.mrf.mxu0
      %v3613 = vadd.f32 %v3415, %v3612
      %v3614 = vpop.f32.mrf.mxu0
      %v3615 = vadd.f32 %v3415, %v3614
      %3616 = vmatmul.bf16.gmra.mxu0 %v3450
      %v3617 = vpop.f32.mrf.mxu0
      %v3618 = vadd.f32 %v3415, %v3617
      %v3619 = vpop.f32.mrf.mxu0
      %v3620 = vadd.f32 %v3415, %v3619
      %3621 = vmatmul.bf16.gmra.mxu0 %v3452
      %v3622 = vpop.f32.mrf.mxu0
      %v3623 = vadd.f32 %v3415, %v3622
      %v3624 = vpop.f32.mrf.mxu0
      %v3625 = vadd.f32 %v3415, %v3624
      %3626 = vmatmul.bf16.gmra.mxu0 %v3454
      %v3627 = vpop.f32.mrf.mxu0
      %v3628 = vadd.f32 %v3415, %v3627
      %v3629 = vpop.f32.mrf.mxu0
      %v3630 = vadd.f32 %v3415, %v3629
      %3631 = vmatmul.bf16.gmra.mxu0 %v3456
      %v3632 = vpop.f32.mrf.mxu0
      %v3633 = vadd.f32 %v3415, %v3632
      %v3634 = vpop.f32.mrf.mxu0
      %v3635 = vadd.f32 %v3415, %v3634
      %3636 = vmatmul.bf16.gmra.mxu0 %v3458
      %v3637 = vpop.f32.mrf.mxu0
      %v3638 = vadd.f32 %v3415, %v3637
      %v3639 = vpop.f32.mrf.mxu0
      %v3640 = vadd.f32 %v3415, %v3639
      %3641 = vmatmul.bf16.gmra.mxu0 %v3460
      %v3642 = vpop.f32.mrf.mxu0
      %v3643 = vadd.f32 %v3415, %v3642
      %v3644 = vpop.f32.mrf.mxu0
      %v3645 = vadd.f32 %v3415, %v3644
      %3646 = vmatmul.bf16.gmra.mxu0 %v3462
      %v3647 = vpop.f32.mrf.mxu0
      %v3648 = vadd.f32 %v3415, %v3647
      %v3649 = vpop.f32.mrf.mxu0
      %v3650 = vadd.f32 %v3415, %v3649
      %3651 = vmatmul.bf16.gmra.mxu0 %v3464
      %v3652 = vpop.f32.mrf.mxu0
      %v3653 = vadd.f32 %v3415, %v3652
      %v3654 = vpop.f32.mrf.mxu0
      %v3655 = vadd.f32 %v3415, %v3654
      %3656 = vmatmul.bf16.gmra.mxu0 %v3466
      %v3657 = vpop.f32.mrf.mxu0
      %v3658 = vadd.f32 %v3415, %v3657
      %v3659 = vpop.f32.mrf.mxu0
      %v3660 = vadd.f32 %v3415, %v3659
      %3661 = vmatmul.bf16.gmra.mxu0 %v3468
      %v3662 = vpop.f32.mrf.mxu0
      %v3663 = vadd.f32 %v3415, %v3662
      %v3664 = vpop.f32.mrf.mxu0
      %v3665 = vadd.f32 %v3415, %v3664
      %3666 = vmatmul.bf16.gmra.mxu0 %v3470
      %v3667 = vpop.f32.mrf.mxu0
      %v3668 = vadd.f32 %v3415, %v3667
      %v3669 = vpop.f32.mrf.mxu0
      %v3670 = vadd.f32 %v3415, %v3669
      %3671 = vmatmul.bf16.gmra.mxu0 %v3472
      %v3672 = vpop.f32.mrf.mxu0
      %v3673 = vadd.f32 %v3415, %v3672
      %v3674 = vpop.f32.mrf.mxu0
      %v3675 = vadd.f32 %v3415, %v3674
      %3676 = vmatmul.bf16.gmra.mxu0 %v3474
      %v3677 = vpop.f32.mrf.mxu0
      %v3678 = vadd.f32 %v3415, %v3677
      %v3679 = vpop.f32.mrf.mxu0
      %v3680 = vadd.f32 %v3415, %v3679
      %3681 = vmatmul.bf16.gmra.mxu0 %v3476
      %v3682 = vpop.f32.mrf.mxu0
      %v3683 = vadd.f32 %v3415, %v3682
      %v3684 = vpop.f32.mrf.mxu0
      %v3685 = vadd.f32 %v3415, %v3684
      %3686 = vmatmul.bf16.gmra.mxu0 %v3478
      %v3687 = vpop.f32.mrf.mxu0
      %v3688 = vadd.f32 %v3415, %v3687
      %v3689 = vpop.f32.mrf.mxu0
      %v3690 = vadd.f32 %v3415, %v3689
      %3691 = vmatmul.bf16.gmra.mxu0 %v3480
      %v3692 = vpop.f32.mrf.mxu0
      %v3693 = vadd.f32 %v3415, %v3692
      %v3694 = vpop.f32.mrf.mxu0
      %v3695 = vadd.f32 %v3415, %v3694
      %3696 = vmatmul.bf16.gmra.mxu0 %v3482
      %v3697 = vpop.f32.mrf.mxu0
      %v3698 = vadd.f32 %v3415, %v3697
      %v3699 = vpop.f32.mrf.mxu0
      %v3700 = vadd.f32 %v3415, %v3699
      %3701 = vmatmul.bf16.gmra.mxu0 %v3484
      %v3702 = vpop.f32.mrf.mxu0
      %v3703 = vadd.f32 %v3415, %v3702
      %v3704 = vpop.f32.mrf.mxu0
      %v3705 = vadd.f32 %v3415, %v3704
      %3706 = vmatmul.bf16.gmra.mxu0 %v3486
      %v3707 = vpop.f32.mrf.mxu0
      %v3708 = vadd.f32 %v3415, %v3707
      %v3709 = vpop.f32.mrf.mxu0
      %v3710 = vadd.f32 %v3415, %v3709
      %3711 = vmatmul.bf16.gmra.mxu0 %v3488
      %v3712 = vpop.f32.mrf.mxu0
      %v3713 = vadd.f32 %v3415, %v3712
      %v3714 = vpop.f32.mrf.mxu0
      %v3715 = vadd.f32 %v3415, %v3714
      %3716 = vmatmul.bf16.gmra.mxu0 %v3490
      %v3717 = vpop.f32.mrf.mxu0
      %v3718 = vadd.f32 %v3415, %v3717
      %v3719 = vpop.f32.mrf.mxu0
      %v3720 = vadd.f32 %v3415, %v3719
      %3721 = vmatmul.bf16.gmra.mxu0 %v3492
      %v3722 = vpop.f32.mrf.mxu0
      %v3723 = vadd.f32 %v3415, %v3722
      %v3724 = vpop.f32.mrf.mxu0
      %v3725 = vadd.f32 %v3415, %v3724
      %3726 = vmatmul.bf16.gmra.mxu0 %v3494
      %v3727 = vpop.f32.mrf.mxu0
      %v3728 = vadd.f32 %v3415, %v3727
      %v3729 = vpop.f32.mrf.mxu0
      %v3730 = vadd.f32 %v3415, %v3729
      %3731 = vmatmul.bf16.gmra.mxu0 %v3496
      %v3732 = vpop.f32.mrf.mxu0
      %v3733 = vadd.f32 %v3415, %v3732
      %v3734 = vpop.f32.mrf.mxu0
      %v3735 = vadd.f32 %v3415, %v3734
      %3736 = vmatmul.bf16.gmra.mxu0 %v3498
      %v3737 = vpop.f32.mrf.mxu0
      %v3738 = vadd.f32 %v3415, %v3737
      %v3739 = vpop.f32.mrf.mxu0
      %v3740 = vadd.f32 %v3415, %v3739
      %3741 = vmatmul.bf16.gmra.mxu0 %v3500
      %v3742 = vpop.f32.mrf.mxu0
      %v3743 = vadd.f32 %v3415, %v3742
      %v3744 = vpop.f32.mrf.mxu0
      %v3745 = vadd.f32 %v3415, %v3744
      %3746 = vmatmul.bf16.gmra.mxu0 %v3502
      %v3747 = vpop.f32.mrf.mxu0
      %v3748 = vadd.f32 %v3415, %v3747
      %v3749 = vpop.f32.mrf.mxu0
      %v3750 = vadd.f32 %v3415, %v3749
      %3751 = vmatmul.bf16.gmra.mxu0 %v3504
      %v3752 = vpop.f32.mrf.mxu0
      %v3753 = vadd.f32 %v3415, %v3752
      %v3754 = vpop.f32.mrf.mxu0
      %v3755 = vadd.f32 %v3415, %v3754
      %3756 = vmatmul.bf16.gmra.mxu0 %v3506
      %v3757 = vpop.f32.mrf.mxu0
      %v3758 = vadd.f32 %v3415, %v3757
      %v3759 = vpop.f32.mrf.mxu0
      %v3760 = vadd.f32 %v3415, %v3759
      %3761 = vmatmul.bf16.gmra.mxu0 %v3508
      %v3762 = vpop.f32.mrf.mxu0
      %v3763 = vadd.f32 %v3415, %v3762
      %v3764 = vpop.f32.mrf.mxu0
      %v3765 = vadd.f32 %v3415, %v3764
      %3766 = vmatmul.bf16.gmra.mxu0 %v3510
      %v3767 = vpop.f32.mrf.mxu0
      %v3768 = vadd.f32 %v3415, %v3767
      %v3769 = vpop.f32.mrf.mxu0
      %v3770 = vadd.f32 %v3415, %v3769
      %3771 = vmatmul.bf16.gmra.mxu0 %v3512
      %v3772 = vpop.f32.mrf.mxu0
      %v3773 = vadd.f32 %v3415, %v3772
      %v3774 = vpop.f32.mrf.mxu0
      %v3775 = vadd.f32 %v3415, %v3774
      %3776 = vmatmul.bf16.gmra.mxu0 %v3514
      %v3777 = vpop.f32.mrf.mxu0
      %v3778 = vadd.f32 %v3415, %v3777
      %v3779 = vpop.f32.mrf.mxu0
      %v3780 = vadd.f32 %v3415, %v3779
      %3781 = vmatmul.bf16.gmra.mxu0 %v3516
      %v3782 = vpop.f32.mrf.mxu0
      %v3783 = vadd.f32 %v3415, %v3782
      %v3784 = vpop.f32.mrf.mxu0
      %v3785 = vadd.f32 %v3415, %v3784
      %3786 = vmatmul.bf16.gmra.mxu0 %v3518
      %v3787 = vpop.f32.mrf.mxu0
      %v3788 = vadd.f32 %v3415, %v3787
      %v3789 = vpop.f32.mrf.mxu0
      %v3790 = vadd.f32 %v3415, %v3789
      %3791 = vmatmul.bf16.gmra.mxu0 %v3520
      %v3792 = vpop.f32.mrf.mxu0
      %v3793 = vadd.f32 %v3415, %v3792
      %v3794 = vpop.f32.mrf.mxu0
      %v3795 = vadd.f32 %v3415, %v3794
      %3796 = vmatmul.bf16.gmra.mxu0 %v3522
      %v3797 = vpop.f32.mrf.mxu0
      %v3798 = vadd.f32 %v3415, %v3797
      %v3799 = vpop.f32.mrf.mxu0
      %v3800 = vadd.f32 %v3415, %v3799
      %3801 = vmatmul.bf16.gmra.mxu0 %v3524
      %v3802 = vpop.f32.mrf.mxu0
      %v3803 = vadd.f32 %v3415, %v3802
      %v3804 = vpop.f32.mrf.mxu0
      %v3805 = vadd.f32 %v3415, %v3804
      %3806 = vmatmul.bf16.gmra.mxu0 %v3526
      %v3807 = vpop.f32.mrf.mxu0
      %v3808 = vadd.f32 %v3415, %v3807
      %v3809 = vpop.f32.mrf.mxu0
      %v3810 = vadd.f32 %v3415, %v3809
      %3811 = vmatmul.bf16.gmra.mxu0 %v3528
      %v3812 = vpop.f32.mrf.mxu0
      %v3813 = vadd.f32 %v3415, %v3812
      %v3814 = vpop.f32.mrf.mxu0
      %v3815 = vadd.f32 %v3415, %v3814
      %3816 = vmatmul.bf16.gmra.mxu0 %v3530
      %v3817 = vpop.f32.mrf.mxu0
      %v3818 = vadd.f32 %v3415, %v3817
      %v3819 = vpop.f32.mrf.mxu0
      %v3820 = vadd.f32 %v3415, %v3819
      %3821 = vmatmul.bf16.gmra.mxu0 %v3532
      %v3822 = vpop.f32.mrf.mxu0
      %v3823 = vadd.f32 %v3415, %v3822
      %v3824 = vpop.f32.mrf.mxu0
      %v3825 = vadd.f32 %v3415, %v3824
      %3826 = vmatmul.bf16.gmra.mxu0 %v3534
      %v3827 = vpop.f32.mrf.mxu0
      %v3828 = vadd.f32 %v3415, %v3827
      %v3829 = vpop.f32.mrf.mxu0
      %v3830 = vadd.f32 %v3415, %v3829
      %3831 = vmatmul.bf16.gmra.mxu0 %v3536
      %v3832 = vpop.f32.mrf.mxu0
      %v3833 = vadd.f32 %v3415, %v3832
      %v3834 = vpop.f32.mrf.mxu0
      %v3835 = vadd.f32 %v3415, %v3834
      %3836 = vmatmul.bf16.gmra.mxu0 %v3538
      %v3837 = vpop.f32.mrf.mxu0
      %v3838 = vadd.f32 %v3415, %v3837
      %v3839 = vpop.f32.mrf.mxu0
      %v3840 = vadd.f32 %v3415, %v3839
      %3841 = vmatmul.bf16.gmra.mxu0 %v3540
      %v3842 = vpop.f32.mrf.mxu0
      %v3843 = vadd.f32 %v3415, %v3842
      %v3844 = vpop.f32.mrf.mxu0
      %v3845 = vadd.f32 %v3415, %v3844
      %3846 = vmatmul.bf16.gmra.mxu0 %v3542
      %v3847 = vpop.f32.mrf.mxu0
      %v3848 = vadd.f32 %v3415, %v3847
      %v3849 = vpop.f32.mrf.mxu0
      %v3850 = vadd.f32 %v3415, %v3849
      %3851 = vmatmul.bf16.gmra.mxu0 %v3544
      %v3852 = vpop.f32.mrf.mxu0
      %v3853 = vadd.f32 %v3415, %v3852
      %v3854 = vpop.f32.mrf.mxu0
      %v3855 = vadd.f32 %v3415, %v3854
      %3856 = vmatmul.bf16.gmra.mxu0 %v3546
      %v3857 = vpop.f32.mrf.mxu0
      %v3858 = vadd.f32 %v3415, %v3857
      %v3859 = vpop.f32.mrf.mxu0
      %v3860 = vadd.f32 %v3415, %v3859
      %3861 = vmatmul.bf16.gmra.mxu0 %v3548
      %v3862 = vpop.f32.mrf.mxu0
      %v3863 = vadd.f32 %v3415, %v3862
      %v3864 = vpop.f32.mrf.mxu0
      %v3865 = vadd.f32 %v3415, %v3864
      %3866 = vmatmul.bf16.gmra.mxu0 %v3550
      %v3867 = vpop.f32.mrf.mxu0
      %v3868 = vadd.f32 %v3415, %v3867
      %v3869 = vpop.f32.mrf.mxu0
      %v3870 = vadd.f32 %v3415, %v3869
      %3871 = vmatmul.bf16.gmra.mxu0 %v3552
      %v3872 = vpop.f32.mrf.mxu0
      %v3873 = vadd.f32 %v3415, %v3872
      %v3874 = vpop.f32.mrf.mxu0
      %v3875 = vadd.f32 %v3415, %v3874
      %3876 = vmatmul.bf16.gmra.mxu0 %v3554
      %v3877 = vpop.f32.mrf.mxu0
      %v3878 = vadd.f32 %v3415, %v3877
      %v3879 = vpop.f32.mrf.mxu0
      %v3880 = vadd.f32 %v3415, %v3879
      %3881 = vmatmul.bf16.gmra.mxu0 %v3556
      %v3882 = vpop.f32.mrf.mxu0
      %v3883 = vadd.f32 %v3415, %v3882
      %v3884 = vpop.f32.mrf.mxu0
      %v3885 = vadd.f32 %v3415, %v3884
      %3886 = vdwg.mxu0
      %vm3887 = vcmp.ge.f32.partialorder %v3568, 0.0
      %vm3888 = vcmp.ge.f32.partialorder %v3570, 0.0
      %vm3889 = vcmp.ge.f32.partialorder %v3573, 0.0
      %vm3890 = vcmp.ge.f32.partialorder %v3575, 0.0
      %vm3891 = vcmp.ge.f32.partialorder %v3578, 0.0
      %vm3892 = vcmp.ge.f32.partialorder %v3580, 0.0
      %vm3893 = vcmp.ge.f32.partialorder %v3583, 0.0
      %vm3894 = vcmp.ge.f32.partialorder %v3585, 0.0
      %vm3895 = vcmp.ge.f32.partialorder %v3588, 0.0
      %vm3896 = vcmp.ge.f32.partialorder %v3590, 0.0
      %vm3897 = vcmp.ge.f32.partialorder %v3593, 0.0
      %vm3898 = vcmp.ge.f32.partialorder %v3595, 0.0
      %vm3899 = vcmp.ge.f32.partialorder %v3598, 0.0
      %vm3900 = vcmp.ge.f32.partialorder %v3600, 0.0
      %vm3901 = vcmp.ge.f32.partialorder %v3603, 0.0
      %vm3902 = vcmp.ge.f32.partialorder %v3605, 0.0
      %vm3903 = vcmp.ge.f32.partialorder %v3608, 0.0
      %vm3904 = vcmp.ge.f32.partialorder %v3610, 0.0
      %vm3905 = vcmp.ge.f32.partialorder %v3613, 0.0
      %vm3906 = vcmp.ge.f32.partialorder %v3615, 0.0
      %vm3907 = vcmp.ge.f32.partialorder %v3618, 0.0
      %vm3908 = vcmp.ge.f32.partialorder %v3620, 0.0
      %vm3909 = vcmp.ge.f32.partialorder %v3623, 0.0
      %vm3910 = vcmp.ge.f32.partialorder %v3625, 0.0
      %vm3911 = vcmp.ge.f32.partialorder %v3628, 0.0
      %vm3912 = vcmp.ge.f32.partialorder %v3630, 0.0
      %vm3913 = vcmp.ge.f32.partialorder %v3633, 0.0
      %vm3914 = vcmp.ge.f32.partialorder %v3635, 0.0
      %vm3915 = vcmp.ge.f32.partialorder %v3638, 0.0
      %vm3916 = vcmp.ge.f32.partialorder %v3640, 0.0
      %vm3917 = vcmp.ge.f32.partialorder %v3643, 0.0
      %vm3918 = vcmp.ge.f32.partialorder %v3645, 0.0
      %vm3919 = vcmp.ge.f32.partialorder %v3648, 0.0
      %vm3920 = vcmp.ge.f32.partialorder %v3650, 0.0
      %vm3921 = vcmp.ge.f32.partialorder %v3653, 0.0
      %vm3922 = vcmp.ge.f32.partialorder %v3655, 0.0
      %vm3923 = vcmp.ge.f32.partialorder %v3658, 0.0
      %vm3924 = vcmp.ge.f32.partialorder %v3660, 0.0
      %vm3925 = vcmp.ge.f32.partialorder %v3663, 0.0
      %vm3926 = vcmp.ge.f32.partialorder %v3665, 0.0
      %vm3927 = vcmp.ge.f32.partialorder %v3668, 0.0
      %vm3928 = vcmp.ge.f32.partialorder %v3670, 0.0
      %vm3929 = vcmp.ge.f32.partialorder %v3673, 0.0
      %vm3930 = vcmp.ge.f32.partialorder %v3675, 0.0
      %vm3931 = vcmp.ge.f32.partialorder %v3678, 0.0
      %vm3932 = vcmp.ge.f32.partialorder %v3680, 0.0
      %vm3933 = vcmp.ge.f32.partialorder %v3683, 0.0
      %vm3934 = vcmp.ge.f32.partialorder %v3685, 0.0
      %vm3935 = vcmp.ge.f32.partialorder %v3688, 0.0
      %vm3936 = vcmp.ge.f32.partialorder %v3690, 0.0
      %vm3937 = vcmp.ge.f32.partialorder %v3693, 0.0
      %vm3938 = vcmp.ge.f32.partialorder %v3695, 0.0
      %vm3939 = vcmp.ge.f32.partialorder %v3698, 0.0
      %vm3940 = vcmp.ge.f32.partialorder %v3700, 0.0
      %vm3941 = vcmp.ge.f32.partialorder %v3703, 0.0
      %vm3942 = vcmp.ge.f32.partialorder %v3705, 0.0
      %vm3943 = vcmp.ge.f32.partialorder %v3708, 0.0
      %vm3944 = vcmp.ge.f32.partialorder %v3710, 0.0
      %vm3945 = vcmp.ge.f32.partialorder %v3713, 0.0
      %vm3946 = vcmp.ge.f32.partialorder %v3715, 0.0
      %vm3947 = vcmp.ge.f32.partialorder %v3718, 0.0
      %vm3948 = vcmp.ge.f32.partialorder %v3720, 0.0
      %vm3949 = vcmp.ge.f32.partialorder %v3723, 0.0
      %vm3950 = vcmp.ge.f32.partialorder %v3725, 0.0
      %vm3951 = vcmp.ge.f32.partialorder %v3728, 0.0
      %vm3952 = vcmp.ge.f32.partialorder %v3730, 0.0
      %vm3953 = vcmp.ge.f32.partialorder %v3733, 0.0
      %vm3954 = vcmp.ge.f32.partialorder %v3735, 0.0
      %vm3955 = vcmp.ge.f32.partialorder %v3738, 0.0
      %vm3956 = vcmp.ge.f32.partialorder %v3740, 0.0
      %vm3957 = vcmp.ge.f32.partialorder %v3743, 0.0
      %vm3958 = vcmp.ge.f32.partialorder %v3745, 0.0
      %vm3959 = vcmp.ge.f32.partialorder %v3748, 0.0
      %vm3960 = vcmp.ge.f32.partialorder %v3750, 0.0
      %vm3961 = vcmp.ge.f32.partialorder %v3753, 0.0
      %vm3962 = vcmp.ge.f32.partialorder %v3755, 0.0
      %vm3963 = vcmp.ge.f32.partialorder %v3758, 0.0
      %vm3964 = vcmp.ge.f32.partialorder %v3760, 0.0
      %vm3965 = vcmp.ge.f32.partialorder %v3763, 0.0
      %vm3966 = vcmp.ge.f32.partialorder %v3765, 0.0
      %vm3967 = vcmp.ge.f32.partialorder %v3768, 0.0
      %vm3968 = vcmp.ge.f32.partialorder %v3770, 0.0
      %vm3969 = vcmp.ge.f32.partialorder %v3773, 0.0
      %vm3970 = vcmp.ge.f32.partialorder %v3775, 0.0
      %vm3971 = vcmp.ge.f32.partialorder %v3778, 0.0
      %vm3972 = vcmp.ge.f32.partialorder %v3780, 0.0
      %vm3973 = vcmp.ge.f32.partialorder %v3783, 0.0
      %vm3974 = vcmp.ge.f32.partialorder %v3785, 0.0
      %vm3975 = vcmp.ge.f32.partialorder %v3788, 0.0
      %vm3976 = vcmp.ge.f32.partialorder %v3790, 0.0
      %vm3977 = vcmp.ge.f32.partialorder %v3793, 0.0
      %vm3978 = vcmp.ge.f32.partialorder %v3795, 0.0
      %vm3979 = vcmp.ge.f32.partialorder %v3798, 0.0
      %vm3980 = vcmp.ge.f32.partialorder %v3800, 0.0
      %vm3981 = vcmp.ge.f32.partialorder %v3803, 0.0
      %vm3982 = vcmp.ge.f32.partialorder %v3805, 0.0
      %vm3983 = vcmp.ge.f32.partialorder %v3808, 0.0
      %vm3984 = vcmp.ge.f32.partialorder %v3810, 0.0
      %vm3985 = vcmp.ge.f32.partialorder %v3813, 0.0
      %vm3986 = vcmp.ge.f32.partialorder %v3815, 0.0
      %vm3987 = vcmp.ge.f32.partialorder %v3818, 0.0
      %vm3988 = vcmp.ge.f32.partialorder %v3820, 0.0
      %vm3989 = vcmp.ge.f32.partialorder %v3823, 0.0
      %vm3990 = vcmp.ge.f32.partialorder %v3825, 0.0
      %vm3991 = vcmp.ge.f32.partialorder %v3828, 0.0
      %vm3992 = vcmp.ge.f32.partialorder %v3830, 0.0
      %vm3993 = vcmp.ge.f32.partialorder %v3833, 0.0
      %vm3994 = vcmp.ge.f32.partialorder %v3835, 0.0
      %vm3995 = vcmp.ge.f32.partialorder %v3838, 0.0
      %vm3996 = vcmp.ge.f32.partialorder %v3840, 0.0
      %vm3997 = vcmp.ge.f32.partialorder %v3843, 0.0
      %vm3998 = vcmp.ge.f32.partialorder %v3845, 0.0
      %vm3999 = vcmp.ge.f32.partialorder %v3848, 0.0
      %vm4000 = vcmp.ge.f32.partialorder %v3850, 0.0
      %vm4001 = vcmp.ge.f32.partialorder %v3853, 0.0
      %vm4002 = vcmp.ge.f32.partialorder %v3855, 0.0
      %vm4003 = vcmp.ge.f32.partialorder %v3858, 0.0
      %vm4004 = vcmp.ge.f32.partialorder %v3860, 0.0
      %vm4005 = vcmp.ge.f32.partialorder %v3863, 0.0
      %vm4006 = vcmp.ge.f32.partialorder %v3865, 0.0
      %vm4007 = vcmp.ge.f32.partialorder %v3868, 0.0
      %vm4008 = vcmp.ge.f32.partialorder %v3870, 0.0
      %vm4009 = vcmp.ge.f32.partialorder %v3873, 0.0
      %vm4010 = vcmp.ge.f32.partialorder %v3875, 0.0
      %vm4011 = vcmp.ge.f32.partialorder %v3878, 0.0
      %vm4012 = vcmp.ge.f32.partialorder %v3880, 0.0
      %vm4013 = vcmp.ge.f32.partialorder %v3883, 0.0
      %vm4014 = vcmp.ge.f32.partialorder %v3885, 0.0
      %v4015 = vmul.f32 %v3568, 0.2
      %v4016 = vmul.f32 %v3570, 0.2
      %v4017 = vmul.f32 %v3573, 0.2
      %v4018 = vmul.f32 %v3575, 0.2
      %v4019 = vmul.f32 %v3578, 0.2
      %v4020 = vmul.f32 %v3580, 0.2
      %v4021 = vmul.f32 %v3583, 0.2
      %v4022 = vmul.f32 %v3585, 0.2
      %v4023 = vmul.f32 %v3588, 0.2
      %v4024 = vmul.f32 %v3590, 0.2
      %v4025 = vmul.f32 %v3593, 0.2
      %v4026 = vmul.f32 %v3595, 0.2
      %v4027 = vmul.f32 %v3598, 0.2
      %v4028 = vmul.f32 %v3600, 0.2
      %v4029 = vmul.f32 %v3603, 0.2
      %v4030 = vmul.f32 %v3605, 0.2
      %v4031 = vmul.f32 %v3608, 0.2
      %v4032 = vmul.f32 %v3610, 0.2
      %v4033 = vmul.f32 %v3613, 0.2
      %v4034 = vmul.f32 %v3615, 0.2
      %v4035 = vmul.f32 %v3618, 0.2
      %v4036 = vmul.f32 %v3620, 0.2
      %v4037 = vmul.f32 %v3623, 0.2
      %v4038 = vmul.f32 %v3625, 0.2
      %v4039 = vmul.f32 %v3628, 0.2
      %v4040 = vmul.f32 %v3630, 0.2
      %v4041 = vmul.f32 %v3633, 0.2
      %v4042 = vmul.f32 %v3635, 0.2
      %v4043 = vmul.f32 %v3638, 0.2
      %v4044 = vmul.f32 %v3640, 0.2
      %v4045 = vmul.f32 %v3643, 0.2
      %v4046 = vmul.f32 %v3645, 0.2
      %v4047 = vmul.f32 %v3648, 0.2
      %v4048 = vmul.f32 %v3650, 0.2
      %v4049 = vmul.f32 %v3653, 0.2
      %v4050 = vmul.f32 %v3655, 0.2
      %v4051 = vmul.f32 %v3658, 0.2
      %v4052 = vmul.f32 %v3660, 0.2
      %v4053 = vmul.f32 %v3663, 0.2
      %v4054 = vmul.f32 %v3665, 0.2
      %v4055 = vmul.f32 %v3668, 0.2
      %v4056 = vmul.f32 %v3670, 0.2
      %v4057 = vmul.f32 %v3673, 0.2
      %v4058 = vmul.f32 %v3675, 0.2
      %v4059 = vmul.f32 %v3678, 0.2
      %v4060 = vmul.f32 %v3680, 0.2
      %v4061 = vmul.f32 %v3683, 0.2
      %v4062 = vmul.f32 %v3685, 0.2
      %v4063 = vmul.f32 %v3688, 0.2
      %v4064 = vmul.f32 %v3690, 0.2
      %v4065 = vmul.f32 %v3693, 0.2
      %v4066 = vmul.f32 %v3695, 0.2
      %v4067 = vmul.f32 %v3698, 0.2
      %v4068 = vmul.f32 %v3700, 0.2
      %v4069 = vmul.f32 %v3703, 0.2
      %v4070 = vmul.f32 %v3705, 0.2
      %v4071 = vmul.f32 %v3708, 0.2
      %v4072 = vmul.f32 %v3710, 0.2
      %v4073 = vmul.f32 %v3713, 0.2
      %v4074 = vmul.f32 %v3715, 0.2
      %v4075 = vmul.f32 %v3718, 0.2
      %v4076 = vmul.f32 %v3720, 0.2
      %v4077 = vmul.f32 %v3723, 0.2
      %v4078 = vmul.f32 %v3725, 0.2
      %v4079 = vmul.f32 %v3728, 0.2
      %v4080 = vmul.f32 %v3730, 0.2
      %v4081 = vmul.f32 %v3733, 0.2
      %v4082 = vmul.f32 %v3735, 0.2
      %v4083 = vmul.f32 %v3738, 0.2
      %v4084 = vmul.f32 %v3740, 0.2
      %v4085 = vmul.f32 %v3743, 0.2
      %v4086 = vmul.f32 %v3745, 0.2
      %v4087 = vmul.f32 %v3748, 0.2
      %v4088 = vmul.f32 %v3750, 0.2
      %v4089 = vmul.f32 %v3753, 0.2
      %v4090 = vmul.f32 %v3755, 0.2
      %v4091 = vmul.f32 %v3758, 0.2
      %v4092 = vmul.f32 %v3760, 0.2
      %v4093 = vmul.f32 %v3763, 0.2
      %v4094 = vmul.f32 %v3765, 0.2
      %v4095 = vmul.f32 %v3768, 0.2
      %v4096 = vmul.f32 %v3770, 0.2
      %v4097 = vmul.f32 %v3773, 0.2
      %v4098 = vmul.f32 %v3775, 0.2
      %v4099 = vmul.f32 %v3778, 0.2
      %v4100 = vmul.f32 %v3780, 0.2
      %v4101 = vmul.f32 %v3783, 0.2
      %v4102 = vmul.f32 %v3785, 0.2
      %v4103 = vmul.f32 %v3788, 0.2
      %v4104 = vmul.f32 %v3790, 0.2
      %v4105 = vmul.f32 %v3793, 0.2
      %v4106 = vmul.f32 %v3795, 0.2
      %v4107 = vmul.f32 %v3798, 0.2
      %v4108 = vmul.f32 %v3800, 0.2
      %v4109 = vmul.f32 %v3803, 0.2
      %v4110 = vmul.f32 %v3805, 0.2
      %v4111 = vmul.f32 %v3808, 0.2
      %v4112 = vmul.f32 %v3810, 0.2
      %v4113 = vmul.f32 %v3813, 0.2
      %v4114 = vmul.f32 %v3815, 0.2
      %v4115 = vmul.f32 %v3818, 0.2
      %v4116 = vmul.f32 %v3820, 0.2
      %v4117 = vmul.f32 %v3823, 0.2
      %v4118 = vmul.f32 %v3825, 0.2
      %v4119 = vmul.f32 %v3828, 0.2
      %v4120 = vmul.f32 %v3830, 0.2
      %v4121 = vmul.f32 %v3833, 0.2
      %v4122 = vmul.f32 %v3835, 0.2
      %v4123 = vmul.f32 %v3838, 0.2
      %v4124 = vmul.f32 %v3840, 0.2
      %v4125 = vmul.f32 %v3843, 0.2
      %v4126 = vmul.f32 %v3845, 0.2
      %v4127 = vmul.f32 %v3848, 0.2
      %v4128 = vmul.f32 %v3850, 0.2
      %v4129 = vmul.f32 %v3853, 0.2
      %v4130 = vmul.f32 %v3855, 0.2
      %v4131 = vmul.f32 %v3858, 0.2
      %v4132 = vmul.f32 %v3860, 0.2
      %v4133 = vmul.f32 %v3863, 0.2
      %v4134 = vmul.f32 %v3865, 0.2
      %v4135 = vmul.f32 %v3868, 0.2
      %v4136 = vmul.f32 %v3870, 0.2
      %v4137 = vmul.f32 %v3873, 0.2
      %v4138 = vmul.f32 %v3875, 0.2
      %v4139 = vmul.f32 %v3878, 0.2
      %v4140 = vmul.f32 %v3880, 0.2
      %v4141 = vmul.f32 %v3883, 0.2
      %v4142 = vmul.f32 %v3885, 0.2
      %v4143 = vsel %vm3887, %v3568, %v4015
      %v4144 = vsel %vm3888, %v3570, %v4016
      %v4145 = vsel %vm3889, %v3573, %v4017
      %v4146 = vsel %vm3890, %v3575, %v4018
      %v4147 = vsel %vm3891, %v3578, %v4019
      %v4148 = vsel %vm3892, %v3580, %v4020
      %v4149 = vsel %vm3893, %v3583, %v4021
      %v4150 = vsel %vm3894, %v3585, %v4022
      %v4151 = vsel %vm3895, %v3588, %v4023
      %v4152 = vsel %vm3896, %v3590, %v4024
      %v4153 = vsel %vm3897, %v3593, %v4025
      %v4154 = vsel %vm3898, %v3595, %v4026
      %v4155 = vsel %vm3899, %v3598, %v4027
      %v4156 = vsel %vm3900, %v3600, %v4028
      %v4157 = vsel %vm3901, %v3603, %v4029
      %v4158 = vsel %vm3902, %v3605, %v4030
      %v4159 = vsel %vm3903, %v3608, %v4031
      %v4160 = vsel %vm3904, %v3610, %v4032
      %v4161 = vsel %vm3905, %v3613, %v4033
      %v4162 = vsel %vm3906, %v3615, %v4034
      %v4163 = vsel %vm3907, %v3618, %v4035
      %v4164 = vsel %vm3908, %v3620, %v4036
      %v4165 = vsel %vm3909, %v3623, %v4037
      %v4166 = vsel %vm3910, %v3625, %v4038
      %v4167 = vsel %vm3911, %v3628, %v4039
      %v4168 = vsel %vm3912, %v3630, %v4040
      %v4169 = vsel %vm3913, %v3633, %v4041
      %v4170 = vsel %vm3914, %v3635, %v4042
      %v4171 = vsel %vm3915, %v3638, %v4043
      %v4172 = vsel %vm3916, %v3640, %v4044
      %v4173 = vsel %vm3917, %v3643, %v4045
      %v4174 = vsel %vm3918, %v3645, %v4046
      %v4175 = vsel %vm3919, %v3648, %v4047
      %v4176 = vsel %vm3920, %v3650, %v4048
      %v4177 = vsel %vm3921, %v3653, %v4049
      %v4178 = vsel %vm3922, %v3655, %v4050
      %v4179 = vsel %vm3923, %v3658, %v4051
      %v4180 = vsel %vm3924, %v3660, %v4052
      %v4181 = vsel %vm3925, %v3663, %v4053
      %v4182 = vsel %vm3926, %v3665, %v4054
      %v4183 = vsel %vm3927, %v3668, %v4055
      %v4184 = vsel %vm3928, %v3670, %v4056
      %v4185 = vsel %vm3929, %v3673, %v4057
      %v4186 = vsel %vm3930, %v3675, %v4058
      %v4187 = vsel %vm3931, %v3678, %v4059
      %v4188 = vsel %vm3932, %v3680, %v4060
      %v4189 = vsel %vm3933, %v3683, %v4061
      %v4190 = vsel %vm3934, %v3685, %v4062
      %v4191 = vsel %vm3935, %v3688, %v4063
      %v4192 = vsel %vm3936, %v3690, %v4064
      %v4193 = vsel %vm3937, %v3693, %v4065
      %v4194 = vsel %vm3938, %v3695, %v4066
      %v4195 = vsel %vm3939, %v3698, %v4067
      %v4196 = vsel %vm3940, %v3700, %v4068
      %v4197 = vsel %vm3941, %v3703, %v4069
      %v4198 = vsel %vm3942, %v3705, %v4070
      %v4199 = vsel %vm3943, %v3708, %v4071
      %v4200 = vsel %vm3944, %v3710, %v4072
      %v4201 = vsel %vm3945, %v3713, %v4073
      %v4202 = vsel %vm3946, %v3715, %v4074
      %v4203 = vsel %vm3947, %v3718, %v4075
      %v4204 = vsel %vm3948, %v3720, %v4076
      %v4205 = vsel %vm3949, %v3723, %v4077
      %v4206 = vsel %vm3950, %v3725, %v4078
      %v4207 = vsel %vm3951, %v3728, %v4079
      %v4208 = vsel %vm3952, %v3730, %v4080
      %v4209 = vsel %vm3953, %v3733, %v4081
      %v4210 = vsel %vm3954, %v3735, %v4082
      %v4211 = vsel %vm3955, %v3738, %v4083
      %v4212 = vsel %vm3956, %v3740, %v4084
      %v4213 = vsel %vm3957, %v3743, %v4085
      %v4214 = vsel %vm3958, %v3745, %v4086
      %v4215 = vsel %vm3959, %v3748, %v4087
      %v4216 = vsel %vm3960, %v3750, %v4088
      %v4217 = vsel %vm3961, %v3753, %v4089
      %v4218 = vsel %vm3962, %v3755, %v4090
      %v4219 = vsel %vm3963, %v3758, %v4091
      %v4220 = vsel %vm3964, %v3760, %v4092
      %v4221 = vsel %vm3965, %v3763, %v4093
      %v4222 = vsel %vm3966, %v3765, %v4094
      %v4223 = vsel %vm3967, %v3768, %v4095
      %v4224 = vsel %vm3968, %v3770, %v4096
      %v4225 = vsel %vm3969, %v3773, %v4097
      %v4226 = vsel %vm3970, %v3775, %v4098
      %v4227 = vsel %vm3971, %v3778, %v4099
      %v4228 = vsel %vm3972, %v3780, %v4100
      %v4229 = vsel %vm3973, %v3783, %v4101
      %v4230 = vsel %vm3974, %v3785, %v4102
      %v4231 = vsel %vm3975, %v3788, %v4103
      %v4232 = vsel %vm3976, %v3790, %v4104
      %v4233 = vsel %vm3977, %v3793, %v4105
      %v4234 = vsel %vm3978, %v3795, %v4106
      %v4235 = vsel %vm3979, %v3798, %v4107
      %v4236 = vsel %vm3980, %v3800, %v4108
      %v4237 = vsel %vm3981, %v3803, %v4109
      %v4238 = vsel %vm3982, %v3805, %v4110
      %v4239 = vsel %vm3983, %v3808, %v4111
      %v4240 = vsel %vm3984, %v3810, %v4112
      %v4241 = vsel %vm3985, %v3813, %v4113
      %v4242 = vsel %vm3986, %v3815, %v4114
      %v4243 = vsel %vm3987, %v3818, %v4115
      %v4244 = vsel %vm3988, %v3820, %v4116
      %v4245 = vsel %vm3989, %v3823, %v4117
      %v4246 = vsel %vm3990, %v3825, %v4118
      %v4247 = vsel %vm3991, %v3828, %v4119
      %v4248 = vsel %vm3992, %v3830, %v4120
      %v4249 = vsel %vm3993, %v3833, %v4121
      %v4250 = vsel %vm3994, %v3835, %v4122
      %v4251 = vsel %vm3995, %v3838, %v4123
      %v4252 = vsel %vm3996, %v3840, %v4124
      %v4253 = vsel %vm3997, %v3843, %v4125
      %v4254 = vsel %vm3998, %v3845, %v4126
      %v4255 = vsel %vm3999, %v3848, %v4127
      %v4256 = vsel %vm4000, %v3850, %v4128
      %v4257 = vsel %vm4001, %v3853, %v4129
      %v4258 = vsel %vm4002, %v3855, %v4130
      %v4259 = vsel %vm4003, %v3858, %v4131
      %v4260 = vsel %vm4004, %v3860, %v4132
      %v4261 = vsel %vm4005, %v3863, %v4133
      %v4262 = vsel %vm4006, %v3865, %v4134
      %v4263 = vsel %vm4007, %v3868, %v4135
      %v4264 = vsel %vm4008, %v3870, %v4136
      %v4265 = vsel %vm4009, %v3873, %v4137
      %v4266 = vsel %vm4010, %v3875, %v4138
      %v4267 = vsel %vm4011, %v3878, %v4139
      %v4268 = vsel %vm4012, %v3880, %v4140
      %v4269 = vsel %vm4013, %v3883, %v4141
      %v4270 = vsel %vm4014, %v3885, %v4142
      %v4271 = vpack.c.bf16 %v4143, %v4143
      %v4272 = vpack.c.bf16 %v4144, %v4144
      %v4273 = vpack.c.bf16 %v4145, %v4145
      %v4274 = vpack.c.bf16 %v4146, %v4146
      %v4275 = vpack.c.bf16 %v4147, %v4147
      %v4276 = vpack.c.bf16 %v4148, %v4148
      %v4277 = vpack.c.bf16 %v4149, %v4149
      %v4278 = vpack.c.bf16 %v4150, %v4150
      %v4279 = vpack.c.bf16 %v4151, %v4151
      %v4280 = vpack.c.bf16 %v4152, %v4152
      %v4281 = vpack.c.bf16 %v4153, %v4153
      %v4282 = vpack.c.bf16 %v4154, %v4154
      %v4283 = vpack.c.bf16 %v4155, %v4155
      %v4284 = vpack.c.bf16 %v4156, %v4156
      %v4285 = vpack.c.bf16 %v4157, %v4157
      %v4286 = vpack.c.bf16 %v4158, %v4158
      %v4287 = vpack.c.bf16 %v4159, %v4159
      %v4288 = vpack.c.bf16 %v4160, %v4160
      %v4289 = vpack.c.bf16 %v4161, %v4161
      %v4290 = vpack.c.bf16 %v4162, %v4162
      %v4291 = vpack.c.bf16 %v4163, %v4163
      %v4292 = vpack.c.bf16 %v4164, %v4164
      %v4293 = vpack.c.bf16 %v4165, %v4165
      %v4294 = vpack.c.bf16 %v4166, %v4166
      %v4295 = vpack.c.bf16 %v4167, %v4167
      %v4296 = vpack.c.bf16 %v4168, %v4168
      %v4297 = vpack.c.bf16 %v4169, %v4169
      %v4298 = vpack.c.bf16 %v4170, %v4170
      %v4299 = vpack.c.bf16 %v4171, %v4171
      %v4300 = vpack.c.bf16 %v4172, %v4172
      %v4301 = vpack.c.bf16 %v4173, %v4173
      %v4302 = vpack.c.bf16 %v4174, %v4174
      %v4303 = vpack.c.bf16 %v4175, %v4175
      %v4304 = vpack.c.bf16 %v4176, %v4176
      %v4305 = vpack.c.bf16 %v4177, %v4177
      %v4306 = vpack.c.bf16 %v4178, %v4178
      %v4307 = vpack.c.bf16 %v4179, %v4179
      %v4308 = vpack.c.bf16 %v4180, %v4180
      %v4309 = vpack.c.bf16 %v4181, %v4181
      %v4310 = vpack.c.bf16 %v4182, %v4182
      %v4311 = vpack.c.bf16 %v4183, %v4183
      %v4312 = vpack.c.bf16 %v4184, %v4184
      %v4313 = vpack.c.bf16 %v4185, %v4185
      %v4314 = vpack.c.bf16 %v4186, %v4186
      %v4315 = vpack.c.bf16 %v4187, %v4187
      %v4316 = vpack.c.bf16 %v4188, %v4188
      %v4317 = vpack.c.bf16 %v4189, %v4189
      %v4318 = vpack.c.bf16 %v4190, %v4190
      %v4319 = vpack.c.bf16 %v4191, %v4191
      %v4320 = vpack.c.bf16 %v4192, %v4192
      %v4321 = vpack.c.bf16 %v4193, %v4193
      %v4322 = vpack.c.bf16 %v4194, %v4194
      %v4323 = vpack.c.bf16 %v4195, %v4195
      %v4324 = vpack.c.bf16 %v4196, %v4196
      %v4325 = vpack.c.bf16 %v4197, %v4197
      %v4326 = vpack.c.bf16 %v4198, %v4198
      %v4327 = vpack.c.bf16 %v4199, %v4199
      %v4328 = vpack.c.bf16 %v4200, %v4200
      %v4329 = vpack.c.bf16 %v4201, %v4201
      %v4330 = vpack.c.bf16 %v4202, %v4202
      %v4331 = vpack.c.bf16 %v4203, %v4203
      %v4332 = vpack.c.bf16 %v4204, %v4204
      %v4333 = vpack.c.bf16 %v4205, %v4205
      %v4334 = vpack.c.bf16 %v4206, %v4206
      %v4335 = vpack.c.bf16 %v4207, %v4207
      %v4336 = vpack.c.bf16 %v4208, %v4208
      %v4337 = vpack.c.bf16 %v4209, %v4209
      %v4338 = vpack.c.bf16 %v4210, %v4210
      %v4339 = vpack.c.bf16 %v4211, %v4211
      %v4340 = vpack.c.bf16 %v4212, %v4212
      %v4341 = vpack.c.bf16 %v4213, %v4213
      %v4342 = vpack.c.bf16 %v4214, %v4214
      %v4343 = vpack.c.bf16 %v4215, %v4215
      %v4344 = vpack.c.bf16 %v4216, %v4216
      %v4345 = vpack.c.bf16 %v4217, %v4217
      %v4346 = vpack.c.bf16 %v4218, %v4218
      %v4347 = vpack.c.bf16 %v4219, %v4219
      %v4348 = vpack.c.bf16 %v4220, %v4220
      %v4349 = vpack.c.bf16 %v4221, %v4221
      %v4350 = vpack.c.bf16 %v4222, %v4222
      %v4351 = vpack.c.bf16 %v4223, %v4223
      %v4352 = vpack.c.bf16 %v4224, %v4224
      %v4353 = vpack.c.bf16 %v4225, %v4225
      %v4354 = vpack.c.bf16 %v4226, %v4226
      %v4355 = vpack.c.bf16 %v4227, %v4227
      %v4356 = vpack.c.bf16 %v4228, %v4228
      %v4357 = vpack.c.bf16 %v4229, %v4229
      %v4358 = vpack.c.bf16 %v4230, %v4230
      %v4359 = vpack.c.bf16 %v4231, %v4231
      %v4360 = vpack.c.bf16 %v4232, %v4232
      %v4361 = vpack.c.bf16 %v4233, %v4233
      %v4362 = vpack.c.bf16 %v4234, %v4234
      %v4363 = vpack.c.bf16 %v4235, %v4235
      %v4364 = vpack.c.bf16 %v4236, %v4236
      %v4365 = vpack.c.bf16 %v4237, %v4237
      %v4366 = vpack.c.bf16 %v4238, %v4238
      %v4367 = vpack.c.bf16 %v4239, %v4239
      %v4368 = vpack.c.bf16 %v4240, %v4240
      %v4369 = vpack.c.bf16 %v4241, %v4241
      %v4370 = vpack.c.bf16 %v4242, %v4242
      %v4371 = vpack.c.bf16 %v4243, %v4243
      %v4372 = vpack.c.bf16 %v4244, %v4244
      %v4373 = vpack.c.bf16 %v4245, %v4245
      %v4374 = vpack.c.bf16 %v4246, %v4246
      %v4375 = vpack.c.bf16 %v4247, %v4247
      %v4376 = vpack.c.bf16 %v4248, %v4248
      %v4377 = vpack.c.bf16 %v4249, %v4249
      %v4378 = vpack.c.bf16 %v4250, %v4250
      %v4379 = vpack.c.bf16 %v4251, %v4251
      %v4380 = vpack.c.bf16 %v4252, %v4252
      %v4381 = vpack.c.bf16 %v4253, %v4253
      %v4382 = vpack.c.bf16 %v4254, %v4254
      %v4383 = vpack.c.bf16 %v4255, %v4255
      %v4384 = vpack.c.bf16 %v4256, %v4256
      %v4385 = vpack.c.bf16 %v4257, %v4257
      %v4386 = vpack.c.bf16 %v4258, %v4258
      %v4387 = vpack.c.bf16 %v4259, %v4259
      %v4388 = vpack.c.bf16 %v4260, %v4260
      %v4389 = vpack.c.bf16 %v4261, %v4261
      %v4390 = vpack.c.bf16 %v4262, %v4262
      %v4391 = vpack.c.bf16 %v4263, %v4263
      %v4392 = vpack.c.bf16 %v4264, %v4264
      %v4393 = vpack.c.bf16 %v4265, %v4265
      %v4394 = vpack.c.bf16 %v4266, %v4266
      %v4395 = vpack.c.bf16 %v4267, %v4267
      %v4396 = vpack.c.bf16 %v4268, %v4268
      %v4397 = vpack.c.bf16 %v4269, %v4269
      %v4398 = vpack.c.bf16 %v4270, %v4270
      %4399 = vst [vmem:[%s194] sm:$0xf] %v4271
      %4400 = vst [vmem:[%s194 + $0x4] sm:$0xf] %v4272
      %4401 = vst [vmem:[%s194 + $0x8] sm:$0xf] %v4273
      %4402 = vst [vmem:[%s194 + $0xc] sm:$0xf] %v4274
      %4403 = vst [vmem:[%s194 + $0x10] sm:$0xf] %v4275
      %4404 = vst [vmem:[%s194 + $0x14] sm:$0xf] %v4276
      %4405 = vst [vmem:[%s194 + $0x18] sm:$0xf] %v4277
      %4406 = vst [vmem:[%s194 + $0x1c] sm:$0xf] %v4278
      %4407 = vst [vmem:[%s194 + $0x20] sm:$0xf] %v4279
      %4408 = vst [vmem:[%s194 + $0x24] sm:$0xf] %v4280
      %4409 = vst [vmem:[%s194 + $0x28] sm:$0xf] %v4281
      %4410 = vst [vmem:[%s194 + $0x2c] sm:$0xf] %v4282
      %4411 = vst [vmem:[%s194 + $0x30] sm:$0xf] %v4283
      %4412 = vst [vmem:[%s194 + $0x34] sm:$0xf] %v4284
      %4413 = vst [vmem:[%s194 + $0x38] sm:$0xf] %v4285
      %4414 = vst [vmem:[%s194 + $0x3c] sm:$0xf] %v4286
      %4415 = vst [vmem:[%s194 + $0x40] sm:$0xf] %v4287
      %4416 = vst [vmem:[%s194 + $0x44] sm:$0xf] %v4288
      %4417 = vst [vmem:[%s194 + $0x48] sm:$0xf] %v4289
      %4418 = vst [vmem:[%s194 + $0x4c] sm:$0xf] %v4290
      %4419 = vst [vmem:[%s194 + $0x50] sm:$0xf] %v4291
      %4420 = vst [vmem:[%s194 + $0x54] sm:$0xf] %v4292
      %4421 = vst [vmem:[%s194 + $0x58] sm:$0xf] %v4293
      %4422 = vst [vmem:[%s194 + $0x5c] sm:$0xf] %v4294
      %4423 = vst [vmem:[%s194 + $0x60] sm:$0xf] %v4295
      %4424 = vst [vmem:[%s194 + $0x64] sm:$0xf] %v4296
      %4425 = vst [vmem:[%s194 + $0x68] sm:$0xf] %v4297
      %4426 = vst [vmem:[%s194 + $0x6c] sm:$0xf] %v4298
      %4427 = vst [vmem:[%s194 + $0x70] sm:$0xf] %v4299
      %4428 = vst [vmem:[%s194 + $0x74] sm:$0xf] %v4300
      %4429 = vst [vmem:[%s194 + $0x78] sm:$0xf] %v4301
      %4430 = vst [vmem:[%s194 + $0x7c] sm:$0xf] %v4302
      %4431 = vst [vmem:[%s194 + $0x80] sm:$0xf] %v4303
      %4432 = vst [vmem:[%s194 + $0x84] sm:$0xf] %v4304
      %4433 = vst [vmem:[%s194 + $0x88] sm:$0xf] %v4305
      %4434 = vst [vmem:[%s194 + $0x8c] sm:$0xf] %v4306
      %4435 = vst [vmem:[%s194 + $0x90] sm:$0xf] %v4307
      %4436 = vst [vmem:[%s194 + $0x94] sm:$0xf] %v4308
      %4437 = vst [vmem:[%s194 + $0x98] sm:$0xf] %v4309
      %4438 = vst [vmem:[%s194 + $0x9c] sm:$0xf] %v4310
      %4439 = vst [vmem:[%s194 + $0xa0] sm:$0xf] %v4311
      %4440 = vst [vmem:[%s194 + $0xa4] sm:$0xf] %v4312
      %4441 = vst [vmem:[%s194 + $0xa8] sm:$0xf] %v4313
      %4442 = vst [vmem:[%s194 + $0xac] sm:$0xf] %v4314
      %4443 = vst [vmem:[%s194 + $0xb0] sm:$0xf] %v4315
      %4444 = vst [vmem:[%s194 + $0xb4] sm:$0xf] %v4316
      %4445 = vst [vmem:[%s194 + $0xb8] sm:$0xf] %v4317
      %4446 = vst [vmem:[%s194 + $0xbc] sm:$0xf] %v4318
      %4447 = vst [vmem:[%s194 + $0xc0] sm:$0xf] %v4319
      %4448 = vst [vmem:[%s194 + $0xc4] sm:$0xf] %v4320
      %4449 = vst [vmem:[%s194 + $0xc8] sm:$0xf] %v4321
      %4450 = vst [vmem:[%s194 + $0xcc] sm:$0xf] %v4322
      %4451 = vst [vmem:[%s194 + $0xd0] sm:$0xf] %v4323
      %4452 = vst [vmem:[%s194 + $0xd4] sm:$0xf] %v4324
      %4453 = vst [vmem:[%s194 + $0xd8] sm:$0xf] %v4325
      %4454 = vst [vmem:[%s194 + $0xdc] sm:$0xf] %v4326
      %4455 = vst [vmem:[%s194 + $0xe0] sm:$0xf] %v4327
      %4456 = vst [vmem:[%s194 + $0xe4] sm:$0xf] %v4328
      %4457 = vst [vmem:[%s194 + $0xe8] sm:$0xf] %v4329
      %4458 = vst [vmem:[%s194 + $0xec] sm:$0xf] %v4330
      %4459 = vst [vmem:[%s194 + $0xf0] sm:$0xf] %v4331
      %4460 = vst [vmem:[%s194 + $0xf4] sm:$0xf] %v4332
      %4461 = vst [vmem:[%s194 + $0xf8] sm:$0xf] %v4333
      %4462 = vst [vmem:[%s194 + $0xfc] sm:$0xf] %v4334
      %4463 = vst [vmem:[%s194 + $0x100] sm:$0xf] %v4335
      %4464 = vst [vmem:[%s194 + $0x104] sm:$0xf] %v4336
      %4465 = vst [vmem:[%s194 + $0x108] sm:$0xf] %v4337
      %4466 = vst [vmem:[%s194 + $0x10c] sm:$0xf] %v4338
      %4467 = vst [vmem:[%s194 + $0x110] sm:$0xf] %v4339
      %4468 = vst [vmem:[%s194 + $0x114] sm:$0xf] %v4340
      %4469 = vst [vmem:[%s194 + $0x118] sm:$0xf] %v4341
      %4470 = vst [vmem:[%s194 + $0x11c] sm:$0xf] %v4342
      %4471 = vst [vmem:[%s194 + $0x120] sm:$0xf] %v4343
      %4472 = vst [vmem:[%s194 + $0x124] sm:$0xf] %v4344
      %4473 = vst [vmem:[%s194 + $0x128] sm:$0xf] %v4345
      %4474 = vst [vmem:[%s194 + $0x12c] sm:$0xf] %v4346
      %4475 = vst [vmem:[%s194 + $0x130] sm:$0xf] %v4347
      %4476 = vst [vmem:[%s194 + $0x134] sm:$0xf] %v4348
      %4477 = vst [vmem:[%s194 + $0x138] sm:$0xf] %v4349
      %4478 = vst [vmem:[%s194 + $0x13c] sm:$0xf] %v4350
      %4479 = vst [vmem:[%s194 + $0x140] sm:$0xf] %v4351
      %4480 = vst [vmem:[%s194 + $0x144] sm:$0xf] %v4352
      %4481 = vst [vmem:[%s194 + $0x148] sm:$0xf] %v4353
      %4482 = vst [vmem:[%s194 + $0x14c] sm:$0xf] %v4354
      %4483 = vst [vmem:[%s194 + $0x150] sm:$0xf] %v4355
      %4484 = vst [vmem:[%s194 + $0x154] sm:$0xf] %v4356
      %4485 = vst [vmem:[%s194 + $0x158] sm:$0xf] %v4357
      %4486 = vst [vmem:[%s194 + $0x15c] sm:$0xf] %v4358
      %4487 = vst [vmem:[%s194 + $0x160] sm:$0xf] %v4359
      %4488 = vst [vmem:[%s194 + $0x164] sm:$0xf] %v4360
      %4489 = vst [vmem:[%s194 + $0x168] sm:$0xf] %v4361
      %4490 = vst [vmem:[%s194 + $0x16c] sm:$0xf] %v4362
      %4491 = vst [vmem:[%s194 + $0x170] sm:$0xf] %v4363
      %4492 = vst [vmem:[%s194 + $0x174] sm:$0xf] %v4364
      %4493 = vst [vmem:[%s194 + $0x178] sm:$0xf] %v4365
      %4494 = vst [vmem:[%s194 + $0x17c] sm:$0xf] %v4366
      %4495 = vst [vmem:[%s194 + $0x180] sm:$0xf] %v4367
      %4496 = vst [vmem:[%s194 + $0x184] sm:$0xf] %v4368
      %4497 = vst [vmem:[%s194 + $0x188] sm:$0xf] %v4369
      %4498 = vst [vmem:[%s194 + $0x18c] sm:$0xf] %v4370
      %4499 = vst [vmem:[%s194 + $0x190] sm:$0xf] %v4371
      %4500 = vst [vmem:[%s194 + $0x194] sm:$0xf] %v4372
      %4501 = vst [vmem:[%s194 + $0x198] sm:$0xf] %v4373
      %4502 = vst [vmem:[%s194 + $0x19c] sm:$0xf] %v4374
      %4503 = vst [vmem:[%s194 + $0x1a0] sm:$0xf] %v4375
      %4504 = vst [vmem:[%s194 + $0x1a4] sm:$0xf] %v4376
      %4505 = vst [vmem:[%s194 + $0x1a8] sm:$0xf] %v4377
      %4506 = vst [vmem:[%s194 + $0x1ac] sm:$0xf] %v4378
      %4507 = vst [vmem:[%s194 + $0x1b0] sm:$0xf] %v4379
      %4508 = vst [vmem:[%s194 + $0x1b4] sm:$0xf] %v4380
      %4509 = vst [vmem:[%s194 + $0x1b8] sm:$0xf] %v4381
      %4510 = vst [vmem:[%s194 + $0x1bc] sm:$0xf] %v4382
      %4511 = vst [vmem:[%s194 + $0x1c0] sm:$0xf] %v4383
      %4512 = vst [vmem:[%s194 + $0x1c4] sm:$0xf] %v4384
      %4513 = vst [vmem:[%s194 + $0x1c8] sm:$0xf] %v4385
      %4514 = vst [vmem:[%s194 + $0x1cc] sm:$0xf] %v4386
      %4515 = vst [vmem:[%s194 + $0x1d0] sm:$0xf] %v4387
      %4516 = vst [vmem:[%s194 + $0x1d4] sm:$0xf] %v4388
      %4517 = vst [vmem:[%s194 + $0x1d8] sm:$0xf] %v4389
      %4518 = vst [vmem:[%s194 + $0x1dc] sm:$0xf] %v4390
      %4519 = vst [vmem:[%s194 + $0x1e0] sm:$0xf] %v4391
      %4520 = vst [vmem:[%s194 + $0x1e4] sm:$0xf] %v4392
      %4521 = vst [vmem:[%s194 + $0x1e8] sm:$0xf] %v4393
      %4522 = vst [vmem:[%s194 + $0x1ec] sm:$0xf] %v4394
      %4523 = vst [vmem:[%s194 + $0x1f0] sm:$0xf] %v4395
      %4524 = vst [vmem:[%s194 + $0x1f4] sm:$0xf] %v4396
      %4525 = vst [vmem:[%s194 + $0x1f8] sm:$0xf] %v4397
      %4526 = vst [vmem:[%s194 + $0x1fc] sm:$0xf] %v4398
      %s4527 = smul.u32 32, %s19
      %p4528 = scmp.lt.s32.totalorder %s18, 1
      %s4529 = scalar_select %p4528, %s18, 1
      %p4530 = scmp.lt.s32.totalorder %s4527, 31
      %s4531 = scalar_select %p4530, %s4527, 31
      %s4532 = smul.addr %s4531, 4
      %s4533 = smul.addr %s4529, 128
      %s4534 = sadd.s32 %s4532, %s4533
      %s4535 = smul.addr %s4534, 4
      %s4536 = scalar_lea.vmem %s3, %s4535
      // Predicated region
      $region33: #{discriminator_forward.5} parent=31 // pred_check
        %p4537 = pneg %p114
      $region34: #{discriminator_forward.5} parent=31 // pred_check_branch
        %4539 = sbr.rel (%p4537) target = $region36
      $region35: #{discriminator_forward.5} parent=31 // pred_region
        %s4540 = smul.u32 32, %s19
      $region36: #{discriminator_forward.5} parent=31 // pred_fallthru
        _
    $region32: #{discriminator_forward.5} parent=5 // pred_fallthru
      _
    %p4541 = scmp.le.s32.totalorder 2, %s9
    // Predicated region
    $region37: #{discriminator_forward.5} parent=5 // pred_check
      %p4542 = pneg %p4541
    $region38: #{discriminator_forward.5} parent=5 // pred_check_branch
      %4544 = sbr.rel (%p4542) target = $region40
    $region39: #{discriminator_forward.5} parent=5 // pred_region
      %s4545 = ssub.s32 %s9, 2
      // Predicated region
      $region41: #{discriminator_forward.5} parent=39 // pred_check
        %p4546 = pneg %p120
      $region42: #{discriminator_forward.5} parent=39 // pred_check_branch
        %4548 = sbr.rel (%p4546) target = $region44
      $region43: #{discriminator_forward.5} parent=39 // pred_region
        %s4549 = smul.u32 32, %s21
        %p4550 = scmp.lt.s32.totalorder %s20, 1
        %s4551 = scalar_select %p4550, %s20, 1
        %p4552 = scmp.lt.s32.totalorder %s4549, 31
        %s4553 = scalar_select %p4552, %s4549, 31
        %s4554 = smul.addr %s4553, 4
        %s4555 = smul.addr %s4551, 128
        %s4556 = sadd.s32 %s4554, %s4555
        %s4557 = smul.addr %s4556, 4
        %s4558 = scalar_lea.vmem %s3, %s4557
      $region44: #{discriminator_forward.5} parent=39 // pred_fallthru
        _
    $region40: #{discriminator_forward.5} parent=5 // pred_fallthru
      _
  $region6: #{discriminator_forward.5} parent=0 // loop_footer
    %s13 = sadd.s32 1, %s9
  $region7: #{discriminator_forward.5} parent=0 // loop_footer_branch
    %8 = sbr.rel target = $region3
  $region8: #{discriminator_forward.5} parent=0 // loop_exit
    _

// kernel: discriminator_forward.6
$region0: #{discriminator_forward.6}
  #allocation0 [shape = 'u32[]', space=smem, size = 0x4, offset = 0x4, fixed_abs, tag = 'smem constant byte address 0x4 - core index']
  #allocation1 [shape = 'u32[72,128]{1,0:T(1,128)}', space=vmem, size = 0x9000, scoped, tag = 'internal scratch']
  %s0 = inlined_call_operand.vmem [shape: bf16[2,17,17,32], index: 0, kind: input, shape index: {}]
  %s1 = inlined_call_operand.vmem [shape: bf16[128,128], index: 1, kind: input, shape index: {}]
  %s2 = inlined_call_operand.vmem [shape: f32[1,128], index: 2, kind: input, shape index: {}]
  %s3 = inlined_call_operand.vmem [shape: bf16[2,16,16,128], index: 3, kind: output, shape index: {}]
  %s4 = sld [smem:[#allocation0]]
  $region45: #{discriminator_forward.6} parent=0
    _
  %s6 = ssub.s32 1, %s4
  %s7 = scalar_select 0, %s6, %s4
  loop: start=0, step=1, limit=4
  $region2: #{discriminator_forward.6} parent=0 // loop_pre_header
    _
  $region3: #{discriminator_forward.6} parent=0 // loop_header
    %s9 = sphi 0, %s13
    %p10 = scmp.ge.s32.totalorder %s9, 4
    %s16 = sphi 0, %s28
    %s17 = sphi 0, %s24
    %s18 = sphi 0, %s16
    %s19 = sphi 0, %s17
    %s20 = sphi 0, %s18
    %s21 = sphi 0, %s19
    %s31 = sphi 0, %s33
    %s34 = sphi 0, %s31
    %s35 = sphi 0, %s34
    %s51 = sphi 0, %s35
    %s55 = sphi 0, %s55
    %s57 = sphi 0, %s55
    %s58 = sphi 0, %s57
    %s72 = sphi 0, %s58
    %s76 = sphi 0, %s76
    %s78 = sphi 0, %s76
    %s79 = sphi 0, %s78
    %s93 = sphi 0, %s79
    %s101 = sphi 0, %s103
    %s104 = sphi 0, %s101
    %s105 = sphi 0, %s104
    %s121 = sphi 0, %s105
  $region4: #{discriminator_forward.6} parent=0 // loop_header_branch
    %12 = sbr.rel (%p10) target = $region8
  $region5: #{discriminator_forward.6} parent=0 // loop_body
    %s14 = ssub.s32 %s9, 1
    %s15 = ssub.s32 %s9, 2
    %s22 = sadd.s32 1, %s17
    %p23 = scmp.ge.s32.totalorder %s22, 1
    %s24 = scalar_select %p23, 0, %s22
    %s25 = sadd.s32 1, %s16
    %s26 = scalar_select %p23, %s25, %s16
    %p27 = scmp.ge.s32.totalorder %s26, 2
    %s28 = scalar_select %p27, 0, %s26
    %s29 = ssub.s32 %s16, %s28
    %p30 = scmp.eq.s32.totalorder %s29, 0
    %s32 = sadd.s32 %s31, 1
    %s33 = scalar_select %p30, %s31, %s32
    %p36 = pneg %p30
    %p37 = scmp.eq.s32.totalorder %s9, 1
    %p38 = por %p36, %p37
    %p39 = scmp.ne.s32.totalorder %s31, %s34
    %p40 = scmp.eq.s32.totalorder %s9, 0
    %p41 = por %p39, %p40
    %p42 = scmp.ne.s32.totalorder %s31, %s34
    %p43 = scmp.eq.s32.totalorder %s14, 1
    %p44 = por %p42, %p43
    %p45 = scmp.ne.s32.totalorder %s34, %s35
    %p46 = scmp.eq.s32.totalorder %s14, 0
    %p47 = por %p45, %p46
    %p48 = scmp.ne.s32.totalorder %s34, %s35
    %p49 = scmp.eq.s32.totalorder %s15, 1
    %p50 = por %p48, %p49
    %p52 = scmp.ne.s32.totalorder %s35, %s51
    %p53 = scmp.eq.s32.totalorder %s15, 0
    %p54 = por %p52, %p53
    %s56 = sadd.s32 %s55, 1
    %p59 = scmp.eq.s32.totalorder %s9, 1
    %p60 = scmp.ne.s32.totalorder %s55, %s57
    %p61 = scmp.eq.s32.totalorder %s9, 0
    %p62 = por %p60, %p61
    %p63 = scmp.ne.s32.totalorder %s55, %s57
    %p64 = scmp.eq.s32.totalorder %s14, 1
    %p65 = por %p63, %p64
    %p66 = scmp.ne.s32.totalorder %s57, %s58
    %p67 = scmp.eq.s32.totalorder %s14, 0
    %p68 = por %p66, %p67
    %p69 = scmp.ne.s32.totalorder %s57, %s58
    %p70 = scmp.eq.s32.totalorder %s15, 1
    %p71 = por %p69, %p70
    %p73 = scmp.ne.s32.totalorder %s58, %s72
    %p74 = scmp.eq.s32.totalorder %s15, 0
    %p75 = por %p73, %p74
    %s77 = sadd.s32 %s76, 1
    %p80 = scmp.eq.s32.totalorder %s9, 1
    %p81 = scmp.ne.s32.totalorder %s76, %s78
    %p82 = scmp.eq.s32.totalorder %s9, 0
    %p83 = por %p81, %p82
    %p84 = scmp.ne.s32.totalorder %s76, %s78
    %p85 = scmp.eq.s32.totalorder %s14, 1
    %p86 = por %p84, %p85
    %p87 = scmp.ne.s32.totalorder %s78, %s79
    %p88 = scmp.eq.s32.totalorder %s14, 0
    %p89 = por %p87, %p88
    %p90 = scmp.ne.s32.totalorder %s78, %s79
    %p91 = scmp.eq.s32.totalorder %s15, 1
    %p92 = por %p90, %p91
    %p94 = scmp.ne.s32.totalorder %s79, %s93
    %p95 = scmp.eq.s32.totalorder %s15, 0
    %p96 = por %p94, %p95
    %s97 = ssub.s32 %s16, %s28
    %s98 = ssub.s32 %s17, %s24
    %s99 = sor.u32 %s97, %s98
    %p100 = scmp.eq.s32.totalorder %s99, 0
    %s102 = sadd.s32 %s101, 1
    %s103 = scalar_select %p100, %s101, %s102
    %p106 = pneg %p100
    %p107 = scmp.eq.s32.totalorder %s9, 1
    %p108 = por %p106, %p107
    %p109 = scmp.ne.s32.totalorder %s101, %s104
    %p110 = scmp.eq.s32.totalorder %s9, 0
    %p111 = por %p109, %p110
    %p112 = scmp.ne.s32.totalorder %s101, %s104
    %p113 = scmp.eq.s32.totalorder %s14, 1
    %p114 = por %p112, %p113
    %p115 = scmp.ne.s32.totalorder %s104, %s105
    %p116 = scmp.eq.s32.totalorder %s14, 0
    %p117 = por %p115, %p116
    %p118 = scmp.ne.s32.totalorder %s104, %s105
    %p119 = scmp.eq.s32.totalorder %s15, 1
    %p120 = por %p118, %p119
    %p122 = scmp.ne.s32.totalorder %s105, %s121
    %p123 = scmp.eq.s32.totalorder %s15, 0
    %p124 = por %p122, %p123
    %p125 = scmp.le.s32.totalorder 1, %s9
    %p126 = scmp.lt.s32.totalorder %s9, 3
    %p127 = pnand %p125, %p126
    %p128 = pneg %p127
    // Predicated region
    $region9: #{discriminator_forward.6} parent=5 // pred_check
      _
    $region10: #{discriminator_forward.6} parent=5 // pred_check_branch
      %130 = sbr.rel (%p127) target = $region12
    $region11: #{discriminator_forward.6} parent=5 // pred_region
      %s131 = ssub.s32 %s9, 1
      // Predicated region
      $region13: #{discriminator_forward.6} parent=11 // pred_check
        %p132 = pneg %p68
      $region14: #{discriminator_forward.6} parent=11 // pred_check_branch
        %134 = sbr.rel (%p132) target = $region16
      $region15: #{discriminator_forward.6} parent=11 // pred_region
        _
      $region16: #{discriminator_forward.6} parent=11 // pred_fallthru
        _
      // Predicated region
      $region17: #{discriminator_forward.6} parent=11 // pred_check
        %p135 = pneg %p89
      $region18: #{discriminator_forward.6} parent=11 // pred_check_branch
        %137 = sbr.rel (%p135) target = $region20
      $region19: #{discriminator_forward.6} parent=11 // pred_region
        _
      $region20: #{discriminator_forward.6} parent=11 // pred_fallthru
        _
    $region12: #{discriminator_forward.6} parent=5 // pred_fallthru
      _
    %p138 = scmp.lt.s32.totalorder %s9, 2
    // Predicated region
    $region21: #{discriminator_forward.6} parent=5 // pred_check
      %p139 = pneg %p138
    $region22: #{discriminator_forward.6} parent=5 // pred_check_branch
      %141 = sbr.rel (%p139) target = $region24
    $region23: #{discriminator_forward.6} parent=5 // pred_region
      // Predicated region
      $region25: #{discriminator_forward.6} parent=23 // pred_check
        %p142 = pneg %p41
      $region26: #{discriminator_forward.6} parent=23 // pred_check_branch
        %144 = sbr.rel (%p142) target = $region28
      $region27: #{discriminator_forward.6} parent=23 // pred_region
        %p145 = scmp.lt.s32.totalorder %s16, 1
        %s146 = scalar_select %p145, %s16, 1
        %s147 = smul.addr %s146, 51
        %s148 = smul.addr %s147, 4
        %s149 = scalar_lea.vmem %s0, %s148
      $region28: #{discriminator_forward.6} parent=23 // pred_fallthru
        _
    $region24: #{discriminator_forward.6} parent=5 // pred_fallthru
      _
    %p150 = scmp.le.s32.totalorder 1, %s9
    %p151 = scmp.lt.s32.totalorder %s9, 3
    %p152 = pnand %p150, %p151
    %p153 = pneg %p152
    // Predicated region
    $region29: #{discriminator_forward.6} parent=5 // pred_check
      _
    $region30: #{discriminator_forward.6} parent=5 // pred_check_branch
      %155 = sbr.rel (%p152) target = $region32
    $region31: #{discriminator_forward.6} parent=5 // pred_region
      %s156 = ssub.s32 %s9, 1
      %p157 = scmp.lt.s32.totalorder %s18, 1
      %s158 = scalar_select %p157, %s18, 1
      %s159 = smul.addr %s158, 51
      %s160 = smul.addr %s159, 4
      %s161 = scalar_lea.vmem %s0, %s160
      %p162 = pneg %p47
      %p163 = pneg %p44
      %p164 = pneg %p68
      %p165 = pneg %p65
      %p166 = pneg %p89
      %p167 = pneg %p86
      %p168 = pneg %p117
      %p169 = pneg %p114
      %s170 = smul.u32 16, %s19
      %p171 = scmp.lt.s32.totalorder %s18, 1
      %s172 = scalar_select %p171, %s18, 1
      %p173 = scmp.lt.s32.totalorder %s170, 15
      %s174 = scalar_select %p173, %s170, 15
      %s175 = smul.addr %s174, 2
      %s176 = smul.addr %s172, 32
      %s177 = sadd.s32 %s175, %s176
      %s178 = smul.addr %s177, 4
      %s179 = scalar_lea.vmem %s3, %s178
      %p180 = scmp.lt.s32.totalorder %s18, 1
      %s181 = scalar_select %p180, %s18, 1
      %s182 = smul.addr %s181, 51
      %s183 = smul.addr %s182, 4
      %s184 = scalar_lea.vmem %s0, %s183
      %s185 = smul.u32 16, %s19
      %p186 = scmp.lt.s32.totalorder %s18, 1
      %s187 = scalar_select %p186, %s18, 1
      %p188 = scmp.lt.s32.totalorder %s185, 15
      %s189 = scalar_select %p188, %s185, 15
      %s190 = smul.addr %s189, 2
      %s191 = smul.addr %s187, 32
      %s192 = sadd.s32 %s190, %s191
      %s193 = smul.addr %s192, 4
      %s194 = scalar_lea.vmem %s3, %s193
      %s195 = smul.u32 16, %s19
      %s196 = smul.u32 %s19, 16
      %s197 = smul.u32 %s196, 3
      %s198 = smul.addr %s197, 4
      %s199 = scalar_lea.vmem %s184, %s198
      %v200 = vld [vmem:[%s199] sm:$0xf]
      %v201 = vld [vmem:[%s199 + $0x4] sm:$0xf]
      %v202 = vld [vmem:[%s199 + $0xc] sm:$0xf]
      %v203 = vld [vmem:[%s199 + $0x10] sm:$0xf]
      %v204 = vld [vmem:[%s199 + $0x18] sm:$0xf]
      %v205 = vld [vmem:[%s199 + $0x1c] sm:$0xf]
      %v206 = vld [vmem:[%s199 + $0x24] sm:$0xf]
      %v207 = vld [vmem:[%s199 + $0x28] sm:$0xf]
      %v208 = vld [vmem:[%s199 + $0x30] sm:$0xf]
      %v209 = vld [vmem:[%s199 + $0x34] sm:$0xf]
      %v210 = vld [vmem:[%s199 + $0x3c] sm:$0xf]
      %v211 = vld [vmem:[%s199 + $0x40] sm:$0xf]
      %v212 = vld [vmem:[%s199 + $0x48] sm:$0xf]
      %v213 = vld [vmem:[%s199 + $0x4c] sm:$0xf]
      %v214 = vld [vmem:[%s199 + $0x54] sm:$0xf]
      %v215 = vld [vmem:[%s199 + $0x58] sm:$0xf]
      %v216 = vld [vmem:[%s199 + $0x60] sm:$0xf]
      %v217 = vld [vmem:[%s199 + $0x64] sm:$0xf]
      %v218 = vld [vmem:[%s199 + $0x6c] sm:$0xf]
      %v219 = vld [vmem:[%s199 + $0x70] sm:$0xf]
      %v220 = vld [vmem:[%s199 + $0x78] sm:$0xf]
      %v221 = vld [vmem:[%s199 + $0x7c] sm:$0xf]
      %v222 = vld [vmem:[%s199 + $0x84] sm:$0xf]
      %v223 = vld [vmem:[%s199 + $0x88] sm:$0xf]
      %v224 = vld [vmem:[%s199 + $0x90] sm:$0xf]
      %v225 = vld [vmem:[%s199 + $0x94] sm:$0xf]
      %v226 = vld [vmem:[%s199 + $0x9c] sm:$0xf]
      %v227 = vld [vmem:[%s199 + $0xa0] sm:$0xf]
      %v228 = vld [vmem:[%s199 + $0xa8] sm:$0xf]
      %v229 = vld [vmem:[%s199 + $0xac] sm:$0xf]
      %v230 = vld [vmem:[%s199 + $0xb4] sm:$0xf]
      %v231 = vld [vmem:[%s199 + $0xb8] sm:$0xf]
      %v232 = vld [vmem:[%s199 + $0x8] sm:$0x1]
      %v233 = vld [vmem:[%s199 + $0x14] sm:$0x1]
      %v234 = vld [vmem:[%s199 + $0x20] sm:$0x1]
      %v235 = vld [vmem:[%s199 + $0x2c] sm:$0x1]
      %v236 = vld [vmem:[%s199 + $0x38] sm:$0x1]
      %v237 = vld [vmem:[%s199 + $0x44] sm:$0x1]
      %v238 = vld [vmem:[%s199 + $0x50] sm:$0x1]
      %v239 = vld [vmem:[%s199 + $0x5c] sm:$0x1]
      %v240 = vld [vmem:[%s199 + $0x68] sm:$0x1]
      %v241 = vld [vmem:[%s199 + $0x74] sm:$0x1]
      %v242 = vld [vmem:[%s199 + $0x80] sm:$0x1]
      %v243 = vld [vmem:[%s199 + $0x8c] sm:$0x1]
      %v244 = vld [vmem:[%s199 + $0x98] sm:$0x1]
      %v245 = vld [vmem:[%s199 + $0xa4] sm:$0x1]
      %v246 = vld [vmem:[%s199 + $0xb0] sm:$0x1]
      %v247 = vld [vmem:[%s199 + $0xbc] sm:$0x1]
      %s248 = sadd.s32 %s196, 1
      %s249 = smul.u32 %s248, 3
      %s250 = smul.addr %s249, 4
      %s251 = scalar_lea.vmem %s184, %s250
      %v252 = vld [vmem:[%s251] sm:$0xf]
      %v253 = vld [vmem:[%s251 + $0x4] sm:$0xf]
      %v254 = vld [vmem:[%s251 + $0xc] sm:$0xf]
      %v255 = vld [vmem:[%s251 + $0x10] sm:$0xf]
      %v256 = vld [vmem:[%s251 + $0x18] sm:$0xf]
      %v257 = vld [vmem:[%s251 + $0x1c] sm:$0xf]
      %v258 = vld [vmem:[%s251 + $0x24] sm:$0xf]
      %v259 = vld [vmem:[%s251 + $0x28] sm:$0xf]
      %v260 = vld [vmem:[%s251 + $0x30] sm:$0xf]
      %v261 = vld [vmem:[%s251 + $0x34] sm:$0xf]
      %v262 = vld [vmem:[%s251 + $0x3c] sm:$0xf]
      %v263 = vld [vmem:[%s251 + $0x40] sm:$0xf]
      %v264 = vld [vmem:[%s251 + $0x48] sm:$0xf]
      %v265 = vld [vmem:[%s251 + $0x4c] sm:$0xf]
      %v266 = vld [vmem:[%s251 + $0x54] sm:$0xf]
      %v267 = vld [vmem:[%s251 + $0x58] sm:$0xf]
      %v268 = vld [vmem:[%s251 + $0x60] sm:$0xf]
      %v269 = vld [vmem:[%s251 + $0x64] sm:$0xf]
      %v270 = vld [vmem:[%s251 + $0x6c] sm:$0xf]
      %v271 = vld [vmem:[%s251 + $0x70] sm:$0xf]
      %v272 = vld [vmem:[%s251 + $0x78] sm:$0xf]
      %v273 = vld [vmem:[%s251 + $0x7c] sm:$0xf]
      %v274 = vld [vmem:[%s251 + $0x84] sm:$0xf]
      %v275 = vld [vmem:[%s251 + $0x88] sm:$0xf]
      %v276 = vld [vmem:[%s251 + $0x90] sm:$0xf]
      %v277 = vld [vmem:[%s251 + $0x94] sm:$0xf]
      %v278 = vld [vmem:[%s251 + $0x9c] sm:$0xf]
      %v279 = vld [vmem:[%s251 + $0xa0] sm:$0xf]
      %v280 = vld [vmem:[%s251 + $0xa8] sm:$0xf]
      %v281 = vld [vmem:[%s251 + $0xac] sm:$0xf]
      %v282 = vld [vmem:[%s251 + $0xb4] sm:$0xf]
      %v283 = vld [vmem:[%s251 + $0xb8] sm:$0xf]
      %v284 = vld [vmem:[%s251 + $0x8] sm:$0x1]
      %v285 = vld [vmem:[%s251 + $0x14] sm:$0x1]
      %v286 = vld [vmem:[%s251 + $0x20] sm:$0x1]
      %v287 = vld [vmem:[%s251 + $0x2c] sm:$0x1]
      %v288 = vld [vmem:[%s251 + $0x38] sm:$0x1]
      %v289 = vld [vmem:[%s251 + $0x44] sm:$0x1]
      %v290 = vld [vmem:[%s251 + $0x50] sm:$0x1]
      %v291 = vld [vmem:[%s251 + $0x5c] sm:$0x1]
      %v292 = vld [vmem:[%s251 + $0x68] sm:$0x1]
      %v293 = vld [vmem:[%s251 + $0x74] sm:$0x1]
      %v294 = vld [vmem:[%s251 + $0x80] sm:$0x1]
      %v295 = vld [vmem:[%s251 + $0x8c] sm:$0x1]
      %v296 = vld [vmem:[%s251 + $0x98] sm:$0x1]
      %v297 = vld [vmem:[%s251 + $0xa4] sm:$0x1]
      %v298 = vld [vmem:[%s251 + $0xb0] sm:$0x1]
      %v299 = vld [vmem:[%s251 + $0xbc] sm:$0x1]
      %v332 = vunpack.c.l.b16 %v200
      %v333 = vunpack.c.l.b16 %v201
      %v334 = vunpack.c.l.b16 %v202
      %v335 = vunpack.c.l.b16 %v203
      %v336 = vunpack.c.l.b16 %v204
      %v337 = vunpack.c.l.b16 %v205
      %v338 = vunpack.c.l.b16 %v206
      %v339 = vunpack.c.l.b16 %v207
      %v340 = vunpack.c.l.b16 %v208
      %v341 = vunpack.c.l.b16 %v209
      %v342 = vunpack.c.l.b16 %v210
      %v343 = vunpack.c.l.b16 %v211
      %v344 = vunpack.c.l.b16 %v212
      %v345 = vunpack.c.l.b16 %v213
      %v346 = vunpack.c.l.b16 %v214
      %v347 = vunpack.c.l.b16 %v215
      %v348 = vunpack.c.l.b16 %v216
      %v349 = vunpack.c.l.b16 %v217
      %v350 = vunpack.c.l.b16 %v218
      %v351 = vunpack.c.l.b16 %v219
      %v352 = vunpack.c.l.b16 %v220
      %v353 = vunpack.c.l.b16 %v221
      %v354 = vunpack.c.l.b16 %v222
      %v355 = vunpack.c.l.b16 %v223
      %v356 = vunpack.c.l.b16 %v224
      %v357 = vunpack.c.l.b16 %v225
      %v358 = vunpack.c.l.b16 %v226
      %v359 = vunpack.c.l.b16 %v227
      %v360 = vunpack.c.l.b16 %v228
      %v361 = vunpack.c.l.b16 %v229
      %v362 = vunpack.c.l.b16 %v230
      %v363 = vunpack.c.l.b16 %v231
      %v364 = vpack.c.b16 %v333, %v332
      %v365 = vpack.c.b16 %v335, %v334
      %v366 = vpack.c.b16 %v337, %v336
      %v367 = vpack.c.b16 %v339, %v338
      %v368 = vpack.c.b16 %v341, %v340
      %v369 = vpack.c.b16 %v343, %v342
      %v370 = vpack.c.b16 %v345, %v344
      %v371 = vpack.c.b16 %v347, %v346
      %v372 = vpack.c.b16 %v349, %v348
      %v373 = vpack.c.b16 %v351, %v350
      %v374 = vpack.c.b16 %v353, %v352
      %v375 = vpack.c.b16 %v355, %v354
      %v376 = vpack.c.b16 %v357, %v356
      %v377 = vpack.c.b16 %v359, %v358
      %v378 = vpack.c.b16 %v361, %v360
      %v379 = vpack.c.b16 %v363, %v362
      %v396 = vunpack.c.l.b16 %v232
      %v397 = vunpack.c.l.b16 %v233
      %v398 = vunpack.c.l.b16 %v234
      %v399 = vunpack.c.l.b16 %v235
      %v400 = vunpack.c.l.b16 %v236
      %v401 = vunpack.c.l.b16 %v237
      %v402 = vunpack.c.l.b16 %v238
      %v403 = vunpack.c.l.b16 %v239
      %v404 = vunpack.c.l.b16 %v240
      %v405 = vunpack.c.l.b16 %v241
      %v406 = vunpack.c.l.b16 %v242
      %v407 = vunpack.c.l.b16 %v243
      %v408 = vunpack.c.l.b16 %v244
      %v409 = vunpack.c.l.b16 %v245
      %v410 = vunpack.c.l.b16 %v246
      %v411 = vunpack.c.l.b16 %v247
      %v412 = vpack.c.b16 %v396, %v396
      %v413 = vpack.c.b16 %v397, %v397
      %v414 = vpack.c.b16 %v398, %v398
      %v415 = vpack.c.b16 %v399, %v399
      %v416 = vpack.c.b16 %v400, %v400
      %v417 = vpack.c.b16 %v401, %v401
      %v418 = vpack.c.b16 %v402, %v402
      %v419 = vpack.c.b16 %v403, %v403
      %v420 = vpack.c.b16 %v404, %v404
      %v421 = vpack.c.b16 %v405, %v405
      %v422 = vpack.c.b16 %v406, %v406
      %v423 = vpack.c.b16 %v407, %v407
      %v424 = vpack.c.b16 %v408, %v408
      %v425 = vpack.c.b16 %v409, %v409
      %v426 = vpack.c.b16 %v410, %v410
      %v427 = vpack.c.b16 %v411, %v411
      %vm428 = vsmask.f32 7424
      %v430 = vshrl.u32 %v364, 16
      %v432 = vshll.u32 %v364, 16
      %v434 = vrot.slane %v432, 1
      %v435 = vor.u32 %v430, %v434
      %v437 = vshll.u32 %v412, 16
      %v439 = vrot.slane %v437, 1
      %v440 = vsel %vm428, %v435, %v439
      %v442 = vshrl.u32 %v365, 16
      %v444 = vshll.u32 %v365, 16
      %v446 = vrot.slane %v444, 1
      %v447 = vor.u32 %v442, %v446
      %v449 = vshll.u32 %v413, 16
      %v451 = vrot.slane %v449, 1
      %v452 = vsel %vm428, %v447, %v451
      %v454 = vshrl.u32 %v366, 16
      %v456 = vshll.u32 %v366, 16
      %v458 = vrot.slane %v456, 1
      %v459 = vor.u32 %v454, %v458
      %v461 = vshll.u32 %v414, 16
      %v463 = vrot.slane %v461, 1
      %v464 = vsel %vm428, %v459, %v463
      %v466 = vshrl.u32 %v367, 16
      %v468 = vshll.u32 %v367, 16
      %v470 = vrot.slane %v468, 1
      %v471 = vor.u32 %v466, %v470
      %v473 = vshll.u32 %v415, 16
      %v475 = vrot.slane %v473, 1
      %v476 = vsel %vm428, %v471, %v475
      %v478 = vshrl.u32 %v368, 16
      %v480 = vshll.u32 %v368, 16
      %v482 = vrot.slane %v480, 1
      %v483 = vor.u32 %v478, %v482
      %v485 = vshll.u32 %v416, 16
      %v487 = vrot.slane %v485, 1
      %v488 = vsel %vm428, %v483, %v487
      %v490 = vshrl.u32 %v369, 16
      %v492 = vshll.u32 %v369, 16
      %v494 = vrot.slane %v492, 1
      %v495 = vor.u32 %v490, %v494
      %v497 = vshll.u32 %v417, 16
      %v499 = vrot.slane %v497, 1
      %v500 = vsel %vm428, %v495, %v499
      %v502 = vshrl.u32 %v370, 16
      %v504 = vshll.u32 %v370, 16
      %v506 = vrot.slane %v504, 1
      %v507 = vor.u32 %v502, %v506
      %v509 = vshll.u32 %v418, 16
      %v511 = vrot.slane %v509, 1
      %v512 = vsel %vm428, %v507, %v511
      %v514 = vshrl.u32 %v371, 16
      %v516 = vshll.u32 %v371, 16
      %v518 = vrot.slane %v516, 1
      %v519 = vor.u32 %v514, %v518
      %v521 = vshll.u32 %v419, 16
      %v523 = vrot.slane %v521, 1
      %v524 = vsel %vm428, %v519, %v523
      %v526 = vshrl.u32 %v372, 16
      %v528 = vshll.u32 %v372, 16
      %v530 = vrot.slane %v528, 1
      %v531 = vor.u32 %v526, %v530
      %v533 = vshll.u32 %v420, 16
      %v535 = vrot.slane %v533, 1
      %v536 = vsel %vm428, %v531, %v535
      %v538 = vshrl.u32 %v373, 16
      %v540 = vshll.u32 %v373, 16
      %v542 = vrot.slane %v540, 1
      %v543 = vor.u32 %v538, %v542
      %v545 = vshll.u32 %v421, 16
      %v547 = vrot.slane %v545, 1
      %v548 = vsel %vm428, %v543, %v547
      %v550 = vshrl.u32 %v374, 16
      %v552 = vshll.u32 %v374, 16
      %v554 = vrot.slane %v552, 1
      %v555 = vor.u32 %v550, %v554
      %v557 = vshll.u32 %v422, 16
      %v559 = vrot.slane %v557, 1
      %v560 = vsel %vm428, %v555, %v559
      %v562 = vshrl.u32 %v375, 16
      %v564 = vshll.u32 %v375, 16
      %v566 = vrot.slane %v564, 1
      %v567 = vor.u32 %v562, %v566
      %v569 = vshll.u32 %v423, 16
      %v571 = vrot.slane %v569, 1
      %v572 = vsel %vm428, %v567, %v571
      %v574 = vshrl.u32 %v376, 16
      %v576 = vshll.u32 %v376, 16
      %v578 = vrot.slane %v576, 1
      %v579 = vor.u32 %v574, %v578
      %v581 = vshll.u32 %v424, 16
      %v583 = vrot.slane %v581, 1
      %v584 = vsel %vm428, %v579, %v583
      %v586 = vshrl.u32 %v377, 16
      %v588 = vshll.u32 %v377, 16
      %v590 = vrot.slane %v588, 1
      %v591 = vor.u32 %v586, %v590
      %v593 = vshll.u32 %v425, 16
      %v595 = vrot.slane %v593, 1
      %v596 = vsel %vm428, %v591, %v595
      %v598 = vshrl.u32 %v378, 16
      %v600 = vshll.u32 %v378, 16
      %v602 = vrot.slane %v600, 1
      %v603 = vor.u32 %v598, %v602
      %v605 = vshll.u32 %v426, 16
      %v607 = vrot.slane %v605, 1
      %v608 = vsel %vm428, %v603, %v607
      %v610 = vshrl.u32 %v379, 16
      %v612 = vshll.u32 %v379, 16
      %v614 = vrot.slane %v612, 1
      %v615 = vor.u32 %v610, %v614
      %v617 = vshll.u32 %v427, 16
      %v619 = vrot.slane %v617, 1
      %v620 = vsel %vm428, %v615, %v619
      %621 = vrot.lane.b32.xlu0 %v440, 32
      %v622 = vpop.permute.xlu0 %621
      %623 = vrot.lane.b32.xlu0 %v452, 32
      %v624 = vpop.permute.xlu0 %623
      %625 = vrot.lane.b32.xlu0 %v464, 32
      %v626 = vpop.permute.xlu0 %625
      %627 = vrot.lane.b32.xlu0 %v476, 32
      %v628 = vpop.permute.xlu0 %627
      %629 = vrot.lane.b32.xlu0 %v488, 32
      %v630 = vpop.permute.xlu0 %629
      %631 = vrot.lane.b32.xlu0 %v500, 32
      %v632 = vpop.permute.xlu0 %631
      %633 = vrot.lane.b32.xlu0 %v512, 32
      %v634 = vpop.permute.xlu0 %633
      %635 = vrot.lane.b32.xlu0 %v524, 32
      %v636 = vpop.permute.xlu0 %635
      %637 = vrot.lane.b32.xlu0 %v536, 32
      %v638 = vpop.permute.xlu0 %637
      %639 = vrot.lane.b32.xlu0 %v548, 32
      %v640 = vpop.permute.xlu0 %639
      %641 = vrot.lane.b32.xlu0 %v560, 32
      %v642 = vpop.permute.xlu0 %641
      %643 = vrot.lane.b32.xlu0 %v572, 32
      %v644 = vpop.permute.xlu0 %643
      %645 = vrot.lane.b32.xlu0 %v584, 32
      %v646 = vpop.permute.xlu0 %645
      %647 = vrot.lane.b32.xlu0 %v596, 32
      %v648 = vpop.permute.xlu0 %647
      %649 = vrot.lane.b32.xlu0 %v608, 32
      %v650 = vpop.permute.xlu0 %649
      %651 = vrot.lane.b32.xlu0 %v620, 32
      %v652 = vpop.permute.xlu0 %651
      %v685 = vunpack.c.l.b16 %v252
      %v686 = vunpack.c.l.b16 %v253
      %v687 = vunpack.c.l.b16 %v254
      %v688 = vunpack.c.l.b16 %v255
      %v689 = vunpack.c.l.b16 %v256
      %v690 = vunpack.c.l.b16 %v257
      %v691 = vunpack.c.l.b16 %v258
      %v692 = vunpack.c.l.b16 %v259
      %v693 = vunpack.c.l.b16 %v260
      %v694 = vunpack.c.l.b16 %v261
      %v695 = vunpack.c.l.b16 %v262
      %v696 = vunpack.c.l.b16 %v263
      %v697 = vunpack.c.l.b16 %v264
      %v698 = vunpack.c.l.b16 %v265
      %v699 = vunpack.c.l.b16 %v266
      %v700 = vunpack.c.l.b16 %v267
      %v701 = vunpack.c.l.b16 %v268
      %v702 = vunpack.c.l.b16 %v269
      %v703 = vunpack.c.l.b16 %v270
      %v704 = vunpack.c.l.b16 %v271
      %v705 = vunpack.c.l.b16 %v272
      %v706 = vunpack.c.l.b16 %v273
      %v707 = vunpack.c.l.b16 %v274
      %v708 = vunpack.c.l.b16 %v275
      %v709 = vunpack.c.l.b16 %v276
      %v710 = vunpack.c.l.b16 %v277
      %v711 = vunpack.c.l.b16 %v278
      %v712 = vunpack.c.l.b16 %v279
      %v713 = vunpack.c.l.b16 %v280
      %v714 = vunpack.c.l.b16 %v281
      %v715 = vunpack.c.l.b16 %v282
      %v716 = vunpack.c.l.b16 %v283
      %v717 = vpack.c.b16 %v686, %v685
      %v718 = vpack.c.b16 %v688, %v687
      %v719 = vpack.c.b16 %v690, %v689
      %v720 = vpack.c.b16 %v692, %v691
      %v721 = vpack.c.b16 %v694, %v693
      %v722 = vpack.c.b16 %v696, %v695
      %v723 = vpack.c.b16 %v698, %v697
      %v724 = vpack.c.b16 %v700, %v699
      %v725 = vpack.c.b16 %v702, %v701
      %v726 = vpack.c.b16 %v704, %v703
      %v727 = vpack.c.b16 %v706, %v705
      %v728 = vpack.c.b16 %v708, %v707
      %v729 = vpack.c.b16 %v710, %v709
      %v730 = vpack.c.b16 %v712, %v711
      %v731 = vpack.c.b16 %v714, %v713
      %v732 = vpack.c.b16 %v716, %v715
      %733 = vrot.lane.b32.xlu0 %v717, 64
      %v734 = vpop.permute.xlu0 %733
      %735 = vrot.lane.b32.xlu0 %v718, 64
      %v736 = vpop.permute.xlu0 %735
      %737 = vrot.lane.b32.xlu0 %v719, 64
      %v738 = vpop.permute.xlu0 %737
      %739 = vrot.lane.b32.xlu0 %v720, 64
      %v740 = vpop.permute.xlu0 %739
      %741 = vrot.lane.b32.xlu0 %v721, 64
      %v742 = vpop.permute.xlu0 %741
      %743 = vrot.lane.b32.xlu0 %v722, 64
      %v744 = vpop.permute.xlu0 %743
      %745 = vrot.lane.b32.xlu0 %v723, 64
      %v746 = vpop.permute.xlu0 %745
      %747 = vrot.lane.b32.xlu0 %v724, 64
      %v748 = vpop.permute.xlu0 %747
      %749 = vrot.lane.b32.xlu0 %v725, 64
      %v750 = vpop.permute.xlu0 %749
      %751 = vrot.lane.b32.xlu0 %v726, 64
      %v752 = vpop.permute.xlu0 %751
      %753 = vrot.lane.b32.xlu0 %v727, 64
      %v754 = vpop.permute.xlu0 %753
      %755 = vrot.lane.b32.xlu0 %v728, 64
      %v756 = vpop.permute.xlu0 %755
      %757 = vrot.lane.b32.xlu0 %v729, 64
      %v758 = vpop.permute.xlu0 %757
      %759 = vrot.lane.b32.xlu0 %v730, 64
      %v760 = vpop.permute.xlu0 %759
      %761 = vrot.lane.b32.xlu0 %v731, 64
      %v762 = vpop.permute.xlu0 %761
      %763 = vrot.lane.b32.xlu0 %v732, 64
      %v764 = vpop.permute.xlu0 %763
      %v781 = vunpack.c.l.b16 %v284
      %v782 = vunpack.c.l.b16 %v285
      %v783 = vunpack.c.l.b16 %v286
      %v784 = vunpack.c.l.b16 %v287
      %v785 = vunpack.c.l.b16 %v288
      %v786 = vunpack.c.l.b16 %v289
      %v787 = vunpack.c.l.b16 %v290
      %v788 = vunpack.c.l.b16 %v291
      %v789 = vunpack.c.l.b16 %v292
      %v790 = vunpack.c.l.b16 %v293
      %v791 = vunpack.c.l.b16 %v294
      %v792 = vunpack.c.l.b16 %v295
      %v793 = vunpack.c.l.b16 %v296
      %v794 = vunpack.c.l.b16 %v297
      %v795 = vunpack.c.l.b16 %v298
      %v796 = vunpack.c.l.b16 %v299
      %v797 = vpack.c.b16 %v781, %v781
      %v798 = vpack.c.b16 %v782, %v782
      %v799 = vpack.c.b16 %v783, %v783
      %v800 = vpack.c.b16 %v784, %v784
      %v801 = vpack.c.b16 %v785, %v785
      %v802 = vpack.c.b16 %v786, %v786
      %v803 = vpack.c.b16 %v787, %v787
      %v804 = vpack.c.b16 %v788, %v788
      %v805 = vpack.c.b16 %v789, %v789
      %v806 = vpack.c.b16 %v790, %v790
      %v807 = vpack.c.b16 %v791, %v791
      %v808 = vpack.c.b16 %v792, %v792
      %v809 = vpack.c.b16 %v793, %v793
      %v810 = vpack.c.b16 %v794, %v794
      %v811 = vpack.c.b16 %v795, %v795
      %v812 = vpack.c.b16 %v796, %v796
      %v814 = vshrl.u32 %v717, 16
      %v816 = vshll.u32 %v717, 16
      %v818 = vrot.slane %v816, 1
      %v819 = vor.u32 %v814, %v818
      %v821 = vshll.u32 %v797, 16
      %v823 = vrot.slane %v821, 1
      %v824 = vsel %vm428, %v819, %v823
      %v826 = vshrl.u32 %v718, 16
      %v828 = vshll.u32 %v718, 16
      %v830 = vrot.slane %v828, 1
      %v831 = vor.u32 %v826, %v830
      %v833 = vshll.u32 %v798, 16
      %v835 = vrot.slane %v833, 1
      %v836 = vsel %vm428, %v831, %v835
      %v838 = vshrl.u32 %v719, 16
      %v840 = vshll.u32 %v719, 16
      %v842 = vrot.slane %v840, 1
      %v843 = vor.u32 %v838, %v842
      %v845 = vshll.u32 %v799, 16
      %v847 = vrot.slane %v845, 1
      %v848 = vsel %vm428, %v843, %v847
      %v850 = vshrl.u32 %v720, 16
      %v852 = vshll.u32 %v720, 16
      %v854 = vrot.slane %v852, 1
      %v855 = vor.u32 %v850, %v854
      %v857 = vshll.u32 %v800, 16
      %v859 = vrot.slane %v857, 1
      %v860 = vsel %vm428, %v855, %v859
      %v862 = vshrl.u32 %v721, 16
      %v864 = vshll.u32 %v721, 16
      %v866 = vrot.slane %v864, 1
      %v867 = vor.u32 %v862, %v866
      %v869 = vshll.u32 %v801, 16
      %v871 = vrot.slane %v869, 1
      %v872 = vsel %vm428, %v867, %v871
      %v874 = vshrl.u32 %v722, 16
      %v876 = vshll.u32 %v722, 16
      %v878 = vrot.slane %v876, 1
      %v879 = vor.u32 %v874, %v878
      %v881 = vshll.u32 %v802, 16
      %v883 = vrot.slane %v881, 1
      %v884 = vsel %vm428, %v879, %v883
      %v886 = vshrl.u32 %v723, 16
      %v888 = vshll.u32 %v723, 16
      %v890 = vrot.slane %v888, 1
      %v891 = vor.u32 %v886, %v890
      %v893 = vshll.u32 %v803, 16
      %v895 = vrot.slane %v893, 1
      %v896 = vsel %vm428, %v891, %v895
      %v898 = vshrl.u32 %v724, 16
      %v900 = vshll.u32 %v724, 16
      %v902 = vrot.slane %v900, 1
      %v903 = vor.u32 %v898, %v902
      %v905 = vshll.u32 %v804, 16
      %v907 = vrot.slane %v905, 1
      %v908 = vsel %vm428, %v903, %v907
      %v910 = vshrl.u32 %v725, 16
      %v912 = vshll.u32 %v725, 16
      %v914 = vrot.slane %v912, 1
      %v915 = vor.u32 %v910, %v914
      %v917 = vshll.u32 %v805, 16
      %v919 = vrot.slane %v917, 1
      %v920 = vsel %vm428, %v915, %v919
      %v922 = vshrl.u32 %v726, 16
      %v924 = vshll.u32 %v726, 16
      %v926 = vrot.slane %v924, 1
      %v927 = vor.u32 %v922, %v926
      %v929 = vshll.u32 %v806, 16
      %v931 = vrot.slane %v929, 1
      %v932 = vsel %vm428, %v927, %v931
      %v934 = vshrl.u32 %v727, 16
      %v936 = vshll.u32 %v727, 16
      %v938 = vrot.slane %v936, 1
      %v939 = vor.u32 %v934, %v938
      %v941 = vshll.u32 %v807, 16
      %v943 = vrot.slane %v941, 1
      %v944 = vsel %vm428, %v939, %v943
      %v946 = vshrl.u32 %v728, 16
      %v948 = vshll.u32 %v728, 16
      %v950 = vrot.slane %v948, 1
      %v951 = vor.u32 %v946, %v950
      %v953 = vshll.u32 %v808, 16
      %v955 = vrot.slane %v953, 1
      %v956 = vsel %vm428, %v951, %v955
      %v958 = vshrl.u32 %v729, 16
      %v960 = vshll.u32 %v729, 16
      %v962 = vrot.slane %v960, 1
      %v963 = vor.u32 %v958, %v962
      %v965 = vshll.u32 %v809, 16
      %v967 = vrot.slane %v965, 1
      %v968 = vsel %vm428, %v963, %v967
      %v970 = vshrl.u32 %v730, 16
      %v972 = vshll.u32 %v730, 16
      %v974 = vrot.slane %v972, 1
      %v975 = vor.u32 %v970, %v974
      %v977 = vshll.u32 %v810, 16
      %v979 = vrot.slane %v977, 1
      %v980 = vsel %vm428, %v975, %v979
      %v982 = vshrl.u32 %v731, 16
      %v984 = vshll.u32 %v731, 16
      %v986 = vrot.slane %v984, 1
      %v987 = vor.u32 %v982, %v986
      %v989 = vshll.u32 %v811, 16
      %v991 = vrot.slane %v989, 1
      %v992 = vsel %vm428, %v987, %v991
      %v994 = vshrl.u32 %v732, 16
      %v996 = vshll.u32 %v732, 16
      %v998 = vrot.slane %v996, 1
      %v999 = vor.u32 %v994, %v998
      %v1001 = vshll.u32 %v812, 16
      %v1003 = vrot.slane %v1001, 1
      %v1004 = vsel %vm428, %v999, %v1003
      %1005 = vrot.lane.b32.xlu0 %v824, 96
      %v1006 = vpop.permute.xlu0 %1005
      %1007 = vrot.lane.b32.xlu0 %v836, 96
      %v1008 = vpop.permute.xlu0 %1007
      %1009 = vrot.lane.b32.xlu0 %v848, 96
      %v1010 = vpop.permute.xlu0 %1009
      %1011 = vrot.lane.b32.xlu0 %v860, 96
      %v1012 = vpop.permute.xlu0 %1011
      %1013 = vrot.lane.b32.xlu0 %v872, 96
      %v1014 = vpop.permute.xlu0 %1013
      %1015 = vrot.lane.b32.xlu0 %v884, 96
      %v1016 = vpop.permute.xlu0 %1015
      %1017 = vrot.lane.b32.xlu0 %v896, 96
      %v1018 = vpop.permute.xlu0 %1017
      %1019 = vrot.lane.b32.xlu0 %v908, 96
      %v1020 = vpop.permute.xlu0 %1019
      %1021 = vrot.lane.b32.xlu0 %v920, 96
      %v1022 = vpop.permute.xlu0 %1021
      %1023 = vrot.lane.b32.xlu0 %v932, 96
      %v1024 = vpop.permute.xlu0 %1023
      %1025 = vrot.lane.b32.xlu0 %v944, 96
      %v1026 = vpop.permute.xlu0 %1025
      %1027 = vrot.lane.b32.xlu0 %v956, 96
      %v1028 = vpop.permute.xlu0 %1027
      %1029 = vrot.lane.b32.xlu0 %v968, 96
      %v1030 = vpop.permute.xlu0 %1029
      %1031 = vrot.lane.b32.xlu0 %v980, 96
      %v1032 = vpop.permute.xlu0 %1031
      %1033 = vrot.lane.b32.xlu0 %v992, 96
      %v1034 = vpop.permute.xlu0 %1033
      %1035 = vrot.lane.b32.xlu0 %v1004, 96
      %v1036 = vpop.permute.xlu0 %1035
      %vm1037 = vcmask 261120
      %v1039 = vsel %vm1037, %v364, %v622
      %v1041 = vsel %vm1037, %v365, %v624
      %v1043 = vsel %vm1037, %v366, %v626
      %v1045 = vsel %vm1037, %v367, %v628
      %v1047 = vsel %vm1037, %v368, %v630
      %v1049 = vsel %vm1037, %v369, %v632
      %v1051 = vsel %vm1037, %v370, %v634
      %v1053 = vsel %vm1037, %v371, %v636
      %v1055 = vsel %vm1037, %v372, %v638
      %v1057 = vsel %vm1037, %v373, %v640
      %v1059 = vsel %vm1037, %v374, %v642
      %v1061 = vsel %vm1037, %v375, %v644
      %v1063 = vsel %vm1037, %v376, %v646
      %v1065 = vsel %vm1037, %v377, %v648
      %v1067 = vsel %vm1037, %v378, %v650
      %v1069 = vsel %vm1037, %v379, %v652
      %vm1070 = vcmask 523264
      %v1072 = vsel %vm1070, %v1039, %v734
      %v1074 = vsel %vm1070, %v1041, %v736
      %v1076 = vsel %vm1070, %v1043, %v738
      %v1078 = vsel %vm1070, %v1045, %v740
      %v1080 = vsel %vm1070, %v1047, %v742
      %v1082 = vsel %vm1070, %v1049, %v744
      %v1084 = vsel %vm1070, %v1051, %v746
      %v1086 = vsel %vm1070, %v1053, %v748
      %v1088 = vsel %vm1070, %v1055, %v750
      %v1090 = vsel %vm1070, %v1057, %v752
      %v1092 = vsel %vm1070, %v1059, %v754
      %v1094 = vsel %vm1070, %v1061, %v756
      %v1096 = vsel %vm1070, %v1063, %v758
      %v1098 = vsel %vm1070, %v1065, %v760
      %v1100 = vsel %vm1070, %v1067, %v762
      %v1102 = vsel %vm1070, %v1069, %v764
      %vm1103 = vcmask 785408
      %v1105 = vsel %vm1103, %v1072, %v1006
      %v1108 = vsel %vm1103, %v1074, %v1008
      %v1111 = vsel %vm1103, %v1076, %v1010
      %v1114 = vsel %vm1103, %v1078, %v1012
      %v1117 = vsel %vm1103, %v1080, %v1014
      %v1120 = vsel %vm1103, %v1082, %v1016
      %v1123 = vsel %vm1103, %v1084, %v1018
      %v1126 = vsel %vm1103, %v1086, %v1020
      %v1129 = vsel %vm1103, %v1088, %v1022
      %v1132 = vsel %vm1103, %v1090, %v1024
      %v1135 = vsel %vm1103, %v1092, %v1026
      %v1138 = vsel %vm1103, %v1094, %v1028
      %v1141 = vsel %vm1103, %v1096, %v1030
      %v1144 = vsel %vm1103, %v1098, %v1032
      %v1147 = vsel %vm1103, %v1100, %v1034
      %v1150 = vsel %vm1103, %v1102, %v1036
      %v1152 = vld [vmem:[%s1] sm:$0xf]
      %v1153 = vld [vmem:[%s1 + $0x4] sm:$0xf]
      %v1154 = vld [vmem:[%s1 + $0x8] sm:$0xf]
      %v1155 = vld [vmem:[%s1 + $0xc] sm:$0xf]
      %v1156 = vld [vmem:[%s1 + $0x10] sm:$0xf]
      %v1157 = vld [vmem:[%s1 + $0x14] sm:$0xf]
      %v1158 = vld [vmem:[%s1 + $0x18] sm:$0xf]
      %v1159 = vld [vmem:[%s1 + $0x1c] sm:$0xf]
      %v1160 = vld [vmem:[%s1 + $0x20] sm:$0xf]
      %v1161 = vld [vmem:[%s1 + $0x24] sm:$0xf]
      %v1162 = vld [vmem:[%s1 + $0x28] sm:$0xf]
      %v1163 = vld [vmem:[%s1 + $0x2c] sm:$0xf]
      %v1164 = vld [vmem:[%s1 + $0x30] sm:$0xf]
      %v1165 = vld [vmem:[%s1 + $0x34] sm:$0xf]
      %v1166 = vld [vmem:[%s1 + $0x38] sm:$0xf]
      %v1167 = vld [vmem:[%s1 + $0x3c] sm:$0xf]
      %v1168 = vld [vmem:[%s2] sm:$0x1]
      %v1170 = vperm.slane %v1168, 0
      %v1188 = vunpack.c.l.b16 %v1152
      %v1189 = vunpack.c.l.b16 %v1153
      %v1190 = vunpack.c.l.b16 %v1154
      %v1191 = vunpack.c.l.b16 %v1155
      %v1192 = vunpack.c.l.b16 %v1156
      %v1193 = vunpack.c.l.b16 %v1157
      %v1194 = vunpack.c.l.b16 %v1158
      %v1195 = vunpack.c.l.b16 %v1159
      %v1196 = vunpack.c.l.b16 %v1160
      %v1197 = vunpack.c.l.b16 %v1161
      %v1198 = vunpack.c.l.b16 %v1162
      %v1199 = vunpack.c.l.b16 %v1163
      %v1200 = vunpack.c.l.b16 %v1164
      %v1201 = vunpack.c.l.b16 %v1165
      %v1202 = vunpack.c.l.b16 %v1166
      %v1203 = vunpack.c.l.b16 %v1167
      %v1204 = vpack.c.b16 %v1189, %v1188
      %v1205 = vpack.c.b16 %v1191, %v1190
      %v1206 = vpack.c.b16 %v1193, %v1192
      %v1207 = vpack.c.b16 %v1195, %v1194
      %v1208 = vpack.c.b16 %v1197, %v1196
      %v1209 = vpack.c.b16 %v1199, %v1198
      %v1210 = vpack.c.b16 %v1201, %v1200
      %v1211 = vpack.c.b16 %v1203, %v1202
      %1220 = vmatpush.bf16.msra.mxu0 %v1211
      %1221 = vmatpush.bf16.msra.mxu0 %v1210
      %1222 = vmatpush.bf16.msra.mxu0 %v1209
      %1223 = vmatpush.bf16.msra.mxu0 %v1208
      %1224 = vmatpush.bf16.msra.mxu0 %v1207
      %1225 = vmatpush.bf16.msra.mxu0 %v1206
      %1226 = vmatpush.bf16.msra.mxu0 %v1205
      %1227 = vmatpush.bf16.msra.mxu0 %v1204
      %1228 = vmatmul.bf16.gmra.mxu0 %v1105
      %v1229 = vpop.f32.mrf.mxu0
      %v1230 = vadd.f32 %v1170, %v1229
      %v1231 = vpop.f32.mrf.mxu0
      %v1232 = vadd.f32 %v1170, %v1231
      %1233 = vmatmul.bf16.gmra.mxu0 %v1108
      %v1234 = vpop.f32.mrf.mxu0
      %v1235 = vadd.f32 %v1170, %v1234
      %v1236 = vpop.f32.mrf.mxu0
      %v1237 = vadd.f32 %v1170, %v1236
      %1238 = vmatmul.bf16.gmra.mxu0 %v1111
      %v1239 = vpop.f32.mrf.mxu0
      %v1240 = vadd.f32 %v1170, %v1239
      %v1241 = vpop.f32.mrf.mxu0
      %v1242 = vadd.f32 %v1170, %v1241
      %1243 = vmatmul.bf16.gmra.mxu0 %v1114
      %v1244 = vpop.f32.mrf.mxu0
      %v1245 = vadd.f32 %v1170, %v1244
      %v1246 = vpop.f32.mrf.mxu0
      %v1247 = vadd.f32 %v1170, %v1246
      %1248 = vmatmul.bf16.gmra.mxu0 %v1117
      %v1249 = vpop.f32.mrf.mxu0
      %v1250 = vadd.f32 %v1170, %v1249
      %v1251 = vpop.f32.mrf.mxu0
      %v1252 = vadd.f32 %v1170, %v1251
      %1253 = vmatmul.bf16.gmra.mxu0 %v1120
      %v1254 = vpop.f32.mrf.mxu0
      %v1255 = vadd.f32 %v1170, %v1254
      %v1256 = vpop.f32.mrf.mxu0
      %v1257 = vadd.f32 %v1170, %v1256
      %1258 = vmatmul.bf16.gmra.mxu0 %v1123
      %v1259 = vpop.f32.mrf.mxu0
      %v1260 = vadd.f32 %v1170, %v1259
      %v1261 = vpop.f32.mrf.mxu0
      %v1262 = vadd.f32 %v1170, %v1261
      %1263 = vmatmul.bf16.gmra.mxu0 %v1126
      %v1264 = vpop.f32.mrf.mxu0
      %v1265 = vadd.f32 %v1170, %v1264
      %v1266 = vpop.f32.mrf.mxu0
      %v1267 = vadd.f32 %v1170, %v1266
      %1268 = vmatmul.bf16.gmra.mxu0 %v1129
      %v1269 = vpop.f32.mrf.mxu0
      %v1270 = vadd.f32 %v1170, %v1269
      %v1271 = vpop.f32.mrf.mxu0
      %v1272 = vadd.f32 %v1170, %v1271
      %1273 = vmatmul.bf16.gmra.mxu0 %v1132
      %v1274 = vpop.f32.mrf.mxu0
      %v1275 = vadd.f32 %v1170, %v1274
      %v1276 = vpop.f32.mrf.mxu0
      %v1277 = vadd.f32 %v1170, %v1276
      %1278 = vmatmul.bf16.gmra.mxu0 %v1135
      %v1279 = vpop.f32.mrf.mxu0
      %v1280 = vadd.f32 %v1170, %v1279
      %v1281 = vpop.f32.mrf.mxu0
      %v1282 = vadd.f32 %v1170, %v1281
      %1283 = vmatmul.bf16.gmra.mxu0 %v1138
      %v1284 = vpop.f32.mrf.mxu0
      %v1285 = vadd.f32 %v1170, %v1284
      %v1286 = vpop.f32.mrf.mxu0
      %v1287 = vadd.f32 %v1170, %v1286
      %1288 = vmatmul.bf16.gmra.mxu0 %v1141
      %v1289 = vpop.f32.mrf.mxu0
      %v1290 = vadd.f32 %v1170, %v1289
      %v1291 = vpop.f32.mrf.mxu0
      %v1292 = vadd.f32 %v1170, %v1291
      %1293 = vmatmul.bf16.gmra.mxu0 %v1144
      %v1294 = vpop.f32.mrf.mxu0
      %v1295 = vadd.f32 %v1170, %v1294
      %v1296 = vpop.f32.mrf.mxu0
      %v1297 = vadd.f32 %v1170, %v1296
      %1298 = vmatmul.bf16.gmra.mxu0 %v1147
      %v1299 = vpop.f32.mrf.mxu0
      %v1300 = vadd.f32 %v1170, %v1299
      %v1301 = vpop.f32.mrf.mxu0
      %v1302 = vadd.f32 %v1170, %v1301
      %1303 = vmatmul.bf16.gmra.mxu0 %v1150
      %v1304 = vpop.f32.mrf.mxu0
      %v1305 = vadd.f32 %v1170, %v1304
      %v1306 = vpop.f32.mrf.mxu0
      %v1307 = vadd.f32 %v1170, %v1306
      %1308 = vdwg.mxu0
      %vm1309 = vcmp.ge.f32.partialorder %v1230, 0.0
      %vm1310 = vcmp.ge.f32.partialorder %v1232, 0.0
      %vm1311 = vcmp.ge.f32.partialorder %v1235, 0.0
      %vm1312 = vcmp.ge.f32.partialorder %v1237, 0.0
      %vm1313 = vcmp.ge.f32.partialorder %v1240, 0.0
      %vm1314 = vcmp.ge.f32.partialorder %v1242, 0.0
      %vm1315 = vcmp.ge.f32.partialorder %v1245, 0.0
      %vm1316 = vcmp.ge.f32.partialorder %v1247, 0.0
      %vm1317 = vcmp.ge.f32.partialorder %v1250, 0.0
      %vm1318 = vcmp.ge.f32.partialorder %v1252, 0.0
      %vm1319 = vcmp.ge.f32.partialorder %v1255, 0.0
      %vm1320 = vcmp.ge.f32.partialorder %v1257, 0.0
      %vm1321 = vcmp.ge.f32.partialorder %v1260, 0.0
      %vm1322 = vcmp.ge.f32.partialorder %v1262, 0.0
      %vm1323 = vcmp.ge.f32.partialorder %v1265, 0.0
      %vm1324 = vcmp.ge.f32.partialorder %v1267, 0.0
      %vm1325 = vcmp.ge.f32.partialorder %v1270, 0.0
      %vm1326 = vcmp.ge.f32.partialorder %v1272, 0.0
      %vm1327 = vcmp.ge.f32.partialorder %v1275, 0.0
      %vm1328 = vcmp.ge.f32.partialorder %v1277, 0.0
      %vm1329 = vcmp.ge.f32.partialorder %v1280, 0.0
      %vm1330 = vcmp.ge.f32.partialorder %v1282, 0.0
      %vm1331 = vcmp.ge.f32.partialorder %v1285, 0.0
      %vm1332 = vcmp.ge.f32.partialorder %v1287, 0.0
      %vm1333 = vcmp.ge.f32.partialorder %v1290, 0.0
      %vm1334 = vcmp.ge.f32.partialorder %v1292, 0.0
      %vm1335 = vcmp.ge.f32.partialorder %v1295, 0.0
      %vm1336 = vcmp.ge.f32.partialorder %v1297, 0.0
      %vm1337 = vcmp.ge.f32.partialorder %v1300, 0.0
      %vm1338 = vcmp.ge.f32.partialorder %v1302, 0.0
      %vm1339 = vcmp.ge.f32.partialorder %v1305, 0.0
      %vm1340 = vcmp.ge.f32.partialorder %v1307, 0.0
      %v1341 = vmul.f32 %v1230, 0.2
      %v1342 = vmul.f32 %v1232, 0.2
      %v1343 = vmul.f32 %v1235, 0.2
      %v1344 = vmul.f32 %v1237, 0.2
      %v1345 = vmul.f32 %v1240, 0.2
      %v1346 = vmul.f32 %v1242, 0.2
      %v1347 = vmul.f32 %v1245, 0.2
      %v1348 = vmul.f32 %v1247, 0.2
      %v1349 = vmul.f32 %v1250, 0.2
      %v1350 = vmul.f32 %v1252, 0.2
      %v1351 = vmul.f32 %v1255, 0.2
      %v1352 = vmul.f32 %v1257, 0.2
      %v1353 = vmul.f32 %v1260, 0.2
      %v1354 = vmul.f32 %v1262, 0.2
      %v1355 = vmul.f32 %v1265, 0.2
      %v1356 = vmul.f32 %v1267, 0.2
      %v1357 = vmul.f32 %v1270, 0.2
      %v1358 = vmul.f32 %v1272, 0.2
      %v1359 = vmul.f32 %v1275, 0.2
      %v1360 = vmul.f32 %v1277, 0.2
      %v1361 = vmul.f32 %v1280, 0.2
      %v1362 = vmul.f32 %v1282, 0.2
      %v1363 = vmul.f32 %v1285, 0.2
      %v1364 = vmul.f32 %v1287, 0.2
      %v1365 = vmul.f32 %v1290, 0.2
      %v1366 = vmul.f32 %v1292, 0.2
      %v1367 = vmul.f32 %v1295, 0.2
      %v1368 = vmul.f32 %v1297, 0.2
      %v1369 = vmul.f32 %v1300, 0.2
      %v1370 = vmul.f32 %v1302, 0.2
      %v1371 = vmul.f32 %v1305, 0.2
      %v1372 = vmul.f32 %v1307, 0.2
      %v1373 = vsel %vm1309, %v1230, %v1341
      %v1374 = vsel %vm1310, %v1232, %v1342
      %v1375 = vsel %vm1311, %v1235, %v1343
      %v1376 = vsel %vm1312, %v1237, %v1344
      %v1377 = vsel %vm1313, %v1240, %v1345
      %v1378 = vsel %vm1314, %v1242, %v1346
      %v1379 = vsel %vm1315, %v1245, %v1347
      %v1380 = vsel %vm1316, %v1247, %v1348
      %v1381 = vsel %vm1317, %v1250, %v1349
      %v1382 = vsel %vm1318, %v1252, %v1350
      %v1383 = vsel %vm1319, %v1255, %v1351
      %v1384 = vsel %vm1320, %v1257, %v1352
      %v1385 = vsel %vm1321, %v1260, %v1353
      %v1386 = vsel %vm1322, %v1262, %v1354
      %v1387 = vsel %vm1323, %v1265, %v1355
      %v1388 = vsel %vm1324, %v1267, %v1356
      %v1389 = vsel %vm1325, %v1270, %v1357
      %v1390 = vsel %vm1326, %v1272, %v1358
      %v1391 = vsel %vm1327, %v1275, %v1359
      %v1392 = vsel %vm1328, %v1277, %v1360
      %v1393 = vsel %vm1329, %v1280, %v1361
      %v1394 = vsel %vm1330, %v1282, %v1362
      %v1395 = vsel %vm1331, %v1285, %v1363
      %v1396 = vsel %vm1332, %v1287, %v1364
      %v1397 = vsel %vm1333, %v1290, %v1365
      %v1398 = vsel %vm1334, %v1292, %v1366
      %v1399 = vsel %vm1335, %v1295, %v1367
      %v1400 = vsel %vm1336, %v1297, %v1368
      %v1401 = vsel %vm1337, %v1300, %v1369
      %v1402 = vsel %vm1338, %v1302, %v1370
      %v1403 = vsel %vm1339, %v1305, %v1371
      %v1404 = vsel %vm1340, %v1307, %v1372
      %v1405 = vpack.c.bf16 %v1373, %v1373
      %v1406 = vpack.c.bf16 %v1374, %v1374
      %v1407 = vpack.c.bf16 %v1375, %v1375
      %v1408 = vpack.c.bf16 %v1376, %v1376
      %v1409 = vpack.c.bf16 %v1377, %v1377
      %v1410 = vpack.c.bf16 %v1378, %v1378
      %v1411 = vpack.c.bf16 %v1379, %v1379
      %v1412 = vpack.c.bf16 %v1380, %v1380
      %v1413 = vpack.c.bf16 %v1381, %v1381
      %v1414 = vpack.c.bf16 %v1382, %v1382
      %v1415 = vpack.c.bf16 %v1383, %v1383
      %v1416 = vpack.c.bf16 %v1384, %v1384
      %v1417 = vpack.c.bf16 %v1385, %v1385
      %v1418 = vpack.c.bf16 %v1386, %v1386
      %v1419 = vpack.c.bf16 %v1387, %v1387
      %v1420 = vpack.c.bf16 %v1388, %v1388
      %v1421 = vpack.c.bf16 %v1389, %v1389
      %v1422 = vpack.c.bf16 %v1390, %v1390
      %v1423 = vpack.c.bf16 %v1391, %v1391
      %v1424 = vpack.c.bf16 %v1392, %v1392
      %v1425 = vpack.c.bf16 %v1393, %v1393
      %v1426 = vpack.c.bf16 %v1394, %v1394
      %v1427 = vpack.c.bf16 %v1395, %v1395
      %v1428 = vpack.c.bf16 %v1396, %v1396
      %v1429 = vpack.c.bf16 %v1397, %v1397
      %v1430 = vpack.c.bf16 %v1398, %v1398
      %v1431 = vpack.c.bf16 %v1399, %v1399
      %v1432 = vpack.c.bf16 %v1400, %v1400
      %v1433 = vpack.c.bf16 %v1401, %v1401
      %v1434 = vpack.c.bf16 %v1402, %v1402
      %v1435 = vpack.c.bf16 %v1403, %v1403
      %v1436 = vpack.c.bf16 %v1404, %v1404
      %1437 = vst [vmem:[%s194] sm:$0xf] %v1405
      %1438 = vst [vmem:[%s194 + $0x4] sm:$0xf] %v1406
      %1439 = vst [vmem:[%s194 + $0x8] sm:$0xf] %v1407
      %1440 = vst [vmem:[%s194 + $0xc] sm:$0xf] %v1408
      %1441 = vst [vmem:[%s194 + $0x10] sm:$0xf] %v1409
      %1442 = vst [vmem:[%s194 + $0x14] sm:$0xf] %v1410
      %1443 = vst [vmem:[%s194 + $0x18] sm:$0xf] %v1411
      %1444 = vst [vmem:[%s194 + $0x1c] sm:$0xf] %v1412
      %1445 = vst [vmem:[%s194 + $0x20] sm:$0xf] %v1413
      %1446 = vst [vmem:[%s194 + $0x24] sm:$0xf] %v1414
      %1447 = vst [vmem:[%s194 + $0x28] sm:$0xf] %v1415
      %1448 = vst [vmem:[%s194 + $0x2c] sm:$0xf] %v1416
      %1449 = vst [vmem:[%s194 + $0x30] sm:$0xf] %v1417
      %1450 = vst [vmem:[%s194 + $0x34] sm:$0xf] %v1418
      %1451 = vst [vmem:[%s194 + $0x38] sm:$0xf] %v1419
      %1452 = vst [vmem:[%s194 + $0x3c] sm:$0xf] %v1420
      %1453 = vst [vmem:[%s194 + $0x40] sm:$0xf] %v1421
      %1454 = vst [vmem:[%s194 + $0x44] sm:$0xf] %v1422
      %1455 = vst [vmem:[%s194 + $0x48] sm:$0xf] %v1423
      %1456 = vst [vmem:[%s194 + $0x4c] sm:$0xf] %v1424
      %1457 = vst [vmem:[%s194 + $0x50] sm:$0xf] %v1425
      %1458 = vst [vmem:[%s194 + $0x54] sm:$0xf] %v1426
      %1459 = vst [vmem:[%s194 + $0x58] sm:$0xf] %v1427
      %1460 = vst [vmem:[%s194 + $0x5c] sm:$0xf] %v1428
      %1461 = vst [vmem:[%s194 + $0x60] sm:$0xf] %v1429
      %1462 = vst [vmem:[%s194 + $0x64] sm:$0xf] %v1430
      %1463 = vst [vmem:[%s194 + $0x68] sm:$0xf] %v1431
      %1464 = vst [vmem:[%s194 + $0x6c] sm:$0xf] %v1432
      %1465 = vst [vmem:[%s194 + $0x70] sm:$0xf] %v1433
      %1466 = vst [vmem:[%s194 + $0x74] sm:$0xf] %v1434
      %1467 = vst [vmem:[%s194 + $0x78] sm:$0xf] %v1435
      %1468 = vst [vmem:[%s194 + $0x7c] sm:$0xf] %v1436
      %s1469 = smul.u32 16, %s19
      %p1470 = scmp.lt.s32.totalorder %s18, 1
      %s1471 = scalar_select %p1470, %s18, 1
      %p1472 = scmp.lt.s32.totalorder %s1469, 15
      %s1473 = scalar_select %p1472, %s1469, 15
      %s1474 = smul.addr %s1473, 2
      %s1475 = smul.addr %s1471, 32
      %s1476 = sadd.s32 %s1474, %s1475
      %s1477 = smul.addr %s1476, 4
      %s1478 = scalar_lea.vmem %s3, %s1477
      // Predicated region
      $region33: #{discriminator_forward.6} parent=31 // pred_check
        %p1479 = pneg %p114
      $region34: #{discriminator_forward.6} parent=31 // pred_check_branch
        %1481 = sbr.rel (%p1479) target = $region36
      $region35: #{discriminator_forward.6} parent=31 // pred_region
        %s1482 = smul.u32 16, %s19
      $region36: #{discriminator_forward.6} parent=31 // pred_fallthru
        _
    $region32: #{discriminator_forward.6} parent=5 // pred_fallthru
      _
    %p1483 = scmp.le.s32.totalorder 2, %s9
    // Predicated region
    $region37: #{discriminator_forward.6} parent=5 // pred_check
      %p1484 = pneg %p1483
    $region38: #{discriminator_forward.6} parent=5 // pred_check_branch
      %1486 = sbr.rel (%p1484) target = $region40
    $region39: #{discriminator_forward.6} parent=5 // pred_region
      %s1487 = ssub.s32 %s9, 2
      // Predicated region
      $region41: #{discriminator_forward.6} parent=39 // pred_check
        %p1488 = pneg %p120
      $region42: #{discriminator_forward.6} parent=39 // pred_check_branch
        %1490 = sbr.rel (%p1488) target = $region44
      $region43: #{discriminator_forward.6} parent=39 // pred_region
        %s1491 = smul.u32 16, %s21
        %p1492 = scmp.lt.s32.totalorder %s20, 1
        %s1493 = scalar_select %p1492, %s20, 1
        %p1494 = scmp.lt.s32.totalorder %s1491, 15
        %s1495 = scalar_select %p1494, %s1491, 15
        %s1496 = smul.addr %s1495, 2
        %s1497 = smul.addr %s1493, 32
        %s1498 = sadd.s32 %s1496, %s1497
        %s1499 = smul.addr %s1498, 4
        %s1500 = scalar_lea.vmem %s3, %s1499
      $region44: #{discriminator_forward.6} parent=39 // pred_fallthru
        _
    $region40: #{discriminator_forward.6} parent=5 // pred_fallthru
      _
  $region6: #{discriminator_forward.6} parent=0 // loop_footer
    %s13 = sadd.s32 1, %s9
  $region7: #{discriminator_forward.6} parent=0 // loop_footer_branch
    %8 = sbr.rel target = $region3
  $region8: #{discriminator_forward.6} parent=0 // loop_exit
    _

// kernel: discriminator_forward.7
$region0: #{discriminator_forward.7}
  #allocation0 [shape = 'u32[]', space=smem, size = 0x4, offset = 0x4, fixed_abs, tag = 'smem constant byte address 0x4 - core index']
  #allocation1 [shape = 'u32[72,128]{1,0:T(1,128)}', space=vmem, size = 0x9000, scoped, tag = 'internal scratch']
  %s0 = inlined_call_operand.vmem [shape: bf16[2,9,9,64], index: 0, kind: input, shape index: {}]
  %s1 = inlined_call_operand.vmem [shape: bf16[256,128], index: 1, kind: input, shape index: {}]
  %s2 = inlined_call_operand.vmem [shape: f32[1,128], index: 2, kind: input, shape index: {}]
  %s3 = inlined_call_operand.vmem [shape: bf16[2,8,8,128], index: 3, kind: output, shape index: {}]
  %s4 = sld [smem:[#allocation0]]
  $region45: #{discriminator_forward.7} parent=0
    _
  %s6 = ssub.s32 1, %s4
  %s7 = scalar_select 0, %s6, %s4
  loop: start=0, step=1, limit=4
  $region2: #{discriminator_forward.7} parent=0 // loop_pre_header
    _
  $region3: #{discriminator_forward.7} parent=0 // loop_header
    %s9 = sphi 0, %s13
    %p10 = scmp.ge.s32.totalorder %s9, 4
    %s16 = sphi 0, %s28
    %s17 = sphi 0, %s24
    %s18 = sphi 0, %s16
    %s19 = sphi 0, %s17
    %s20 = sphi 0, %s18
    %s21 = sphi 0, %s19
    %s31 = sphi 0, %s33
    %s34 = sphi 0, %s31
    %s35 = sphi 0, %s34
    %s51 = sphi 0, %s35
    %s55 = sphi 0, %s55
    %s57 = sphi 0, %s55
    %s58 = sphi 0, %s57
    %s72 = sphi 0, %s58
    %s76 = sphi 0, %s76
    %s78 = sphi 0, %s76
    %s79 = sphi 0, %s78
    %s93 = sphi 0, %s79
    %s101 = sphi 0, %s103
    %s104 = sphi 0, %s101
    %s105 = sphi 0, %s104
    %s121 = sphi 0, %s105
  $region4: #{discriminator_forward.7} parent=0 // loop_header_branch
    %12 = sbr.rel (%p10) target = $region8
  $region5: #{discriminator_forward.7} parent=0 // loop_body
    %s14 = ssub.s32 %s9, 1
    %s15 = ssub.s32 %s9, 2
    %s22 = sadd.s32 1, %s17
    %p23 = scmp.ge.s32.totalorder %s22, 1
    %s24 = scalar_select %p23, 0, %s22
    %s25 = sadd.s32 1, %s16
    %s26 = scalar_select %p23, %s25, %s16
    %p27 = scmp.ge.s32.totalorder %s26, 2
    %s28 = scalar_select %p27, 0, %s26
    %s29 = ssub.s32 %s16, %s28
    %p30 = scmp.eq.s32.totalorder %s29, 0
    %s32 = sadd.s32 %s31, 1
    %s33 = scalar_select %p30, %s31, %s32
    %p36 = pneg %p30
    %p37 = scmp.eq.s32.totalorder %s9, 1
    %p38 = por %p36, %p37
    %p39 = scmp.ne.s32.totalorder %s31, %s34
    %p40 = scmp.eq.s32.totalorder %s9, 0
    %p41 = por %p39, %p40
    %p42 = scmp.ne.s32.totalorder %s31, %s34
    %p43 = scmp.eq.s32.totalorder %s14, 1
    %p44 = por %p42, %p43
    %p45 = scmp.ne.s32.totalorder %s34, %s35
    %p46 = scmp.eq.s32.totalorder %s14, 0
    %p47 = por %p45, %p46
    %p48 = scmp.ne.s32.totalorder %s34, %s35
    %p49 = scmp.eq.s32.totalorder %s15, 1
    %p50 = por %p48, %p49
    %p52 = scmp.ne.s32.totalorder %s35, %s51
    %p53 = scmp.eq.s32.totalorder %s15, 0
    %p54 = por %p52, %p53
    %s56 = sadd.s32 %s55, 1
    %p59 = scmp.eq.s32.totalorder %s9, 1
    %p60 = scmp.ne.s32.totalorder %s55, %s57
    %p61 = scmp.eq.s32.totalorder %s9, 0
    %p62 = por %p60, %p61
    %p63 = scmp.ne.s32.totalorder %s55, %s57
    %p64 = scmp.eq.s32.totalorder %s14, 1
    %p65 = por %p63, %p64
    %p66 = scmp.ne.s32.totalorder %s57, %s58
    %p67 = scmp.eq.s32.totalorder %s14, 0
    %p68 = por %p66, %p67
    %p69 = scmp.ne.s32.totalorder %s57, %s58
    %p70 = scmp.eq.s32.totalorder %s15, 1
    %p71 = por %p69, %p70
    %p73 = scmp.ne.s32.totalorder %s58, %s72
    %p74 = scmp.eq.s32.totalorder %s15, 0
    %p75 = por %p73, %p74
    %s77 = sadd.s32 %s76, 1
    %p80 = scmp.eq.s32.totalorder %s9, 1
    %p81 = scmp.ne.s32.totalorder %s76, %s78
    %p82 = scmp.eq.s32.totalorder %s9, 0
    %p83 = por %p81, %p82
    %p84 = scmp.ne.s32.totalorder %s76, %s78
    %p85 = scmp.eq.s32.totalorder %s14, 1
    %p86 = por %p84, %p85
    %p87 = scmp.ne.s32.totalorder %s78, %s79
    %p88 = scmp.eq.s32.totalorder %s14, 0
    %p89 = por %p87, %p88
    %p90 = scmp.ne.s32.totalorder %s78, %s79
    %p91 = scmp.eq.s32.totalorder %s15, 1
    %p92 = por %p90, %p91
    %p94 = scmp.ne.s32.totalorder %s79, %s93
    %p95 = scmp.eq.s32.totalorder %s15, 0
    %p96 = por %p94, %p95
    %s97 = ssub.s32 %s16, %s28
    %s98 = ssub.s32 %s17, %s24
    %s99 = sor.u32 %s97, %s98
    %p100 = scmp.eq.s32.totalorder %s99, 0
    %s102 = sadd.s32 %s101, 1
    %s103 = scalar_select %p100, %s101, %s102
    %p106 = pneg %p100
    %p107 = scmp.eq.s32.totalorder %s9, 1
    %p108 = por %p106, %p107
    %p109 = scmp.ne.s32.totalorder %s101, %s104
    %p110 = scmp.eq.s32.totalorder %s9, 0
    %p111 = por %p109, %p110
    %p112 = scmp.ne.s32.totalorder %s101, %s104
    %p113 = scmp.eq.s32.totalorder %s14, 1
    %p114 = por %p112, %p113
    %p115 = scmp.ne.s32.totalorder %s104, %s105
    %p116 = scmp.eq.s32.totalorder %s14, 0
    %p117 = por %p115, %p116
    %p118 = scmp.ne.s32.totalorder %s104, %s105
    %p119 = scmp.eq.s32.totalorder %s15, 1
    %p120 = por %p118, %p119
    %p122 = scmp.ne.s32.totalorder %s105, %s121
    %p123 = scmp.eq.s32.totalorder %s15, 0
    %p124 = por %p122, %p123
    %p125 = scmp.le.s32.totalorder 1, %s9
    %p126 = scmp.lt.s32.totalorder %s9, 3
    %p127 = pnand %p125, %p126
    %p128 = pneg %p127
    // Predicated region
    $region9: #{discriminator_forward.7} parent=5 // pred_check
      _
    $region10: #{discriminator_forward.7} parent=5 // pred_check_branch
      %130 = sbr.rel (%p127) target = $region12
    $region11: #{discriminator_forward.7} parent=5 // pred_region
      %s131 = ssub.s32 %s9, 1
      // Predicated region
      $region13: #{discriminator_forward.7} parent=11 // pred_check
        %p132 = pneg %p68
      $region14: #{discriminator_forward.7} parent=11 // pred_check_branch
        %134 = sbr.rel (%p132) target = $region16
      $region15: #{discriminator_forward.7} parent=11 // pred_region
        _
      $region16: #{discriminator_forward.7} parent=11 // pred_fallthru
        _
      // Predicated region
      $region17: #{discriminator_forward.7} parent=11 // pred_check
        %p135 = pneg %p89
      $region18: #{discriminator_forward.7} parent=11 // pred_check_branch
        %137 = sbr.rel (%p135) target = $region20
      $region19: #{discriminator_forward.7} parent=11 // pred_region
        _
      $region20: #{discriminator_forward.7} parent=11 // pred_fallthru
        _
    $region12: #{discriminator_forward.7} parent=5 // pred_fallthru
      _
    %p138 = scmp.lt.s32.totalorder %s9, 2
    // Predicated region
    $region21: #{discriminator_forward.7} parent=5 // pred_check
      %p139 = pneg %p138
    $region22: #{discriminator_forward.7} parent=5 // pred_check_branch
      %141 = sbr.rel (%p139) target = $region24
    $region23: #{discriminator_forward.7} parent=5 // pred_region
      // Predicated region
      $region25: #{discriminator_forward.7} parent=23 // pred_check
        %p142 = pneg %p41
      $region26: #{discriminator_forward.7} parent=23 // pred_check_branch
        %144 = sbr.rel (%p142) target = $region28
      $region27: #{discriminator_forward.7} parent=23 // pred_region
        %p145 = scmp.lt.s32.totalorder %s16, 1
        %s146 = scalar_select %p145, %s16, 1
        %s147 = smul.addr %s146, 18
        %s148 = smul.addr %s147, 4
        %s149 = scalar_lea.vmem %s0, %s148
      $region28: #{discriminator_forward.7} parent=23 // pred_fallthru
        _
    $region24: #{discriminator_forward.7} parent=5 // pred_fallthru
      _
    %p150 = scmp.le.s32.totalorder 1, %s9
    %p151 = scmp.lt.s32.totalorder %s9, 3
    %p152 = pnand %p150, %p151
    %p153 = pneg %p152
    // Predicated region
    $region29: #{discriminator_forward.7} parent=5 // pred_check
      _
    $region30: #{discriminator_forward.7} parent=5 // pred_check_branch
      %155 = sbr.rel (%p152) target = $region32
    $region31: #{discriminator_forward.7} parent=5 // pred_region
      %s156 = ssub.s32 %s9, 1
      %p157 = scmp.lt.s32.totalorder %s18, 1
      %s158 = scalar_select %p157, %s18, 1
      %s159 = smul.addr %s158, 18
      %s160 = smul.addr %s159, 4
      %s161 = scalar_lea.vmem %s0, %s160
      %p162 = pneg %p47
      %p163 = pneg %p44
      %p164 = pneg %p68
      %p165 = pneg %p65
      %p166 = pneg %p89
      %p167 = pneg %p86
      %p168 = pneg %p117
      %p169 = pneg %p114
      %s170 = smul.u32 8, %s19
      %p171 = scmp.lt.s32.totalorder %s18, 1
      %s172 = scalar_select %p171, %s18, 1
      %p173 = scmp.lt.s32.totalorder %s170, 7
      %s174 = scalar_select %p173, %s170, 7
      %s175 = smul.addr %s172, 8
      %s176 = sadd.s32 %s174, %s175
      %s177 = smul.addr %s176, 4
      %s178 = scalar_lea.vmem %s3, %s177
      %p179 = scmp.lt.s32.totalorder %s18, 1
      %s180 = scalar_select %p179, %s18, 1
      %s181 = smul.addr %s180, 18
      %s182 = smul.addr %s181, 4
      %s183 = scalar_lea.vmem %s0, %s182
      %s184 = smul.u32 8, %s19
      %p185 = scmp.lt.s32.totalorder %s18, 1
      %s186 = scalar_select %p185, %s18, 1
      %p187 = scmp.lt.s32.totalorder %s184, 7
      %s188 = scalar_select %p187, %s184, 7
      %s189 = smul.addr %s186, 8
      %s190 = sadd.s32 %s188, %s189
      %s191 = smul.addr %s190, 4
      %s192 = scalar_lea.vmem %s3, %s191
      %s193 = smul.u32 8, %s19
      %s194 = smul.u32 %s19, 8
      %s195 = smul.u32 %s194, 2
      %s196 = smul.addr %s195, 4
      %s197 = scalar_lea.vmem %s183, %s196
      %v198 = vld [vmem:[%s197] sm:$0xf]
      %v199 = vld [vmem:[%s197 + $0x8] sm:$0xf]
      %v200 = vld [vmem:[%s197 + $0x10] sm:$0xf]
      %v201 = vld [vmem:[%s197 + $0x18] sm:$0xf]
      %v202 = vld [vmem:[%s197 + $0x20] sm:$0xf]
      %v203 = vld [vmem:[%s197 + $0x28] sm:$0xf]
      %v204 = vld [vmem:[%s197 + $0x30] sm:$0xf]
      %v205 = vld [vmem:[%s197 + $0x38] sm:$0xf]
      %v206 = vld [vmem:[%s197 + $0x4] sm:$0x1]
      %v207 = vld [vmem:[%s197 + $0xc] sm:$0x1]
      %v208 = vld [vmem:[%s197 + $0x14] sm:$0x1]
      %v209 = vld [vmem:[%s197 + $0x1c] sm:$0x1]
      %v210 = vld [vmem:[%s197 + $0x24] sm:$0x1]
      %v211 = vld [vmem:[%s197 + $0x2c] sm:$0x1]
      %v212 = vld [vmem:[%s197 + $0x34] sm:$0x1]
      %v213 = vld [vmem:[%s197 + $0x3c] sm:$0x1]
      %s214 = sadd.s32 %s194, 1
      %s215 = smul.u32 %s214, 2
      %s216 = smul.addr %s215, 4
      %s217 = scalar_lea.vmem %s183, %s216
      %v218 = vld [vmem:[%s217] sm:$0xf]
      %v219 = vld [vmem:[%s217 + $0x8] sm:$0xf]
      %v220 = vld [vmem:[%s217 + $0x10] sm:$0xf]
      %v221 = vld [vmem:[%s217 + $0x18] sm:$0xf]
      %v222 = vld [vmem:[%s217 + $0x20] sm:$0xf]
      %v223 = vld [vmem:[%s217 + $0x28] sm:$0xf]
      %v224 = vld [vmem:[%s217 + $0x30] sm:$0xf]
      %v225 = vld [vmem:[%s217 + $0x38] sm:$0xf]
      %v226 = vld [vmem:[%s217 + $0x4] sm:$0x1]
      %v227 = vld [vmem:[%s217 + $0xc] sm:$0x1]
      %v228 = vld [vmem:[%s217 + $0x14] sm:$0x1]
      %v229 = vld [vmem:[%s217 + $0x1c] sm:$0x1]
      %v230 = vld [vmem:[%s217 + $0x24] sm:$0x1]
      %v231 = vld [vmem:[%s217 + $0x2c] sm:$0x1]
      %v232 = vld [vmem:[%s217 + $0x34] sm:$0x1]
      %v233 = vld [vmem:[%s217 + $0x3c] sm:$0x1]
      %v250 = vunpack.c.l.b16 %v198
      %v251 = vunpack.c.l.b16 %v206
      %v252 = vunpack.c.l.b16 %v199
      %v253 = vunpack.c.l.b16 %v207
      %v254 = vunpack.c.l.b16 %v200
      %v255 = vunpack.c.l.b16 %v208
      %v256 = vunpack.c.l.b16 %v201
      %v257 = vunpack.c.l.b16 %v209
      %v258 = vunpack.c.l.b16 %v202
      %v259 = vunpack.c.l.b16 %v210
      %v260 = vunpack.c.l.b16 %v203
      %v261 = vunpack.c.l.b16 %v211
      %v262 = vunpack.c.l.b16 %v204
      %v263 = vunpack.c.l.b16 %v212
      %v264 = vunpack.c.l.b16 %v205
      %v265 = vunpack.c.l.b16 %v213
      %v266 = vpack.c.b16 %v251, %v250
      %v267 = vpack.c.b16 %v253, %v252
      %v268 = vpack.c.b16 %v255, %v254
      %v269 = vpack.c.b16 %v257, %v256
      %v270 = vpack.c.b16 %v259, %v258
      %v271 = vpack.c.b16 %v261, %v260
      %v272 = vpack.c.b16 %v263, %v262
      %v273 = vpack.c.b16 %v265, %v264
      %v275 = vshrl.u32 %v266, 16
      %v277 = vshll.u32 %v266, 16
      %v279 = vrot.slane %v277, 1
      %v280 = vor.u32 %v275, %v279
      %v282 = vshrl.u32 %v267, 16
      %v284 = vshll.u32 %v267, 16
      %v286 = vrot.slane %v284, 1
      %v287 = vor.u32 %v282, %v286
      %v289 = vshrl.u32 %v268, 16
      %v291 = vshll.u32 %v268, 16
      %v293 = vrot.slane %v291, 1
      %v294 = vor.u32 %v289, %v293
      %v296 = vshrl.u32 %v269, 16
      %v298 = vshll.u32 %v269, 16
      %v300 = vrot.slane %v298, 1
      %v301 = vor.u32 %v296, %v300
      %v303 = vshrl.u32 %v270, 16
      %v305 = vshll.u32 %v270, 16
      %v307 = vrot.slane %v305, 1
      %v308 = vor.u32 %v303, %v307
      %v310 = vshrl.u32 %v271, 16
      %v312 = vshll.u32 %v271, 16
      %v314 = vrot.slane %v312, 1
      %v315 = vor.u32 %v310, %v314
      %v317 = vshrl.u32 %v272, 16
      %v319 = vshll.u32 %v272, 16
      %v321 = vrot.slane %v319, 1
      %v322 = vor.u32 %v317, %v321
      %v324 = vshrl.u32 %v273, 16
      %v326 = vshll.u32 %v273, 16
      %v328 = vrot.slane %v326, 1
      %v329 = vor.u32 %v324, %v328
      %330 = vrot.lane.b32.xlu0 %v280, 64
      %v331 = vpop.permute.xlu0 %330
      %332 = vrot.lane.b32.xlu0 %v287, 64
      %v333 = vpop.permute.xlu0 %332
      %334 = vrot.lane.b32.xlu0 %v294, 64
      %v335 = vpop.permute.xlu0 %334
      %336 = vrot.lane.b32.xlu0 %v301, 64
      %v337 = vpop.permute.xlu0 %336
      %338 = vrot.lane.b32.xlu0 %v308, 64
      %v339 = vpop.permute.xlu0 %338
      %340 = vrot.lane.b32.xlu0 %v315, 64
      %v341 = vpop.permute.xlu0 %340
      %342 = vrot.lane.b32.xlu0 %v322, 64
      %v343 = vpop.permute.xlu0 %342
      %344 = vrot.lane.b32.xlu0 %v329, 64
      %v345 = vpop.permute.xlu0 %344
      %v362 = vunpack.c.l.b16 %v218
      %v363 = vunpack.c.l.b16 %v226
      %v364 = vunpack.c.l.b16 %v219
      %v365 = vunpack.c.l.b16 %v227
      %v366 = vunpack.c.l.b16 %v220
      %v367 = vunpack.c.l.b16 %v228
      %v368 = vunpack.c.l.b16 %v221
      %v369 = vunpack.c.l.b16 %v229
      %v370 = vunpack.c.l.b16 %v222
      %v371 = vunpack.c.l.b16 %v230
      %v372 = vunpack.c.l.b16 %v223
      %v373 = vunpack.c.l.b16 %v231
      %v374 = vunpack.c.l.b16 %v224
      %v375 = vunpack.c.l.b16 %v232
      %v376 = vunpack.c.l.b16 %v225
      %v377 = vunpack.c.l.b16 %v233
      %v378 = vpack.c.b16 %v363, %v362
      %v379 = vpack.c.b16 %v365, %v364
      %v380 = vpack.c.b16 %v367, %v366
      %v381 = vpack.c.b16 %v369, %v368
      %v382 = vpack.c.b16 %v371, %v370
      %v383 = vpack.c.b16 %v373, %v372
      %v384 = vpack.c.b16 %v375, %v374
      %v385 = vpack.c.b16 %v377, %v376
      %v387 = vshrl.u32 %v378, 16
      %v389 = vshll.u32 %v378, 16
      %v391 = vrot.slane %v389, 1
      %v392 = vor.u32 %v387, %v391
      %v394 = vshrl.u32 %v379, 16
      %v396 = vshll.u32 %v379, 16
      %v398 = vrot.slane %v396, 1
      %v399 = vor.u32 %v394, %v398
      %v401 = vshrl.u32 %v380, 16
      %v403 = vshll.u32 %v380, 16
      %v405 = vrot.slane %v403, 1
      %v406 = vor.u32 %v401, %v405
      %v408 = vshrl.u32 %v381, 16
      %v410 = vshll.u32 %v381, 16
      %v412 = vrot.slane %v410, 1
      %v413 = vor.u32 %v408, %v412
      %v415 = vshrl.u32 %v382, 16
      %v417 = vshll.u32 %v382, 16
      %v419 = vrot.slane %v417, 1
      %v420 = vor.u32 %v415, %v419
      %v422 = vshrl.u32 %v383, 16
      %v424 = vshll.u32 %v383, 16
      %v426 = vrot.slane %v424, 1
      %v427 = vor.u32 %v422, %v426
      %v429 = vshrl.u32 %v384, 16
      %v431 = vshll.u32 %v384, 16
      %v433 = vrot.slane %v431, 1
      %v434 = vor.u32 %v429, %v433
      %v436 = vshrl.u32 %v385, 16
      %v438 = vshll.u32 %v385, 16
      %v440 = vrot.slane %v438, 1
      %v441 = vor.u32 %v436, %v440
      %442 = vrot.lane.b32.xlu0 %v392, 64
      %v443 = vpop.permute.xlu0 %442
      %444 = vrot.lane.b32.xlu0 %v399, 64
      %v445 = vpop.permute.xlu0 %444
      %446 = vrot.lane.b32.xlu0 %v406, 64
      %v447 = vpop.permute.xlu0 %446
      %448 = vrot.lane.b32.xlu0 %v413, 64
      %v449 = vpop.permute.xlu0 %448
      %450 = vrot.lane.b32.xlu0 %v420, 64
      %v451 = vpop.permute.xlu0 %450
      %452 = vrot.lane.b32.xlu0 %v427, 64
      %v453 = vpop.permute.xlu0 %452
      %454 = vrot.lane.b32.xlu0 %v434, 64
      %v455 = vpop.permute.xlu0 %454
      %456 = vrot.lane.b32.xlu0 %v441, 64
      %v457 = vpop.permute.xlu0 %456
      %vm458 = vcmask 523264
      %v461 = vsel %vm458, %v198, %v331
      %v464 = vsel %vm458, %v199, %v333
      %v467 = vsel %vm458, %v200, %v335
      %v470 = vsel %vm458, %v201, %v337
      %v473 = vsel %vm458, %v202, %v339
      %v476 = vsel %vm458, %v203, %v341
      %v479 = vsel %vm458, %v204, %v343
      %v482 = vsel %vm458, %v205, %v345
      %v485 = vsel %vm458, %v218, %v443
      %v488 = vsel %vm458, %v219, %v445
      %v491 = vsel %vm458, %v220, %v447
      %v494 = vsel %vm458, %v221, %v449
      %v497 = vsel %vm458, %v222, %v451
      %v500 = vsel %vm458, %v223, %v453
      %v503 = vsel %vm458, %v224, %v455
      %v506 = vsel %vm458, %v225, %v457
      %v523 = vunpack.c.l.b16 %v461
      %v524 = vunpack.c.l.b16 %v485
      %v525 = vunpack.c.l.b16 %v464
      %v526 = vunpack.c.l.b16 %v488
      %v527 = vunpack.c.l.b16 %v467
      %v528 = vunpack.c.l.b16 %v491
      %v529 = vunpack.c.l.b16 %v470
      %v530 = vunpack.c.l.b16 %v494
      %v531 = vunpack.c.l.b16 %v473
      %v532 = vunpack.c.l.b16 %v497
      %v533 = vunpack.c.l.b16 %v476
      %v534 = vunpack.c.l.b16 %v500
      %v535 = vunpack.c.l.b16 %v479
      %v536 = vunpack.c.l.b16 %v503
      %v537 = vunpack.c.l.b16 %v482
      %v538 = vunpack.c.l.b16 %v506
      %v539 = vld [vmem:[%s1] sm:$0xf]
      %v540 = vld [vmem:[%s1 + $0x4] sm:$0xf]
      %v541 = vld [vmem:[%s1 + $0x8] sm:$0xf]
      %v542 = vld [vmem:[%s1 + $0xc] sm:$0xf]
      %v543 = vld [vmem:[%s1 + $0x10] sm:$0xf]
      %v544 = vld [vmem:[%s1 + $0x14] sm:$0xf]
      %v545 = vld [vmem:[%s1 + $0x18] sm:$0xf]
      %v546 = vld [vmem:[%s1 + $0x1c] sm:$0xf]
      %v547 = vld [vmem:[%s1 + $0x20] sm:$0xf]
      %v548 = vld [vmem:[%s1 + $0x24] sm:$0xf]
      %v549 = vld [vmem:[%s1 + $0x28] sm:$0xf]
      %v550 = vld [vmem:[%s1 + $0x2c] sm:$0xf]
      %v551 = vld [vmem:[%s1 + $0x30] sm:$0xf]
      %v552 = vld [vmem:[%s1 + $0x34] sm:$0xf]
      %v553 = vld [vmem:[%s1 + $0x38] sm:$0xf]
      %v554 = vld [vmem:[%s1 + $0x3c] sm:$0xf]
      %v555 = vld [vmem:[%s1 + $0x40] sm:$0xf]
      %v556 = vld [vmem:[%s1 + $0x44] sm:$0xf]
      %v557 = vld [vmem:[%s1 + $0x48] sm:$0xf]
      %v558 = vld [vmem:[%s1 + $0x4c] sm:$0xf]
      %v559 = vld [vmem:[%s1 + $0x50] sm:$0xf]
      %v560 = vld [vmem:[%s1 + $0x54] sm:$0xf]
      %v561 = vld [vmem:[%s1 + $0x58] sm:$0xf]
      %v562 = vld [vmem:[%s1 + $0x5c] sm:$0xf]
      %v563 = vld [vmem:[%s1 + $0x60] sm:$0xf]
      %v564 = vld [vmem:[%s1 + $0x64] sm:$0xf]
      %v565 = vld [vmem:[%s1 + $0x68] sm:$0xf]
      %v566 = vld [vmem:[%s1 + $0x6c] sm:$0xf]
      %v567 = vld [vmem:[%s1 + $0x70] sm:$0xf]
      %v568 = vld [vmem:[%s1 + $0x74] sm:$0xf]
      %v569 = vld [vmem:[%s1 + $0x78] sm:$0xf]
      %v570 = vld [vmem:[%s1 + $0x7c] sm:$0xf]
      %v571 = vld [vmem:[%s2] sm:$0x1]
      %v573 = vperm.slane %v571, 0
      %v575 = vpack.c.b16 %v525, %v523
      %v576 = vpack.c.b16 %v526, %v524
      %v577 = vpack.c.b16 %v529, %v527
      %v578 = vpack.c.b16 %v530, %v528
      %v579 = vpack.c.b16 %v533, %v531
      %v580 = vpack.c.b16 %v534, %v532
      %v581 = vpack.c.b16 %v537, %v535
      %v582 = vpack.c.b16 %v538, %v536
      %v623 = vunpack.c.l.b16 %v539
      %v624 = vunpack.c.l.b16 %v540
      %v625 = vunpack.c.l.b16 %v541
      %v626 = vunpack.c.l.b16 %v542
      %v627 = vunpack.c.l.b16 %v543
      %v628 = vunpack.c.l.b16 %v544
      %v629 = vunpack.c.l.b16 %v545
      %v630 = vunpack.c.l.b16 %v546
      %v631 = vunpack.c.l.b16 %v547
      %v632 = vunpack.c.l.b16 %v548
      %v633 = vunpack.c.l.b16 %v549
      %v634 = vunpack.c.l.b16 %v550
      %v635 = vunpack.c.l.b16 %v551
      %v636 = vunpack.c.l.b16 %v552
      %v637 = vunpack.c.l.b16 %v553
      %v638 = vunpack.c.l.b16 %v554
      %v639 = vunpack.c.l.b16 %v555
      %v640 = vunpack.c.l.b16 %v556
      %v641 = vunpack.c.l.b16 %v557
      %v642 = vunpack.c.l.b16 %v558
      %v643 = vunpack.c.l.b16 %v559
      %v644 = vunpack.c.l.b16 %v560
      %v645 = vunpack.c.l.b16 %v561
      %v646 = vunpack.c.l.b16 %v562
      %v647 = vunpack.c.l.b16 %v563
      %v648 = vunpack.c.l.b16 %v564
      %v649 = vunpack.c.l.b16 %v565
      %v650 = vunpack.c.l.b16 %v566
      %v651 = vunpack.c.l.b16 %v567
      %v652 = vunpack.c.l.b16 %v568
      %v653 = vunpack.c.l.b16 %v569
      %v654 = vunpack.c.l.b16 %v570
      %v655 = vpack.c.b16 %v624, %v623
      %v656 = vpack.c.b16 %v626, %v625
      %v657 = vpack.c.b16 %v628, %v627
      %v658 = vpack.c.b16 %v630, %v629
      %v659 = vpack.c.b16 %v632, %v631
      %v660 = vpack.c.b16 %v634, %v633
      %v661 = vpack.c.b16 %v636, %v635
      %v662 = vpack.c.b16 %v638, %v637
      %v663 = vpack.c.b16 %v640, %v639
      %v664 = vpack.c.b16 %v642, %v641
      %v665 = vpack.c.b16 %v644, %v643
      %v666 = vpack.c.b16 %v646, %v645
      %v667 = vpack.c.b16 %v648, %v647
      %v668 = vpack.c.b16 %v650, %v649
      %v669 = vpack.c.b16 %v652, %v651
      %v670 = vpack.c.b16 %v654, %v653
      %687 = vmatpush.bf16.msra.mxu0 %v662
      %688 = vmatpush.bf16.msra.mxu0 %v661
      %689 = vmatpush.bf16.msra.mxu0 %v660
      %690 = vmatpush.bf16.msra.mxu0 %v659
      %691 = vmatpush.bf16.msra.mxu0 %v658
      %692 = vmatpush.bf16.msra.mxu0 %v657
      %693 = vmatpush.bf16.msra.mxu0 %v656
      %694 = vmatpush.bf16.msra.mxu0 %v655
      %695 = vmatmul.bf16.gmra.mxu0 %v575
      %v696 = vpop.f32.mrf.mxu0
      %v697 = vadd.f32 %v573, %v696
      %v698 = vpop.f32.mrf.mxu0
      %v699 = vadd.f32 %v573, %v698
      %700 = vmatmul.bf16.gmra.mxu0 %v577
      %v701 = vpop.f32.mrf.mxu0
      %v702 = vadd.f32 %v573, %v701
      %v703 = vpop.f32.mrf.mxu0
      %v704 = vadd.f32 %v573, %v703
      %705 = vmatmul.bf16.gmra.mxu0 %v579
      %v706 = vpop.f32.mrf.mxu0
      %v707 = vadd.f32 %v573, %v706
      %v708 = vpop.f32.mrf.mxu0
      %v709 = vadd.f32 %v573, %v708
      %710 = vmatmul.bf16.gmra.mxu0 %v581
      %v711 = vpop.f32.mrf.mxu0
      %v712 = vadd.f32 %v573, %v711
      %v713 = vpop.f32.mrf.mxu0
      %v714 = vadd.f32 %v573, %v713
      %715 = vdwg.mxu0
      %716 = vmatpush.bf16.msra.mxu0 %v670
      %717 = vmatpush.bf16.msra.mxu0 %v669
      %718 = vmatpush.bf16.msra.mxu0 %v668
      %719 = vmatpush.bf16.msra.mxu0 %v667
      %720 = vmatpush.bf16.msra.mxu0 %v666
      %721 = vmatpush.bf16.msra.mxu0 %v665
      %722 = vmatpush.bf16.msra.mxu0 %v664
      %723 = vmatpush.bf16.msra.mxu0 %v663
      %724 = vmatmul.bf16.gmra.mxu0 %v576
      %v725 = vpop.f32.mrf.mxu0
      %v726 = vadd.f32 %v697, %v725
      %v727 = vpop.f32.mrf.mxu0
      %v728 = vadd.f32 %v699, %v727
      %729 = vmatmul.bf16.gmra.mxu0 %v578
      %v730 = vpop.f32.mrf.mxu0
      %v731 = vadd.f32 %v702, %v730
      %v732 = vpop.f32.mrf.mxu0
      %v733 = vadd.f32 %v704, %v732
      %734 = vmatmul.bf16.gmra.mxu0 %v580
      %v735 = vpop.f32.mrf.mxu0
      %v736 = vadd.f32 %v707, %v735
      %v737 = vpop.f32.mrf.mxu0
      %v738 = vadd.f32 %v709, %v737
      %739 = vmatmul.bf16.gmra.mxu0 %v582
      %v740 = vpop.f32.mrf.mxu0
      %v741 = vadd.f32 %v712, %v740
      %v742 = vpop.f32.mrf.mxu0
      %v743 = vadd.f32 %v714, %v742
      %744 = vdwg.mxu0
      %vm745 = vcmp.ge.f32.partialorder %v726, 0.0
      %vm746 = vcmp.ge.f32.partialorder %v728, 0.0
      %vm747 = vcmp.ge.f32.partialorder %v731, 0.0
      %vm748 = vcmp.ge.f32.partialorder %v733, 0.0
      %vm749 = vcmp.ge.f32.partialorder %v736, 0.0
      %vm750 = vcmp.ge.f32.partialorder %v738, 0.0
      %vm751 = vcmp.ge.f32.partialorder %v741, 0.0
      %vm752 = vcmp.ge.f32.partialorder %v743, 0.0
      %v753 = vmul.f32 %v726, 0.2
      %v754 = vmul.f32 %v728, 0.2
      %v755 = vmul.f32 %v731, 0.2
      %v756 = vmul.f32 %v733, 0.2
      %v757 = vmul.f32 %v736, 0.2
      %v758 = vmul.f32 %v738, 0.2
      %v759 = vmul.f32 %v741, 0.2
      %v760 = vmul.f32 %v743, 0.2
      %v761 = vsel %vm745, %v726, %v753
      %v762 = vsel %vm746, %v728, %v754
      %v763 = vsel %vm747, %v731, %v755
      %v764 = vsel %vm748, %v733, %v756
      %v765 = vsel %vm749, %v736, %v757
      %v766 = vsel %vm750, %v738, %v758
      %v767 = vsel %vm751, %v741, %v759
      %v768 = vsel %vm752, %v743, %v760
      %v769 = vpack.c.bf16 %v761, %v761
      %v770 = vpack.c.bf16 %v762, %v762
      %v771 = vpack.c.bf16 %v763, %v763
      %v772 = vpack.c.bf16 %v764, %v764
      %v773 = vpack.c.bf16 %v765, %v765
      %v774 = vpack.c.bf16 %v766, %v766
      %v775 = vpack.c.bf16 %v767, %v767
      %v776 = vpack.c.bf16 %v768, %v768
      %777 = vst [vmem:[%s192] sm:$0xf] %v769
      %778 = vst [vmem:[%s192 + $0x4] sm:$0xf] %v770
      %779 = vst [vmem:[%s192 + $0x8] sm:$0xf] %v771
      %780 = vst [vmem:[%s192 + $0xc] sm:$0xf] %v772
      %781 = vst [vmem:[%s192 + $0x10] sm:$0xf] %v773
      %782 = vst [vmem:[%s192 + $0x14] sm:$0xf] %v774
      %783 = vst [vmem:[%s192 + $0x18] sm:$0xf] %v775
      %784 = vst [vmem:[%s192 + $0x1c] sm:$0xf] %v776
      %s785 = smul.u32 8, %s19
      %p786 = scmp.lt.s32.totalorder %s18, 1
      %s787 = scalar_select %p786, %s18, 1
      %p788 = scmp.lt.s32.totalorder %s785, 7
      %s789 = scalar_select %p788, %s785, 7
      %s790 = smul.addr %s787, 8
      %s791 = sadd.s32 %s789, %s790
      %s792 = smul.addr %s791, 4
      %s793 = scalar_lea.vmem %s3, %s792
      // Predicated region
      $region33: #{discriminator_forward.7} parent=31 // pred_check
        %p794 = pneg %p114
      $region34: #{discriminator_forward.7} parent=31 // pred_check_branch
        %796 = sbr.rel (%p794) target = $region36
      $region35: #{discriminator_forward.7} parent=31 // pred_region
        %s797 = smul.u32 8, %s19
      $region36: #{discriminator_forward.7} parent=31 // pred_fallthru
        _
    $region32: #{discriminator_forward.7} parent=5 // pred_fallthru
      _
    %p798 = scmp.le.s32.totalorder 2, %s9
    // Predicated region
    $region37: #{discriminator_forward.7} parent=5 // pred_check
      %p799 = pneg %p798
    $region38: #{discriminator_forward.7} parent=5 // pred_check_branch
      %801 = sbr.rel (%p799) target = $region40
    $region39: #{discriminator_forward.7} parent=5 // pred_region
      %s802 = ssub.s32 %s9, 2
      // Predicated region
      $region41: #{discriminator_forward.7} parent=39 // pred_check
        %p803 = pneg %p120
      $region42: #{discriminator_forward.7} parent=39 // pred_check_branch
        %805 = sbr.rel (%p803) target = $region44
      $region43: #{discriminator_forward.7} parent=39 // pred_region
        %s806 = smul.u32 8, %s21
        %p807 = scmp.lt.s32.totalorder %s20, 1
        %s808 = scalar_select %p807, %s20, 1
        %p809 = scmp.lt.s32.totalorder %s806, 7
        %s810 = scalar_select %p809, %s806, 7
        %s811 = smul.addr %s808, 8
        %s812 = sadd.s32 %s810, %s811
        %s813 = smul.addr %s812, 4
        %s814 = scalar_lea.vmem %s3, %s813
      $region44: #{discriminator_forward.7} parent=39 // pred_fallthru
        _
    $region40: #{discriminator_forward.7} parent=5 // pred_fallthru
      _
  $region6: #{discriminator_forward.7} parent=0 // loop_footer
    %s13 = sadd.s32 1, %s9
  $region7: #{discriminator_forward.7} parent=0 // loop_footer_branch
    %8 = sbr.rel target = $region3
  $region8: #{discriminator_forward.7} parent=0 // loop_exit
    _

// kernel: discriminator_forward.8
$region0: #{discriminator_forward.8}
  #allocation0 [shape = 'u32[]', space=smem, size = 0x4, offset = 0x4, fixed_abs, tag = 'smem constant byte address 0x4 - core index']
  #allocation1 [shape = 'u32[72,128]{1,0:T(1,128)}', space=vmem, size = 0x9000, scoped, tag = 'internal scratch']
  %s0 = inlined_call_operand.vmem [shape: bf16[2,5,5,128], index: 0, kind: input, shape index: {}]
  %s1 = inlined_call_operand.vmem [shape: bf16[512,128], index: 1, kind: input, shape index: {}]
  %s2 = inlined_call_operand.vmem [shape: f32[1,128], index: 2, kind: input, shape index: {}]
  %s3 = inlined_call_operand.vmem [shape: bf16[2,4,4,128], index: 3, kind: output, shape index: {}]
  %s4 = sld [smem:[#allocation0]]
  $region45: #{discriminator_forward.8} parent=0
    _
  %s6 = ssub.s32 1, %s4
  %s7 = scalar_select 0, %s6, %s4
  loop: start=0, step=1, limit=4
  $region2: #{discriminator_forward.8} parent=0 // loop_pre_header
    _
  $region3: #{discriminator_forward.8} parent=0 // loop_header
    %s9 = sphi 0, %s13
    %p10 = scmp.ge.s32.totalorder %s9, 4
    %s16 = sphi 0, %s28
    %s17 = sphi 0, %s24
    %s18 = sphi 0, %s16
    %s19 = sphi 0, %s17
    %s20 = sphi 0, %s18
    %s21 = sphi 0, %s19
    %s31 = sphi 0, %s33
    %s34 = sphi 0, %s31
    %s35 = sphi 0, %s34
    %s51 = sphi 0, %s35
    %s55 = sphi 0, %s55
    %s57 = sphi 0, %s55
    %s58 = sphi 0, %s57
    %s72 = sphi 0, %s58
    %s76 = sphi 0, %s76
    %s78 = sphi 0, %s76
    %s79 = sphi 0, %s78
    %s93 = sphi 0, %s79
    %s101 = sphi 0, %s103
    %s104 = sphi 0, %s101
    %s105 = sphi 0, %s104
    %s121 = sphi 0, %s105
  $region4: #{discriminator_forward.8} parent=0 // loop_header_branch
    %12 = sbr.rel (%p10) target = $region8
  $region5: #{discriminator_forward.8} parent=0 // loop_body
    %s14 = ssub.s32 %s9, 1
    %s15 = ssub.s32 %s9, 2
    %s22 = sadd.s32 1, %s17
    %p23 = scmp.ge.s32.totalorder %s22, 1
    %s24 = scalar_select %p23, 0, %s22
    %s25 = sadd.s32 1, %s16
    %s26 = scalar_select %p23, %s25, %s16
    %p27 = scmp.ge.s32.totalorder %s26, 2
    %s28 = scalar_select %p27, 0, %s26
    %s29 = ssub.s32 %s16, %s28
    %p30 = scmp.eq.s32.totalorder %s29, 0
    %s32 = sadd.s32 %s31, 1
    %s33 = scalar_select %p30, %s31, %s32
    %p36 = pneg %p30
    %p37 = scmp.eq.s32.totalorder %s9, 1
    %p38 = por %p36, %p37
    %p39 = scmp.ne.s32.totalorder %s31, %s34
    %p40 = scmp.eq.s32.totalorder %s9, 0
    %p41 = por %p39, %p40
    %p42 = scmp.ne.s32.totalorder %s31, %s34
    %p43 = scmp.eq.s32.totalorder %s14, 1
    %p44 = por %p42, %p43
    %p45 = scmp.ne.s32.totalorder %s34, %s35
    %p46 = scmp.eq.s32.totalorder %s14, 0
    %p47 = por %p45, %p46
    %p48 = scmp.ne.s32.totalorder %s34, %s35
    %p49 = scmp.eq.s32.totalorder %s15, 1
    %p50 = por %p48, %p49
    %p52 = scmp.ne.s32.totalorder %s35, %s51
    %p53 = scmp.eq.s32.totalorder %s15, 0
    %p54 = por %p52, %p53
    %s56 = sadd.s32 %s55, 1
    %p59 = scmp.eq.s32.totalorder %s9, 1
    %p60 = scmp.ne.s32.totalorder %s55, %s57
    %p61 = scmp.eq.s32.totalorder %s9, 0
    %p62 = por %p60, %p61
    %p63 = scmp.ne.s32.totalorder %s55, %s57
    %p64 = scmp.eq.s32.totalorder %s14, 1
    %p65 = por %p63, %p64
    %p66 = scmp.ne.s32.totalorder %s57, %s58
    %p67 = scmp.eq.s32.totalorder %s14, 0
    %p68 = por %p66, %p67
    %p69 = scmp.ne.s32.totalorder %s57, %s58
    %p70 = scmp.eq.s32.totalorder %s15, 1
    %p71 = por %p69, %p70
    %p73 = scmp.ne.s32.totalorder %s58, %s72
    %p74 = scmp.eq.s32.totalorder %s15, 0
    %p75 = por %p73, %p74
    %s77 = sadd.s32 %s76, 1
    %p80 = scmp.eq.s32.totalorder %s9, 1
    %p81 = scmp.ne.s32.totalorder %s76, %s78
    %p82 = scmp.eq.s32.totalorder %s9, 0
    %p83 = por %p81, %p82
    %p84 = scmp.ne.s32.totalorder %s76, %s78
    %p85 = scmp.eq.s32.totalorder %s14, 1
    %p86 = por %p84, %p85
    %p87 = scmp.ne.s32.totalorder %s78, %s79
    %p88 = scmp.eq.s32.totalorder %s14, 0
    %p89 = por %p87, %p88
    %p90 = scmp.ne.s32.totalorder %s78, %s79
    %p91 = scmp.eq.s32.totalorder %s15, 1
    %p92 = por %p90, %p91
    %p94 = scmp.ne.s32.totalorder %s79, %s93
    %p95 = scmp.eq.s32.totalorder %s15, 0
    %p96 = por %p94, %p95
    %s97 = ssub.s32 %s16, %s28
    %s98 = ssub.s32 %s17, %s24
    %s99 = sor.u32 %s97, %s98
    %p100 = scmp.eq.s32.totalorder %s99, 0
    %s102 = sadd.s32 %s101, 1
    %s103 = scalar_select %p100, %s101, %s102
    %p106 = pneg %p100
    %p107 = scmp.eq.s32.totalorder %s9, 1
    %p108 = por %p106, %p107
    %p109 = scmp.ne.s32.totalorder %s101, %s104
    %p110 = scmp.eq.s32.totalorder %s9, 0
    %p111 = por %p109, %p110
    %p112 = scmp.ne.s32.totalorder %s101, %s104
    %p113 = scmp.eq.s32.totalorder %s14, 1
    %p114 = por %p112, %p113
    %p115 = scmp.ne.s32.totalorder %s104, %s105
    %p116 = scmp.eq.s32.totalorder %s14, 0
    %p117 = por %p115, %p116
    %p118 = scmp.ne.s32.totalorder %s104, %s105
    %p119 = scmp.eq.s32.totalorder %s15, 1
    %p120 = por %p118, %p119
    %p122 = scmp.ne.s32.totalorder %s105, %s121
    %p123 = scmp.eq.s32.totalorder %s15, 0
    %p124 = por %p122, %p123
    %p125 = scmp.le.s32.totalorder 1, %s9
    %p126 = scmp.lt.s32.totalorder %s9, 3
    %p127 = pnand %p125, %p126
    %p128 = pneg %p127
    // Predicated region
    $region9: #{discriminator_forward.8} parent=5 // pred_check
      _
    $region10: #{discriminator_forward.8} parent=5 // pred_check_branch
      %130 = sbr.rel (%p127) target = $region12
    $region11: #{discriminator_forward.8} parent=5 // pred_region
      %s131 = ssub.s32 %s9, 1
      // Predicated region
      $region13: #{discriminator_forward.8} parent=11 // pred_check
        %p132 = pneg %p68
      $region14: #{discriminator_forward.8} parent=11 // pred_check_branch
        %134 = sbr.rel (%p132) target = $region16
      $region15: #{discriminator_forward.8} parent=11 // pred_region
        _
      $region16: #{discriminator_forward.8} parent=11 // pred_fallthru
        _
      // Predicated region
      $region17: #{discriminator_forward.8} parent=11 // pred_check
        %p135 = pneg %p89
      $region18: #{discriminator_forward.8} parent=11 // pred_check_branch
        %137 = sbr.rel (%p135) target = $region20
      $region19: #{discriminator_forward.8} parent=11 // pred_region
        _
      $region20: #{discriminator_forward.8} parent=11 // pred_fallthru
        _
    $region12: #{discriminator_forward.8} parent=5 // pred_fallthru
      _
    %p138 = scmp.lt.s32.totalorder %s9, 2
    // Predicated region
    $region21: #{discriminator_forward.8} parent=5 // pred_check
      %p139 = pneg %p138
    $region22: #{discriminator_forward.8} parent=5 // pred_check_branch
      %141 = sbr.rel (%p139) target = $region24
    $region23: #{discriminator_forward.8} parent=5 // pred_region
      // Predicated region
      $region25: #{discriminator_forward.8} parent=23 // pred_check
        %p142 = pneg %p41
      $region26: #{discriminator_forward.8} parent=23 // pred_check_branch
        %144 = sbr.rel (%p142) target = $region28
      $region27: #{discriminator_forward.8} parent=23 // pred_region
        %p145 = scmp.lt.s32.totalorder %s16, 1
        %s146 = scalar_select %p145, %s16, 1
        %s147 = smul.addr %s146, 5
        %s148 = smul.addr %s147, 4
        %s149 = scalar_lea.vmem %s0, %s148
      $region28: #{discriminator_forward.8} parent=23 // pred_fallthru
        _
    $region24: #{discriminator_forward.8} parent=5 // pred_fallthru
      _
    %p150 = scmp.le.s32.totalorder 1, %s9
    %p151 = scmp.lt.s32.totalorder %s9, 3
    %p152 = pnand %p150, %p151
    %p153 = pneg %p152
    // Predicated region
    $region29: #{discriminator_forward.8} parent=5 // pred_check
      _
    $region30: #{discriminator_forward.8} parent=5 // pred_check_branch
      %155 = sbr.rel (%p152) target = $region32
    $region31: #{discriminator_forward.8} parent=5 // pred_region
      %s156 = ssub.s32 %s9, 1
      %p157 = scmp.lt.s32.totalorder %s18, 1
      %s158 = scalar_select %p157, %s18, 1
      %s159 = smul.addr %s158, 5
      %s160 = smul.addr %s159, 4
      %s161 = scalar_lea.vmem %s0, %s160
      %p162 = pneg %p47
      %p163 = pneg %p44
      %p164 = pneg %p68
      %p165 = pneg %p65
      %p166 = pneg %p89
      %p167 = pneg %p86
      %p168 = pneg %p117
      %p169 = pneg %p114
      %s170 = smul.u32 4, %s19
      %p171 = scmp.lt.s32.totalorder %s18, 1
      %s172 = scalar_select %p171, %s18, 1
      %p173 = scmp.lt.s32.totalorder %s170, 3
      %s174 = scalar_select %p173, %s170, 3
      %s175 = smul.addr %s172, 4
      %s176 = sadd.s32 %s174, %s175
      %s177 = smul.addr %s176, 2
      %s178 = scalar_lea.vmem %s3, %s177
      %p179 = scmp.lt.s32.totalorder %s18, 1
      %s180 = scalar_select %p179, %s18, 1
      %s181 = smul.addr %s180, 5
      %s182 = smul.addr %s181, 4
      %s183 = scalar_lea.vmem %s0, %s182
      %s184 = smul.u32 4, %s19
      %p185 = scmp.lt.s32.totalorder %s18, 1
      %s186 = scalar_select %p185, %s18, 1
      %p187 = scmp.lt.s32.totalorder %s184, 3
      %s188 = scalar_select %p187, %s184, 3
      %s189 = smul.addr %s186, 4
      %s190 = sadd.s32 %s188, %s189
      %s191 = smul.addr %s190, 2
      %s192 = scalar_lea.vmem %s3, %s191
      %s193 = smul.u32 4, %s19
      %s194 = smul.u32 %s19, 4
      %s195 = smul.addr %s194, 4
      %s196 = scalar_lea.vmem %s183, %s195
      %v197 = vld [vmem:[%s196] sm:$0x3]
      %v198 = vld [vmem:[%s196 + $0x4] sm:$0x3]
      %v199 = vld [vmem:[%s196 + $0x8] sm:$0x3]
      %v200 = vld [vmem:[%s196 + $0xc] sm:$0x3]
      %v201 = vld [vmem:[%s196] sm:$0x7]
      %v202 = vld [vmem:[%s196 + $0x4] sm:$0x7]
      %v203 = vld [vmem:[%s196 + $0x8] sm:$0x7]
      %v204 = vld [vmem:[%s196 + $0xc] sm:$0x7]
      %s205 = sadd.s32 %s194, 1
      %s206 = smul.addr %s205, 4
      %s207 = scalar_lea.vmem %s183, %s206
      %v208 = vld [vmem:[%s207] sm:$0x3]
      %v209 = vld [vmem:[%s207 + $0x4] sm:$0x3]
      %v210 = vld [vmem:[%s207 + $0x8] sm:$0x3]
      %v211 = vld [vmem:[%s207 + $0xc] sm:$0x3]
      %v212 = vld [vmem:[%s207] sm:$0x7]
      %v213 = vld [vmem:[%s207 + $0x4] sm:$0x7]
      %v214 = vld [vmem:[%s207 + $0x8] sm:$0x7]
      %v215 = vld [vmem:[%s207 + $0xc] sm:$0x7]
      %v220 = vunpack.c.l.b16 %v201
      %v221 = vunpack.c.l.b16 %v202
      %v222 = vunpack.c.l.b16 %v203
      %v223 = vunpack.c.l.b16 %v204
      %v224 = vpack.c.b16 %v220, %v220
      %v225 = vpack.c.b16 %v221, %v221
      %v226 = vpack.c.b16 %v222, %v222
      %v227 = vpack.c.b16 %v223, %v223
      %v229 = vshrl.u32 %v224, 16
      %v231 = vshll.u32 %v224, 16
      %v233 = vrot.slane %v231, 1
      %v234 = vor.u32 %v229, %v233
      %v236 = vshrl.u32 %v225, 16
      %v238 = vshll.u32 %v225, 16
      %v240 = vrot.slane %v238, 1
      %v241 = vor.u32 %v236, %v240
      %v243 = vshrl.u32 %v226, 16
      %v245 = vshll.u32 %v226, 16
      %v247 = vrot.slane %v245, 1
      %v248 = vor.u32 %v243, %v247
      %v250 = vshrl.u32 %v227, 16
      %v252 = vshll.u32 %v227, 16
      %v254 = vrot.slane %v252, 1
      %v255 = vor.u32 %v250, %v254
      %v260 = vunpack.c.l.b16 %v212
      %v261 = vunpack.c.l.b16 %v213
      %v262 = vunpack.c.l.b16 %v214
      %v263 = vunpack.c.l.b16 %v215
      %v264 = vpack.c.b16 %v260, %v260
      %v265 = vpack.c.b16 %v261, %v261
      %v266 = vpack.c.b16 %v262, %v262
      %v267 = vpack.c.b16 %v263, %v263
      %v269 = vshrl.u32 %v264, 16
      %v271 = vshll.u32 %v264, 16
      %v273 = vrot.slane %v271, 1
      %v274 = vor.u32 %v269, %v273
      %v276 = vshrl.u32 %v265, 16
      %v278 = vshll.u32 %v265, 16
      %v280 = vrot.slane %v278, 1
      %v281 = vor.u32 %v276, %v280
      %v283 = vshrl.u32 %v266, 16
      %v285 = vshll.u32 %v266, 16
      %v287 = vrot.slane %v285, 1
      %v288 = vor.u32 %v283, %v287
      %v290 = vshrl.u32 %v267, 16
      %v292 = vshll.u32 %v267, 16
      %v294 = vrot.slane %v292, 1
      %v295 = vor.u32 %v290, %v294
      %v300 = vrot.slane %v234, 6
      %v301 = vrot.slane %v208, 4
      %v302 = vrot.slane %v274, 2
      %v303 = vrot.slane %v241, 6
      %v304 = vrot.slane %v209, 4
      %v305 = vrot.slane %v281, 2
      %v306 = vrot.slane %v248, 6
      %v307 = vrot.slane %v210, 4
      %v308 = vrot.slane %v288, 2
      %v309 = vrot.slane %v255, 6
      %v310 = vrot.slane %v211, 4
      %v311 = vrot.slane %v295, 2
      %vm312 = vcmask 1041408
      %v315 = vsel %vm312, %v197, %v300
      %vm316 = vcmask 1045508
      %v319 = vsel %vm316, %v301, %v302
      %vm320 = vcmask 1043456
      %v321 = vsel %vm320, %v315, %v319
      %v324 = vsel %vm312, %v198, %v303
      %v327 = vsel %vm316, %v304, %v305
      %v328 = vsel %vm320, %v324, %v327
      %v331 = vsel %vm312, %v199, %v306
      %v334 = vsel %vm316, %v307, %v308
      %v335 = vsel %vm320, %v331, %v334
      %v338 = vsel %vm312, %v200, %v309
      %v341 = vsel %vm316, %v310, %v311
      %v342 = vsel %vm320, %v338, %v341
      %v343 = vld [vmem:[%s1] sm:$0xf]
      %v344 = vld [vmem:[%s1 + $0x4] sm:$0xf]
      %v345 = vld [vmem:[%s1 + $0x8] sm:$0xf]
      %v346 = vld [vmem:[%s1 + $0xc] sm:$0xf]
      %v347 = vld [vmem:[%s1 + $0x10] sm:$0xf]
      %v348 = vld [vmem:[%s1 + $0x14] sm:$0xf]
      %v349 = vld [vmem:[%s1 + $0x18] sm:$0xf]
      %v350 = vld [vmem:[%s1 + $0x1c] sm:$0xf]
      %v351 = vld [vmem:[%s1 + $0x20] sm:$0xf]
      %v352 = vld [vmem:[%s1 + $0x24] sm:$0xf]
      %v353 = vld [vmem:[%s1 + $0x28] sm:$0xf]
      %v354 = vld [vmem:[%s1 + $0x2c] sm:$0xf]
      %v355 = vld [vmem:[%s1 + $0x30] sm:$0xf]
      %v356 = vld [vmem:[%s1 + $0x34] sm:$0xf]
      %v357 = vld [vmem:[%s1 + $0x38] sm:$0xf]
      %v358 = vld [vmem:[%s1 + $0x3c] sm:$0xf]
      %v359 = vld [vmem:[%s1 + $0x40] sm:$0xf]
      %v360 = vld [vmem:[%s1 + $0x44] sm:$0xf]
      %v361 = vld [vmem:[%s1 + $0x48] sm:$0xf]
      %v362 = vld [vmem:[%s1 + $0x4c] sm:$0xf]
      %v363 = vld [vmem:[%s1 + $0x50] sm:$0xf]
      %v364 = vld [vmem:[%s1 + $0x54] sm:$0xf]
      %v365 = vld [vmem:[%s1 + $0x58] sm:$0xf]
      %v366 = vld [vmem:[%s1 + $0x5c] sm:$0xf]
      %v367 = vld [vmem:[%s1 + $0x60] sm:$0xf]
      %v368 = vld [vmem:[%s1 + $0x64] sm:$0xf]
      %v369 = vld [vmem:[%s1 + $0x68] sm:$0xf]
      %v370 = vld [vmem:[%s1 + $0x6c] sm:$0xf]
      %v371 = vld [vmem:[%s1 + $0x70] sm:$0xf]
      %v372 = vld [vmem:[%s1 + $0x74] sm:$0xf]
      %v373 = vld [vmem:[%s1 + $0x78] sm:$0xf]
      %v374 = vld [vmem:[%s1 + $0x7c] sm:$0xf]
      %v375 = vld [vmem:[%s1 + $0x80] sm:$0xf]
      %v376 = vld [vmem:[%s1 + $0x84] sm:$0xf]
      %v377 = vld [vmem:[%s1 + $0x88] sm:$0xf]
      %v378 = vld [vmem:[%s1 + $0x8c] sm:$0xf]
      %v379 = vld [vmem:[%s1 + $0x90] sm:$0xf]
      %v380 = vld [vmem:[%s1 + $0x94] sm:$0xf]
      %v381 = vld [vmem:[%s1 + $0x98] sm:$0xf]
      %v382 = vld [vmem:[%s1 + $0x9c] sm:$0xf]
      %v383 = vld [vmem:[%s1 + $0xa0] sm:$0xf]
      %v384 = vld [vmem:[%s1 + $0xa4] sm:$0xf]
      %v385 = vld [vmem:[%s1 + $0xa8] sm:$0xf]
      %v386 = vld [vmem:[%s1 + $0xac] sm:$0xf]
      %v387 = vld [vmem:[%s1 + $0xb0] sm:$0xf]
      %v388 = vld [vmem:[%s1 + $0xb4] sm:$0xf]
      %v389 = vld [vmem:[%s1 + $0xb8] sm:$0xf]
      %v390 = vld [vmem:[%s1 + $0xbc] sm:$0xf]
      %v391 = vld [vmem:[%s1 + $0xc0] sm:$0xf]
      %v392 = vld [vmem:[%s1 + $0xc4] sm:$0xf]
      %v393 = vld [vmem:[%s1 + $0xc8] sm:$0xf]
      %v394 = vld [vmem:[%s1 + $0xcc] sm:$0xf]
      %v395 = vld [vmem:[%s1 + $0xd0] sm:$0xf]
      %v396 = vld [vmem:[%s1 + $0xd4] sm:$0xf]
      %v397 = vld [vmem:[%s1 + $0xd8] sm:$0xf]
      %v398 = vld [vmem:[%s1 + $0xdc] sm:$0xf]
      %v399 = vld [vmem:[%s1 + $0xe0] sm:$0xf]
      %v400 = vld [vmem:[%s1 + $0xe4] sm:$0xf]
      %v401 = vld [vmem:[%s1 + $0xe8] sm:$0xf]
      %v402 = vld [vmem:[%s1 + $0xec] sm:$0xf]
      %v403 = vld [vmem:[%s1 + $0xf0] sm:$0xf]
      %v404 = vld [vmem:[%s1 + $0xf4] sm:$0xf]
      %v405 = vld [vmem:[%s1 + $0xf8] sm:$0xf]
      %v406 = vld [vmem:[%s1 + $0xfc] sm:$0xf]
      %v407 = vld [vmem:[%s2] sm:$0x1]
      %v409 = vperm.slane %v407, 0
      %411 = vst [vmem:[#allocation1] ss:$4 sm:$0xff] %v321
      %s412 = scalar_lea.vmem [#allocation1], 1
      %413 = vst [vmem:[%s412] ss:$4 sm:$0xff] %v328
      %s414 = scalar_lea.vmem [#allocation1], 2
      %415 = vst [vmem:[%s414] ss:$4 sm:$0xff] %v335
      %s416 = scalar_lea.vmem [#allocation1], 3
      %417 = vst [vmem:[%s416] ss:$4 sm:$0xff] %v342
      %v418 = vld.sshfl [vmem:[#allocation1] sm:$0xff pattern:$0x73625140]
      %v419 = vld.sshfl [vmem:[#allocation1 + $0x8] sm:$0xff pattern:$0x73625140]
      %v420 = vld.sshfl [vmem:[#allocation1 + $0x10] sm:$0xff pattern:$0x73625140]
      %v421 = vld.sshfl [vmem:[#allocation1 + $0x18] sm:$0xff pattern:$0x73625140]
      %v490 = vunpack.c.l.b16 %v343
      %v491 = vunpack.c.l.b16 %v344
      %v492 = vunpack.c.l.b16 %v345
      %v493 = vunpack.c.l.b16 %v346
      %v494 = vunpack.c.l.b16 %v347
      %v495 = vunpack.c.l.b16 %v348
      %v496 = vunpack.c.l.b16 %v349
      %v497 = vunpack.c.l.b16 %v350
      %v498 = vunpack.c.l.b16 %v351
      %v499 = vunpack.c.l.b16 %v352
      %v500 = vunpack.c.l.b16 %v353
      %v501 = vunpack.c.l.b16 %v354
      %v502 = vunpack.c.l.b16 %v355
      %v503 = vunpack.c.l.b16 %v356
      %v504 = vunpack.c.l.b16 %v357
      %v505 = vunpack.c.l.b16 %v358
      %v506 = vunpack.c.l.b16 %v359
      %v507 = vunpack.c.l.b16 %v360
      %v508 = vunpack.c.l.b16 %v361
      %v509 = vunpack.c.l.b16 %v362
      %v510 = vunpack.c.l.b16 %v363
      %v511 = vunpack.c.l.b16 %v364
      %v512 = vunpack.c.l.b16 %v365
      %v513 = vunpack.c.l.b16 %v366
      %v514 = vunpack.c.l.b16 %v367
      %v515 = vunpack.c.l.b16 %v368
      %v516 = vunpack.c.l.b16 %v369
      %v517 = vunpack.c.l.b16 %v370
      %v518 = vunpack.c.l.b16 %v371
      %v519 = vunpack.c.l.b16 %v372
      %v520 = vunpack.c.l.b16 %v373
      %v521 = vunpack.c.l.b16 %v374
      %v522 = vunpack.c.l.b16 %v375
      %v523 = vunpack.c.l.b16 %v376
      %v524 = vunpack.c.l.b16 %v377
      %v525 = vunpack.c.l.b16 %v378
      %v526 = vunpack.c.l.b16 %v379
      %v527 = vunpack.c.l.b16 %v380
      %v528 = vunpack.c.l.b16 %v381
      %v529 = vunpack.c.l.b16 %v382
      %v530 = vunpack.c.l.b16 %v383
      %v531 = vunpack.c.l.b16 %v384
      %v532 = vunpack.c.l.b16 %v385
      %v533 = vunpack.c.l.b16 %v386
      %v534 = vunpack.c.l.b16 %v387
      %v535 = vunpack.c.l.b16 %v388
      %v536 = vunpack.c.l.b16 %v389
      %v537 = vunpack.c.l.b16 %v390
      %v538 = vunpack.c.l.b16 %v391
      %v539 = vunpack.c.l.b16 %v392
      %v540 = vunpack.c.l.b16 %v393
      %v541 = vunpack.c.l.b16 %v394
      %v542 = vunpack.c.l.b16 %v395
      %v543 = vunpack.c.l.b16 %v396
      %v544 = vunpack.c.l.b16 %v397
      %v545 = vunpack.c.l.b16 %v398
      %v546 = vunpack.c.l.b16 %v399
      %v547 = vunpack.c.l.b16 %v400
      %v548 = vunpack.c.l.b16 %v401
      %v549 = vunpack.c.l.b16 %v402
      %v550 = vunpack.c.l.b16 %v403
      %v551 = vunpack.c.l.b16 %v404
      %v552 = vunpack.c.l.b16 %v405
      %v553 = vunpack.c.l.b16 %v406
      %v554 = vpack.c.b16 %v491, %v490
      %v555 = vpack.c.b16 %v493, %v492
      %v556 = vpack.c.b16 %v495, %v494
      %v557 = vpack.c.b16 %v497, %v496
      %v558 = vpack.c.b16 %v499, %v498
      %v559 = vpack.c.b16 %v501, %v500
      %v560 = vpack.c.b16 %v503, %v502
      %v561 = vpack.c.b16 %v505, %v504
      %v562 = vpack.c.b16 %v507, %v506
      %v563 = vpack.c.b16 %v509, %v508
      %v564 = vpack.c.b16 %v511, %v510
      %v565 = vpack.c.b16 %v513, %v512
      %v566 = vpack.c.b16 %v515, %v514
      %v567 = vpack.c.b16 %v517, %v516
      %v568 = vpack.c.b16 %v519, %v518
      %v569 = vpack.c.b16 %v521, %v520
      %v570 = vpack.c.b16 %v523, %v522
      %v571 = vpack.c.b16 %v525, %v524
      %v572 = vpack.c.b16 %v527, %v526
      %v573 = vpack.c.b16 %v529, %v528
      %v574 = vpack.c.b16 %v531, %v530
      %v575 = vpack.c.b16 %v533, %v532
      %v576 = vpack.c.b16 %v535, %v534
      %v577 = vpack.c.b16 %v537, %v536
      %v578 = vpack.c.b16 %v539, %v538
      %v579 = vpack.c.b16 %v541, %v540
      %v580 = vpack.c.b16 %v543, %v542
      %v581 = vpack.c.b16 %v545, %v544
      %v582 = vpack.c.b16 %v547, %v546
      %v583 = vpack.c.b16 %v549, %v548
      %v584 = vpack.c.b16 %v551, %v550
      %v585 = vpack.c.b16 %v553, %v552
      %618 = vmatpush.bf16.msra.mxu0 %v561
      %619 = vmatpush.bf16.msra.mxu0 %v560
      %620 = vmatpush.bf16.msra.mxu0 %v559
      %621 = vmatpush.bf16.msra.mxu0 %v558
      %622 = vmatpush.bf16.msra.mxu0 %v557
      %623 = vmatpush.bf16.msra.mxu0 %v556
      %624 = vmatpush.bf16.msra.mxu0 %v555
      %625 = vmatpush.bf16.msra.mxu0 %v554
      %626 = vmatmul.bf16.gmra.mxu0 %v418
      %v627 = vpop.f32.mrf.mxu0
      %v628 = vadd.f32 %v409, %v627
      %v629 = vpop.f32.mrf.mxu0
      %v630 = vadd.f32 %v409, %v629
      %631 = vdwg.mxu0
      %632 = vmatpush.bf16.msra.mxu0 %v569
      %633 = vmatpush.bf16.msra.mxu0 %v568
      %634 = vmatpush.bf16.msra.mxu0 %v567
      %635 = vmatpush.bf16.msra.mxu0 %v566
      %636 = vmatpush.bf16.msra.mxu0 %v565
      %637 = vmatpush.bf16.msra.mxu0 %v564
      %638 = vmatpush.bf16.msra.mxu0 %v563
      %639 = vmatpush.bf16.msra.mxu0 %v562
      %640 = vmatmul.bf16.gmra.mxu0 %v419
      %v641 = vpop.f32.mrf.mxu0
      %v642 = vadd.f32 %v628, %v641
      %v643 = vpop.f32.mrf.mxu0
      %v644 = vadd.f32 %v630, %v643
      %645 = vdwg.mxu0
      %646 = vmatpush.bf16.msra.mxu0 %v577
      %647 = vmatpush.bf16.msra.mxu0 %v576
      %648 = vmatpush.bf16.msra.mxu0 %v575
      %649 = vmatpush.bf16.msra.mxu0 %v574
      %650 = vmatpush.bf16.msra.mxu0 %v573
      %651 = vmatpush.bf16.msra.mxu0 %v572
      %652 = vmatpush.bf16.msra.mxu0 %v571
      %653 = vmatpush.bf16.msra.mxu0 %v570
      %654 = vmatmul.bf16.gmra.mxu0 %v420
      %v655 = vpop.f32.mrf.mxu0
      %v656 = vadd.f32 %v642, %v655
      %v657 = vpop.f32.mrf.mxu0
      %v658 = vadd.f32 %v644, %v657
      %659 = vdwg.mxu0
      %660 = vmatpush.bf16.msra.mxu0 %v585
      %661 = vmatpush.bf16.msra.mxu0 %v584
      %662 = vmatpush.bf16.msra.mxu0 %v583
      %663 = vmatpush.bf16.msra.mxu0 %v582
      %664 = vmatpush.bf16.msra.mxu0 %v581
      %665 = vmatpush.bf16.msra.mxu0 %v580
      %666 = vmatpush.bf16.msra.mxu0 %v579
      %667 = vmatpush.bf16.msra.mxu0 %v578
      %668 = vmatmul.bf16.gmra.mxu0 %v421
      %v669 = vpop.f32.mrf.mxu0
      %v670 = vadd.f32 %v656, %v669
      %v671 = vpop.f32.mrf.mxu0
      %v672 = vadd.f32 %v658, %v671
      %673 = vdwg.mxu0
      %vm674 = vcmp.ge.f32.partialorder %v670, 0.0
      %vm675 = vcmp.ge.f32.partialorder %v672, 0.0
      %v676 = vmul.f32 %v670, 0.2
      %v677 = vmul.f32 %v672, 0.2
      %v678 = vsel %vm674, %v670, %v676
      %v679 = vsel %vm675, %v672, %v677
      %v682 = vrot.slane %v678, 4
      %v683 = vrot.slane %v679, 4
      %v686 = vpack.c.bf16 %v678, %v678
      %v687 = vpack.c.bf16 %v682, %v682
      %v688 = vpack.c.bf16 %v679, %v679
      %v689 = vpack.c.bf16 %v683, %v683
      %690 = vst [vmem:[%s192] sm:$0x3] %v686
      %691 = vst [vmem:[%s192 + $0x2] sm:$0x3] %v687
      %692 = vst [vmem:[%s192 + $0x4] sm:$0x3] %v688
      %693 = vst [vmem:[%s192 + $0x6] sm:$0x3] %v689
      %s694 = smul.u32 4, %s19
      %p695 = scmp.lt.s32.totalorder %s18, 1
      %s696 = scalar_select %p695, %s18, 1
      %p697 = scmp.lt.s32.totalorder %s694, 3
      %s698 = scalar_select %p697, %s694, 3
      %s699 = smul.addr %s696, 4
      %s700 = sadd.s32 %s698, %s699
      %s701 = smul.addr %s700, 2
      %s702 = scalar_lea.vmem %s3, %s701
      // Predicated region
      $region33: #{discriminator_forward.8} parent=31 // pred_check
        %p703 = pneg %p114
      $region34: #{discriminator_forward.8} parent=31 // pred_check_branch
        %705 = sbr.rel (%p703) target = $region36
      $region35: #{discriminator_forward.8} parent=31 // pred_region
        %s706 = smul.u32 4, %s19
      $region36: #{discriminator_forward.8} parent=31 // pred_fallthru
        _
    $region32: #{discriminator_forward.8} parent=5 // pred_fallthru
      _
    %p707 = scmp.le.s32.totalorder 2, %s9
    // Predicated region
    $region37: #{discriminator_forward.8} parent=5 // pred_check
      %p708 = pneg %p707
    $region38: #{discriminator_forward.8} parent=5 // pred_check_branch
      %710 = sbr.rel (%p708) target = $region40
    $region39: #{discriminator_forward.8} parent=5 // pred_region
      %s711 = ssub.s32 %s9, 2
      // Predicated region
      $region41: #{discriminator_forward.8} parent=39 // pred_check
        %p712 = pneg %p120
      $region42: #{discriminator_forward.8} parent=39 // pred_check_branch
        %714 = sbr.rel (%p712) target = $region44
      $region43: #{discriminator_forward.8} parent=39 // pred_region
        %s715 = smul.u32 4, %s21
        %p716 = scmp.lt.s32.totalorder %s20, 1
        %s717 = scalar_select %p716, %s20, 1
        %p718 = scmp.lt.s32.totalorder %s715, 3
        %s719 = scalar_select %p718, %s715, 3
        %s720 = smul.addr %s717, 4
        %s721 = sadd.s32 %s719, %s720
        %s722 = smul.addr %s721, 2
        %s723 = scalar_lea.vmem %s3, %s722
      $region44: #{discriminator_forward.8} parent=39 // pred_fallthru
        _
    $region40: #{discriminator_forward.8} parent=5 // pred_fallthru
      _
  $region6: #{discriminator_forward.8} parent=0 // loop_footer
    %s13 = sadd.s32 1, %s9
  $region7: #{discriminator_forward.8} parent=0 // loop_footer_branch
    %8 = sbr.rel target = $region3
  $region8: #{discriminator_forward.8} parent=0 // loop_exit
    _

// kernel: discriminator_forward.9
$region0: #{discriminator_forward.9}
  #allocation0 [shape = 'u32[]', space=smem, size = 0x4, offset = 0x4, fixed_abs, tag = 'smem constant byte address 0x4 - core index']
  #allocation1 [shape = 'u32[72,128]{1,0:T(1,128)}', space=vmem, size = 0x9000, scoped, tag = 'internal scratch']
  %s0 = inlined_call_operand.vmem [shape: bf16[2,4,4,64], index: 0, kind: input, shape index: {}]
  %s1 = inlined_call_operand.vmem [shape: bf16[1024,128], index: 1, kind: input, shape index: {}]
  %s2 = inlined_call_operand.vmem [shape: f32[1,128], index: 2, kind: input, shape index: {}]
  %s3 = inlined_call_operand.vmem [shape: f32[2,1,1,128], index: 3, kind: output, shape index: {}]
  %s4 = sld [smem:[#allocation0]]
  $region45: #{discriminator_forward.9} parent=0
    _
  %s6 = ssub.s32 1, %s4
  %s7 = scalar_select 0, %s6, %s4
  loop: start=0, step=1, limit=4
  $region2: #{discriminator_forward.9} parent=0 // loop_pre_header
    _
  $region3: #{discriminator_forward.9} parent=0 // loop_header
    %s9 = sphi 0, %s13
    %p10 = scmp.ge.s32.totalorder %s9, 4
    %s16 = sphi 0, %s28
    %s17 = sphi 0, %s24
    %s18 = sphi 0, %s16
    %s19 = sphi 0, %s17
    %s20 = sphi 0, %s18
    %s21 = sphi 0, %s19
    %s31 = sphi 0, %s33
    %s34 = sphi 0, %s31
    %s35 = sphi 0, %s34
    %s51 = sphi 0, %s35
    %s55 = sphi 0, %s55
    %s57 = sphi 0, %s55
    %s58 = sphi 0, %s57
    %s72 = sphi 0, %s58
    %s76 = sphi 0, %s76
    %s78 = sphi 0, %s76
    %s79 = sphi 0, %s78
    %s93 = sphi 0, %s79
    %s101 = sphi 0, %s103
    %s104 = sphi 0, %s101
    %s105 = sphi 0, %s104
    %s121 = sphi 0, %s105
  $region4: #{discriminator_forward.9} parent=0 // loop_header_branch
    %12 = sbr.rel (%p10) target = $region8
  $region5: #{discriminator_forward.9} parent=0 // loop_body
    %s14 = ssub.s32 %s9, 1
    %s15 = ssub.s32 %s9, 2
    %s22 = sadd.s32 1, %s17
    %p23 = scmp.ge.s32.totalorder %s22, 1
    %s24 = scalar_select %p23, 0, %s22
    %s25 = sadd.s32 1, %s16
    %s26 = scalar_select %p23, %s25, %s16
    %p27 = scmp.ge.s32.totalorder %s26, 2
    %s28 = scalar_select %p27, 0, %s26
    %s29 = ssub.s32 %s16, %s28
    %p30 = scmp.eq.s32.totalorder %s29, 0
    %s32 = sadd.s32 %s31, 1
    %s33 = scalar_select %p30, %s31, %s32
    %p36 = pneg %p30
    %p37 = scmp.eq.s32.totalorder %s9, 1
    %p38 = por %p36, %p37
    %p39 = scmp.ne.s32.totalorder %s31, %s34
    %p40 = scmp.eq.s32.totalorder %s9, 0
    %p41 = por %p39, %p40
    %p42 = scmp.ne.s32.totalorder %s31, %s34
    %p43 = scmp.eq.s32.totalorder %s14, 1
    %p44 = por %p42, %p43
    %p45 = scmp.ne.s32.totalorder %s34, %s35
    %p46 = scmp.eq.s32.totalorder %s14, 0
    %p47 = por %p45, %p46
    %p48 = scmp.ne.s32.totalorder %s34, %s35
    %p49 = scmp.eq.s32.totalorder %s15, 1
    %p50 = por %p48, %p49
    %p52 = scmp.ne.s32.totalorder %s35, %s51
    %p53 = scmp.eq.s32.totalorder %s15, 0
    %p54 = por %p52, %p53
    %s56 = sadd.s32 %s55, 1
    %p59 = scmp.eq.s32.totalorder %s9, 1
    %p60 = scmp.ne.s32.totalorder %s55, %s57
    %p61 = scmp.eq.s32.totalorder %s9, 0
    %p62 = por %p60, %p61
    %p63 = scmp.ne.s32.totalorder %s55, %s57
    %p64 = scmp.eq.s32.totalorder %s14, 1
    %p65 = por %p63, %p64
    %p66 = scmp.ne.s32.totalorder %s57, %s58
    %p67 = scmp.eq.s32.totalorder %s14, 0
    %p68 = por %p66, %p67
    %p69 = scmp.ne.s32.totalorder %s57, %s58
    %p70 = scmp.eq.s32.totalorder %s15, 1
    %p71 = por %p69, %p70
    %p73 = scmp.ne.s32.totalorder %s58, %s72
    %p74 = scmp.eq.s32.totalorder %s15, 0
    %p75 = por %p73, %p74
    %s77 = sadd.s32 %s76, 1
    %p80 = scmp.eq.s32.totalorder %s9, 1
    %p81 = scmp.ne.s32.totalorder %s76, %s78
    %p82 = scmp.eq.s32.totalorder %s9, 0
    %p83 = por %p81, %p82
    %p84 = scmp.ne.s32.totalorder %s76, %s78
    %p85 = scmp.eq.s32.totalorder %s14, 1
    %p86 = por %p84, %p85
    %p87 = scmp.ne.s32.totalorder %s78, %s79
    %p88 = scmp.eq.s32.totalorder %s14, 0
    %p89 = por %p87, %p88
    %p90 = scmp.ne.s32.totalorder %s78, %s79
    %p91 = scmp.eq.s32.totalorder %s15, 1
    %p92 = por %p90, %p91
    %p94 = scmp.ne.s32.totalorder %s79, %s93
    %p95 = scmp.eq.s32.totalorder %s15, 0
    %p96 = por %p94, %p95
    %s97 = ssub.s32 %s16, %s28
    %s98 = ssub.s32 %s17, %s24
    %s99 = sor.u32 %s97, %s98
    %p100 = scmp.eq.s32.totalorder %s99, 0
    %s102 = sadd.s32 %s101, 1
    %s103 = scalar_select %p100, %s101, %s102
    %p106 = pneg %p100
    %p107 = scmp.eq.s32.totalorder %s9, 1
    %p108 = por %p106, %p107
    %p109 = scmp.ne.s32.totalorder %s101, %s104
    %p110 = scmp.eq.s32.totalorder %s9, 0
    %p111 = por %p109, %p110
    %p112 = scmp.ne.s32.totalorder %s101, %s104
    %p113 = scmp.eq.s32.totalorder %s14, 1
    %p114 = por %p112, %p113
    %p115 = scmp.ne.s32.totalorder %s104, %s105
    %p116 = scmp.eq.s32.totalorder %s14, 0
    %p117 = por %p115, %p116
    %p118 = scmp.ne.s32.totalorder %s104, %s105
    %p119 = scmp.eq.s32.totalorder %s15, 1
    %p120 = por %p118, %p119
    %p122 = scmp.ne.s32.totalorder %s105, %s121
    %p123 = scmp.eq.s32.totalorder %s15, 0
    %p124 = por %p122, %p123
    %p125 = scmp.le.s32.totalorder 1, %s9
    %p126 = scmp.lt.s32.totalorder %s9, 3
    %p127 = pnand %p125, %p126
    %p128 = pneg %p127
    // Predicated region
    $region9: #{discriminator_forward.9} parent=5 // pred_check
      _
    $region10: #{discriminator_forward.9} parent=5 // pred_check_branch
      %130 = sbr.rel (%p127) target = $region12
    $region11: #{discriminator_forward.9} parent=5 // pred_region
      %s131 = ssub.s32 %s9, 1
      // Predicated region
      $region13: #{discriminator_forward.9} parent=11 // pred_check
        %p132 = pneg %p68
      $region14: #{discriminator_forward.9} parent=11 // pred_check_branch
        %134 = sbr.rel (%p132) target = $region16
      $region15: #{discriminator_forward.9} parent=11 // pred_region
        _
      $region16: #{discriminator_forward.9} parent=11 // pred_fallthru
        _
      // Predicated region
      $region17: #{discriminator_forward.9} parent=11 // pred_check
        %p135 = pneg %p89
      $region18: #{discriminator_forward.9} parent=11 // pred_check_branch
        %137 = sbr.rel (%p135) target = $region20
      $region19: #{discriminator_forward.9} parent=11 // pred_region
        _
      $region20: #{discriminator_forward.9} parent=11 // pred_fallthru
        _
    $region12: #{discriminator_forward.9} parent=5 // pred_fallthru
      _
    %p138 = scmp.lt.s32.totalorder %s9, 2
    // Predicated region
    $region21: #{discriminator_forward.9} parent=5 // pred_check
      %p139 = pneg %p138
    $region22: #{discriminator_forward.9} parent=5 // pred_check_branch
      %141 = sbr.rel (%p139) target = $region24
    $region23: #{discriminator_forward.9} parent=5 // pred_region
      // Predicated region
      $region25: #{discriminator_forward.9} parent=23 // pred_check
        %p142 = pneg %p41
      $region26: #{discriminator_forward.9} parent=23 // pred_check_branch
        %144 = sbr.rel (%p142) target = $region28
      $region27: #{discriminator_forward.9} parent=23 // pred_region
        %p145 = scmp.lt.s32.totalorder %s16, 1
        %s146 = scalar_select %p145, %s16, 1
        %s147 = smul.addr %s146, 4
        %s148 = smul.addr %s147, 2
        %s149 = scalar_lea.vmem %s0, %s148
      $region28: #{discriminator_forward.9} parent=23 // pred_fallthru
        _
    $region24: #{discriminator_forward.9} parent=5 // pred_fallthru
      _
    %p150 = scmp.le.s32.totalorder 1, %s9
    %p151 = scmp.lt.s32.totalorder %s9, 3
    %p152 = pnand %p150, %p151
    %p153 = pneg %p152
    // Predicated region
    $region29: #{discriminator_forward.9} parent=5 // pred_check
      _
    $region30: #{discriminator_forward.9} parent=5 // pred_check_branch
      %155 = sbr.rel (%p152) target = $region32
    $region31: #{discriminator_forward.9} parent=5 // pred_region
      %s156 = ssub.s32 %s9, 1
      %p157 = scmp.lt.s32.totalorder %s18, 1
      %s158 = scalar_select %p157, %s18, 1
      %s159 = smul.addr %s158, 4
      %s160 = smul.addr %s159, 2
      %s161 = scalar_lea.vmem %s0, %s160
      %p162 = pneg %p47
      %p163 = pneg %p44
      %p164 = pneg %p68
      %p165 = pneg %p65
      %p166 = pneg %p89
      %p167 = pneg %p86
      %p168 = pneg %p117
      %p169 = pneg %p114
      %p170 = scmp.lt.s32.totalorder %s18, 1
      %s171 = scalar_select %p170, %s18, 1
      %p172 = scmp.lt.s32.totalorder %s19, 0
      %s173 = scalar_select %p172, %s19, 0
      %s174 = sadd.s32 %s173, %s171
      %s175 = scalar_lea.vmem %s3, %s174
      %p176 = scmp.lt.s32.totalorder %s18, 1
      %s177 = scalar_select %p176, %s18, 1
      %s178 = smul.addr %s177, 4
      %s179 = smul.addr %s178, 2
      %s180 = scalar_lea.vmem %s0, %s179
      %p181 = scmp.lt.s32.totalorder %s18, 1
      %s182 = scalar_select %p181, %s18, 1
      %p183 = scmp.lt.s32.totalorder %s19, 0
      %s184 = scalar_select %p183, %s19, 0
      %s185 = sadd.s32 %s184, %s182
      %s186 = scalar_lea.vmem %s3, %s185
      %s187 = smul.addr %s19, 2
      %s188 = scalar_lea.vmem %s180, %s187
      %v189 = vld [vmem:[%s188] sm:$0x1]
      %v190 = vld [vmem:[%s188] sm:$0x2]
      %s191 = sadd.s32 %s19, 1
      %s192 = smul.addr %s191, 2
      %s193 = scalar_lea.vmem %s180, %s192
      %v194 = vld [vmem:[%s193] sm:$0x1]
      %v195 = vld [vmem:[%s193] sm:$0x2]
      %s196 = sadd.s32 %s19, 2
      %s197 = smul.addr %s196, 2
      %s198 = scalar_lea.vmem %s180, %s197
      %v199 = vld [vmem:[%s198] sm:$0x1]
      %v200 = vld [vmem:[%s198] sm:$0x2]
      %s201 = sadd.s32 %s19, 3
      %s202 = smul.addr %s201, 2
      %s203 = scalar_lea.vmem %s180, %s202
      %v204 = vld [vmem:[%s203] sm:$0x1]
      %v205 = vld [vmem:[%s203] sm:$0x2]
      %207 = vst [vmem:[#allocation1] ss:$4 sm:$0xff] %v189
      %v208 = vld.sshfl [vmem:[#allocation1] sm:$0xff pattern:$0x73625140]
      %v209 = vshrl.u32 %v208, 16
      %211 = vrot.lane.b32.xlu0 %v209, 64
      %v212 = vpop.permute.xlu0 %211
      %214 = vst [vmem:[#allocation1] ss:$4 sm:$0xff] %v190
      %v215 = vld.sshfl [vmem:[#allocation1] sm:$0xff pattern:$0x73625140]
      %v217 = vrot.slane %v215, 1
      %218 = vst [vmem:[#allocation1] ss:$4 sm:$0xff] %v190
      %v219 = vld.sshfl [vmem:[#allocation1] sm:$0xff pattern:$0x73625140]
      %v220 = vshrl.u32 %v219, 16
      %v222 = vrot.slane %v220, 1
      %223 = vrot.lane.b32.xlu0 %v222, 64
      %v224 = vpop.permute.xlu0 %223
      %226 = vst [vmem:[#allocation1] ss:$4 sm:$0xff] %v194
      %v227 = vld.sshfl [vmem:[#allocation1] sm:$0xff pattern:$0x73625140]
      %v228 = vshrl.u32 %v227, 16
      %230 = vrot.lane.b32.xlu0 %v228, 64
      %v231 = vpop.permute.xlu0 %230
      %233 = vst [vmem:[#allocation1] ss:$4 sm:$0xff] %v195
      %v234 = vld.sshfl [vmem:[#allocation1] sm:$0xff pattern:$0x73625140]
      %v236 = vrot.slane %v234, 1
      %237 = vst [vmem:[#allocation1] ss:$4 sm:$0xff] %v195
      %v238 = vld.sshfl [vmem:[#allocation1] sm:$0xff pattern:$0x73625140]
      %v239 = vshrl.u32 %v238, 16
      %v241 = vrot.slane %v239, 1
      %242 = vrot.lane.b32.xlu0 %v241, 64
      %v243 = vpop.permute.xlu0 %242
      %245 = vst [vmem:[#allocation1] ss:$4 sm:$0xff] %v199
      %v246 = vld.sshfl [vmem:[#allocation1] sm:$0xff pattern:$0x73625140]
      %v247 = vshrl.u32 %v246, 16
      %249 = vrot.lane.b32.xlu0 %v247, 64
      %v250 = vpop.permute.xlu0 %249
      %252 = vst [vmem:[#allocation1] ss:$4 sm:$0xff] %v200
      %v253 = vld.sshfl [vmem:[#allocation1] sm:$0xff pattern:$0x73625140]
      %v255 = vrot.slane %v253, 1
      %256 = vst [vmem:[#allocation1] ss:$4 sm:$0xff] %v200
      %v257 = vld.sshfl [vmem:[#allocation1] sm:$0xff pattern:$0x73625140]
      %v258 = vshrl.u32 %v257, 16
      %v260 = vrot.slane %v258, 1
      %261 = vrot.lane.b32.xlu0 %v260, 64
      %v262 = vpop.permute.xlu0 %261
      %264 = vst [vmem:[#allocation1] ss:$4 sm:$0xff] %v204
      %v265 = vld.sshfl [vmem:[#allocation1] sm:$0xff pattern:$0x73625140]
      %v266 = vshrl.u32 %v265, 16
      %268 = vrot.lane.b32.xlu0 %v266, 64
      %v269 = vpop.permute.xlu0 %268
      %271 = vst [vmem:[#allocation1] ss:$4 sm:$0xff] %v205
      %v272 = vld.sshfl [vmem:[#allocation1] sm:$0xff pattern:$0x73625140]
      %v274 = vrot.slane %v272, 1
      %275 = vst [vmem:[#allocation1] ss:$4 sm:$0xff] %v205
      %v276 = vld.sshfl [vmem:[#allocation1] sm:$0xff pattern:$0x73625140]
      %v277 = vshrl.u32 %v276, 16
      %v279 = vrot.slane %v277, 1
      %280 = vrot.lane.b32.xlu0 %v279, 64
      %v281 = vpop.permute.xlu0 %280
      %vm282 = vcmask 523264
      %v284 = vsel %vm282, %v189, %v212
      %v288 = vsel %vm282, %v217, %v224
      %v291 = vsel %vm282, %v194, %v231
      %v295 = vsel %vm282, %v236, %v243
      %v298 = vsel %vm282, %v199, %v250
      %v302 = vsel %vm282, %v255, %v262
      %v305 = vsel %vm282, %v204, %v269
      %v309 = vsel %vm282, %v274, %v281
      %v311 = vld [vmem:[%s1] sm:$0xf]
      %v312 = vld [vmem:[%s1 + $0x4] sm:$0xf]
      %v313 = vld [vmem:[%s1 + $0x8] sm:$0xf]
      %v314 = vld [vmem:[%s1 + $0xc] sm:$0xf]
      %v315 = vld [vmem:[%s1 + $0x10] sm:$0xf]
      %v316 = vld [vmem:[%s1 + $0x14] sm:$0xf]
      %v317 = vld [vmem:[%s1 + $0x18] sm:$0xf]
      %v318 = vld [vmem:[%s1 + $0x1c] sm:$0xf]
      %v319 = vld [vmem:[%s1 + $0x20] sm:$0xf]
      %v320 = vld [vmem:[%s1 + $0x24] sm:$0xf]
      %v321 = vld [vmem:[%s1 + $0x28] sm:$0xf]
      %v322 = vld [vmem:[%s1 + $0x2c] sm:$0xf]
      %v323 = vld [vmem:[%s1 + $0x30] sm:$0xf]
      %v324 = vld [vmem:[%s1 + $0x34] sm:$0xf]
      %v325 = vld [vmem:[%s1 + $0x38] sm:$0xf]
      %v326 = vld [vmem:[%s1 + $0x3c] sm:$0xf]
      %v327 = vld [vmem:[%s1 + $0x40] sm:$0xf]
      %v328 = vld [vmem:[%s1 + $0x44] sm:$0xf]
      %v329 = vld [vmem:[%s1 + $0x48] sm:$0xf]
      %v330 = vld [vmem:[%s1 + $0x4c] sm:$0xf]
      %v331 = vld [vmem:[%s1 + $0x50] sm:$0xf]
      %v332 = vld [vmem:[%s1 + $0x54] sm:$0xf]
      %v333 = vld [vmem:[%s1 + $0x58] sm:$0xf]
      %v334 = vld [vmem:[%s1 + $0x5c] sm:$0xf]
      %v335 = vld [vmem:[%s1 + $0x60] sm:$0xf]
      %v336 = vld [vmem:[%s1 + $0x64] sm:$0xf]
      %v337 = vld [vmem:[%s1 + $0x68] sm:$0xf]
      %v338 = vld [vmem:[%s1 + $0x6c] sm:$0xf]
      %v339 = vld [vmem:[%s1 + $0x70] sm:$0xf]
      %v340 = vld [vmem:[%s1 + $0x74] sm:$0xf]
      %v341 = vld [vmem:[%s1 + $0x78] sm:$0xf]
      %v342 = vld [vmem:[%s1 + $0x7c] sm:$0xf]
      %v343 = vld [vmem:[%s1 + $0x80] sm:$0xf]
      %v344 = vld [vmem:[%s1 + $0x84] sm:$0xf]
      %v345 = vld [vmem:[%s1 + $0x88] sm:$0xf]
      %v346 = vld [vmem:[%s1 + $0x8c] sm:$0xf]
      %v347 = vld [vmem:[%s1 + $0x90] sm:$0xf]
      %v348 = vld [vmem:[%s1 + $0x94] sm:$0xf]
      %v349 = vld [vmem:[%s1 + $0x98] sm:$0xf]
      %v350 = vld [vmem:[%s1 + $0x9c] sm:$0xf]
      %v351 = vld [vmem:[%s1 + $0xa0] sm:$0xf]
      %v352 = vld [vmem:[%s1 + $0xa4] sm:$0xf]
      %v353 = vld [vmem:[%s1 + $0xa8] sm:$0xf]
      %v354 = vld [vmem:[%s1 + $0xac] sm:$0xf]
      %v355 = vld [vmem:[%s1 + $0xb0] sm:$0xf]
      %v356 = vld [vmem:[%s1 + $0xb4] sm:$0xf]
      %v357 = vld [vmem:[%s1 + $0xb8] sm:$0xf]
      %v358 = vld [vmem:[%s1 + $0xbc] sm:$0xf]
      %v359 = vld [vmem:[%s1 + $0xc0] sm:$0xf]
      %v360 = vld [vmem:[%s1 + $0xc4] sm:$0xf]
      %v361 = vld [vmem:[%s1 + $0xc8] sm:$0xf]
      %v362 = vld [vmem:[%s1 + $0xcc] sm:$0xf]
      %v363 = vld [vmem:[%s1 + $0xd0] sm:$0xf]
      %v364 = vld [vmem:[%s1 + $0xd4] sm:$0xf]
      %v365 = vld [vmem:[%s1 + $0xd8] sm:$0xf]
      %v366 = vld [vmem:[%s1 + $0xdc] sm:$0xf]
      %v367 = vld [vmem:[%s1 + $0xe0] sm:$0xf]
      %v368 = vld [vmem:[%s1 + $0xe4] sm:$0xf]
      %v369 = vld [vmem:[%s1 + $0xe8] sm:$0xf]
      %v370 = vld [vmem:[%s1 + $0xec] sm:$0xf]
      %v371 = vld [vmem:[%s1 + $0xf0] sm:$0xf]
      %v372 = vld [vmem:[%s1 + $0xf4] sm:$0xf]
      %v373 = vld [vmem:[%s1 + $0xf8] sm:$0xf]
      %v374 = vld [vmem:[%s1 + $0xfc] sm:$0xf]
      %v375 = vld [vmem:[%s1 + $0x100] sm:$0xf]
      %v376 = vld [vmem:[%s1 + $0x104] sm:$0xf]
      %v377 = vld [vmem:[%s1 + $0x108] sm:$0xf]
      %v378 = vld [vmem:[%s1 + $0x10c] sm:$0xf]
      %v379 = vld [vmem:[%s1 + $0x110] sm:$0xf]
      %v380 = vld [vmem:[%s1 + $0x114] sm:$0xf]
      %v381 = vld [vmem:[%s1 + $0x118] sm:$0xf]
      %v382 = vld [vmem:[%s1 + $0x11c] sm:$0xf]
      %v383 = vld [vmem:[%s1 + $0x120] sm:$0xf]
      %v384 = vld [vmem:[%s1 + $0x124] sm:$0xf]
      %v385 = vld [vmem:[%s1 + $0x128] sm:$0xf]
      %v386 = vld [vmem:[%s1 + $0x12c] sm:$0xf]
      %v387 = vld [vmem:[%s1 + $0x130] sm:$0xf]
      %v388 = vld [vmem:[%s1 + $0x134] sm:$0xf]
      %v389 = vld [vmem:[%s1 + $0x138] sm:$0xf]
      %v390 = vld [vmem:[%s1 + $0x13c] sm:$0xf]
      %v391 = vld [vmem:[%s1 + $0x140] sm:$0xf]
      %v392 = vld [vmem:[%s1 + $0x144] sm:$0xf]
      %v393 = vld [vmem:[%s1 + $0x148] sm:$0xf]
      %v394 = vld [vmem:[%s1 + $0x14c] sm:$0xf]
      %v395 = vld [vmem:[%s1 + $0x150] sm:$0xf]
      %v396 = vld [vmem:[%s1 + $0x154] sm:$0xf]
      %v397 = vld [vmem:[%s1 + $0x158] sm:$0xf]
      %v398 = vld [vmem:[%s1 + $0x15c] sm:$0xf]
      %v399 = vld [vmem:[%s1 + $0x160] sm:$0xf]
      %v400 = vld [vmem:[%s1 + $0x164] sm:$0xf]
      %v401 = vld [vmem:[%s1 + $0x168] sm:$0xf]
      %v402 = vld [vmem:[%s1 + $0x16c] sm:$0xf]
      %v403 = vld [vmem:[%s1 + $0x170] sm:$0xf]
      %v404 = vld [vmem:[%s1 + $0x174] sm:$0xf]
      %v405 = vld [vmem:[%s1 + $0x178] sm:$0xf]
      %v406 = vld [vmem:[%s1 + $0x17c] sm:$0xf]
      %v407 = vld [vmem:[%s1 + $0x180] sm:$0xf]
      %v408 = vld [vmem:[%s1 + $0x184] sm:$0xf]
      %v409 = vld [vmem:[%s1 + $0x188] sm:$0xf]
      %v410 = vld [vmem:[%s1 + $0x18c] sm:$0xf]
      %v411 = vld [vmem:[%s1 + $0x190] sm:$0xf]
      %v412 = vld [vmem:[%s1 + $0x194] sm:$0xf]
      %v413 = vld [vmem:[%s1 + $0x198] sm:$0xf]
      %v414 = vld [vmem:[%s1 + $0x19c] sm:$0xf]
      %v415 = vld [vmem:[%s1 + $0x1a0] sm:$0xf]
      %v416 = vld [vmem:[%s1 + $0x1a4] sm:$0xf]
      %v417 = vld [vmem:[%s1 + $0x1a8] sm:$0xf]
      %v418 = vld [vmem:[%s1 + $0x1ac] sm:$0xf]
      %v419 = vld [vmem:[%s1 + $0x1b0] sm:$0xf]
      %v420 = vld [vmem:[%s1 + $0x1b4] sm:$0xf]
      %v421 = vld [vmem:[%s1 + $0x1b8] sm:$0xf]
      %v422 = vld [vmem:[%s1 + $0x1bc] sm:$0xf]
      %v423 = vld [vmem:[%s1 + $0x1c0] sm:$0xf]
      %v424 = vld [vmem:[%s1 + $0x1c4] sm:$0xf]
      %v425 = vld [vmem:[%s1 + $0x1c8] sm:$0xf]
      %v426 = vld [vmem:[%s1 + $0x1cc] sm:$0xf]
      %v427 = vld [vmem:[%s1 + $0x1d0] sm:$0xf]
      %v428 = vld [vmem:[%s1 + $0x1d4] sm:$0xf]
      %v429 = vld [vmem:[%s1 + $0x1d8] sm:$0xf]
      %v430 = vld [vmem:[%s1 + $0x1dc] sm:$0xf]
      %v431 = vld [vmem:[%s1 + $0x1e0] sm:$0xf]
      %v432 = vld [vmem:[%s1 + $0x1e4] sm:$0xf]
      %v433 = vld [vmem:[%s1 + $0x1e8] sm:$0xf]
      %v434 = vld [vmem:[%s1 + $0x1ec] sm:$0xf]
      %v435 = vld [vmem:[%s1 + $0x1f0] sm:$0xf]
      %v436 = vld [vmem:[%s1 + $0x1f4] sm:$0xf]
      %v437 = vld [vmem:[%s1 + $0x1f8] sm:$0xf]
      %v438 = vld [vmem:[%s1 + $0x1fc] sm:$0xf]
      %v439 = vld [vmem:[%s2] sm:$0x1]
      %v568 = vunpack.c.l.b16 %v311
      %v569 = vunpack.c.l.b16 %v312
      %v570 = vunpack.c.l.b16 %v313
      %v571 = vunpack.c.l.b16 %v314
      %v572 = vunpack.c.l.b16 %v315
      %v573 = vunpack.c.l.b16 %v316
      %v574 = vunpack.c.l.b16 %v317
      %v575 = vunpack.c.l.b16 %v318
      %v576 = vunpack.c.l.b16 %v319
      %v577 = vunpack.c.l.b16 %v320
      %v578 = vunpack.c.l.b16 %v321
      %v579 = vunpack.c.l.b16 %v322
      %v580 = vunpack.c.l.b16 %v323
      %v581 = vunpack.c.l.b16 %v324
      %v582 = vunpack.c.l.b16 %v325
      %v583 = vunpack.c.l.b16 %v326
      %v584 = vunpack.c.l.b16 %v327
      %v585 = vunpack.c.l.b16 %v328
      %v586 = vunpack.c.l.b16 %v329
      %v587 = vunpack.c.l.b16 %v330
      %v588 = vunpack.c.l.b16 %v331
      %v589 = vunpack.c.l.b16 %v332
      %v590 = vunpack.c.l.b16 %v333
      %v591 = vunpack.c.l.b16 %v334
      %v592 = vunpack.c.l.b16 %v335
      %v593 = vunpack.c.l.b16 %v336
      %v594 = vunpack.c.l.b16 %v337
      %v595 = vunpack.c.l.b16 %v338
      %v596 = vunpack.c.l.b16 %v339
      %v597 = vunpack.c.l.b16 %v340
      %v598 = vunpack.c.l.b16 %v341
      %v599 = vunpack.c.l.b16 %v342
      %v600 = vunpack.c.l.b16 %v343
      %v601 = vunpack.c.l.b16 %v344
      %v602 = vunpack.c.l.b16 %v345
      %v603 = vunpack.c.l.b16 %v346
      %v604 = vunpack.c.l.b16 %v347
      %v605 = vunpack.c.l.b16 %v348
      %v606 = vunpack.c.l.b16 %v349
      %v607 = vunpack.c.l.b16 %v350
      %v608 = vunpack.c.l.b16 %v351
      %v609 = vunpack.c.l.b16 %v352
      %v610 = vunpack.c.l.b16 %v353
      %v611 = vunpack.c.l.b16 %v354
      %v612 = vunpack.c.l.b16 %v355
      %v613 = vunpack.c.l.b16 %v356
      %v614 = vunpack.c.l.b16 %v357
      %v615 = vunpack.c.l.b16 %v358
      %v616 = vunpack.c.l.b16 %v359
      %v617 = vunpack.c.l.b16 %v360
      %v618 = vunpack.c.l.b16 %v361
      %v619 = vunpack.c.l.b16 %v362
      %v620 = vunpack.c.l.b16 %v363
      %v621 = vunpack.c.l.b16 %v364
      %v622 = vunpack.c.l.b16 %v365
      %v623 = vunpack.c.l.b16 %v366
      %v624 = vunpack.c.l.b16 %v367
      %v625 = vunpack.c.l.b16 %v368
      %v626 = vunpack.c.l.b16 %v369
      %v627 = vunpack.c.l.b16 %v370
      %v628 = vunpack.c.l.b16 %v371
      %v629 = vunpack.c.l.b16 %v372
      %v630 = vunpack.c.l.b16 %v373
      %v631 = vunpack.c.l.b16 %v374
      %v632 = vunpack.c.l.b16 %v375
      %v633 = vunpack.c.l.b16 %v376
      %v634 = vunpack.c.l.b16 %v377
      %v635 = vunpack.c.l.b16 %v378
      %v636 = vunpack.c.l.b16 %v379
      %v637 = vunpack.c.l.b16 %v380
      %v638 = vunpack.c.l.b16 %v381
      %v639 = vunpack.c.l.b16 %v382
      %v640 = vunpack.c.l.b16 %v383
      %v641 = vunpack.c.l.b16 %v384
      %v642 = vunpack.c.l.b16 %v385
      %v643 = vunpack.c.l.b16 %v386
      %v644 = vunpack.c.l.b16 %v387
      %v645 = vunpack.c.l.b16 %v388
      %v646 = vunpack.c.l.b16 %v389
      %v647 = vunpack.c.l.b16 %v390
      %v648 = vunpack.c.l.b16 %v391
      %v649 = vunpack.c.l.b16 %v392
      %v650 = vunpack.c.l.b16 %v393
      %v651 = vunpack.c.l.b16 %v394
      %v652 = vunpack.c.l.b16 %v395
      %v653 = vunpack.c.l.b16 %v396
      %v654 = vunpack.c.l.b16 %v397
      %v655 = vunpack.c.l.b16 %v398
      %v656 = vunpack.c.l.b16 %v399
      %v657 = vunpack.c.l.b16 %v400
      %v658 = vunpack.c.l.b16 %v401
      %v659 = vunpack.c.l.b16 %v402
      %v660 = vunpack.c.l.b16 %v403
      %v661 = vunpack.c.l.b16 %v404
      %v662 = vunpack.c.l.b16 %v405
      %v663 = vunpack.c.l.b16 %v406
      %v664 = vunpack.c.l.b16 %v407
      %v665 = vunpack.c.l.b16 %v408
      %v666 = vunpack.c.l.b16 %v409
      %v667 = vunpack.c.l.b16 %v410
      %v668 = vunpack.c.l.b16 %v411
      %v669 = vunpack.c.l.b16 %v412
      %v670 = vunpack.c.l.b16 %v413
      %v671 = vunpack.c.l.b16 %v414
      %v672 = vunpack.c.l.b16 %v415
      %v673 = vunpack.c.l.b16 %v416
      %v674 = vunpack.c.l.b16 %v417
      %v675 = vunpack.c.l.b16 %v418
      %v676 = vunpack.c.l.b16 %v419
      %v677 = vunpack.c.l.b16 %v420
      %v678 = vunpack.c.l.b16 %v421
      %v679 = vunpack.c.l.b16 %v422
      %v680 = vunpack.c.l.b16 %v423
      %v681 = vunpack.c.l.b16 %v424
      %v682 = vunpack.c.l.b16 %v425
      %v683 = vunpack.c.l.b16 %v426
      %v684 = vunpack.c.l.b16 %v427
      %v685 = vunpack.c.l.b16 %v428
      %v686 = vunpack.c.l.b16 %v429
      %v687 = vunpack.c.l.b16 %v430
      %v688 = vunpack.c.l.b16 %v431
      %v689 = vunpack.c.l.b16 %v432
      %v690 = vunpack.c.l.b16 %v433
      %v691 = vunpack.c.l.b16 %v434
      %v692 = vunpack.c.l.b16 %v435
      %v693 = vunpack.c.l.b16 %v436
      %v694 = vunpack.c.l.b16 %v437
      %v695 = vunpack.c.l.b16 %v438
      %v696 = vpack.c.b16 %v569, %v568
      %v697 = vpack.c.b16 %v571, %v570
      %v698 = vpack.c.b16 %v573, %v572
      %v699 = vpack.c.b16 %v575, %v574
      %v700 = vpack.c.b16 %v577, %v576
      %v701 = vpack.c.b16 %v579, %v578
      %v702 = vpack.c.b16 %v581, %v580
      %v703 = vpack.c.b16 %v583, %v582
      %v704 = vpack.c.b16 %v585, %v584
      %v705 = vpack.c.b16 %v587, %v586
      %v706 = vpack.c.b16 %v589, %v588
      %v707 = vpack.c.b16 %v591, %v590
      %v708 = vpack.c.b16 %v593, %v592
      %v709 = vpack.c.b16 %v595, %v594
      %v710 = vpack.c.b16 %v597, %v596
      %v711 = vpack.c.b16 %v599, %v598
      %v712 = vpack.c.b16 %v601, %v600
      %v713 = vpack.c.b16 %v603, %v602
      %v714 = vpack.c.b16 %v605, %v604
      %v715 = vpack.c.b16 %v607, %v606
      %v716 = vpack.c.b16 %v609, %v608
      %v717 = vpack.c.b16 %v611, %v610
      %v718 = vpack.c.b16 %v613, %v612
      %v719 = vpack.c.b16 %v615, %v614
      %v720 = vpack.c.b16 %v617, %v616
      %v721 = vpack.c.b16 %v619, %v618
      %v722 = vpack.c.b16 %v621, %v620
      %v723 = vpack.c.b16 %v623, %v622
      %v724 = vpack.c.b16 %v625, %v624
      %v725 = vpack.c.b16 %v627, %v626
      %v726 = vpack.c.b16 %v629, %v628
      %v727 = vpack.c.b16 %v631, %v630
      %v728 = vpack.c.b16 %v633, %v632
      %v729 = vpack.c.b16 %v635, %v634
      %v730 = vpack.c.b16 %v637, %v636
      %v731 = vpack.c.b16 %v639, %v638
      %v732 = vpack.c.b16 %v641, %v640
      %v733 = vpack.c.b16 %v643, %v642
      %v734 = vpack.c.b16 %v645, %v644
      %v735 = vpack.c.b16 %v647, %v646
      %v736 = vpack.c.b16 %v649, %v648
      %v737 = vpack.c.b16 %v651, %v650
      %v738 = vpack.c.b16 %v653, %v652
      %v739 = vpack.c.b16 %v655, %v654
      %v740 = vpack.c.b16 %v657, %v656
      %v741 = vpack.c.b16 %v659, %v658
      %v742 = vpack.c.b16 %v661, %v660
      %v743 = vpack.c.b16 %v663, %v662
      %v744 = vpack.c.b16 %v665, %v664
      %v745 = vpack.c.b16 %v667, %v666
      %v746 = vpack.c.b16 %v669, %v668
      %v747 = vpack.c.b16 %v671, %v670
      %v748 = vpack.c.b16 %v673, %v672
      %v749 = vpack.c.b16 %v675, %v674
      %v750 = vpack.c.b16 %v677, %v676
      %v751 = vpack.c.b16 %v679, %v678
      %v752 = vpack.c.b16 %v681, %v680
      %v753 = vpack.c.b16 %v683, %v682
      %v754 = vpack.c.b16 %v685, %v684
      %v755 = vpack.c.b16 %v687, %v686
      %v756 = vpack.c.b16 %v689, %v688
      %v757 = vpack.c.b16 %v691, %v690
      %v758 = vpack.c.b16 %v693, %v692
      %v759 = vpack.c.b16 %v695, %v694
      %824 = vmatpush.bf16.msra.mxu0 %v703
      %825 = vmatpush.bf16.msra.mxu0 %v702
      %826 = vmatpush.bf16.msra.mxu0 %v701
      %827 = vmatpush.bf16.msra.mxu0 %v700
      %828 = vmatpush.bf16.msra.mxu0 %v699
      %829 = vmatpush.bf16.msra.mxu0 %v698
      %830 = vmatpush.bf16.msra.mxu0 %v697
      %831 = vmatpush.bf16.msra.mxu0 %v696
      %832 = vmatmul.bf16.gmra.mxu0 %v284
      %v833 = vpop.f32.mrf.mxu0
      %v834 = vadd.f32 %v439, %v833
      %v835 = vpop.f32.mrf.mxu0
      %836 = vdwg.mxu0
      %837 = vmatpush.bf16.msra.mxu0 %v711
      %838 = vmatpush.bf16.msra.mxu0 %v710
      %839 = vmatpush.bf16.msra.mxu0 %v709
      %840 = vmatpush.bf16.msra.mxu0 %v708
      %841 = vmatpush.bf16.msra.mxu0 %v707
      %842 = vmatpush.bf16.msra.mxu0 %v706
      %843 = vmatpush.bf16.msra.mxu0 %v705
      %844 = vmatpush.bf16.msra.mxu0 %v704
      %845 = vmatmul.bf16.gmra.mxu0 %v288
      %v846 = vpop.f32.mrf.mxu0
      %v847 = vadd.f32 %v834, %v846
      %v848 = vpop.f32.mrf.mxu0
      %849 = vdwg.mxu0
      %850 = vmatpush.bf16.msra.mxu0 %v719
      %851 = vmatpush.bf16.msra.mxu0 %v718
      %852 = vmatpush.bf16.msra.mxu0 %v717
      %853 = vmatpush.bf16.msra.mxu0 %v716
      %854 = vmatpush.bf16.msra.mxu0 %v715
      %855 = vmatpush.bf16.msra.mxu0 %v714
      %856 = vmatpush.bf16.msra.mxu0 %v713
      %857 = vmatpush.bf16.msra.mxu0 %v712
      %858 = vmatmul.bf16.gmra.mxu0 %v291
      %v859 = vpop.f32.mrf.mxu0
      %v860 = vadd.f32 %v847, %v859
      %v861 = vpop.f32.mrf.mxu0
      %862 = vdwg.mxu0
      %863 = vmatpush.bf16.msra.mxu0 %v727
      %864 = vmatpush.bf16.msra.mxu0 %v726
      %865 = vmatpush.bf16.msra.mxu0 %v725
      %866 = vmatpush.bf16.msra.mxu0 %v724
      %867 = vmatpush.bf16.msra.mxu0 %v723
      %868 = vmatpush.bf16.msra.mxu0 %v722
      %869 = vmatpush.bf16.msra.mxu0 %v721
      %870 = vmatpush.bf16.msra.mxu0 %v720
      %871 = vmatmul.bf16.gmra.mxu0 %v295
      %v872 = vpop.f32.mrf.mxu0
      %v873 = vadd.f32 %v860, %v872
      %v874 = vpop.f32.mrf.mxu0
      %875 = vdwg.mxu0
      %876 = vmatpush.bf16.msra.mxu0 %v735
      %877 = vmatpush.bf16.msra.mxu0 %v734
      %878 = vmatpush.bf16.msra.mxu0 %v733
      %879 = vmatpush.bf16.msra.mxu0 %v732
      %880 = vmatpush.bf16.msra.mxu0 %v731
      %881 = vmatpush.bf16.msra.mxu0 %v730
      %882 = vmatpush.bf16.msra.mxu0 %v729
      %883 = vmatpush.bf16.msra.mxu0 %v728
      %884 = vmatmul.bf16.gmra.mxu0 %v298
      %v885 = vpop.f32.mrf.mxu0
      %v886 = vadd.f32 %v873, %v885
      %v887 = vpop.f32.mrf.mxu0
      %888 = vdwg.mxu0
      %889 = vmatpush.bf16.msra.mxu0 %v743
      %890 = vmatpush.bf16.msra.mxu0 %v742
      %891 = vmatpush.bf16.msra.mxu0 %v741
      %892 = vmatpush.bf16.msra.mxu0 %v740
      %893 = vmatpush.bf16.msra.mxu0 %v739
      %894 = vmatpush.bf16.msra.mxu0 %v738
      %895 = vmatpush.bf16.msra.mxu0 %v737
      %896 = vmatpush.bf16.msra.mxu0 %v736
      %897 = vmatmul.bf16.gmra.mxu0 %v302
      %v898 = vpop.f32.mrf.mxu0
      %v899 = vadd.f32 %v886, %v898
      %v900 = vpop.f32.mrf.mxu0
      %901 = vdwg.mxu0
      %902 = vmatpush.bf16.msra.mxu0 %v751
      %903 = vmatpush.bf16.msra.mxu0 %v750
      %904 = vmatpush.bf16.msra.mxu0 %v749
      %905 = vmatpush.bf16.msra.mxu0 %v748
      %906 = vmatpush.bf16.msra.mxu0 %v747
      %907 = vmatpush.bf16.msra.mxu0 %v746
      %908 = vmatpush.bf16.msra.mxu0 %v745
      %909 = vmatpush.bf16.msra.mxu0 %v744
      %910 = vmatmul.bf16.gmra.mxu0 %v305
      %v911 = vpop.f32.mrf.mxu0
      %v912 = vadd.f32 %v899, %v911
      %v913 = vpop.f32.mrf.mxu0
      %914 = vdwg.mxu0
      %915 = vmatpush.bf16.msra.mxu0 %v759
      %916 = vmatpush.bf16.msra.mxu0 %v758
      %917 = vmatpush.bf16.msra.mxu0 %v757
      %918 = vmatpush.bf16.msra.mxu0 %v756
      %919 = vmatpush.bf16.msra.mxu0 %v755
      %920 = vmatpush.bf16.msra.mxu0 %v754
      %921 = vmatpush.bf16.msra.mxu0 %v753
      %922 = vmatpush.bf16.msra.mxu0 %v752
      %923 = vmatmul.bf16.gmra.mxu0 %v309
      %v924 = vpop.f32.mrf.mxu0
      %v925 = vadd.f32 %v912, %v924
      %v926 = vpop.f32.mrf.mxu0
      %927 = vdwg.mxu0
      %928 = vst [vmem:[%s186] sm:$0x1] %v925
      %p929 = scmp.lt.s32.totalorder %s18, 1
      %s930 = scalar_select %p929, %s18, 1
      %p931 = scmp.lt.s32.totalorder %s19, 0
      %s932 = scalar_select %p931, %s19, 0
      %s933 = sadd.s32 %s932, %s930
      %s934 = scalar_lea.vmem %s3, %s933
      // Predicated region
      $region33: #{discriminator_forward.9} parent=31 // pred_check
        %p935 = pneg %p114
      $region34: #{discriminator_forward.9} parent=31 // pred_check_branch
        %937 = sbr.rel (%p935) target = $region36
      $region35: #{discriminator_forward.9} parent=31 // pred_region
        _
      $region36: #{discriminator_forward.9} parent=31 // pred_fallthru
        _
    $region32: #{discriminator_forward.9} parent=5 // pred_fallthru
      _
    %p938 = scmp.le.s32.totalorder 2, %s9
    // Predicated region
    $region37: #{discriminator_forward.9} parent=5 // pred_check
      %p939 = pneg %p938
    $region38: #{discriminator_forward.9} parent=5 // pred_check_branch
      %941 = sbr.rel (%p939) target = $region40
    $region39: #{discriminator_forward.9} parent=5 // pred_region
      %s942 = ssub.s32 %s9, 2
      // Predicated region
      $region41: #{discriminator_forward.9} parent=39 // pred_check
        %p943 = pneg %p120
      $region42: #{discriminator_forward.9} parent=39 // pred_check_branch
        %945 = sbr.rel (%p943) target = $region44
      $region43: #{discriminator_forward.9} parent=39 // pred_region
        %p946 = scmp.lt.s32.totalorder %s20, 1
        %s947 = scalar_select %p946, %s20, 1
        %p948 = scmp.lt.s32.totalorder %s21, 0
        %s949 = scalar_select %p948, %s21, 0
        %s950 = sadd.s32 %s949, %s947
        %s951 = scalar_lea.vmem %s3, %s950
      $region44: #{discriminator_forward.9} parent=39 // pred_fallthru
        _
    $region40: #{discriminator_forward.9} parent=5 // pred_fallthru
      _
  $region6: #{discriminator_forward.9} parent=0 // loop_footer
    %s13 = sadd.s32 1, %s9
  $region7: #{discriminator_forward.9} parent=0 // loop_footer_branch
    %8 = sbr.rel target = $region3
  $region8: #{discriminator_forward.9} parent=0 // loop_exit
    _

</llo_original>
